<compile_context>
chip_gen: v5e
topology: v5e:2x2
jax: 0.10.0
libtpu: 0.0.40
codegen_flags: <defaults>
</compile_context>

<pallas_src>
import jax
import jax.numpy as jnp
from jax.experimental import pallas as pl
from jax.experimental.pallas import tpu as pltpu

# -------------------- model hyper-params --------------------------------------
PATCH = 7
IMG = 28
S = (IMG // PATCH) ** 2          # token_dim = 16
C = 14                           # channel_dim
HID = 32                         # hidden_dim
DEPTH = 2
NCLASS = 10
NPAD = 128                       # lane-dense padded logits width
LN_EPS = 1e-5
DTYPE = jnp.float32


# -------------------- in-kernel math helpers -----------------------------------
def _gelu(x):
    # exact (erf-based) GELU == torch.nn.GELU() default
    return 0.5 * x * (1.0 + jax.lax.erf(x * (1.0 / jnp.sqrt(2.0).astype(x.dtype))))


def _layer_norm(x, g, b):
    mu = jnp.mean(x, axis=-1, keepdims=True)
    var = jnp.mean(jnp.square(x - mu), axis=-1, keepdims=True)
    return (x - mu) * jax.lax.rsqrt(var + LN_EPS) * g + b


# -------------------- the single fused Pallas kernel ----------------------------
def fused_mixer_kernel(*refs):
    # refs layout:
    #   [0]               patches2d block  (TB*S, P)
    #   [1:3]             conv_w (P,C), conv_b (1,C)
    #   [3:3+10*DEPTH]    per layer: ln_g(1,C), ln_b(1,C), w1T(H,S), b1(H,1),
    #                                w2T(S,H), b2(S,1), w3(C,H), b3(1,H), w4(H,C), b4(1,C)
    #   [-5:-1]           norm_g(1,C), norm_b(1,C), fc_w_pad(C,128), fc_b_pad(1,128)
    #   [-1]              out block (TB, 128)
    patch_ref = refs[0]
    cw_ref, cb_ref = refs[1], refs[2]
    layer_refs = refs[3:3 + 10 * DEPTH]
    ng_ref, nb_ref, fcw_ref, fcb_ref, out_ref = refs[3 + 10 * DEPTH:]

    tb = out_ref.shape[0]

    # ---- patch embedding: big-M 2D matmul  (TB*S, P) @ (P, C) ----
    x2d = (jnp.dot(patch_ref[...], cw_ref[...], preferred_element_type=jnp.float32)
           + cb_ref[...])                                          # (TB*S, C)

    for l in range(DEPTH):
        (g_ref, be_ref, w1t_ref, b1_ref, w2t_ref, b2_ref,
         w3_ref, b3_ref, w4_ref, b4_ref) = layer_refs[10 * l:10 * (l + 1)]
        g = g_ref[...]
        be = be_ref[...]

        # LayerNorm over channels (same params used twice per layer, like the module)
        y2d = _layer_norm(x2d, g, be)                              # (TB*S, C)
        y3 = y2d.reshape(tb, S, C)                                 # aligned leading split

        # ---- token mixing (mlp1), left-multiplied: no activation transpose ----
        #   h1T[b,h,c] = sum_s w1[s,h] * y[b,s,c]
        #   xtT[b,s,c] = sum_h w2[h,s] * h1T[b,h,c]   (== mlp1(y.T).T)
        w1t_b = jnp.broadcast_to(w1t_ref[...][None], (tb, HID, S))
        h1t = _gelu(jnp.einsum('bhs,bsc->bhc', w1t_b, y3,
                               preferred_element_type=jnp.float32) + b1_ref[...])
        w2t_b = jnp.broadcast_to(w2t_ref[...][None], (tb, S, HID))
        xtt = (jnp.einsum('bsh,bhc->bsc', w2t_b, h1t,
                          preferred_element_type=jnp.float32) + b2_ref[...])

        pre2d = (y3 + xtt).reshape(tb * S, C)
        xskip = _layer_norm(pre2d, g, be)                          # (TB*S, C)

        # ---- channel mixing (mpl2): flattened big-M 2D matmuls ----
        h2 = _gelu(jnp.dot(xskip, w3_ref[...], preferred_element_type=jnp.float32)
                   + b3_ref[...])
        xc = jnp.dot(h2, w4_ref[...], preferred_element_type=jnp.float32) + b4_ref[...]
        x2d = xskip + xc

    # ---- head: final LayerNorm, global token mean, lane-dense FC ----
    yh = _layer_norm(x2d, ng_ref[...], nb_ref[...])                # (TB*S, C)
    pooled = jnp.mean(yh.reshape(tb, S, C), axis=1)                # (TB, C)
    out_ref[...] = (jnp.dot(pooled, fcw_ref[...], preferred_element_type=jnp.float32)
                    + fcb_ref[...]).astype(out_ref.dtype)


# -------------------- host-side glue -------------------------------------------
def _round_up(x, m):
    return (x + m - 1) // m * m


def extract_patches(data):
    # data: (B, 1, 28, 28) NCHW -> (B, S, p*p) with (c, kh, kw) flattening order
    B = data.shape[0]
    x = data.reshape(B, 1, IMG // PATCH, PATCH, IMG // PATCH, PATCH)
    x = x.transpose(0, 2, 4, 1, 3, 5)
    return x.reshape(B, S, PATCH * PATCH)


def _kernel_params(params):
    # flatten params into the kernel's expected order; transpose the token-mixing
    # weights and pad the head to a lane-dense width (all static/host-side, tiny).
    flat = [params["conv_w"], params["conv_b"]]
    for lp in params["layers"]:
        flat += [lp["ln_g"], lp["ln_b"],
                 lp["w1"].T, lp["b1"].reshape(HID, 1),
                 lp["w2"].T, lp["b2"].reshape(S, 1),
                 lp["w3"], lp["b3"], lp["w4"], lp["b4"]]
    fc_w = jnp.zeros((C, NPAD), DTYPE).at[:, :NCLASS].set(params["fc_w"])
    fc_b = jnp.zeros((1, NPAD), DTYPE).at[:, :NCLASS].set(params["fc_b"])
    flat += [params["norm_g"], params["norm_b"], fc_w, fc_b]
    return flat


def mlp_mixer_forward(data, params, *, block_b=256):
    B = data.shape[0]
    P = PATCH * PATCH
    TB = min(block_b, _round_up(B, 8))          # batch tile, multiple of 8
    Bpad = _round_up(B, TB)

    patches = extract_patches(data.astype(DTYPE))
    if Bpad != B:
        patches = jnp.pad(patches, ((0, Bpad - B), (0, 0), (0, 0)))
    patches2d = patches.reshape(Bpad * S, P)    # rows grouped by sample

    flat = _kernel_params(params)
    in_specs = [pl.BlockSpec((TB * S, P), lambda i: (i, 0))]
    in_specs += [pl.BlockSpec(p.shape, lambda i: (0, 0)) for p in flat]

    out = pl.pallas_call(
        fused_mixer_kernel,
        out_shape=jax.ShapeDtypeStruct((Bpad, NPAD), DTYPE),
        grid=(Bpad // TB,),
        in_specs=in_specs,
        out_specs=pl.BlockSpec((TB, NPAD), lambda i: (i, 0)),
        compiler_params=pltpu.CompilerParams(
            dimension_semantics=("parallel",),          # shard batch blocks across TCs
            vmem_limit_bytes=32 * 1024 * 1024),
    )(patches2d, *flat)
    return out[:B, :NCLASS]


# -------------------- deterministic parameter init ------------------------------
def _uniform(key, shape, fan_in):
    bound = 1.0 / jnp.sqrt(jnp.asarray(fan_in, DTYPE))
    return jax.random.uniform(key, shape, DTYPE, -bound, bound)


def init_params(key):
    P = PATCH * PATCH
    keys = iter(jax.random.split(key, 8 + DEPTH * 8))
    conv_w = _uniform(next(keys), (C, 1, PATCH, PATCH), P).reshape(C, P).T   # (P, C)
    conv_b = _uniform(next(keys), (1, C), P)
    layers = []
    for _ in range(DEPTH):
        layers.append(dict(
            ln_g=jnp.ones((1, C), DTYPE), ln_b=jnp.zeros((1, C), DTYPE),
            w1=_uniform(next(keys), (S, HID), S),   b1=_uniform(next(keys), (1, HID), S),
            w2=_uniform(next(keys), (HID, S), HID), b2=_uniform(next(keys), (1, S), HID),
            w3=_uniform(next(keys), (C, HID), C),   b3=_uniform(next(keys), (1, HID), C),
            w4=_uniform(next(keys), (HID, C), HID), b4=_uniform(next(keys), (1, C), HID),
        ))
    return dict(conv_w=conv_w, conv_b=conv_b, layers=layers,
                norm_g=jnp.ones((1, C), DTYPE), norm_b=jnp.zeros((1, C), DTYPE),
                fc_w=_uniform(next(keys), (C, NCLASS), C),
                fc_b=_uniform(next(keys), (1, NCLASS), C))


# -------------------- pure-JAX reference (correctness check) --------------------
def reference_forward(data, params):
    x = extract_patches(data) @ params["conv_w"] + params["conv_b"]          # (B,S,C)
    for lp in params["layers"]:
        g, b = lp["ln_g"][0], lp["ln_b"][0]
        y = _layer_norm(x, g, b)
        yt = jnp.swapaxes(y, 1, 2)                                           # (B,C,S)
        xt = _gelu(yt @ lp["w1"] + lp["b1"][0]) @ lp["w2"] + lp["b2"][0]
        xskip = _layer_norm(jnp.swapaxes(yt + xt, 1, 2), g, b)
        xc = _gelu(xskip @ lp["w3"] + lp["b3"][0]) @ lp["w4"] + lp["b4"][0]
        x = xskip + xc
    x = _layer_norm(x, params["norm_g"][0], params["norm_b"][0])
    x = jnp.mean(x, axis=1)
    return x @ params["fc_w"] + params["fc_b"][0]


if __name__ == "__main__":
    key = jax.random.PRNGKey(0)
    pkey, dkey = jax.random.split(key)
    params = init_params(pkey)
    data = jax.random.normal(dkey, (2, 1, IMG, IMG), DTYPE)   # NCHW, like the PyTorch module

    fwd = jax.jit(lambda d: mlp_mixer_forward(d, params))
    out = jax.block_until_ready(fwd(data))
    ref = jax.block_until_ready(reference_forward(data, params))

    assert out.shape == (2, NCLASS)
    assert jnp.allclose(out, ref, rtol=1e-4, atol=1e-4), (out, ref)
    print("KERNEL_OK")
</pallas_src>

<mosaic_0001>
module attributes {stable_mosaic.version = 11 : i64} {
  func.func @fused_mixer_kernel(%arg0: i32, %arg1: memref<128x49xf32, #tpu.memory_space<vmem>>, %arg2: memref<49x14xf32, #tpu.memory_space<vmem>>, %arg3: memref<1x14xf32, #tpu.memory_space<vmem>>, %arg4: memref<1x14xf32, #tpu.memory_space<vmem>>, %arg5: memref<1x14xf32, #tpu.memory_space<vmem>>, %arg6: memref<32x16xf32, #tpu.memory_space<vmem>>, %arg7: memref<32x1xf32, #tpu.memory_space<vmem>>, %arg8: memref<16x32xf32, #tpu.memory_space<vmem>>, %arg9: memref<16x1xf32, #tpu.memory_space<vmem>>, %arg10: memref<14x32xf32, #tpu.memory_space<vmem>>, %arg11: memref<1x32xf32, #tpu.memory_space<vmem>>, %arg12: memref<32x14xf32, #tpu.memory_space<vmem>>, %arg13: memref<1x14xf32, #tpu.memory_space<vmem>>, %arg14: memref<1x14xf32, #tpu.memory_space<vmem>>, %arg15: memref<1x14xf32, #tpu.memory_space<vmem>>, %arg16: memref<32x16xf32, #tpu.memory_space<vmem>>, %arg17: memref<32x1xf32, #tpu.memory_space<vmem>>, %arg18: memref<16x32xf32, #tpu.memory_space<vmem>>, %arg19: memref<16x1xf32, #tpu.memory_space<vmem>>, %arg20: memref<14x32xf32, #tpu.memory_space<vmem>>, %arg21: memref<1x32xf32, #tpu.memory_space<vmem>>, %arg22: memref<32x14xf32, #tpu.memory_space<vmem>>, %arg23: memref<1x14xf32, #tpu.memory_space<vmem>>, %arg24: memref<1x14xf32, #tpu.memory_space<vmem>>, %arg25: memref<1x14xf32, #tpu.memory_space<vmem>>, %arg26: memref<14x128xf32, #tpu.memory_space<vmem>>, %arg27: memref<1x128xf32, #tpu.memory_space<vmem>>, %arg28: memref<8x128xf32, #tpu.memory_space<vmem>>) attributes {dimension_semantics = [#tpu.dimension_semantics<parallel>], iteration_bounds = array<i64: 1>, scalar_prefetch = 0 : i64, scratch_operands = 0 : i64, tpu.core_type = #tpu.core_type<tc>, window_params = [{transform_indices = @transform_0, window_bounds = array<i64: 128, 49>}, {pipeline_mode = #tpu.pipeline_mode<synchronous>, transform_indices = @transform_1, window_bounds = array<i64: 49, 14>}, {pipeline_mode = #tpu.pipeline_mode<synchronous>, transform_indices = @transform_2, window_bounds = array<i64: 1, 14>}, {pipeline_mode = #tpu.pipeline_mode<synchronous>, transform_indices = @transform_3, window_bounds = array<i64: 1, 14>}, {pipeline_mode = #tpu.pipeline_mode<synchronous>, transform_indices = @transform_4, window_bounds = array<i64: 1, 14>}, {pipeline_mode = #tpu.pipeline_mode<synchronous>, transform_indices = @transform_5, window_bounds = array<i64: 32, 16>}, {pipeline_mode = #tpu.pipeline_mode<synchronous>, transform_indices = @transform_6, window_bounds = array<i64: 32, 1>}, {pipeline_mode = #tpu.pipeline_mode<synchronous>, transform_indices = @transform_7, window_bounds = array<i64: 16, 32>}, {pipeline_mode = #tpu.pipeline_mode<synchronous>, transform_indices = @transform_8, window_bounds = array<i64: 16, 1>}, {pipeline_mode = #tpu.pipeline_mode<synchronous>, transform_indices = @transform_9, window_bounds = array<i64: 14, 32>}, {pipeline_mode = #tpu.pipeline_mode<synchronous>, transform_indices = @transform_10, window_bounds = array<i64: 1, 32>}, {pipeline_mode = #tpu.pipeline_mode<synchronous>, transform_indices = @transform_11, window_bounds = array<i64: 32, 14>}, {pipeline_mode = #tpu.pipeline_mode<synchronous>, transform_indices = @transform_12, window_bounds = array<i64: 1, 14>}, {pipeline_mode = #tpu.pipeline_mode<synchronous>, transform_indices = @transform_13, window_bounds = array<i64: 1, 14>}, {pipeline_mode = #tpu.pipeline_mode<synchronous>, transform_indices = @transform_14, window_bounds = array<i64: 1, 14>}, {pipeline_mode = #tpu.pipeline_mode<synchronous>, transform_indices = @transform_15, window_bounds = array<i64: 32, 16>}, {pipeline_mode = #tpu.pipeline_mode<synchronous>, transform_indices = @transform_16, window_bounds = array<i64: 32, 1>}, {pipeline_mode = #tpu.pipeline_mode<synchronous>, transform_indices = @transform_17, window_bounds = array<i64: 16, 32>}, {pipeline_mode = #tpu.pipeline_mode<synchronous>, transform_indices = @transform_18, window_bounds = array<i64: 16, 1>}, {pipeline_mode = #tpu.pipeline_mode<synchronous>, transform_indices = @transform_19, window_bounds = array<i64: 14, 32>}, {pipeline_mode = #tpu.pipeline_mode<synchronous>, transform_indices = @transform_20, window_bounds = array<i64: 1, 32>}, {pipeline_mode = #tpu.pipeline_mode<synchronous>, transform_indices = @transform_21, window_bounds = array<i64: 32, 14>}, {pipeline_mode = #tpu.pipeline_mode<synchronous>, transform_indices = @transform_22, window_bounds = array<i64: 1, 14>}, {pipeline_mode = #tpu.pipeline_mode<synchronous>, transform_indices = @transform_23, window_bounds = array<i64: 1, 14>}, {pipeline_mode = #tpu.pipeline_mode<synchronous>, transform_indices = @transform_24, window_bounds = array<i64: 1, 14>}, {pipeline_mode = #tpu.pipeline_mode<synchronous>, transform_indices = @transform_25, window_bounds = array<i64: 14, 128>}, {pipeline_mode = #tpu.pipeline_mode<synchronous>, transform_indices = @transform_26, window_bounds = array<i64: 1, 128>}, {transform_indices = @transform_27, window_bounds = array<i64: 8, 128>}]} {
    %c0 = arith.constant 0 : index
    %c0_0 = arith.constant 0 : index
    %0 = vector.load %arg1[%c0, %c0_0] : memref<128x49xf32, #tpu.memory_space<vmem>>, vector<128x49xf32>
    %c0_1 = arith.constant 0 : index
    %c0_2 = arith.constant 0 : index
    %1 = vector.load %arg2[%c0_1, %c0_2] : memref<49x14xf32, #tpu.memory_space<vmem>>, vector<49x14xf32>
    %cst = arith.constant dense<0.000000e+00> : vector<128x14xf32>
    %2 = tpu.matmul %0, %1, %cst {dimension_numbers = #tpu.dot_dimension_numbers<[1], [0], [0], [1], [0, 0, 1, 1], [], []>} : vector<128x49xf32>, vector<49x14xf32>, vector<128x14xf32> -> vector<128x14xf32>
    %c0_3 = arith.constant 0 : index
    %c0_4 = arith.constant 0 : index
    %3 = vector.load %arg3[%c0_3, %c0_4] : memref<1x14xf32, #tpu.memory_space<vmem>>, vector<1x14xf32>
    %4 = vector.broadcast %3 : vector<1x14xf32> to vector<128x14xf32>
    %5 = arith.addf %2, %4 : vector<128x14xf32>
    %c0_5 = arith.constant 0 : index
    %c0_6 = arith.constant 0 : index
    %6 = vector.load %arg4[%c0_5, %c0_6] : memref<1x14xf32, #tpu.memory_space<vmem>>, vector<1x14xf32>
    %c0_7 = arith.constant 0 : index
    %c0_8 = arith.constant 0 : index
    %7 = vector.load %arg5[%c0_7, %c0_8] : memref<1x14xf32, #tpu.memory_space<vmem>>, vector<1x14xf32>
    %cst_9 = arith.constant dense<0.000000e+00> : vector<128xf32>
    %8 = vector.multi_reduction <add>, %5, %cst_9 [1] : vector<128x14xf32> to vector<128xf32>
    %9 = vector.shape_cast %8 : vector<128xf32> to vector<128x1xf32>
    %cst_10 = arith.constant 1.400000e+01 : f32
    %10 = vector.broadcast %cst_10 : f32 to vector<128x1xf32>
    %11 = arith.divf %9, %10 : vector<128x1xf32>
    %12 = vector.broadcast %11 : vector<128x1xf32> to vector<128x14xf32>
    %13 = arith.subf %5, %12 : vector<128x14xf32>
    %14 = arith.mulf %13, %13 : vector<128x14xf32>
    %cst_11 = arith.constant dense<0.000000e+00> : vector<128xf32>
    %15 = vector.multi_reduction <add>, %14, %cst_11 [1] : vector<128x14xf32> to vector<128xf32>
    %16 = vector.shape_cast %15 : vector<128xf32> to vector<128x1xf32>
    %cst_12 = arith.constant 1.400000e+01 : f32
    %17 = vector.broadcast %cst_12 : f32 to vector<128x1xf32>
    %18 = arith.divf %16, %17 : vector<128x1xf32>
    %19 = vector.broadcast %11 : vector<128x1xf32> to vector<128x14xf32>
    %20 = arith.subf %5, %19 : vector<128x14xf32>
    %cst_13 = arith.constant 9.99999974E-6 : f32
    %21 = vector.broadcast %cst_13 : f32 to vector<128x1xf32>
    %22 = arith.addf %18, %21 : vector<128x1xf32>
    %23 = math.rsqrt %22 : vector<128x1xf32>
    %24 = vector.broadcast %23 : vector<128x1xf32> to vector<128x14xf32>
    %25 = arith.mulf %20, %24 : vector<128x14xf32>
    %26 = vector.broadcast %6 : vector<1x14xf32> to vector<128x14xf32>
    %27 = arith.mulf %25, %26 : vector<128x14xf32>
    %28 = vector.broadcast %7 : vector<1x14xf32> to vector<128x14xf32>
    %29 = arith.addf %27, %28 : vector<128x14xf32>
    %30 = vector.shape_cast %29 : vector<128x14xf32> to vector<8x16x14xf32>
    %c0_14 = arith.constant 0 : index
    %c0_15 = arith.constant 0 : index
    %31 = vector.load %arg6[%c0_14, %c0_15] : memref<32x16xf32, #tpu.memory_space<vmem>>, vector<32x16xf32>
    %32 = vector.shape_cast %31 : vector<32x16xf32> to vector<1x32x16xf32>
    %33 = vector.shape_cast %32 : vector<1x32x16xf32> to vector<1x32x16xf32>
    %34 = vector.broadcast %33 : vector<1x32x16xf32> to vector<8x32x16xf32>
    "tpu.trace_start"() <{level = 10 : i32, message = "bhs,bsc->bhc"}> : () -> ()
    %cst_16 = arith.constant dense<0.000000e+00> : vector<8x32x14xf32>
    %35 = tpu.matmul %34, %30, %cst_16 {dimension_numbers = #tpu.dot_dimension_numbers<[2], [1], [1], [2], [0, 0, 0, 1, 1, 2], [0], [0]>} : vector<8x32x16xf32>, vector<8x16x14xf32>, vector<8x32x14xf32> -> vector<8x32x14xf32>
    "tpu.trace_stop"() : () -> ()
    %c0_17 = arith.constant 0 : index
    %c0_18 = arith.constant 0 : index
    %36 = vector.load %arg7[%c0_17, %c0_18] : memref<32x1xf32, #tpu.memory_space<vmem>>, vector<32x1xf32>
    %37 = vector.shape_cast %36 : vector<32x1xf32> to vector<1x32x1xf32>
    %38 = vector.broadcast %37 : vector<1x32x1xf32> to vector<8x32x14xf32>
    %39 = arith.addf %35, %38 : vector<8x32x14xf32>
    %cst_19 = arith.constant 5.000000e-01 : f32
    %40 = vector.broadcast %cst_19 : f32 to vector<8x32x14xf32>
    %41 = arith.mulf %40, %39 : vector<8x32x14xf32>
    %cst_20 = arith.constant 2.000000e+00 : f32
    %42 = math.sqrt %cst_20 : f32
    %cst_21 = arith.constant 1.000000e+00 : f32
    %43 = arith.divf %cst_21, %42 : f32
    %44 = vector.broadcast %43 : f32 to vector<8x32x14xf32>
    %45 = arith.mulf %39, %44 : vector<8x32x14xf32>
    %46 = math.erf %45 : vector<8x32x14xf32>
    %cst_22 = arith.constant 1.000000e+00 : f32
    %47 = vector.broadcast %cst_22 : f32 to vector<8x32x14xf32>
    %48 = arith.addf %47, %46 : vector<8x32x14xf32>
    %49 = arith.mulf %41, %48 : vector<8x32x14xf32>
    %c0_23 = arith.constant 0 : index
    %c0_24 = arith.constant 0 : index
    %50 = vector.load %arg8[%c0_23, %c0_24] : memref<16x32xf32, #tpu.memory_space<vmem>>, vector<16x32xf32>
    %51 = vector.shape_cast %50 : vector<16x32xf32> to vector<1x16x32xf32>
    %52 = vector.shape_cast %51 : vector<1x16x32xf32> to vector<1x16x32xf32>
    %53 = vector.broadcast %52 : vector<1x16x32xf32> to vector<8x16x32xf32>
    "tpu.trace_start"() <{level = 10 : i32, message = "bsh,bhc->bsc"}> : () -> ()
    %cst_25 = arith.constant dense<0.000000e+00> : vector<8x16x14xf32>
    %54 = tpu.matmul %53, %49, %cst_25 {dimension_numbers = #tpu.dot_dimension_numbers<[2], [1], [1], [2], [0, 0, 0, 1, 1, 2], [0], [0]>} : vector<8x16x32xf32>, vector<8x32x14xf32>, vector<8x16x14xf32> -> vector<8x16x14xf32>
    "tpu.trace_stop"() : () -> ()
    %c0_26 = arith.constant 0 : index
    %c0_27 = arith.constant 0 : index
    %55 = vector.load %arg9[%c0_26, %c0_27] : memref<16x1xf32, #tpu.memory_space<vmem>>, vector<16x1xf32>
    %56 = vector.shape_cast %55 : vector<16x1xf32> to vector<1x16x1xf32>
    %57 = vector.broadcast %56 : vector<1x16x1xf32> to vector<8x16x14xf32>
    %58 = arith.addf %54, %57 : vector<8x16x14xf32>
    %59 = arith.addf %30, %58 : vector<8x16x14xf32>
    %60 = vector.shape_cast %59 : vector<8x16x14xf32> to vector<128x14xf32>
    %cst_28 = arith.constant dense<0.000000e+00> : vector<128xf32>
    %61 = vector.multi_reduction <add>, %60, %cst_28 [1] : vector<128x14xf32> to vector<128xf32>
    %62 = vector.shape_cast %61 : vector<128xf32> to vector<128x1xf32>
    %cst_29 = arith.constant 1.400000e+01 : f32
    %63 = vector.broadcast %cst_29 : f32 to vector<128x1xf32>
    %64 = arith.divf %62, %63 : vector<128x1xf32>
    %65 = vector.broadcast %64 : vector<128x1xf32> to vector<128x14xf32>
    %66 = arith.subf %60, %65 : vector<128x14xf32>
    %67 = arith.mulf %66, %66 : vector<128x14xf32>
    %cst_30 = arith.constant dense<0.000000e+00> : vector<128xf32>
    %68 = vector.multi_reduction <add>, %67, %cst_30 [1] : vector<128x14xf32> to vector<128xf32>
    %69 = vector.shape_cast %68 : vector<128xf32> to vector<128x1xf32>
    %cst_31 = arith.constant 1.400000e+01 : f32
    %70 = vector.broadcast %cst_31 : f32 to vector<128x1xf32>
    %71 = arith.divf %69, %70 : vector<128x1xf32>
    %72 = vector.broadcast %64 : vector<128x1xf32> to vector<128x14xf32>
    %73 = arith.subf %60, %72 : vector<128x14xf32>
    %cst_32 = arith.constant 9.99999974E-6 : f32
    %74 = vector.broadcast %cst_32 : f32 to vector<128x1xf32>
    %75 = arith.addf %71, %74 : vector<128x1xf32>
    %76 = math.rsqrt %75 : vector<128x1xf32>
    %77 = vector.broadcast %76 : vector<128x1xf32> to vector<128x14xf32>
    %78 = arith.mulf %73, %77 : vector<128x14xf32>
    %79 = vector.broadcast %6 : vector<1x14xf32> to vector<128x14xf32>
    %80 = arith.mulf %78, %79 : vector<128x14xf32>
    %81 = vector.broadcast %7 : vector<1x14xf32> to vector<128x14xf32>
    %82 = arith.addf %80, %81 : vector<128x14xf32>
    %c0_33 = arith.constant 0 : index
    %c0_34 = arith.constant 0 : index
    %83 = vector.load %arg10[%c0_33, %c0_34] : memref<14x32xf32, #tpu.memory_space<vmem>>, vector<14x32xf32>
    %cst_35 = arith.constant dense<0.000000e+00> : vector<128x32xf32>
    %84 = tpu.matmul %82, %83, %cst_35 {dimension_numbers = #tpu.dot_dimension_numbers<[1], [0], [0], [1], [0, 0, 1, 1], [], []>} : vector<128x14xf32>, vector<14x32xf32>, vector<128x32xf32> -> vector<128x32xf32>
    %c0_36 = arith.constant 0 : index
    %c0_37 = arith.constant 0 : index
    %85 = vector.load %arg11[%c0_36, %c0_37] : memref<1x32xf32, #tpu.memory_space<vmem>>, vector<1x32xf32>
    %86 = vector.broadcast %85 : vector<1x32xf32> to vector<128x32xf32>
    %87 = arith.addf %84, %86 : vector<128x32xf32>
    %cst_38 = arith.constant 5.000000e-01 : f32
    %88 = vector.broadcast %cst_38 : f32 to vector<128x32xf32>
    %89 = arith.mulf %88, %87 : vector<128x32xf32>
    %cst_39 = arith.constant 2.000000e+00 : f32
    %90 = math.sqrt %cst_39 : f32
    %cst_40 = arith.constant 1.000000e+00 : f32
    %91 = arith.divf %cst_40, %90 : f32
    %92 = vector.broadcast %91 : f32 to vector<128x32xf32>
    %93 = arith.mulf %87, %92 : vector<128x32xf32>
    %94 = math.erf %93 : vector<128x32xf32>
    %cst_41 = arith.constant 1.000000e+00 : f32
    %95 = vector.broadcast %cst_41 : f32 to vector<128x32xf32>
    %96 = arith.addf %95, %94 : vector<128x32xf32>
    %97 = arith.mulf %89, %96 : vector<128x32xf32>
    %c0_42 = arith.constant 0 : index
    %c0_43 = arith.constant 0 : index
    %98 = vector.load %arg12[%c0_42, %c0_43] : memref<32x14xf32, #tpu.memory_space<vmem>>, vector<32x14xf32>
    %cst_44 = arith.constant dense<0.000000e+00> : vector<128x14xf32>
    %99 = tpu.matmul %97, %98, %cst_44 {dimension_numbers = #tpu.dot_dimension_numbers<[1], [0], [0], [1], [0, 0, 1, 1], [], []>} : vector<128x32xf32>, vector<32x14xf32>, vector<128x14xf32> -> vector<128x14xf32>
    %c0_45 = arith.constant 0 : index
    %c0_46 = arith.constant 0 : index
    %100 = vector.load %arg13[%c0_45, %c0_46] : memref<1x14xf32, #tpu.memory_space<vmem>>, vector<1x14xf32>
    %101 = vector.broadcast %100 : vector<1x14xf32> to vector<128x14xf32>
    %102 = arith.addf %99, %101 : vector<128x14xf32>
    %103 = arith.addf %82, %102 : vector<128x14xf32>
    %c0_47 = arith.constant 0 : index
    %c0_48 = arith.constant 0 : index
    %104 = vector.load %arg14[%c0_47, %c0_48] : memref<1x14xf32, #tpu.memory_space<vmem>>, vector<1x14xf32>
    %c0_49 = arith.constant 0 : index
    %c0_50 = arith.constant 0 : index
    %105 = vector.load %arg15[%c0_49, %c0_50] : memref<1x14xf32, #tpu.memory_space<vmem>>, vector<1x14xf32>
    %cst_51 = arith.constant dense<0.000000e+00> : vector<128xf32>
    %106 = vector.multi_reduction <add>, %103, %cst_51 [1] : vector<128x14xf32> to vector<128xf32>
    %107 = vector.shape_cast %106 : vector<128xf32> to vector<128x1xf32>
    %cst_52 = arith.constant 1.400000e+01 : f32
    %108 = vector.broadcast %cst_52 : f32 to vector<128x1xf32>
    %109 = arith.divf %107, %108 : vector<128x1xf32>
    %110 = vector.broadcast %109 : vector<128x1xf32> to vector<128x14xf32>
    %111 = arith.subf %103, %110 : vector<128x14xf32>
    %112 = arith.mulf %111, %111 : vector<128x14xf32>
    %cst_53 = arith.constant dense<0.000000e+00> : vector<128xf32>
    %113 = vector.multi_reduction <add>, %112, %cst_53 [1] : vector<128x14xf32> to vector<128xf32>
    %114 = vector.shape_cast %113 : vector<128xf32> to vector<128x1xf32>
    %cst_54 = arith.constant 1.400000e+01 : f32
    %115 = vector.broadcast %cst_54 : f32 to vector<128x1xf32>
    %116 = arith.divf %114, %115 : vector<128x1xf32>
    %117 = vector.broadcast %109 : vector<128x1xf32> to vector<128x14xf32>
    %118 = arith.subf %103, %117 : vector<128x14xf32>
    %cst_55 = arith.constant 9.99999974E-6 : f32
    %119 = vector.broadcast %cst_55 : f32 to vector<128x1xf32>
    %120 = arith.addf %116, %119 : vector<128x1xf32>
    %121 = math.rsqrt %120 : vector<128x1xf32>
    %122 = vector.broadcast %121 : vector<128x1xf32> to vector<128x14xf32>
    %123 = arith.mulf %118, %122 : vector<128x14xf32>
    %124 = vector.broadcast %104 : vector<1x14xf32> to vector<128x14xf32>
    %125 = arith.mulf %123, %124 : vector<128x14xf32>
    %126 = vector.broadcast %105 : vector<1x14xf32> to vector<128x14xf32>
    %127 = arith.addf %125, %126 : vector<128x14xf32>
    %128 = vector.shape_cast %127 : vector<128x14xf32> to vector<8x16x14xf32>
    %c0_56 = arith.constant 0 : index
    %c0_57 = arith.constant 0 : index
    %129 = vector.load %arg16[%c0_56, %c0_57] : memref<32x16xf32, #tpu.memory_space<vmem>>, vector<32x16xf32>
    %130 = vector.shape_cast %129 : vector<32x16xf32> to vector<1x32x16xf32>
    %131 = vector.shape_cast %130 : vector<1x32x16xf32> to vector<1x32x16xf32>
    %132 = vector.broadcast %131 : vector<1x32x16xf32> to vector<8x32x16xf32>
    "tpu.trace_start"() <{level = 10 : i32, message = "bhs,bsc->bhc"}> : () -> ()
    %cst_58 = arith.constant dense<0.000000e+00> : vector<8x32x14xf32>
    %133 = tpu.matmul %132, %128, %cst_58 {dimension_numbers = #tpu.dot_dimension_numbers<[2], [1], [1], [2], [0, 0, 0, 1, 1, 2], [0], [0]>} : vector<8x32x16xf32>, vector<8x16x14xf32>, vector<8x32x14xf32> -> vector<8x32x14xf32>
    "tpu.trace_stop"() : () -> ()
    %c0_59 = arith.constant 0 : index
    %c0_60 = arith.constant 0 : index
    %134 = vector.load %arg17[%c0_59, %c0_60] : memref<32x1xf32, #tpu.memory_space<vmem>>, vector<32x1xf32>
    %135 = vector.shape_cast %134 : vector<32x1xf32> to vector<1x32x1xf32>
    %136 = vector.broadcast %135 : vector<1x32x1xf32> to vector<8x32x14xf32>
    %137 = arith.addf %133, %136 : vector<8x32x14xf32>
    %cst_61 = arith.constant 5.000000e-01 : f32
    %138 = vector.broadcast %cst_61 : f32 to vector<8x32x14xf32>
    %139 = arith.mulf %138, %137 : vector<8x32x14xf32>
    %cst_62 = arith.constant 2.000000e+00 : f32
    %140 = math.sqrt %cst_62 : f32
    %cst_63 = arith.constant 1.000000e+00 : f32
    %141 = arith.divf %cst_63, %140 : f32
    %142 = vector.broadcast %141 : f32 to vector<8x32x14xf32>
    %143 = arith.mulf %137, %142 : vector<8x32x14xf32>
    %144 = math.erf %143 : vector<8x32x14xf32>
    %cst_64 = arith.constant 1.000000e+00 : f32
    %145 = vector.broadcast %cst_64 : f32 to vector<8x32x14xf32>
    %146 = arith.addf %145, %144 : vector<8x32x14xf32>
    %147 = arith.mulf %139, %146 : vector<8x32x14xf32>
    %c0_65 = arith.constant 0 : index
    %c0_66 = arith.constant 0 : index
    %148 = vector.load %arg18[%c0_65, %c0_66] : memref<16x32xf32, #tpu.memory_space<vmem>>, vector<16x32xf32>
    %149 = vector.shape_cast %148 : vector<16x32xf32> to vector<1x16x32xf32>
    %150 = vector.shape_cast %149 : vector<1x16x32xf32> to vector<1x16x32xf32>
    %151 = vector.broadcast %150 : vector<1x16x32xf32> to vector<8x16x32xf32>
    "tpu.trace_start"() <{level = 10 : i32, message = "bsh,bhc->bsc"}> : () -> ()
    %cst_67 = arith.constant dense<0.000000e+00> : vector<8x16x14xf32>
    %152 = tpu.matmul %151, %147, %cst_67 {dimension_numbers = #tpu.dot_dimension_numbers<[2], [1], [1], [2], [0, 0, 0, 1, 1, 2], [0], [0]>} : vector<8x16x32xf32>, vector<8x32x14xf32>, vector<8x16x14xf32> -> vector<8x16x14xf32>
    "tpu.trace_stop"() : () -> ()
    %c0_68 = arith.constant 0 : index
    %c0_69 = arith.constant 0 : index
    %153 = vector.load %arg19[%c0_68, %c0_69] : memref<16x1xf32, #tpu.memory_space<vmem>>, vector<16x1xf32>
    %154 = vector.shape_cast %153 : vector<16x1xf32> to vector<1x16x1xf32>
    %155 = vector.broadcast %154 : vector<1x16x1xf32> to vector<8x16x14xf32>
    %156 = arith.addf %152, %155 : vector<8x16x14xf32>
    %157 = arith.addf %128, %156 : vector<8x16x14xf32>
    %158 = vector.shape_cast %157 : vector<8x16x14xf32> to vector<128x14xf32>
    %cst_70 = arith.constant dense<0.000000e+00> : vector<128xf32>
    %159 = vector.multi_reduction <add>, %158, %cst_70 [1] : vector<128x14xf32> to vector<128xf32>
    %160 = vector.shape_cast %159 : vector<128xf32> to vector<128x1xf32>
    %cst_71 = arith.constant 1.400000e+01 : f32
    %161 = vector.broadcast %cst_71 : f32 to vector<128x1xf32>
    %162 = arith.divf %160, %161 : vector<128x1xf32>
    %163 = vector.broadcast %162 : vector<128x1xf32> to vector<128x14xf32>
    %164 = arith.subf %158, %163 : vector<128x14xf32>
    %165 = arith.mulf %164, %164 : vector<128x14xf32>
    %cst_72 = arith.constant dense<0.000000e+00> : vector<128xf32>
    %166 = vector.multi_reduction <add>, %165, %cst_72 [1] : vector<128x14xf32> to vector<128xf32>
    %167 = vector.shape_cast %166 : vector<128xf32> to vector<128x1xf32>
    %cst_73 = arith.constant 1.400000e+01 : f32
    %168 = vector.broadcast %cst_73 : f32 to vector<128x1xf32>
    %169 = arith.divf %167, %168 : vector<128x1xf32>
    %170 = vector.broadcast %162 : vector<128x1xf32> to vector<128x14xf32>
    %171 = arith.subf %158, %170 : vector<128x14xf32>
    %cst_74 = arith.constant 9.99999974E-6 : f32
    %172 = vector.broadcast %cst_74 : f32 to vector<128x1xf32>
    %173 = arith.addf %169, %172 : vector<128x1xf32>
    %174 = math.rsqrt %173 : vector<128x1xf32>
    %175 = vector.broadcast %174 : vector<128x1xf32> to vector<128x14xf32>
    %176 = arith.mulf %171, %175 : vector<128x14xf32>
    %177 = vector.broadcast %104 : vector<1x14xf32> to vector<128x14xf32>
    %178 = arith.mulf %176, %177 : vector<128x14xf32>
    %179 = vector.broadcast %105 : vector<1x14xf32> to vector<128x14xf32>
    %180 = arith.addf %178, %179 : vector<128x14xf32>
    %c0_75 = arith.constant 0 : index
    %c0_76 = arith.constant 0 : index
    %181 = vector.load %arg20[%c0_75, %c0_76] : memref<14x32xf32, #tpu.memory_space<vmem>>, vector<14x32xf32>
    %cst_77 = arith.constant dense<0.000000e+00> : vector<128x32xf32>
    %182 = tpu.matmul %180, %181, %cst_77 {dimension_numbers = #tpu.dot_dimension_numbers<[1], [0], [0], [1], [0, 0, 1, 1], [], []>} : vector<128x14xf32>, vector<14x32xf32>, vector<128x32xf32> -> vector<128x32xf32>
    %c0_78 = arith.constant 0 : index
    %c0_79 = arith.constant 0 : index
    %183 = vector.load %arg21[%c0_78, %c0_79] : memref<1x32xf32, #tpu.memory_space<vmem>>, vector<1x32xf32>
    %184 = vector.broadcast %183 : vector<1x32xf32> to vector<128x32xf32>
    %185 = arith.addf %182, %184 : vector<128x32xf32>
    %cst_80 = arith.constant 5.000000e-01 : f32
    %186 = vector.broadcast %cst_80 : f32 to vector<128x32xf32>
    %187 = arith.mulf %186, %185 : vector<128x32xf32>
    %cst_81 = arith.constant 2.000000e+00 : f32
    %188 = math.sqrt %cst_81 : f32
    %cst_82 = arith.constant 1.000000e+00 : f32
    %189 = arith.divf %cst_82, %188 : f32
    %190 = vector.broadcast %189 : f32 to vector<128x32xf32>
    %191 = arith.mulf %185, %190 : vector<128x32xf32>
    %192 = math.erf %191 : vector<128x32xf32>
    %cst_83 = arith.constant 1.000000e+00 : f32
    %193 = vector.broadcast %cst_83 : f32 to vector<128x32xf32>
    %194 = arith.addf %193, %192 : vector<128x32xf32>
    %195 = arith.mulf %187, %194 : vector<128x32xf32>
    %c0_84 = arith.constant 0 : index
    %c0_85 = arith.constant 0 : index
    %196 = vector.load %arg22[%c0_84, %c0_85] : memref<32x14xf32, #tpu.memory_space<vmem>>, vector<32x14xf32>
    %cst_86 = arith.constant dense<0.000000e+00> : vector<128x14xf32>
    %197 = tpu.matmul %195, %196, %cst_86 {dimension_numbers = #tpu.dot_dimension_numbers<[1], [0], [0], [1], [0, 0, 1, 1], [], []>} : vector<128x32xf32>, vector<32x14xf32>, vector<128x14xf32> -> vector<128x14xf32>
    %c0_87 = arith.constant 0 : index
    %c0_88 = arith.constant 0 : index
    %198 = vector.load %arg23[%c0_87, %c0_88] : memref<1x14xf32, #tpu.memory_space<vmem>>, vector<1x14xf32>
    %199 = vector.broadcast %198 : vector<1x14xf32> to vector<128x14xf32>
    %200 = arith.addf %197, %199 : vector<128x14xf32>
    %201 = arith.addf %180, %200 : vector<128x14xf32>
    %c0_89 = arith.constant 0 : index
    %c0_90 = arith.constant 0 : index
    %202 = vector.load %arg24[%c0_89, %c0_90] : memref<1x14xf32, #tpu.memory_space<vmem>>, vector<1x14xf32>
    %c0_91 = arith.constant 0 : index
    %c0_92 = arith.constant 0 : index
    %203 = vector.load %arg25[%c0_91, %c0_92] : memref<1x14xf32, #tpu.memory_space<vmem>>, vector<1x14xf32>
    %cst_93 = arith.constant dense<0.000000e+00> : vector<128xf32>
    %204 = vector.multi_reduction <add>, %201, %cst_93 [1] : vector<128x14xf32> to vector<128xf32>
    %205 = vector.shape_cast %204 : vector<128xf32> to vector<128x1xf32>
    %cst_94 = arith.constant 1.400000e+01 : f32
    %206 = vector.broadcast %cst_94 : f32 to vector<128x1xf32>
    %207 = arith.divf %205, %206 : vector<128x1xf32>
    %208 = vector.broadcast %207 : vector<128x1xf32> to vector<128x14xf32>
    %209 = arith.subf %201, %208 : vector<128x14xf32>
    %210 = arith.mulf %209, %209 : vector<128x14xf32>
    %cst_95 = arith.constant dense<0.000000e+00> : vector<128xf32>
    %211 = vector.multi_reduction <add>, %210, %cst_95 [1] : vector<128x14xf32> to vector<128xf32>
    %212 = vector.shape_cast %211 : vector<128xf32> to vector<128x1xf32>
    %cst_96 = arith.constant 1.400000e+01 : f32
    %213 = vector.broadcast %cst_96 : f32 to vector<128x1xf32>
    %214 = arith.divf %212, %213 : vector<128x1xf32>
    %215 = vector.broadcast %207 : vector<128x1xf32> to vector<128x14xf32>
    %216 = arith.subf %201, %215 : vector<128x14xf32>
    %cst_97 = arith.constant 9.99999974E-6 : f32
    %217 = vector.broadcast %cst_97 : f32 to vector<128x1xf32>
    %218 = arith.addf %214, %217 : vector<128x1xf32>
    %219 = math.rsqrt %218 : vector<128x1xf32>
    %220 = vector.broadcast %219 : vector<128x1xf32> to vector<128x14xf32>
    %221 = arith.mulf %216, %220 : vector<128x14xf32>
    %222 = vector.broadcast %202 : vector<1x14xf32> to vector<128x14xf32>
    %223 = arith.mulf %221, %222 : vector<128x14xf32>
    %224 = vector.broadcast %203 : vector<1x14xf32> to vector<128x14xf32>
    %225 = arith.addf %223, %224 : vector<128x14xf32>
    %226 = vector.shape_cast %225 : vector<128x14xf32> to vector<8x16x14xf32>
    %cst_98 = arith.constant dense<0.000000e+00> : vector<8x14xf32>
    %227 = vector.multi_reduction <add>, %226, %cst_98 [1] : vector<8x16x14xf32> to vector<8x14xf32>
    %cst_99 = arith.constant 1.600000e+01 : f32
    %228 = vector.broadcast %cst_99 : f32 to vector<8x14xf32>
    %229 = arith.divf %227, %228 : vector<8x14xf32>
    %c0_100 = arith.constant 0 : index
    %c0_101 = arith.constant 0 : index
    %230 = vector.load %arg26[%c0_100, %c0_101] : memref<14x128xf32, #tpu.memory_space<vmem>>, vector<14x128xf32>
    %cst_102 = arith.constant dense<0.000000e+00> : vector<8x128xf32>
    %231 = tpu.matmul %229, %230, %cst_102 {dimension_numbers = #tpu.dot_dimension_numbers<[1], [0], [0], [1], [0, 0, 1, 1], [], []>} : vector<8x14xf32>, vector<14x128xf32>, vector<8x128xf32> -> vector<8x128xf32>
    %c0_103 = arith.constant 0 : index
    %c0_104 = arith.constant 0 : index
    %232 = vector.load %arg27[%c0_103, %c0_104] : memref<1x128xf32, #tpu.memory_space<vmem>>, vector<1x128xf32>
    %233 = vector.broadcast %232 : vector<1x128xf32> to vector<8x128xf32>
    %234 = arith.addf %231, %233 : vector<8x128xf32>
    %c0_105 = arith.constant 0 : index
    %c0_106 = arith.constant 0 : index
    %235 = vector.load %arg28[%c0_105, %c0_106] : memref<8x128xf32, #tpu.memory_space<vmem>>, vector<8x128xf32>
    tpu.vector_store %arg28[%c0_105, %c0_106], %234 {strides = array<i32>} : memref<8x128xf32, #tpu.memory_space<vmem>>, vector<8x128xf32>,
    return
  }
  func.func @transform_0(%arg0: i32) -> (i32, i32) {
    %c0_i32 = arith.constant 0 : i32
    %c0_i32_0 = arith.constant 0 : i32
    return %arg0, %c0_i32 : i32, i32
  }
  func.func @transform_1(%arg0: i32) -> (i32, i32) {
    %c0_i32 = arith.constant 0 : i32
    %c0_i32_0 = arith.constant 0 : i32
    %c0_i32_1 = arith.constant 0 : i32
    return %c0_i32, %c0_i32_0 : i32, i32
  }
  func.func @transform_2(%arg0: i32) -> (i32, i32) {
    %c0_i32 = arith.constant 0 : i32
    %c0_i32_0 = arith.constant 0 : i32
    %c0_i32_1 = arith.constant 0 : i32
    return %c0_i32, %c0_i32_0 : i32, i32
  }
  func.func @transform_3(%arg0: i32) -> (i32, i32) {
    %c0_i32 = arith.constant 0 : i32
    %c0_i32_0 = arith.constant 0 : i32
    %c0_i32_1 = arith.constant 0 : i32
    return %c0_i32, %c0_i32_0 : i32, i32
  }
  func.func @transform_4(%arg0: i32) -> (i32, i32) {
    %c0_i32 = arith.constant 0 : i32
    %c0_i32_0 = arith.constant 0 : i32
    %c0_i32_1 = arith.constant 0 : i32
    return %c0_i32, %c0_i32_0 : i32, i32
  }
  func.func @transform_5(%arg0: i32) -> (i32, i32) {
    %c0_i32 = arith.constant 0 : i32
    %c0_i32_0 = arith.constant 0 : i32
    %c0_i32_1 = arith.constant 0 : i32
    return %c0_i32, %c0_i32_0 : i32, i32
  }
  func.func @transform_6(%arg0: i32) -> (i32, i32) {
    %c0_i32 = arith.constant 0 : i32
    %c0_i32_0 = arith.constant 0 : i32
    %c0_i32_1 = arith.constant 0 : i32
    return %c0_i32, %c0_i32_0 : i32, i32
  }
  func.func @transform_7(%arg0: i32) -> (i32, i32) {
    %c0_i32 = arith.constant 0 : i32
    %c0_i32_0 = arith.constant 0 : i32
    %c0_i32_1 = arith.constant 0 : i32
    return %c0_i32, %c0_i32_0 : i32, i32
  }
  func.func @transform_8(%arg0: i32) -> (i32, i32) {
    %c0_i32 = arith.constant 0 : i32
    %c0_i32_0 = arith.constant 0 : i32
    %c0_i32_1 = arith.constant 0 : i32
    return %c0_i32, %c0_i32_0 : i32, i32
  }
  func.func @transform_9(%arg0: i32) -> (i32, i32) {
    %c0_i32 = arith.constant 0 : i32
    %c0_i32_0 = arith.constant 0 : i32
    %c0_i32_1 = arith.constant 0 : i32
    return %c0_i32, %c0_i32_0 : i32, i32
  }
  func.func @transform_10(%arg0: i32) -> (i32, i32) {
    %c0_i32 = arith.constant 0 : i32
    %c0_i32_0 = arith.constant 0 : i32
    %c0_i32_1 = arith.constant 0 : i32
    return %c0_i32, %c0_i32_0 : i32, i32
  }
  func.func @transform_11(%arg0: i32) -> (i32, i32) {
    %c0_i32 = arith.constant 0 : i32
    %c0_i32_0 = arith.constant 0 : i32
    %c0_i32_1 = arith.constant 0 : i32
    return %c0_i32, %c0_i32_0 : i32, i32
  }
  func.func @transform_12(%arg0: i32) -> (i32, i32) {
    %c0_i32 = arith.constant 0 : i32
    %c0_i32_0 = arith.constant 0 : i32
    %c0_i32_1 = arith.constant 0 : i32
    return %c0_i32, %c0_i32_0 : i32, i32
  }
  func.func @transform_13(%arg0: i32) -> (i32, i32) {
    %c0_i32 = arith.constant 0 : i32
    %c0_i32_0 = arith.constant 0 : i32
    %c0_i32_1 = arith.constant 0 : i32
    return %c0_i32, %c0_i32_0 : i32, i32
  }
  func.func @transform_14(%arg0: i32) -> (i32, i32) {
    %c0_i32 = arith.constant 0 : i32
    %c0_i32_0 = arith.constant 0 : i32
    %c0_i32_1 = arith.constant 0 : i32
    return %c0_i32, %c0_i32_0 : i32, i32
  }
  func.func @transform_15(%arg0: i32) -> (i32, i32) {
    %c0_i32 = arith.constant 0 : i32
    %c0_i32_0 = arith.constant 0 : i32
    %c0_i32_1 = arith.constant 0 : i32
    return %c0_i32, %c0_i32_0 : i32, i32
  }
  func.func @transform_16(%arg0: i32) -> (i32, i32) {
    %c0_i32 = arith.constant 0 : i32
    %c0_i32_0 = arith.constant 0 : i32
    %c0_i32_1 = arith.constant 0 : i32
    return %c0_i32, %c0_i32_0 : i32, i32
  }
  func.func @transform_17(%arg0: i32) -> (i32, i32) {
    %c0_i32 = arith.constant 0 : i32
    %c0_i32_0 = arith.constant 0 : i32
    %c0_i32_1 = arith.constant 0 : i32
    return %c0_i32, %c0_i32_0 : i32, i32
  }
  func.func @transform_18(%arg0: i32) -> (i32, i32) {
    %c0_i32 = arith.constant 0 : i32
    %c0_i32_0 = arith.constant 0 : i32
    %c0_i32_1 = arith.constant 0 : i32
    return %c0_i32, %c0_i32_0 : i32, i32
  }
  func.func @transform_19(%arg0: i32) -> (i32, i32) {
    %c0_i32 = arith.constant 0 : i32
    %c0_i32_0 = arith.constant 0 : i32
    %c0_i32_1 = arith.constant 0 : i32
    return %c0_i32, %c0_i32_0 : i32, i32
  }
  func.func @transform_20(%arg0: i32) -> (i32, i32) {
    %c0_i32 = arith.constant 0 : i32
    %c0_i32_0 = arith.constant 0 : i32
    %c0_i32_1 = arith.constant 0 : i32
    return %c0_i32, %c0_i32_0 : i32, i32
  }
  func.func @transform_21(%arg0: i32) -> (i32, i32) {
    %c0_i32 = arith.constant 0 : i32
    %c0_i32_0 = arith.constant 0 : i32
    %c0_i32_1 = arith.constant 0 : i32
    return %c0_i32, %c0_i32_0 : i32, i32
  }
  func.func @transform_22(%arg0: i32) -> (i32, i32) {
    %c0_i32 = arith.constant 0 : i32
    %c0_i32_0 = arith.constant 0 : i32
    %c0_i32_1 = arith.constant 0 : i32
    return %c0_i32, %c0_i32_0 : i32, i32
  }
  func.func @transform_23(%arg0: i32) -> (i32, i32) {
    %c0_i32 = arith.constant 0 : i32
    %c0_i32_0 = arith.constant 0 : i32
    %c0_i32_1 = arith.constant 0 : i32
    return %c0_i32, %c0_i32_0 : i32, i32
  }
  func.func @transform_24(%arg0: i32) -> (i32, i32) {
    %c0_i32 = arith.constant 0 : i32
    %c0_i32_0 = arith.constant 0 : i32
    %c0_i32_1 = arith.constant 0 : i32
    return %c0_i32, %c0_i32_0 : i32, i32
  }
  func.func @transform_25(%arg0: i32) -> (i32, i32) {
    %c0_i32 = arith.constant 0 : i32
    %c0_i32_0 = arith.constant 0 : i32
    %c0_i32_1 = arith.constant 0 : i32
    return %c0_i32, %c0_i32_0 : i32, i32
  }
  func.func @transform_26(%arg0: i32) -> (i32, i32) {
    %c0_i32 = arith.constant 0 : i32
    %c0_i32_0 = arith.constant 0 : i32
    %c0_i32_1 = arith.constant 0 : i32
    return %c0_i32, %c0_i32_0 : i32, i32
  }
  func.func @transform_27(%arg0: i32) -> (i32, i32) {
    %c0_i32 = arith.constant 0 : i32
    %c0_i32_0 = arith.constant 0 : i32
    return %arg0, %c0_i32 : i32, i32
  }
}

</mosaic_0001>

<llo_original>
// kernel: _lambda_.1
$region0: #{_lambda_.1}
  #allocation0 [shape = 'u32[]', space=smem, size = 0x4, offset = 0x4, fixed_abs, tag = 'smem constant byte address 0x4 - core index']
  #allocation1 [shape = 'u32[72,128]{1,0:T(1,128)}', space=vmem, size = 0x9000, scoped, tag = 'internal scratch']
  %s0 = inlined_call_operand.vmem [shape: f32[128,49], index: 0, kind: input, shape index: {}]
  %s1 = inlined_call_operand.vmem [shape: f32[49,14], index: 1, kind: input, shape index: {}]
  %s2 = inlined_call_operand.vmem [shape: f32[1,14], index: 2, kind: input, shape index: {}]
  %s3 = inlined_call_operand.vmem [shape: f32[1,14], index: 3, kind: input, shape index: {}, may-alias: {3,13,23}]
  %s4 = inlined_call_operand.vmem [shape: f32[1,14], index: 4, kind: input, shape index: {}, may-alias: {4,14,24}]
  %s5 = inlined_call_operand.vmem [shape: f32[32,16], index: 5, kind: input, shape index: {}]
  %s6 = inlined_call_operand.vmem [shape: f32[32,1], index: 6, kind: input, shape index: {}]
  %s7 = inlined_call_operand.vmem [shape: f32[16,32], index: 7, kind: input, shape index: {}]
  %s8 = inlined_call_operand.vmem [shape: f32[16,1], index: 8, kind: input, shape index: {}]
  %s9 = inlined_call_operand.vmem [shape: f32[14,32], index: 9, kind: input, shape index: {}]
  %s10 = inlined_call_operand.vmem [shape: f32[1,32], index: 10, kind: input, shape index: {}]
  %s11 = inlined_call_operand.vmem [shape: f32[32,14], index: 11, kind: input, shape index: {}]
  %s12 = inlined_call_operand.vmem [shape: f32[1,14], index: 12, kind: input, shape index: {}]
  %s13 = inlined_call_operand.vmem [shape: f32[1,14], index: 13, kind: input, shape index: {}, may-alias: {3,13,23}]
  %s14 = inlined_call_operand.vmem [shape: f32[1,14], index: 14, kind: input, shape index: {}, may-alias: {4,14,24}]
  %s15 = inlined_call_operand.vmem [shape: f32[32,16], index: 15, kind: input, shape index: {}]
  %s16 = inlined_call_operand.vmem [shape: f32[32,1], index: 16, kind: input, shape index: {}]
  %s17 = inlined_call_operand.vmem [shape: f32[16,32], index: 17, kind: input, shape index: {}]
  %s18 = inlined_call_operand.vmem [shape: f32[16,1], index: 18, kind: input, shape index: {}]
  %s19 = inlined_call_operand.vmem [shape: f32[14,32], index: 19, kind: input, shape index: {}]
  %s20 = inlined_call_operand.vmem [shape: f32[1,32], index: 20, kind: input, shape index: {}]
  %s21 = inlined_call_operand.vmem [shape: f32[32,14], index: 21, kind: input, shape index: {}]
  %s22 = inlined_call_operand.vmem [shape: f32[1,14], index: 22, kind: input, shape index: {}]
  %s23 = inlined_call_operand.vmem [shape: f32[1,14], index: 23, kind: input, shape index: {}, may-alias: {3,13,23}]
  %s24 = inlined_call_operand.vmem [shape: f32[1,14], index: 24, kind: input, shape index: {}, may-alias: {4,14,24}]
  %s25 = inlined_call_operand.vmem [shape: f32[14,128], index: 25, kind: input, shape index: {}]
  %s26 = inlined_call_operand.vmem [shape: f32[1,128], index: 26, kind: input, shape index: {}]
  %s27 = inlined_call_operand.vmem [shape: f32[8,128], index: 27, kind: output, shape index: {}]
  %s28 = sld [smem:[#allocation0]]
  $region118: #{_lambda_.1} parent=0
    _
  %s30 = ssub.s32 1, %s28
  %s31 = scalar_select 0, %s30, %s28
  // Predicated region
  $region2: #{_lambda_.1} parent=0 // pred_check
    _
  $region3: #{_lambda_.1} parent=0 // pred_check_branch
    %33 = sbr.rel (0) target = $region5
  $region4: #{_lambda_.1} parent=0 // pred_region
    _
  $region5: #{_lambda_.1} parent=0 // pred_fallthru
    _
  // Predicated region
  $region6: #{_lambda_.1} parent=0 // pred_check
    _
  $region7: #{_lambda_.1} parent=0 // pred_check_branch
    %35 = sbr.rel (0) target = $region9
  $region8: #{_lambda_.1} parent=0 // pred_region
    _
  $region9: #{_lambda_.1} parent=0 // pred_fallthru
    _
  // Predicated region
  $region10: #{_lambda_.1} parent=0 // pred_check
    _
  $region11: #{_lambda_.1} parent=0 // pred_check_branch
    %37 = sbr.rel (0) target = $region13
  $region12: #{_lambda_.1} parent=0 // pred_region
    _
  $region13: #{_lambda_.1} parent=0 // pred_fallthru
    _
  // Predicated region
  $region14: #{_lambda_.1} parent=0 // pred_check
    _
  $region15: #{_lambda_.1} parent=0 // pred_check_branch
    %39 = sbr.rel (0) target = $region17
  $region16: #{_lambda_.1} parent=0 // pred_region
    _
  $region17: #{_lambda_.1} parent=0 // pred_fallthru
    _
  // Predicated region
  $region18: #{_lambda_.1} parent=0 // pred_check
    _
  $region19: #{_lambda_.1} parent=0 // pred_check_branch
    %41 = sbr.rel (0) target = $region21
  $region20: #{_lambda_.1} parent=0 // pred_region
    _
  $region21: #{_lambda_.1} parent=0 // pred_fallthru
    _
  // Predicated region
  $region22: #{_lambda_.1} parent=0 // pred_check
    _
  $region23: #{_lambda_.1} parent=0 // pred_check_branch
    %43 = sbr.rel (0) target = $region25
  $region24: #{_lambda_.1} parent=0 // pred_region
    _
  $region25: #{_lambda_.1} parent=0 // pred_fallthru
    _
  // Predicated region
  $region26: #{_lambda_.1} parent=0 // pred_check
    _
  $region27: #{_lambda_.1} parent=0 // pred_check_branch
    %45 = sbr.rel (0) target = $region29
  $region28: #{_lambda_.1} parent=0 // pred_region
    _
  $region29: #{_lambda_.1} parent=0 // pred_fallthru
    _
  // Predicated region
  $region30: #{_lambda_.1} parent=0 // pred_check
    _
  $region31: #{_lambda_.1} parent=0 // pred_check_branch
    %47 = sbr.rel (0) target = $region33
  $region32: #{_lambda_.1} parent=0 // pred_region
    _
  $region33: #{_lambda_.1} parent=0 // pred_fallthru
    _
  // Predicated region
  $region34: #{_lambda_.1} parent=0 // pred_check
    _
  $region35: #{_lambda_.1} parent=0 // pred_check_branch
    %49 = sbr.rel (0) target = $region37
  $region36: #{_lambda_.1} parent=0 // pred_region
    _
  $region37: #{_lambda_.1} parent=0 // pred_fallthru
    _
  // Predicated region
  $region38: #{_lambda_.1} parent=0 // pred_check
    _
  $region39: #{_lambda_.1} parent=0 // pred_check_branch
    %51 = sbr.rel (0) target = $region41
  $region40: #{_lambda_.1} parent=0 // pred_region
    _
  $region41: #{_lambda_.1} parent=0 // pred_fallthru
    _
  // Predicated region
  $region42: #{_lambda_.1} parent=0 // pred_check
    _
  $region43: #{_lambda_.1} parent=0 // pred_check_branch
    %53 = sbr.rel (0) target = $region45
  $region44: #{_lambda_.1} parent=0 // pred_region
    _
  $region45: #{_lambda_.1} parent=0 // pred_fallthru
    _
  // Predicated region
  $region46: #{_lambda_.1} parent=0 // pred_check
    _
  $region47: #{_lambda_.1} parent=0 // pred_check_branch
    %55 = sbr.rel (0) target = $region49
  $region48: #{_lambda_.1} parent=0 // pred_region
    _
  $region49: #{_lambda_.1} parent=0 // pred_fallthru
    _
  // Predicated region
  $region50: #{_lambda_.1} parent=0 // pred_check
    _
  $region51: #{_lambda_.1} parent=0 // pred_check_branch
    %57 = sbr.rel (0) target = $region53
  $region52: #{_lambda_.1} parent=0 // pred_region
    _
  $region53: #{_lambda_.1} parent=0 // pred_fallthru
    _
  // Predicated region
  $region54: #{_lambda_.1} parent=0 // pred_check
    _
  $region55: #{_lambda_.1} parent=0 // pred_check_branch
    %59 = sbr.rel (0) target = $region57
  $region56: #{_lambda_.1} parent=0 // pred_region
    _
  $region57: #{_lambda_.1} parent=0 // pred_fallthru
    _
  // Predicated region
  $region58: #{_lambda_.1} parent=0 // pred_check
    _
  $region59: #{_lambda_.1} parent=0 // pred_check_branch
    %61 = sbr.rel (0) target = $region61
  $region60: #{_lambda_.1} parent=0 // pred_region
    _
  $region61: #{_lambda_.1} parent=0 // pred_fallthru
    _
  // Predicated region
  $region62: #{_lambda_.1} parent=0 // pred_check
    _
  $region63: #{_lambda_.1} parent=0 // pred_check_branch
    %63 = sbr.rel (0) target = $region65
  $region64: #{_lambda_.1} parent=0 // pred_region
    _
  $region65: #{_lambda_.1} parent=0 // pred_fallthru
    _
  // Predicated region
  $region66: #{_lambda_.1} parent=0 // pred_check
    _
  $region67: #{_lambda_.1} parent=0 // pred_check_branch
    %65 = sbr.rel (0) target = $region69
  $region68: #{_lambda_.1} parent=0 // pred_region
    _
  $region69: #{_lambda_.1} parent=0 // pred_fallthru
    _
  // Predicated region
  $region70: #{_lambda_.1} parent=0 // pred_check
    _
  $region71: #{_lambda_.1} parent=0 // pred_check_branch
    %67 = sbr.rel (0) target = $region73
  $region72: #{_lambda_.1} parent=0 // pred_region
    _
  $region73: #{_lambda_.1} parent=0 // pred_fallthru
    _
  // Predicated region
  $region74: #{_lambda_.1} parent=0 // pred_check
    _
  $region75: #{_lambda_.1} parent=0 // pred_check_branch
    %69 = sbr.rel (0) target = $region77
  $region76: #{_lambda_.1} parent=0 // pred_region
    _
  $region77: #{_lambda_.1} parent=0 // pred_fallthru
    _
  // Predicated region
  $region78: #{_lambda_.1} parent=0 // pred_check
    _
  $region79: #{_lambda_.1} parent=0 // pred_check_branch
    %71 = sbr.rel (0) target = $region81
  $region80: #{_lambda_.1} parent=0 // pred_region
    _
  $region81: #{_lambda_.1} parent=0 // pred_fallthru
    _
  // Predicated region
  $region82: #{_lambda_.1} parent=0 // pred_check
    _
  $region83: #{_lambda_.1} parent=0 // pred_check_branch
    %73 = sbr.rel (0) target = $region85
  $region84: #{_lambda_.1} parent=0 // pred_region
    _
  $region85: #{_lambda_.1} parent=0 // pred_fallthru
    _
  // Predicated region
  $region86: #{_lambda_.1} parent=0 // pred_check
    _
  $region87: #{_lambda_.1} parent=0 // pred_check_branch
    %75 = sbr.rel (0) target = $region89
  $region88: #{_lambda_.1} parent=0 // pred_region
    _
  $region89: #{_lambda_.1} parent=0 // pred_fallthru
    _
  // Predicated region
  $region90: #{_lambda_.1} parent=0 // pred_check
    _
  $region91: #{_lambda_.1} parent=0 // pred_check_branch
    %77 = sbr.rel (0) target = $region93
  $region92: #{_lambda_.1} parent=0 // pred_region
    _
  $region93: #{_lambda_.1} parent=0 // pred_fallthru
    _
  // Predicated region
  $region94: #{_lambda_.1} parent=0 // pred_check
    _
  $region95: #{_lambda_.1} parent=0 // pred_check_branch
    %79 = sbr.rel (0) target = $region97
  $region96: #{_lambda_.1} parent=0 // pred_region
    _
  $region97: #{_lambda_.1} parent=0 // pred_fallthru
    _
  // Predicated region
  $region98: #{_lambda_.1} parent=0 // pred_check
    _
  $region99: #{_lambda_.1} parent=0 // pred_check_branch
    %81 = sbr.rel (0) target = $region101
  $region100: #{_lambda_.1} parent=0 // pred_region
    _
  $region101: #{_lambda_.1} parent=0 // pred_fallthru
    _
  // Predicated region
  $region102: #{_lambda_.1} parent=0 // pred_check
    _
  $region103: #{_lambda_.1} parent=0 // pred_check_branch
    %83 = sbr.rel (0) target = $region105
  $region104: #{_lambda_.1} parent=0 // pred_region
    _
  $region105: #{_lambda_.1} parent=0 // pred_fallthru
    _
  // Predicated region
  $region106: #{_lambda_.1} parent=0 // pred_check
    _
  $region107: #{_lambda_.1} parent=0 // pred_check_branch
    %85 = sbr.rel (0) target = $region109
  $region108: #{_lambda_.1} parent=0 // pred_region
    _
  $region109: #{_lambda_.1} parent=0 // pred_fallthru
    _
  %v86 = vld [vmem:[%s0] sm:$0xff]
  %v87 = vld [vmem:[%s0 + $0x8] sm:$0xff]
  %v88 = vld [vmem:[%s0 + $0x10] sm:$0xff]
  %v89 = vld [vmem:[%s0 + $0x18] sm:$0xff]
  %v90 = vld [vmem:[%s0 + $0x20] sm:$0xff]
  %v91 = vld [vmem:[%s0 + $0x28] sm:$0xff]
  %v92 = vld [vmem:[%s0 + $0x30] sm:$0xff]
  %v93 = vld [vmem:[%s0 + $0x38] sm:$0xff]
  %v94 = vld [vmem:[%s0 + $0x40] sm:$0xff]
  %v95 = vld [vmem:[%s0 + $0x48] sm:$0xff]
  %v96 = vld [vmem:[%s0 + $0x50] sm:$0xff]
  %v97 = vld [vmem:[%s0 + $0x58] sm:$0xff]
  %v98 = vld [vmem:[%s0 + $0x60] sm:$0xff]
  %v99 = vld [vmem:[%s0 + $0x68] sm:$0xff]
  %v100 = vld [vmem:[%s0 + $0x70] sm:$0xff]
  %v101 = vld [vmem:[%s0 + $0x78] sm:$0xff]
  %v102 = vld [vmem:[%s1] sm:$0xff]
  %v103 = vld [vmem:[%s1 + $0x8] sm:$0xff]
  %v104 = vld [vmem:[%s1 + $0x10] sm:$0xff]
  %v105 = vld [vmem:[%s1 + $0x18] sm:$0xff]
  %v106 = vld [vmem:[%s1 + $0x20] sm:$0xff]
  %v107 = vld [vmem:[%s1 + $0x28] sm:$0xff]
  %v108 = vld [vmem:[%s1 + $0x30] sm:$0x1]
  %v109 = vld [vmem:[%s2] sm:$0x1]
  %v111 = vperm.slane %v109, 0
  %vm113 = vcmask 400384
  %v115 = vsel %vm113, %v86, 0
  %v118 = vsel %vm113, %v87, 0
  %v121 = vsel %vm113, %v88, 0
  %v124 = vsel %vm113, %v89, 0
  %v127 = vsel %vm113, %v90, 0
  %v130 = vsel %vm113, %v91, 0
  %v133 = vsel %vm113, %v92, 0
  %v136 = vsel %vm113, %v93, 0
  %v139 = vsel %vm113, %v94, 0
  %v142 = vsel %vm113, %v95, 0
  %v145 = vsel %vm113, %v96, 0
  %v148 = vsel %vm113, %v97, 0
  %v151 = vsel %vm113, %v98, 0
  %v154 = vsel %vm113, %v99, 0
  %v157 = vsel %vm113, %v100, 0
  %v160 = vsel %vm113, %v101, 0
  %vm162 = vcmask 1040384
  %v164 = vsel %vm162, %v108, 0
  %166 = vmatpush.msra.mxu0 0.0
  %167 = vmatpush.msra.mxu0 0.0
  %168 = vmatpush.msra.mxu0 0.0
  %169 = vmatpush.msra.mxu0 0.0
  %170 = vmatpush.msra.mxu0 0.0
  %171 = vmatpush.msra.mxu0 0.0
  %172 = vmatpush.msra.mxu0 0.0
  %173 = vmatpush.msra.mxu0 0.0
  %174 = vmatpush.msra.mxu0 0.0
  %175 = vmatpush.msra.mxu0 %v164
  %176 = vmatpush.msra.mxu0 %v107
  %177 = vmatpush.msra.mxu0 %v106
  %178 = vmatpush.msra.mxu0 %v105
  %179 = vmatpush.msra.mxu0 %v104
  %180 = vmatpush.msra.mxu0 %v103
  %181 = vmatpush.msra.mxu0 %v102
  %182 = vmatmul.f32.gmra.mxu0 %v115
  %v183 = vpop.f32.mrf.mxu0
  %v184 = vadd.f32 %v111, %v183
  %185 = vmatmul.f32.gmra.mxu0 %v118
  %v186 = vpop.f32.mrf.mxu0
  %v187 = vadd.f32 %v111, %v186
  %188 = vmatmul.f32.gmra.mxu0 %v121
  %v189 = vpop.f32.mrf.mxu0
  %v190 = vadd.f32 %v111, %v189
  %191 = vmatmul.f32.gmra.mxu0 %v124
  %v192 = vpop.f32.mrf.mxu0
  %v193 = vadd.f32 %v111, %v192
  %194 = vmatmul.f32.gmra.mxu0 %v127
  %v195 = vpop.f32.mrf.mxu0
  %v196 = vadd.f32 %v111, %v195
  %197 = vmatmul.f32.gmra.mxu0 %v130
  %v198 = vpop.f32.mrf.mxu0
  %v199 = vadd.f32 %v111, %v198
  %200 = vmatmul.f32.gmra.mxu0 %v133
  %v201 = vpop.f32.mrf.mxu0
  %v202 = vadd.f32 %v111, %v201
  %203 = vmatmul.f32.gmra.mxu0 %v136
  %v204 = vpop.f32.mrf.mxu0
  %v205 = vadd.f32 %v111, %v204
  %206 = vmatmul.f32.gmra.mxu0 %v139
  %v207 = vpop.f32.mrf.mxu0
  %v208 = vadd.f32 %v111, %v207
  %209 = vmatmul.f32.gmra.mxu0 %v142
  %v210 = vpop.f32.mrf.mxu0
  %v211 = vadd.f32 %v111, %v210
  %212 = vmatmul.f32.gmra.mxu0 %v145
  %v213 = vpop.f32.mrf.mxu0
  %v214 = vadd.f32 %v111, %v213
  %215 = vmatmul.f32.gmra.mxu0 %v148
  %v216 = vpop.f32.mrf.mxu0
  %v217 = vadd.f32 %v111, %v216
  %218 = vmatmul.f32.gmra.mxu0 %v151
  %v219 = vpop.f32.mrf.mxu0
  %v220 = vadd.f32 %v111, %v219
  %221 = vmatmul.f32.gmra.mxu0 %v154
  %v222 = vpop.f32.mrf.mxu0
  %v223 = vadd.f32 %v111, %v222
  %224 = vmatmul.f32.gmra.mxu0 %v157
  %v225 = vpop.f32.mrf.mxu0
  %v226 = vadd.f32 %v111, %v225
  %227 = vmatmul.f32.gmra.mxu0 %v160
  %v228 = vpop.f32.mrf.mxu0
  %v229 = vadd.f32 %v111, %v228
  %230 = vdwg.mxu0
  %v231 = vld [vmem:[%s3] sm:$0x1]
  %v232 = vld [vmem:[%s4] sm:$0x1]
  %vm233 = vcmask 113664
  %v234 = vsel %vm233, %v184, 0.0
  %235 = vadd.xlane.f32.xlu0 %v234
  %v236 = vpop.xlane.xlu0 %235
  %v237 = vsel %vm233, %v187, 0.0
  %238 = vadd.xlane.f32.xlu0 %v237
  %v239 = vpop.xlane.xlu0 %238
  %v240 = vsel %vm233, %v190, 0.0
  %241 = vadd.xlane.f32.xlu0 %v240
  %v242 = vpop.xlane.xlu0 %241
  %v243 = vsel %vm233, %v193, 0.0
  %244 = vadd.xlane.f32.xlu0 %v243
  %v245 = vpop.xlane.xlu0 %244
  %v246 = vsel %vm233, %v196, 0.0
  %247 = vadd.xlane.f32.xlu0 %v246
  %v248 = vpop.xlane.xlu0 %247
  %v249 = vsel %vm233, %v199, 0.0
  %250 = vadd.xlane.f32.xlu0 %v249
  %v251 = vpop.xlane.xlu0 %250
  %v252 = vsel %vm233, %v202, 0.0
  %253 = vadd.xlane.f32.xlu0 %v252
  %v254 = vpop.xlane.xlu0 %253
  %v255 = vsel %vm233, %v205, 0.0
  %256 = vadd.xlane.f32.xlu0 %v255
  %v257 = vpop.xlane.xlu0 %256
  %v258 = vsel %vm233, %v208, 0.0
  %259 = vadd.xlane.f32.xlu0 %v258
  %v260 = vpop.xlane.xlu0 %259
  %v261 = vsel %vm233, %v211, 0.0
  %262 = vadd.xlane.f32.xlu0 %v261
  %v263 = vpop.xlane.xlu0 %262
  %v264 = vsel %vm233, %v214, 0.0
  %265 = vadd.xlane.f32.xlu0 %v264
  %v266 = vpop.xlane.xlu0 %265
  %v267 = vsel %vm233, %v217, 0.0
  %268 = vadd.xlane.f32.xlu0 %v267
  %v269 = vpop.xlane.xlu0 %268
  %v270 = vsel %vm233, %v220, 0.0
  %271 = vadd.xlane.f32.xlu0 %v270
  %v272 = vpop.xlane.xlu0 %271
  %v273 = vsel %vm233, %v223, 0.0
  %274 = vadd.xlane.f32.xlu0 %v273
  %v275 = vpop.xlane.xlu0 %274
  %v276 = vsel %vm233, %v226, 0.0
  %277 = vadd.xlane.f32.xlu0 %v276
  %v278 = vpop.xlane.xlu0 %277
  %v279 = vsel %vm233, %v229, 0.0
  %280 = vadd.xlane.f32.xlu0 %v279
  %v281 = vpop.xlane.xlu0 %280
  %v282 = vrcp.pop 14.0
  %v283 = vmul.f32 14.0, %v282
  %v284 = vsub.f32 1.0, %v283
  %v285 = vmul.f32 %v282, %v284
  %v286 = vadd.f32 %v282, %v285
  %vm287 = vweird.f32 %v282
  %v288 = vsel %vm287, %v282, %v286
  %v289 = vmul.f32 %v236, %v288
  %v290 = vmul.f32 %v239, %v288
  %v291 = vmul.f32 %v242, %v288
  %v292 = vmul.f32 %v245, %v288
  %v293 = vmul.f32 %v248, %v288
  %v294 = vmul.f32 %v251, %v288
  %v295 = vmul.f32 %v254, %v288
  %v296 = vmul.f32 %v257, %v288
  %v297 = vmul.f32 %v260, %v288
  %v298 = vmul.f32 %v263, %v288
  %v299 = vmul.f32 %v266, %v288
  %v300 = vmul.f32 %v269, %v288
  %v301 = vmul.f32 %v272, %v288
  %v302 = vmul.f32 %v275, %v288
  %v303 = vmul.f32 %v278, %v288
  %v304 = vmul.f32 %v281, %v288
  %v305 = vsub.f32 %v184, %v289
  %v306 = vsub.f32 %v187, %v290
  %v307 = vsub.f32 %v190, %v291
  %v308 = vsub.f32 %v193, %v292
  %v309 = vsub.f32 %v196, %v293
  %v310 = vsub.f32 %v199, %v294
  %v311 = vsub.f32 %v202, %v295
  %v312 = vsub.f32 %v205, %v296
  %v313 = vsub.f32 %v208, %v297
  %v314 = vsub.f32 %v211, %v298
  %v315 = vsub.f32 %v214, %v299
  %v316 = vsub.f32 %v217, %v300
  %v317 = vsub.f32 %v220, %v301
  %v318 = vsub.f32 %v223, %v302
  %v319 = vsub.f32 %v226, %v303
  %v320 = vsub.f32 %v229, %v304
  %v321 = vmul.f32 %v305, %v305
  %v322 = vmul.f32 %v306, %v306
  %v323 = vmul.f32 %v307, %v307
  %v324 = vmul.f32 %v308, %v308
  %v325 = vmul.f32 %v309, %v309
  %v326 = vmul.f32 %v310, %v310
  %v327 = vmul.f32 %v311, %v311
  %v328 = vmul.f32 %v312, %v312
  %v329 = vmul.f32 %v313, %v313
  %v330 = vmul.f32 %v314, %v314
  %v331 = vmul.f32 %v315, %v315
  %v332 = vmul.f32 %v316, %v316
  %v333 = vmul.f32 %v317, %v317
  %v334 = vmul.f32 %v318, %v318
  %v335 = vmul.f32 %v319, %v319
  %v336 = vmul.f32 %v320, %v320
  %v337 = vsel %vm233, %v321, 0.0
  %338 = vadd.xlane.f32.xlu0 %v337
  %v339 = vpop.xlane.xlu0 %338
  %v340 = vsel %vm233, %v322, 0.0
  %341 = vadd.xlane.f32.xlu0 %v340
  %v342 = vpop.xlane.xlu0 %341
  %v343 = vsel %vm233, %v323, 0.0
  %344 = vadd.xlane.f32.xlu0 %v343
  %v345 = vpop.xlane.xlu0 %344
  %v346 = vsel %vm233, %v324, 0.0
  %347 = vadd.xlane.f32.xlu0 %v346
  %v348 = vpop.xlane.xlu0 %347
  %v349 = vsel %vm233, %v325, 0.0
  %350 = vadd.xlane.f32.xlu0 %v349
  %v351 = vpop.xlane.xlu0 %350
  %v352 = vsel %vm233, %v326, 0.0
  %353 = vadd.xlane.f32.xlu0 %v352
  %v354 = vpop.xlane.xlu0 %353
  %v355 = vsel %vm233, %v327, 0.0
  %356 = vadd.xlane.f32.xlu0 %v355
  %v357 = vpop.xlane.xlu0 %356
  %v358 = vsel %vm233, %v328, 0.0
  %359 = vadd.xlane.f32.xlu0 %v358
  %v360 = vpop.xlane.xlu0 %359
  %v361 = vsel %vm233, %v329, 0.0
  %362 = vadd.xlane.f32.xlu0 %v361
  %v363 = vpop.xlane.xlu0 %362
  %v364 = vsel %vm233, %v330, 0.0
  %365 = vadd.xlane.f32.xlu0 %v364
  %v366 = vpop.xlane.xlu0 %365
  %v367 = vsel %vm233, %v331, 0.0
  %368 = vadd.xlane.f32.xlu0 %v367
  %v369 = vpop.xlane.xlu0 %368
  %v370 = vsel %vm233, %v332, 0.0
  %371 = vadd.xlane.f32.xlu0 %v370
  %v372 = vpop.xlane.xlu0 %371
  %v373 = vsel %vm233, %v333, 0.0
  %374 = vadd.xlane.f32.xlu0 %v373
  %v375 = vpop.xlane.xlu0 %374
  %v376 = vsel %vm233, %v334, 0.0
  %377 = vadd.xlane.f32.xlu0 %v376
  %v378 = vpop.xlane.xlu0 %377
  %v379 = vsel %vm233, %v335, 0.0
  %380 = vadd.xlane.f32.xlu0 %v379
  %v381 = vpop.xlane.xlu0 %380
  %v382 = vsel %vm233, %v336, 0.0
  %383 = vadd.xlane.f32.xlu0 %v382
  %v384 = vpop.xlane.xlu0 %383
  %v385 = vmul.f32 %v339, %v288
  %v386 = vmul.f32 %v342, %v288
  %v387 = vmul.f32 %v345, %v288
  %v388 = vmul.f32 %v348, %v288
  %v389 = vmul.f32 %v351, %v288
  %v390 = vmul.f32 %v354, %v288
  %v391 = vmul.f32 %v357, %v288
  %v392 = vmul.f32 %v360, %v288
  %v393 = vmul.f32 %v363, %v288
  %v394 = vmul.f32 %v366, %v288
  %v395 = vmul.f32 %v369, %v288
  %v396 = vmul.f32 %v372, %v288
  %v397 = vmul.f32 %v375, %v288
  %v398 = vmul.f32 %v378, %v288
  %v399 = vmul.f32 %v381, %v288
  %v400 = vmul.f32 %v384, %v288
  %v401 = vadd.f32 %v385, 1e-05
  %v402 = vadd.f32 %v386, 1e-05
  %v403 = vadd.f32 %v387, 1e-05
  %v404 = vadd.f32 %v388, 1e-05
  %v405 = vadd.f32 %v389, 1e-05
  %v406 = vadd.f32 %v390, 1e-05
  %v407 = vadd.f32 %v391, 1e-05
  %v408 = vadd.f32 %v392, 1e-05
  %v409 = vadd.f32 %v393, 1e-05
  %v410 = vadd.f32 %v394, 1e-05
  %v411 = vadd.f32 %v395, 1e-05
  %v412 = vadd.f32 %v396, 1e-05
  %v413 = vadd.f32 %v397, 1e-05
  %v414 = vadd.f32 %v398, 1e-05
  %v415 = vadd.f32 %v399, 1e-05
  %v416 = vadd.f32 %v400, 1e-05
  %v417 = vrsqrt.pop %v401
  %v418 = vmul.f32 %v417, %v401
  %v419 = vmul.f32 %v418, %v417
  %v420 = vmul.f32 0.5, %v419
  %v421 = vsub.f32 1.5, %v420
  %v422 = vmul.f32 %v417, %v421
  %vm423 = vweird.f32 %v401
  %vm424 = vweird.f32 %v417
  %vm425 = vmor %vm423, %vm424
  %v426 = vsel %vm425, %v417, %v422
  %v427 = vrsqrt.pop %v402
  %v428 = vmul.f32 %v427, %v402
  %v429 = vmul.f32 %v428, %v427
  %v430 = vmul.f32 0.5, %v429
  %v431 = vsub.f32 1.5, %v430
  %v432 = vmul.f32 %v427, %v431
  %vm433 = vweird.f32 %v402
  %vm434 = vweird.f32 %v427
  %vm435 = vmor %vm433, %vm434
  %v436 = vsel %vm435, %v427, %v432
  %v437 = vrsqrt.pop %v403
  %v438 = vmul.f32 %v437, %v403
  %v439 = vmul.f32 %v438, %v437
  %v440 = vmul.f32 0.5, %v439
  %v441 = vsub.f32 1.5, %v440
  %v442 = vmul.f32 %v437, %v441
  %vm443 = vweird.f32 %v403
  %vm444 = vweird.f32 %v437
  %vm445 = vmor %vm443, %vm444
  %v446 = vsel %vm445, %v437, %v442
  %v447 = vrsqrt.pop %v404
  %v448 = vmul.f32 %v447, %v404
  %v449 = vmul.f32 %v448, %v447
  %v450 = vmul.f32 0.5, %v449
  %v451 = vsub.f32 1.5, %v450
  %v452 = vmul.f32 %v447, %v451
  %vm453 = vweird.f32 %v404
  %vm454 = vweird.f32 %v447
  %vm455 = vmor %vm453, %vm454
  %v456 = vsel %vm455, %v447, %v452
  %v457 = vrsqrt.pop %v405
  %v458 = vmul.f32 %v457, %v405
  %v459 = vmul.f32 %v458, %v457
  %v460 = vmul.f32 0.5, %v459
  %v461 = vsub.f32 1.5, %v460
  %v462 = vmul.f32 %v457, %v461
  %vm463 = vweird.f32 %v405
  %vm464 = vweird.f32 %v457
  %vm465 = vmor %vm463, %vm464
  %v466 = vsel %vm465, %v457, %v462
  %v467 = vrsqrt.pop %v406
  %v468 = vmul.f32 %v467, %v406
  %v469 = vmul.f32 %v468, %v467
  %v470 = vmul.f32 0.5, %v469
  %v471 = vsub.f32 1.5, %v470
  %v472 = vmul.f32 %v467, %v471
  %vm473 = vweird.f32 %v406
  %vm474 = vweird.f32 %v467
  %vm475 = vmor %vm473, %vm474
  %v476 = vsel %vm475, %v467, %v472
  %v477 = vrsqrt.pop %v407
  %v478 = vmul.f32 %v477, %v407
  %v479 = vmul.f32 %v478, %v477
  %v480 = vmul.f32 0.5, %v479
  %v481 = vsub.f32 1.5, %v480
  %v482 = vmul.f32 %v477, %v481
  %vm483 = vweird.f32 %v407
  %vm484 = vweird.f32 %v477
  %vm485 = vmor %vm483, %vm484
  %v486 = vsel %vm485, %v477, %v482
  %v487 = vrsqrt.pop %v408
  %v488 = vmul.f32 %v487, %v408
  %v489 = vmul.f32 %v488, %v487
  %v490 = vmul.f32 0.5, %v489
  %v491 = vsub.f32 1.5, %v490
  %v492 = vmul.f32 %v487, %v491
  %vm493 = vweird.f32 %v408
  %vm494 = vweird.f32 %v487
  %vm495 = vmor %vm493, %vm494
  %v496 = vsel %vm495, %v487, %v492
  %v497 = vrsqrt.pop %v409
  %v498 = vmul.f32 %v497, %v409
  %v499 = vmul.f32 %v498, %v497
  %v500 = vmul.f32 0.5, %v499
  %v501 = vsub.f32 1.5, %v500
  %v502 = vmul.f32 %v497, %v501
  %vm503 = vweird.f32 %v409
  %vm504 = vweird.f32 %v497
  %vm505 = vmor %vm503, %vm504
  %v506 = vsel %vm505, %v497, %v502
  %v507 = vrsqrt.pop %v410
  %v508 = vmul.f32 %v507, %v410
  %v509 = vmul.f32 %v508, %v507
  %v510 = vmul.f32 0.5, %v509
  %v511 = vsub.f32 1.5, %v510
  %v512 = vmul.f32 %v507, %v511
  %vm513 = vweird.f32 %v410
  %vm514 = vweird.f32 %v507
  %vm515 = vmor %vm513, %vm514
  %v516 = vsel %vm515, %v507, %v512
  %v517 = vrsqrt.pop %v411
  %v518 = vmul.f32 %v517, %v411
  %v519 = vmul.f32 %v518, %v517
  %v520 = vmul.f32 0.5, %v519
  %v521 = vsub.f32 1.5, %v520
  %v522 = vmul.f32 %v517, %v521
  %vm523 = vweird.f32 %v411
  %vm524 = vweird.f32 %v517
  %vm525 = vmor %vm523, %vm524
  %v526 = vsel %vm525, %v517, %v522
  %v527 = vrsqrt.pop %v412
  %v528 = vmul.f32 %v527, %v412
  %v529 = vmul.f32 %v528, %v527
  %v530 = vmul.f32 0.5, %v529
  %v531 = vsub.f32 1.5, %v530
  %v532 = vmul.f32 %v527, %v531
  %vm533 = vweird.f32 %v412
  %vm534 = vweird.f32 %v527
  %vm535 = vmor %vm533, %vm534
  %v536 = vsel %vm535, %v527, %v532
  %v537 = vrsqrt.pop %v413
  %v538 = vmul.f32 %v537, %v413
  %v539 = vmul.f32 %v538, %v537
  %v540 = vmul.f32 0.5, %v539
  %v541 = vsub.f32 1.5, %v540
  %v542 = vmul.f32 %v537, %v541
  %vm543 = vweird.f32 %v413
  %vm544 = vweird.f32 %v537
  %vm545 = vmor %vm543, %vm544
  %v546 = vsel %vm545, %v537, %v542
  %v547 = vrsqrt.pop %v414
  %v548 = vmul.f32 %v547, %v414
  %v549 = vmul.f32 %v548, %v547
  %v550 = vmul.f32 0.5, %v549
  %v551 = vsub.f32 1.5, %v550
  %v552 = vmul.f32 %v547, %v551
  %vm553 = vweird.f32 %v414
  %vm554 = vweird.f32 %v547
  %vm555 = vmor %vm553, %vm554
  %v556 = vsel %vm555, %v547, %v552
  %v557 = vrsqrt.pop %v415
  %v558 = vmul.f32 %v557, %v415
  %v559 = vmul.f32 %v558, %v557
  %v560 = vmul.f32 0.5, %v559
  %v561 = vsub.f32 1.5, %v560
  %v562 = vmul.f32 %v557, %v561
  %vm563 = vweird.f32 %v415
  %vm564 = vweird.f32 %v557
  %vm565 = vmor %vm563, %vm564
  %v566 = vsel %vm565, %v557, %v562
  %v567 = vrsqrt.pop %v416
  %v568 = vmul.f32 %v567, %v416
  %v569 = vmul.f32 %v568, %v567
  %v570 = vmul.f32 0.5, %v569
  %v571 = vsub.f32 1.5, %v570
  %v572 = vmul.f32 %v567, %v571
  %vm573 = vweird.f32 %v416
  %vm574 = vweird.f32 %v567
  %vm575 = vmor %vm573, %vm574
  %v576 = vsel %vm575, %v567, %v572
  %v577 = vmul.f32 %v305, %v426
  %v578 = vmul.f32 %v306, %v436
  %v579 = vmul.f32 %v307, %v446
  %v580 = vmul.f32 %v308, %v456
  %v581 = vmul.f32 %v309, %v466
  %v582 = vmul.f32 %v310, %v476
  %v583 = vmul.f32 %v311, %v486
  %v584 = vmul.f32 %v312, %v496
  %v585 = vmul.f32 %v313, %v506
  %v586 = vmul.f32 %v314, %v516
  %v587 = vmul.f32 %v315, %v526
  %v588 = vmul.f32 %v316, %v536
  %v589 = vmul.f32 %v317, %v546
  %v590 = vmul.f32 %v318, %v556
  %v591 = vmul.f32 %v319, %v566
  %v592 = vmul.f32 %v320, %v576
  %v594 = vperm.slane %v231, 0
  %v596 = vmul.f32 %v577, %v594
  %v597 = vmul.f32 %v578, %v594
  %v598 = vmul.f32 %v579, %v594
  %v599 = vmul.f32 %v580, %v594
  %v600 = vmul.f32 %v581, %v594
  %v601 = vmul.f32 %v582, %v594
  %v602 = vmul.f32 %v583, %v594
  %v603 = vmul.f32 %v584, %v594
  %v604 = vmul.f32 %v585, %v594
  %v605 = vmul.f32 %v586, %v594
  %v606 = vmul.f32 %v587, %v594
  %v607 = vmul.f32 %v588, %v594
  %v608 = vmul.f32 %v589, %v594
  %v609 = vmul.f32 %v590, %v594
  %v610 = vmul.f32 %v591, %v594
  %v611 = vmul.f32 %v592, %v594
  %v613 = vperm.slane %v232, 0
  %v615 = vadd.f32 %v596, %v613
  %v616 = vadd.f32 %v597, %v613
  %v617 = vadd.f32 %v598, %v613
  %v618 = vadd.f32 %v599, %v613
  %v619 = vadd.f32 %v600, %v613
  %v620 = vadd.f32 %v601, %v613
  %v621 = vadd.f32 %v602, %v613
  %v622 = vadd.f32 %v603, %v613
  %v623 = vadd.f32 %v604, %v613
  %v624 = vadd.f32 %v605, %v613
  %v625 = vadd.f32 %v606, %v613
  %v626 = vadd.f32 %v607, %v613
  %v627 = vadd.f32 %v608, %v613
  %v628 = vadd.f32 %v609, %v613
  %v629 = vadd.f32 %v610, %v613
  %v630 = vadd.f32 %v611, %v613
  %v631 = vld [vmem:[%s5] sm:$0xff]
  %v632 = vld [vmem:[%s5 + $0x8] sm:$0xff]
  %v633 = vld [vmem:[%s5 + $0x10] sm:$0xff]
  %v634 = vld [vmem:[%s5 + $0x18] sm:$0xff]
  %v635 = vld [vmem:[%s6] sm:$0xff]
  %v636 = vld [vmem:[%s6 + $0x8] sm:$0xff]
  %v637 = vld [vmem:[%s6 + $0x10] sm:$0xff]
  %v638 = vld [vmem:[%s6 + $0x18] sm:$0xff]
  %640 = vset.pattern.permute.xlu0 0
  %641 = vperm.xlu0 %640, %v635
  %v642 = vpop.permute.xlu0 %641
  %645 = vset.pattern.permute.xlu0 0
  %646 = vperm.xlu0 %645, %v636
  %v647 = vpop.permute.xlu0 %646
  %650 = vset.pattern.permute.xlu0 0
  %651 = vperm.xlu0 %650, %v637
  %v652 = vpop.permute.xlu0 %651
  %655 = vset.pattern.permute.xlu0 0
  %656 = vperm.xlu0 %655, %v638
  %v657 = vpop.permute.xlu0 %656
  %vm659 = vcmask 130048
  %v661 = vsel %vm659, %v631, 0
  %v664 = vsel %vm659, %v632, 0
  %v667 = vsel %vm659, %v633, 0
  %v670 = vsel %vm659, %v634, 0
  %672 = vmatpush.msra.mxu0 0.0
  %673 = vmatpush.msra.mxu0 0.0
  %674 = vmatpush.msra.mxu0 0.0
  %675 = vmatpush.msra.mxu0 0.0
  %676 = vmatpush.msra.mxu0 0.0
  %677 = vmatpush.msra.mxu0 0.0
  %678 = vmatpush.msra.mxu0 0.0
  %679 = vmatpush.msra.mxu0 0.0
  %680 = vmatpush.msra.mxu0 0.0
  %681 = vmatpush.msra.mxu0 0.0
  %682 = vmatpush.msra.mxu0 0.0
  %683 = vmatpush.msra.mxu0 0.0
  %684 = vmatpush.msra.mxu0 0.0
  %685 = vmatpush.msra.mxu0 0.0
  %686 = vmatpush.msra.mxu0 %v616
  %687 = vmatpush.msra.mxu0 %v615
  %688 = vmatmul.f32.gmra.mxu0 %v661
  %v689 = vpop.f32.mrf.mxu0
  %v690 = vadd.f32 %v642, %v689
  %691 = vmatmul.f32.gmra.mxu0 %v664
  %v692 = vpop.f32.mrf.mxu0
  %v693 = vadd.f32 %v647, %v692
  %694 = vmatmul.f32.gmra.mxu0 %v667
  %v695 = vpop.f32.mrf.mxu0
  %v696 = vadd.f32 %v652, %v695
  %697 = vmatmul.f32.gmra.mxu0 %v670
  %v698 = vpop.f32.mrf.mxu0
  %v699 = vadd.f32 %v657, %v698
  %700 = vdwg.mxu0
  %701 = vmatpush.msra.mxu0 0.0
  %702 = vmatpush.msra.mxu0 0.0
  %703 = vmatpush.msra.mxu0 0.0
  %704 = vmatpush.msra.mxu0 0.0
  %705 = vmatpush.msra.mxu0 0.0
  %706 = vmatpush.msra.mxu0 0.0
  %707 = vmatpush.msra.mxu0 0.0
  %708 = vmatpush.msra.mxu0 0.0
  %709 = vmatpush.msra.mxu0 0.0
  %710 = vmatpush.msra.mxu0 0.0
  %711 = vmatpush.msra.mxu0 0.0
  %712 = vmatpush.msra.mxu0 0.0
  %713 = vmatpush.msra.mxu0 0.0
  %714 = vmatpush.msra.mxu0 0.0
  %715 = vmatpush.msra.mxu0 %v618
  %716 = vmatpush.msra.mxu0 %v617
  %717 = vmatmul.f32.gmra.mxu0 %v661
  %v718 = vpop.f32.mrf.mxu0
  %v719 = vadd.f32 %v642, %v718
  %720 = vmatmul.f32.gmra.mxu0 %v664
  %v721 = vpop.f32.mrf.mxu0
  %v722 = vadd.f32 %v647, %v721
  %723 = vmatmul.f32.gmra.mxu0 %v667
  %v724 = vpop.f32.mrf.mxu0
  %v725 = vadd.f32 %v652, %v724
  %726 = vmatmul.f32.gmra.mxu0 %v670
  %v727 = vpop.f32.mrf.mxu0
  %v728 = vadd.f32 %v657, %v727
  %729 = vdwg.mxu0
  %730 = vmatpush.msra.mxu0 0.0
  %731 = vmatpush.msra.mxu0 0.0
  %732 = vmatpush.msra.mxu0 0.0
  %733 = vmatpush.msra.mxu0 0.0
  %734 = vmatpush.msra.mxu0 0.0
  %735 = vmatpush.msra.mxu0 0.0
  %736 = vmatpush.msra.mxu0 0.0
  %737 = vmatpush.msra.mxu0 0.0
  %738 = vmatpush.msra.mxu0 0.0
  %739 = vmatpush.msra.mxu0 0.0
  %740 = vmatpush.msra.mxu0 0.0
  %741 = vmatpush.msra.mxu0 0.0
  %742 = vmatpush.msra.mxu0 0.0
  %743 = vmatpush.msra.mxu0 0.0
  %744 = vmatpush.msra.mxu0 %v620
  %745 = vmatpush.msra.mxu0 %v619
  %746 = vmatmul.f32.gmra.mxu0 %v661
  %v747 = vpop.f32.mrf.mxu0
  %v748 = vadd.f32 %v642, %v747
  %749 = vmatmul.f32.gmra.mxu0 %v664
  %v750 = vpop.f32.mrf.mxu0
  %v751 = vadd.f32 %v647, %v750
  %752 = vmatmul.f32.gmra.mxu0 %v667
  %v753 = vpop.f32.mrf.mxu0
  %v754 = vadd.f32 %v652, %v753
  %755 = vmatmul.f32.gmra.mxu0 %v670
  %v756 = vpop.f32.mrf.mxu0
  %v757 = vadd.f32 %v657, %v756
  %758 = vdwg.mxu0
  %759 = vmatpush.msra.mxu0 0.0
  %760 = vmatpush.msra.mxu0 0.0
  %761 = vmatpush.msra.mxu0 0.0
  %762 = vmatpush.msra.mxu0 0.0
  %763 = vmatpush.msra.mxu0 0.0
  %764 = vmatpush.msra.mxu0 0.0
  %765 = vmatpush.msra.mxu0 0.0
  %766 = vmatpush.msra.mxu0 0.0
  %767 = vmatpush.msra.mxu0 0.0
  %768 = vmatpush.msra.mxu0 0.0
  %769 = vmatpush.msra.mxu0 0.0
  %770 = vmatpush.msra.mxu0 0.0
  %771 = vmatpush.msra.mxu0 0.0
  %772 = vmatpush.msra.mxu0 0.0
  %773 = vmatpush.msra.mxu0 %v622
  %774 = vmatpush.msra.mxu0 %v621
  %775 = vmatmul.f32.gmra.mxu0 %v661
  %v776 = vpop.f32.mrf.mxu0
  %v777 = vadd.f32 %v642, %v776
  %778 = vmatmul.f32.gmra.mxu0 %v664
  %v779 = vpop.f32.mrf.mxu0
  %v780 = vadd.f32 %v647, %v779
  %781 = vmatmul.f32.gmra.mxu0 %v667
  %v782 = vpop.f32.mrf.mxu0
  %v783 = vadd.f32 %v652, %v782
  %784 = vmatmul.f32.gmra.mxu0 %v670
  %v785 = vpop.f32.mrf.mxu0
  %v786 = vadd.f32 %v657, %v785
  %787 = vdwg.mxu0
  %788 = vmatpush.msra.mxu0 0.0
  %789 = vmatpush.msra.mxu0 0.0
  %790 = vmatpush.msra.mxu0 0.0
  %791 = vmatpush.msra.mxu0 0.0
  %792 = vmatpush.msra.mxu0 0.0
  %793 = vmatpush.msra.mxu0 0.0
  %794 = vmatpush.msra.mxu0 0.0
  %795 = vmatpush.msra.mxu0 0.0
  %796 = vmatpush.msra.mxu0 0.0
  %797 = vmatpush.msra.mxu0 0.0
  %798 = vmatpush.msra.mxu0 0.0
  %799 = vmatpush.msra.mxu0 0.0
  %800 = vmatpush.msra.mxu0 0.0
  %801 = vmatpush.msra.mxu0 0.0
  %802 = vmatpush.msra.mxu0 %v624
  %803 = vmatpush.msra.mxu0 %v623
  %804 = vmatmul.f32.gmra.mxu0 %v661
  %v805 = vpop.f32.mrf.mxu0
  %v806 = vadd.f32 %v642, %v805
  %807 = vmatmul.f32.gmra.mxu0 %v664
  %v808 = vpop.f32.mrf.mxu0
  %v809 = vadd.f32 %v647, %v808
  %810 = vmatmul.f32.gmra.mxu0 %v667
  %v811 = vpop.f32.mrf.mxu0
  %v812 = vadd.f32 %v652, %v811
  %813 = vmatmul.f32.gmra.mxu0 %v670
  %v814 = vpop.f32.mrf.mxu0
  %v815 = vadd.f32 %v657, %v814
  %816 = vdwg.mxu0
  %817 = vmatpush.msra.mxu0 0.0
  %818 = vmatpush.msra.mxu0 0.0
  %819 = vmatpush.msra.mxu0 0.0
  %820 = vmatpush.msra.mxu0 0.0
  %821 = vmatpush.msra.mxu0 0.0
  %822 = vmatpush.msra.mxu0 0.0
  %823 = vmatpush.msra.mxu0 0.0
  %824 = vmatpush.msra.mxu0 0.0
  %825 = vmatpush.msra.mxu0 0.0
  %826 = vmatpush.msra.mxu0 0.0
  %827 = vmatpush.msra.mxu0 0.0
  %828 = vmatpush.msra.mxu0 0.0
  %829 = vmatpush.msra.mxu0 0.0
  %830 = vmatpush.msra.mxu0 0.0
  %831 = vmatpush.msra.mxu0 %v626
  %832 = vmatpush.msra.mxu0 %v625
  %833 = vmatmul.f32.gmra.mxu0 %v661
  %v834 = vpop.f32.mrf.mxu0
  %v835 = vadd.f32 %v642, %v834
  %836 = vmatmul.f32.gmra.mxu0 %v664
  %v837 = vpop.f32.mrf.mxu0
  %v838 = vadd.f32 %v647, %v837
  %839 = vmatmul.f32.gmra.mxu0 %v667
  %v840 = vpop.f32.mrf.mxu0
  %v841 = vadd.f32 %v652, %v840
  %842 = vmatmul.f32.gmra.mxu0 %v670
  %v843 = vpop.f32.mrf.mxu0
  %v844 = vadd.f32 %v657, %v843
  %845 = vdwg.mxu0
  %846 = vmatpush.msra.mxu0 0.0
  %847 = vmatpush.msra.mxu0 0.0
  %848 = vmatpush.msra.mxu0 0.0
  %849 = vmatpush.msra.mxu0 0.0
  %850 = vmatpush.msra.mxu0 0.0
  %851 = vmatpush.msra.mxu0 0.0
  %852 = vmatpush.msra.mxu0 0.0
  %853 = vmatpush.msra.mxu0 0.0
  %854 = vmatpush.msra.mxu0 0.0
  %855 = vmatpush.msra.mxu0 0.0
  %856 = vmatpush.msra.mxu0 0.0
  %857 = vmatpush.msra.mxu0 0.0
  %858 = vmatpush.msra.mxu0 0.0
  %859 = vmatpush.msra.mxu0 0.0
  %860 = vmatpush.msra.mxu0 %v628
  %861 = vmatpush.msra.mxu0 %v627
  %862 = vmatmul.f32.gmra.mxu0 %v661
  %v863 = vpop.f32.mrf.mxu0
  %v864 = vadd.f32 %v642, %v863
  %865 = vmatmul.f32.gmra.mxu0 %v664
  %v866 = vpop.f32.mrf.mxu0
  %v867 = vadd.f32 %v647, %v866
  %868 = vmatmul.f32.gmra.mxu0 %v667
  %v869 = vpop.f32.mrf.mxu0
  %v870 = vadd.f32 %v652, %v869
  %871 = vmatmul.f32.gmra.mxu0 %v670
  %v872 = vpop.f32.mrf.mxu0
  %v873 = vadd.f32 %v657, %v872
  %874 = vdwg.mxu0
  %875 = vmatpush.msra.mxu0 0.0
  %876 = vmatpush.msra.mxu0 0.0
  %877 = vmatpush.msra.mxu0 0.0
  %878 = vmatpush.msra.mxu0 0.0
  %879 = vmatpush.msra.mxu0 0.0
  %880 = vmatpush.msra.mxu0 0.0
  %881 = vmatpush.msra.mxu0 0.0
  %882 = vmatpush.msra.mxu0 0.0
  %883 = vmatpush.msra.mxu0 0.0
  %884 = vmatpush.msra.mxu0 0.0
  %885 = vmatpush.msra.mxu0 0.0
  %886 = vmatpush.msra.mxu0 0.0
  %887 = vmatpush.msra.mxu0 0.0
  %888 = vmatpush.msra.mxu0 0.0
  %889 = vmatpush.msra.mxu0 %v630
  %890 = vmatpush.msra.mxu0 %v629
  %891 = vmatmul.f32.gmra.mxu0 %v661
  %v892 = vpop.f32.mrf.mxu0
  %v893 = vadd.f32 %v642, %v892
  %894 = vmatmul.f32.gmra.mxu0 %v664
  %v895 = vpop.f32.mrf.mxu0
  %v896 = vadd.f32 %v647, %v895
  %897 = vmatmul.f32.gmra.mxu0 %v667
  %v898 = vpop.f32.mrf.mxu0
  %v899 = vadd.f32 %v652, %v898
  %900 = vmatmul.f32.gmra.mxu0 %v670
  %v901 = vpop.f32.mrf.mxu0
  %v902 = vadd.f32 %v657, %v901
  %903 = vdwg.mxu0
  %v904 = vmul.f32 %v690, 0.5
  %v905 = vmul.f32 %v693, 0.5
  %v906 = vmul.f32 %v696, 0.5
  %v907 = vmul.f32 %v699, 0.5
  %v908 = vmul.f32 %v719, 0.5
  %v909 = vmul.f32 %v722, 0.5
  %v910 = vmul.f32 %v725, 0.5
  %v911 = vmul.f32 %v728, 0.5
  %v912 = vmul.f32 %v748, 0.5
  %v913 = vmul.f32 %v751, 0.5
  %v914 = vmul.f32 %v754, 0.5
  %v915 = vmul.f32 %v757, 0.5
  %v916 = vmul.f32 %v777, 0.5
  %v917 = vmul.f32 %v780, 0.5
  %v918 = vmul.f32 %v783, 0.5
  %v919 = vmul.f32 %v786, 0.5
  %v920 = vmul.f32 %v806, 0.5
  %v921 = vmul.f32 %v809, 0.5
  %v922 = vmul.f32 %v812, 0.5
  %v923 = vmul.f32 %v815, 0.5
  %v924 = vmul.f32 %v835, 0.5
  %v925 = vmul.f32 %v838, 0.5
  %v926 = vmul.f32 %v841, 0.5
  %v927 = vmul.f32 %v844, 0.5
  %v928 = vmul.f32 %v864, 0.5
  %v929 = vmul.f32 %v867, 0.5
  %v930 = vmul.f32 %v870, 0.5
  %v931 = vmul.f32 %v873, 0.5
  %v932 = vmul.f32 %v893, 0.5
  %v933 = vmul.f32 %v896, 0.5
  %v934 = vmul.f32 %v899, 0.5
  %v935 = vmul.f32 %v902, 0.5
  %v936 = vmul.f32 %v690, 0.70710677
  %v937 = vmul.f32 %v693, 0.70710677
  %v938 = vmul.f32 %v696, 0.70710677
  %v939 = vmul.f32 %v699, 0.70710677
  %v940 = vmul.f32 %v719, 0.70710677
  %v941 = vmul.f32 %v722, 0.70710677
  %v942 = vmul.f32 %v725, 0.70710677
  %v943 = vmul.f32 %v728, 0.70710677
  %v944 = vmul.f32 %v748, 0.70710677
  %v945 = vmul.f32 %v751, 0.70710677
  %v946 = vmul.f32 %v754, 0.70710677
  %v947 = vmul.f32 %v757, 0.70710677
  %v948 = vmul.f32 %v777, 0.70710677
  %v949 = vmul.f32 %v780, 0.70710677
  %v950 = vmul.f32 %v783, 0.70710677
  %v951 = vmul.f32 %v786, 0.70710677
  %v952 = vmul.f32 %v806, 0.70710677
  %v953 = vmul.f32 %v809, 0.70710677
  %v954 = vmul.f32 %v812, 0.70710677
  %v955 = vmul.f32 %v815, 0.70710677
  %v956 = vmul.f32 %v835, 0.70710677
  %v957 = vmul.f32 %v838, 0.70710677
  %v958 = vmul.f32 %v841, 0.70710677
  %v959 = vmul.f32 %v844, 0.70710677
  %v960 = vmul.f32 %v864, 0.70710677
  %v961 = vmul.f32 %v867, 0.70710677
  %v962 = vmul.f32 %v870, 0.70710677
  %v963 = vmul.f32 %v873, 0.70710677
  %v964 = vmul.f32 %v893, 0.70710677
  %v965 = vmul.f32 %v896, 0.70710677
  %v966 = vmul.f32 %v899, 0.70710677
  %v967 = vmul.f32 %v902, 0.70710677
  %v968 = vmul.f32 %v936, %v936
  %v969 = vmin.f32 16.0, %v968
  %v970 = vmul.f32 %v969, 2.1237322e-06
  %v971 = vadd.f32 %v970, 0.00028619796
  %v972 = vmul.f32 %v969, %v971
  %v973 = vadd.f32 %v972, 0.0036580483
  %v974 = vmul.f32 %v969, %v973
  %v975 = vadd.f32 %v974, 0.05243302
  %v976 = vmul.f32 %v969, %v975
  %v977 = vadd.f32 %v976, 0.18741608
  %v978 = vmul.f32 %v969, %v977
  %v979 = vadd.f32 %v978, 1.1283791
  %v980 = vmul.f32 %v936, %v979
  %v981 = vmul.f32 %v969, 3.8918573e-05
  %v982 = vadd.f32 %v981, 0.001143296
  %v983 = vmul.f32 %v969, %v982
  %v984 = vadd.f32 %v983, 0.014752088
  %v985 = vmul.f32 %v969, %v984
  %v986 = vadd.f32 %v985, 0.112945676
  %v987 = vmul.f32 %v969, %v986
  %v988 = vadd.f32 %v987, 0.4994258
  %v989 = vmul.f32 %v969, %v988
  %v990 = vadd.f32 %v989, 1.0
  %v991 = vrcp.pop %v990
  %v992 = vmul.f32 %v990, %v991
  %v993 = vsub.f32 1.0, %v992
  %v994 = vmul.f32 %v991, %v993
  %v995 = vadd.f32 %v991, %v994
  %vm996 = vweird.f32 %v990
  %vm997 = vweird.f32 %v991
  %vm998 = vmor %vm996, %vm997
  %v999 = vsel %vm998, %v991, %v995
  %v1000 = vand.u32 2147483647, %v990
  %vm1001 = vcmp.eq.f32.partialorder %v1000, 8.507059e+37
  %v1002 = vand.u32 %v990, 2147483648
  %v1003 = vor.u32 1.1754944e-38, %v1002
  %v1004 = vsel %vm1001, %v1003, %v999
  %v1005 = vmul.f32 %v980, %v1004
  %v1006 = vmin.f32 %v1005, 1.0
  %v1007 = vmax.f32 %v1006, -1.0
  %v1008 = vmul.f32 %v937, %v937
  %v1009 = vmin.f32 16.0, %v1008
  %v1010 = vmul.f32 %v1009, 2.1237322e-06
  %v1011 = vadd.f32 %v1010, 0.00028619796
  %v1012 = vmul.f32 %v1009, %v1011
  %v1013 = vadd.f32 %v1012, 0.0036580483
  %v1014 = vmul.f32 %v1009, %v1013
  %v1015 = vadd.f32 %v1014, 0.05243302
  %v1016 = vmul.f32 %v1009, %v1015
  %v1017 = vadd.f32 %v1016, 0.18741608
  %v1018 = vmul.f32 %v1009, %v1017
  %v1019 = vadd.f32 %v1018, 1.1283791
  %v1020 = vmul.f32 %v937, %v1019
  %v1021 = vmul.f32 %v1009, 3.8918573e-05
  %v1022 = vadd.f32 %v1021, 0.001143296
  %v1023 = vmul.f32 %v1009, %v1022
  %v1024 = vadd.f32 %v1023, 0.014752088
  %v1025 = vmul.f32 %v1009, %v1024
  %v1026 = vadd.f32 %v1025, 0.112945676
  %v1027 = vmul.f32 %v1009, %v1026
  %v1028 = vadd.f32 %v1027, 0.4994258
  %v1029 = vmul.f32 %v1009, %v1028
  %v1030 = vadd.f32 %v1029, 1.0
  %v1031 = vrcp.pop %v1030
  %v1032 = vmul.f32 %v1030, %v1031
  %v1033 = vsub.f32 1.0, %v1032
  %v1034 = vmul.f32 %v1031, %v1033
  %v1035 = vadd.f32 %v1031, %v1034
  %vm1036 = vweird.f32 %v1030
  %vm1037 = vweird.f32 %v1031
  %vm1038 = vmor %vm1036, %vm1037
  %v1039 = vsel %vm1038, %v1031, %v1035
  %v1040 = vand.u32 2147483647, %v1030
  %vm1041 = vcmp.eq.f32.partialorder %v1040, 8.507059e+37
  %v1042 = vand.u32 %v1030, 2147483648
  %v1043 = vor.u32 1.1754944e-38, %v1042
  %v1044 = vsel %vm1041, %v1043, %v1039
  %v1045 = vmul.f32 %v1020, %v1044
  %v1046 = vmin.f32 %v1045, 1.0
  %v1047 = vmax.f32 %v1046, -1.0
  %v1048 = vmul.f32 %v938, %v938
  %v1049 = vmin.f32 16.0, %v1048
  %v1050 = vmul.f32 %v1049, 2.1237322e-06
  %v1051 = vadd.f32 %v1050, 0.00028619796
  %v1052 = vmul.f32 %v1049, %v1051
  %v1053 = vadd.f32 %v1052, 0.0036580483
  %v1054 = vmul.f32 %v1049, %v1053
  %v1055 = vadd.f32 %v1054, 0.05243302
  %v1056 = vmul.f32 %v1049, %v1055
  %v1057 = vadd.f32 %v1056, 0.18741608
  %v1058 = vmul.f32 %v1049, %v1057
  %v1059 = vadd.f32 %v1058, 1.1283791
  %v1060 = vmul.f32 %v938, %v1059
  %v1061 = vmul.f32 %v1049, 3.8918573e-05
  %v1062 = vadd.f32 %v1061, 0.001143296
  %v1063 = vmul.f32 %v1049, %v1062
  %v1064 = vadd.f32 %v1063, 0.014752088
  %v1065 = vmul.f32 %v1049, %v1064
  %v1066 = vadd.f32 %v1065, 0.112945676
  %v1067 = vmul.f32 %v1049, %v1066
  %v1068 = vadd.f32 %v1067, 0.4994258
  %v1069 = vmul.f32 %v1049, %v1068
  %v1070 = vadd.f32 %v1069, 1.0
  %v1071 = vrcp.pop %v1070
  %v1072 = vmul.f32 %v1070, %v1071
  %v1073 = vsub.f32 1.0, %v1072
  %v1074 = vmul.f32 %v1071, %v1073
  %v1075 = vadd.f32 %v1071, %v1074
  %vm1076 = vweird.f32 %v1070
  %vm1077 = vweird.f32 %v1071
  %vm1078 = vmor %vm1076, %vm1077
  %v1079 = vsel %vm1078, %v1071, %v1075
  %v1080 = vand.u32 2147483647, %v1070
  %vm1081 = vcmp.eq.f32.partialorder %v1080, 8.507059e+37
  %v1082 = vand.u32 %v1070, 2147483648
  %v1083 = vor.u32 1.1754944e-38, %v1082
  %v1084 = vsel %vm1081, %v1083, %v1079
  %v1085 = vmul.f32 %v1060, %v1084
  %v1086 = vmin.f32 %v1085, 1.0
  %v1087 = vmax.f32 %v1086, -1.0
  %v1088 = vmul.f32 %v939, %v939
  %v1089 = vmin.f32 16.0, %v1088
  %v1090 = vmul.f32 %v1089, 2.1237322e-06
  %v1091 = vadd.f32 %v1090, 0.00028619796
  %v1092 = vmul.f32 %v1089, %v1091
  %v1093 = vadd.f32 %v1092, 0.0036580483
  %v1094 = vmul.f32 %v1089, %v1093
  %v1095 = vadd.f32 %v1094, 0.05243302
  %v1096 = vmul.f32 %v1089, %v1095
  %v1097 = vadd.f32 %v1096, 0.18741608
  %v1098 = vmul.f32 %v1089, %v1097
  %v1099 = vadd.f32 %v1098, 1.1283791
  %v1100 = vmul.f32 %v939, %v1099
  %v1101 = vmul.f32 %v1089, 3.8918573e-05
  %v1102 = vadd.f32 %v1101, 0.001143296
  %v1103 = vmul.f32 %v1089, %v1102
  %v1104 = vadd.f32 %v1103, 0.014752088
  %v1105 = vmul.f32 %v1089, %v1104
  %v1106 = vadd.f32 %v1105, 0.112945676
  %v1107 = vmul.f32 %v1089, %v1106
  %v1108 = vadd.f32 %v1107, 0.4994258
  %v1109 = vmul.f32 %v1089, %v1108
  %v1110 = vadd.f32 %v1109, 1.0
  %v1111 = vrcp.pop %v1110
  %v1112 = vmul.f32 %v1110, %v1111
  %v1113 = vsub.f32 1.0, %v1112
  %v1114 = vmul.f32 %v1111, %v1113
  %v1115 = vadd.f32 %v1111, %v1114
  %vm1116 = vweird.f32 %v1110
  %vm1117 = vweird.f32 %v1111
  %vm1118 = vmor %vm1116, %vm1117
  %v1119 = vsel %vm1118, %v1111, %v1115
  %v1120 = vand.u32 2147483647, %v1110
  %vm1121 = vcmp.eq.f32.partialorder %v1120, 8.507059e+37
  %v1122 = vand.u32 %v1110, 2147483648
  %v1123 = vor.u32 1.1754944e-38, %v1122
  %v1124 = vsel %vm1121, %v1123, %v1119
  %v1125 = vmul.f32 %v1100, %v1124
  %v1126 = vmin.f32 %v1125, 1.0
  %v1127 = vmax.f32 %v1126, -1.0
  %v1128 = vmul.f32 %v940, %v940
  %v1129 = vmin.f32 16.0, %v1128
  %v1130 = vmul.f32 %v1129, 2.1237322e-06
  %v1131 = vadd.f32 %v1130, 0.00028619796
  %v1132 = vmul.f32 %v1129, %v1131
  %v1133 = vadd.f32 %v1132, 0.0036580483
  %v1134 = vmul.f32 %v1129, %v1133
  %v1135 = vadd.f32 %v1134, 0.05243302
  %v1136 = vmul.f32 %v1129, %v1135
  %v1137 = vadd.f32 %v1136, 0.18741608
  %v1138 = vmul.f32 %v1129, %v1137
  %v1139 = vadd.f32 %v1138, 1.1283791
  %v1140 = vmul.f32 %v940, %v1139
  %v1141 = vmul.f32 %v1129, 3.8918573e-05
  %v1142 = vadd.f32 %v1141, 0.001143296
  %v1143 = vmul.f32 %v1129, %v1142
  %v1144 = vadd.f32 %v1143, 0.014752088
  %v1145 = vmul.f32 %v1129, %v1144
  %v1146 = vadd.f32 %v1145, 0.112945676
  %v1147 = vmul.f32 %v1129, %v1146
  %v1148 = vadd.f32 %v1147, 0.4994258
  %v1149 = vmul.f32 %v1129, %v1148
  %v1150 = vadd.f32 %v1149, 1.0
  %v1151 = vrcp.pop %v1150
  %v1152 = vmul.f32 %v1150, %v1151
  %v1153 = vsub.f32 1.0, %v1152
  %v1154 = vmul.f32 %v1151, %v1153
  %v1155 = vadd.f32 %v1151, %v1154
  %vm1156 = vweird.f32 %v1150
  %vm1157 = vweird.f32 %v1151
  %vm1158 = vmor %vm1156, %vm1157
  %v1159 = vsel %vm1158, %v1151, %v1155
  %v1160 = vand.u32 2147483647, %v1150
  %vm1161 = vcmp.eq.f32.partialorder %v1160, 8.507059e+37
  %v1162 = vand.u32 %v1150, 2147483648
  %v1163 = vor.u32 1.1754944e-38, %v1162
  %v1164 = vsel %vm1161, %v1163, %v1159
  %v1165 = vmul.f32 %v1140, %v1164
  %v1166 = vmin.f32 %v1165, 1.0
  %v1167 = vmax.f32 %v1166, -1.0
  %v1168 = vmul.f32 %v941, %v941
  %v1169 = vmin.f32 16.0, %v1168
  %v1170 = vmul.f32 %v1169, 2.1237322e-06
  %v1171 = vadd.f32 %v1170, 0.00028619796
  %v1172 = vmul.f32 %v1169, %v1171
  %v1173 = vadd.f32 %v1172, 0.0036580483
  %v1174 = vmul.f32 %v1169, %v1173
  %v1175 = vadd.f32 %v1174, 0.05243302
  %v1176 = vmul.f32 %v1169, %v1175
  %v1177 = vadd.f32 %v1176, 0.18741608
  %v1178 = vmul.f32 %v1169, %v1177
  %v1179 = vadd.f32 %v1178, 1.1283791
  %v1180 = vmul.f32 %v941, %v1179
  %v1181 = vmul.f32 %v1169, 3.8918573e-05
  %v1182 = vadd.f32 %v1181, 0.001143296
  %v1183 = vmul.f32 %v1169, %v1182
  %v1184 = vadd.f32 %v1183, 0.014752088
  %v1185 = vmul.f32 %v1169, %v1184
  %v1186 = vadd.f32 %v1185, 0.112945676
  %v1187 = vmul.f32 %v1169, %v1186
  %v1188 = vadd.f32 %v1187, 0.4994258
  %v1189 = vmul.f32 %v1169, %v1188
  %v1190 = vadd.f32 %v1189, 1.0
  %v1191 = vrcp.pop %v1190
  %v1192 = vmul.f32 %v1190, %v1191
  %v1193 = vsub.f32 1.0, %v1192
  %v1194 = vmul.f32 %v1191, %v1193
  %v1195 = vadd.f32 %v1191, %v1194
  %vm1196 = vweird.f32 %v1190
  %vm1197 = vweird.f32 %v1191
  %vm1198 = vmor %vm1196, %vm1197
  %v1199 = vsel %vm1198, %v1191, %v1195
  %v1200 = vand.u32 2147483647, %v1190
  %vm1201 = vcmp.eq.f32.partialorder %v1200, 8.507059e+37
  %v1202 = vand.u32 %v1190, 2147483648
  %v1203 = vor.u32 1.1754944e-38, %v1202
  %v1204 = vsel %vm1201, %v1203, %v1199
  %v1205 = vmul.f32 %v1180, %v1204
  %v1206 = vmin.f32 %v1205, 1.0
  %v1207 = vmax.f32 %v1206, -1.0
  %v1208 = vmul.f32 %v942, %v942
  %v1209 = vmin.f32 16.0, %v1208
  %v1210 = vmul.f32 %v1209, 2.1237322e-06
  %v1211 = vadd.f32 %v1210, 0.00028619796
  %v1212 = vmul.f32 %v1209, %v1211
  %v1213 = vadd.f32 %v1212, 0.0036580483
  %v1214 = vmul.f32 %v1209, %v1213
  %v1215 = vadd.f32 %v1214, 0.05243302
  %v1216 = vmul.f32 %v1209, %v1215
  %v1217 = vadd.f32 %v1216, 0.18741608
  %v1218 = vmul.f32 %v1209, %v1217
  %v1219 = vadd.f32 %v1218, 1.1283791
  %v1220 = vmul.f32 %v942, %v1219
  %v1221 = vmul.f32 %v1209, 3.8918573e-05
  %v1222 = vadd.f32 %v1221, 0.001143296
  %v1223 = vmul.f32 %v1209, %v1222
  %v1224 = vadd.f32 %v1223, 0.014752088
  %v1225 = vmul.f32 %v1209, %v1224
  %v1226 = vadd.f32 %v1225, 0.112945676
  %v1227 = vmul.f32 %v1209, %v1226
  %v1228 = vadd.f32 %v1227, 0.4994258
  %v1229 = vmul.f32 %v1209, %v1228
  %v1230 = vadd.f32 %v1229, 1.0
  %v1231 = vrcp.pop %v1230
  %v1232 = vmul.f32 %v1230, %v1231
  %v1233 = vsub.f32 1.0, %v1232
  %v1234 = vmul.f32 %v1231, %v1233
  %v1235 = vadd.f32 %v1231, %v1234
  %vm1236 = vweird.f32 %v1230
  %vm1237 = vweird.f32 %v1231
  %vm1238 = vmor %vm1236, %vm1237
  %v1239 = vsel %vm1238, %v1231, %v1235
  %v1240 = vand.u32 2147483647, %v1230
  %vm1241 = vcmp.eq.f32.partialorder %v1240, 8.507059e+37
  %v1242 = vand.u32 %v1230, 2147483648
  %v1243 = vor.u32 1.1754944e-38, %v1242
  %v1244 = vsel %vm1241, %v1243, %v1239
  %v1245 = vmul.f32 %v1220, %v1244
  %v1246 = vmin.f32 %v1245, 1.0
  %v1247 = vmax.f32 %v1246, -1.0
  %v1248 = vmul.f32 %v943, %v943
  %v1249 = vmin.f32 16.0, %v1248
  %v1250 = vmul.f32 %v1249, 2.1237322e-06
  %v1251 = vadd.f32 %v1250, 0.00028619796
  %v1252 = vmul.f32 %v1249, %v1251
  %v1253 = vadd.f32 %v1252, 0.0036580483
  %v1254 = vmul.f32 %v1249, %v1253
  %v1255 = vadd.f32 %v1254, 0.05243302
  %v1256 = vmul.f32 %v1249, %v1255
  %v1257 = vadd.f32 %v1256, 0.18741608
  %v1258 = vmul.f32 %v1249, %v1257
  %v1259 = vadd.f32 %v1258, 1.1283791
  %v1260 = vmul.f32 %v943, %v1259
  %v1261 = vmul.f32 %v1249, 3.8918573e-05
  %v1262 = vadd.f32 %v1261, 0.001143296
  %v1263 = vmul.f32 %v1249, %v1262
  %v1264 = vadd.f32 %v1263, 0.014752088
  %v1265 = vmul.f32 %v1249, %v1264
  %v1266 = vadd.f32 %v1265, 0.112945676
  %v1267 = vmul.f32 %v1249, %v1266
  %v1268 = vadd.f32 %v1267, 0.4994258
  %v1269 = vmul.f32 %v1249, %v1268
  %v1270 = vadd.f32 %v1269, 1.0
  %v1271 = vrcp.pop %v1270
  %v1272 = vmul.f32 %v1270, %v1271
  %v1273 = vsub.f32 1.0, %v1272
  %v1274 = vmul.f32 %v1271, %v1273
  %v1275 = vadd.f32 %v1271, %v1274
  %vm1276 = vweird.f32 %v1270
  %vm1277 = vweird.f32 %v1271
  %vm1278 = vmor %vm1276, %vm1277
  %v1279 = vsel %vm1278, %v1271, %v1275
  %v1280 = vand.u32 2147483647, %v1270
  %vm1281 = vcmp.eq.f32.partialorder %v1280, 8.507059e+37
  %v1282 = vand.u32 %v1270, 2147483648
  %v1283 = vor.u32 1.1754944e-38, %v1282
  %v1284 = vsel %vm1281, %v1283, %v1279
  %v1285 = vmul.f32 %v1260, %v1284
  %v1286 = vmin.f32 %v1285, 1.0
  %v1287 = vmax.f32 %v1286, -1.0
  %v1288 = vmul.f32 %v944, %v944
  %v1289 = vmin.f32 16.0, %v1288
  %v1290 = vmul.f32 %v1289, 2.1237322e-06
  %v1291 = vadd.f32 %v1290, 0.00028619796
  %v1292 = vmul.f32 %v1289, %v1291
  %v1293 = vadd.f32 %v1292, 0.0036580483
  %v1294 = vmul.f32 %v1289, %v1293
  %v1295 = vadd.f32 %v1294, 0.05243302
  %v1296 = vmul.f32 %v1289, %v1295
  %v1297 = vadd.f32 %v1296, 0.18741608
  %v1298 = vmul.f32 %v1289, %v1297
  %v1299 = vadd.f32 %v1298, 1.1283791
  %v1300 = vmul.f32 %v944, %v1299
  %v1301 = vmul.f32 %v1289, 3.8918573e-05
  %v1302 = vadd.f32 %v1301, 0.001143296
  %v1303 = vmul.f32 %v1289, %v1302
  %v1304 = vadd.f32 %v1303, 0.014752088
  %v1305 = vmul.f32 %v1289, %v1304
  %v1306 = vadd.f32 %v1305, 0.112945676
  %v1307 = vmul.f32 %v1289, %v1306
  %v1308 = vadd.f32 %v1307, 0.4994258
  %v1309 = vmul.f32 %v1289, %v1308
  %v1310 = vadd.f32 %v1309, 1.0
  %v1311 = vrcp.pop %v1310
  %v1312 = vmul.f32 %v1310, %v1311
  %v1313 = vsub.f32 1.0, %v1312
  %v1314 = vmul.f32 %v1311, %v1313
  %v1315 = vadd.f32 %v1311, %v1314
  %vm1316 = vweird.f32 %v1310
  %vm1317 = vweird.f32 %v1311
  %vm1318 = vmor %vm1316, %vm1317
  %v1319 = vsel %vm1318, %v1311, %v1315
  %v1320 = vand.u32 2147483647, %v1310
  %vm1321 = vcmp.eq.f32.partialorder %v1320, 8.507059e+37
  %v1322 = vand.u32 %v1310, 2147483648
  %v1323 = vor.u32 1.1754944e-38, %v1322
  %v1324 = vsel %vm1321, %v1323, %v1319
  %v1325 = vmul.f32 %v1300, %v1324
  %v1326 = vmin.f32 %v1325, 1.0
  %v1327 = vmax.f32 %v1326, -1.0
  %v1328 = vmul.f32 %v945, %v945
  %v1329 = vmin.f32 16.0, %v1328
  %v1330 = vmul.f32 %v1329, 2.1237322e-06
  %v1331 = vadd.f32 %v1330, 0.00028619796
  %v1332 = vmul.f32 %v1329, %v1331
  %v1333 = vadd.f32 %v1332, 0.0036580483
  %v1334 = vmul.f32 %v1329, %v1333
  %v1335 = vadd.f32 %v1334, 0.05243302
  %v1336 = vmul.f32 %v1329, %v1335
  %v1337 = vadd.f32 %v1336, 0.18741608
  %v1338 = vmul.f32 %v1329, %v1337
  %v1339 = vadd.f32 %v1338, 1.1283791
  %v1340 = vmul.f32 %v945, %v1339
  %v1341 = vmul.f32 %v1329, 3.8918573e-05
  %v1342 = vadd.f32 %v1341, 0.001143296
  %v1343 = vmul.f32 %v1329, %v1342
  %v1344 = vadd.f32 %v1343, 0.014752088
  %v1345 = vmul.f32 %v1329, %v1344
  %v1346 = vadd.f32 %v1345, 0.112945676
  %v1347 = vmul.f32 %v1329, %v1346
  %v1348 = vadd.f32 %v1347, 0.4994258
  %v1349 = vmul.f32 %v1329, %v1348
  %v1350 = vadd.f32 %v1349, 1.0
  %v1351 = vrcp.pop %v1350
  %v1352 = vmul.f32 %v1350, %v1351
  %v1353 = vsub.f32 1.0, %v1352
  %v1354 = vmul.f32 %v1351, %v1353
  %v1355 = vadd.f32 %v1351, %v1354
  %vm1356 = vweird.f32 %v1350
  %vm1357 = vweird.f32 %v1351
  %vm1358 = vmor %vm1356, %vm1357
  %v1359 = vsel %vm1358, %v1351, %v1355
  %v1360 = vand.u32 2147483647, %v1350
  %vm1361 = vcmp.eq.f32.partialorder %v1360, 8.507059e+37
  %v1362 = vand.u32 %v1350, 2147483648
  %v1363 = vor.u32 1.1754944e-38, %v1362
  %v1364 = vsel %vm1361, %v1363, %v1359
  %v1365 = vmul.f32 %v1340, %v1364
  %v1366 = vmin.f32 %v1365, 1.0
  %v1367 = vmax.f32 %v1366, -1.0
  %v1368 = vmul.f32 %v946, %v946
  %v1369 = vmin.f32 16.0, %v1368
  %v1370 = vmul.f32 %v1369, 2.1237322e-06
  %v1371 = vadd.f32 %v1370, 0.00028619796
  %v1372 = vmul.f32 %v1369, %v1371
  %v1373 = vadd.f32 %v1372, 0.0036580483
  %v1374 = vmul.f32 %v1369, %v1373
  %v1375 = vadd.f32 %v1374, 0.05243302
  %v1376 = vmul.f32 %v1369, %v1375
  %v1377 = vadd.f32 %v1376, 0.18741608
  %v1378 = vmul.f32 %v1369, %v1377
  %v1379 = vadd.f32 %v1378, 1.1283791
  %v1380 = vmul.f32 %v946, %v1379
  %v1381 = vmul.f32 %v1369, 3.8918573e-05
  %v1382 = vadd.f32 %v1381, 0.001143296
  %v1383 = vmul.f32 %v1369, %v1382
  %v1384 = vadd.f32 %v1383, 0.014752088
  %v1385 = vmul.f32 %v1369, %v1384
  %v1386 = vadd.f32 %v1385, 0.112945676
  %v1387 = vmul.f32 %v1369, %v1386
  %v1388 = vadd.f32 %v1387, 0.4994258
  %v1389 = vmul.f32 %v1369, %v1388
  %v1390 = vadd.f32 %v1389, 1.0
  %v1391 = vrcp.pop %v1390
  %v1392 = vmul.f32 %v1390, %v1391
  %v1393 = vsub.f32 1.0, %v1392
  %v1394 = vmul.f32 %v1391, %v1393
  %v1395 = vadd.f32 %v1391, %v1394
  %vm1396 = vweird.f32 %v1390
  %vm1397 = vweird.f32 %v1391
  %vm1398 = vmor %vm1396, %vm1397
  %v1399 = vsel %vm1398, %v1391, %v1395
  %v1400 = vand.u32 2147483647, %v1390
  %vm1401 = vcmp.eq.f32.partialorder %v1400, 8.507059e+37
  %v1402 = vand.u32 %v1390, 2147483648
  %v1403 = vor.u32 1.1754944e-38, %v1402
  %v1404 = vsel %vm1401, %v1403, %v1399
  %v1405 = vmul.f32 %v1380, %v1404
  %v1406 = vmin.f32 %v1405, 1.0
  %v1407 = vmax.f32 %v1406, -1.0
  %v1408 = vmul.f32 %v947, %v947
  %v1409 = vmin.f32 16.0, %v1408
  %v1410 = vmul.f32 %v1409, 2.1237322e-06
  %v1411 = vadd.f32 %v1410, 0.00028619796
  %v1412 = vmul.f32 %v1409, %v1411
  %v1413 = vadd.f32 %v1412, 0.0036580483
  %v1414 = vmul.f32 %v1409, %v1413
  %v1415 = vadd.f32 %v1414, 0.05243302
  %v1416 = vmul.f32 %v1409, %v1415
  %v1417 = vadd.f32 %v1416, 0.18741608
  %v1418 = vmul.f32 %v1409, %v1417
  %v1419 = vadd.f32 %v1418, 1.1283791
  %v1420 = vmul.f32 %v947, %v1419
  %v1421 = vmul.f32 %v1409, 3.8918573e-05
  %v1422 = vadd.f32 %v1421, 0.001143296
  %v1423 = vmul.f32 %v1409, %v1422
  %v1424 = vadd.f32 %v1423, 0.014752088
  %v1425 = vmul.f32 %v1409, %v1424
  %v1426 = vadd.f32 %v1425, 0.112945676
  %v1427 = vmul.f32 %v1409, %v1426
  %v1428 = vadd.f32 %v1427, 0.4994258
  %v1429 = vmul.f32 %v1409, %v1428
  %v1430 = vadd.f32 %v1429, 1.0
  %v1431 = vrcp.pop %v1430
  %v1432 = vmul.f32 %v1430, %v1431
  %v1433 = vsub.f32 1.0, %v1432
  %v1434 = vmul.f32 %v1431, %v1433
  %v1435 = vadd.f32 %v1431, %v1434
  %vm1436 = vweird.f32 %v1430
  %vm1437 = vweird.f32 %v1431
  %vm1438 = vmor %vm1436, %vm1437
  %v1439 = vsel %vm1438, %v1431, %v1435
  %v1440 = vand.u32 2147483647, %v1430
  %vm1441 = vcmp.eq.f32.partialorder %v1440, 8.507059e+37
  %v1442 = vand.u32 %v1430, 2147483648
  %v1443 = vor.u32 1.1754944e-38, %v1442
  %v1444 = vsel %vm1441, %v1443, %v1439
  %v1445 = vmul.f32 %v1420, %v1444
  %v1446 = vmin.f32 %v1445, 1.0
  %v1447 = vmax.f32 %v1446, -1.0
  %v1448 = vmul.f32 %v948, %v948
  %v1449 = vmin.f32 16.0, %v1448
  %v1450 = vmul.f32 %v1449, 2.1237322e-06
  %v1451 = vadd.f32 %v1450, 0.00028619796
  %v1452 = vmul.f32 %v1449, %v1451
  %v1453 = vadd.f32 %v1452, 0.0036580483
  %v1454 = vmul.f32 %v1449, %v1453
  %v1455 = vadd.f32 %v1454, 0.05243302
  %v1456 = vmul.f32 %v1449, %v1455
  %v1457 = vadd.f32 %v1456, 0.18741608
  %v1458 = vmul.f32 %v1449, %v1457
  %v1459 = vadd.f32 %v1458, 1.1283791
  %v1460 = vmul.f32 %v948, %v1459
  %v1461 = vmul.f32 %v1449, 3.8918573e-05
  %v1462 = vadd.f32 %v1461, 0.001143296
  %v1463 = vmul.f32 %v1449, %v1462
  %v1464 = vadd.f32 %v1463, 0.014752088
  %v1465 = vmul.f32 %v1449, %v1464
  %v1466 = vadd.f32 %v1465, 0.112945676
  %v1467 = vmul.f32 %v1449, %v1466
  %v1468 = vadd.f32 %v1467, 0.4994258
  %v1469 = vmul.f32 %v1449, %v1468
  %v1470 = vadd.f32 %v1469, 1.0
  %v1471 = vrcp.pop %v1470
  %v1472 = vmul.f32 %v1470, %v1471
  %v1473 = vsub.f32 1.0, %v1472
  %v1474 = vmul.f32 %v1471, %v1473
  %v1475 = vadd.f32 %v1471, %v1474
  %vm1476 = vweird.f32 %v1470
  %vm1477 = vweird.f32 %v1471
  %vm1478 = vmor %vm1476, %vm1477
  %v1479 = vsel %vm1478, %v1471, %v1475
  %v1480 = vand.u32 2147483647, %v1470
  %vm1481 = vcmp.eq.f32.partialorder %v1480, 8.507059e+37
  %v1482 = vand.u32 %v1470, 2147483648
  %v1483 = vor.u32 1.1754944e-38, %v1482
  %v1484 = vsel %vm1481, %v1483, %v1479
  %v1485 = vmul.f32 %v1460, %v1484
  %v1486 = vmin.f32 %v1485, 1.0
  %v1487 = vmax.f32 %v1486, -1.0
  %v1488 = vmul.f32 %v949, %v949
  %v1489 = vmin.f32 16.0, %v1488
  %v1490 = vmul.f32 %v1489, 2.1237322e-06
  %v1491 = vadd.f32 %v1490, 0.00028619796
  %v1492 = vmul.f32 %v1489, %v1491
  %v1493 = vadd.f32 %v1492, 0.0036580483
  %v1494 = vmul.f32 %v1489, %v1493
  %v1495 = vadd.f32 %v1494, 0.05243302
  %v1496 = vmul.f32 %v1489, %v1495
  %v1497 = vadd.f32 %v1496, 0.18741608
  %v1498 = vmul.f32 %v1489, %v1497
  %v1499 = vadd.f32 %v1498, 1.1283791
  %v1500 = vmul.f32 %v949, %v1499
  %v1501 = vmul.f32 %v1489, 3.8918573e-05
  %v1502 = vadd.f32 %v1501, 0.001143296
  %v1503 = vmul.f32 %v1489, %v1502
  %v1504 = vadd.f32 %v1503, 0.014752088
  %v1505 = vmul.f32 %v1489, %v1504
  %v1506 = vadd.f32 %v1505, 0.112945676
  %v1507 = vmul.f32 %v1489, %v1506
  %v1508 = vadd.f32 %v1507, 0.4994258
  %v1509 = vmul.f32 %v1489, %v1508
  %v1510 = vadd.f32 %v1509, 1.0
  %v1511 = vrcp.pop %v1510
  %v1512 = vmul.f32 %v1510, %v1511
  %v1513 = vsub.f32 1.0, %v1512
  %v1514 = vmul.f32 %v1511, %v1513
  %v1515 = vadd.f32 %v1511, %v1514
  %vm1516 = vweird.f32 %v1510
  %vm1517 = vweird.f32 %v1511
  %vm1518 = vmor %vm1516, %vm1517
  %v1519 = vsel %vm1518, %v1511, %v1515
  %v1520 = vand.u32 2147483647, %v1510
  %vm1521 = vcmp.eq.f32.partialorder %v1520, 8.507059e+37
  %v1522 = vand.u32 %v1510, 2147483648
  %v1523 = vor.u32 1.1754944e-38, %v1522
  %v1524 = vsel %vm1521, %v1523, %v1519
  %v1525 = vmul.f32 %v1500, %v1524
  %v1526 = vmin.f32 %v1525, 1.0
  %v1527 = vmax.f32 %v1526, -1.0
  %v1528 = vmul.f32 %v950, %v950
  %v1529 = vmin.f32 16.0, %v1528
  %v1530 = vmul.f32 %v1529, 2.1237322e-06
  %v1531 = vadd.f32 %v1530, 0.00028619796
  %v1532 = vmul.f32 %v1529, %v1531
  %v1533 = vadd.f32 %v1532, 0.0036580483
  %v1534 = vmul.f32 %v1529, %v1533
  %v1535 = vadd.f32 %v1534, 0.05243302
  %v1536 = vmul.f32 %v1529, %v1535
  %v1537 = vadd.f32 %v1536, 0.18741608
  %v1538 = vmul.f32 %v1529, %v1537
  %v1539 = vadd.f32 %v1538, 1.1283791
  %v1540 = vmul.f32 %v950, %v1539
  %v1541 = vmul.f32 %v1529, 3.8918573e-05
  %v1542 = vadd.f32 %v1541, 0.001143296
  %v1543 = vmul.f32 %v1529, %v1542
  %v1544 = vadd.f32 %v1543, 0.014752088
  %v1545 = vmul.f32 %v1529, %v1544
  %v1546 = vadd.f32 %v1545, 0.112945676
  %v1547 = vmul.f32 %v1529, %v1546
  %v1548 = vadd.f32 %v1547, 0.4994258
  %v1549 = vmul.f32 %v1529, %v1548
  %v1550 = vadd.f32 %v1549, 1.0
  %v1551 = vrcp.pop %v1550
  %v1552 = vmul.f32 %v1550, %v1551
  %v1553 = vsub.f32 1.0, %v1552
  %v1554 = vmul.f32 %v1551, %v1553
  %v1555 = vadd.f32 %v1551, %v1554
  %vm1556 = vweird.f32 %v1550
  %vm1557 = vweird.f32 %v1551
  %vm1558 = vmor %vm1556, %vm1557
  %v1559 = vsel %vm1558, %v1551, %v1555
  %v1560 = vand.u32 2147483647, %v1550
  %vm1561 = vcmp.eq.f32.partialorder %v1560, 8.507059e+37
  %v1562 = vand.u32 %v1550, 2147483648
  %v1563 = vor.u32 1.1754944e-38, %v1562
  %v1564 = vsel %vm1561, %v1563, %v1559
  %v1565 = vmul.f32 %v1540, %v1564
  %v1566 = vmin.f32 %v1565, 1.0
  %v1567 = vmax.f32 %v1566, -1.0
  %v1568 = vmul.f32 %v951, %v951
  %v1569 = vmin.f32 16.0, %v1568
  %v1570 = vmul.f32 %v1569, 2.1237322e-06
  %v1571 = vadd.f32 %v1570, 0.00028619796
  %v1572 = vmul.f32 %v1569, %v1571
  %v1573 = vadd.f32 %v1572, 0.0036580483
  %v1574 = vmul.f32 %v1569, %v1573
  %v1575 = vadd.f32 %v1574, 0.05243302
  %v1576 = vmul.f32 %v1569, %v1575
  %v1577 = vadd.f32 %v1576, 0.18741608
  %v1578 = vmul.f32 %v1569, %v1577
  %v1579 = vadd.f32 %v1578, 1.1283791
  %v1580 = vmul.f32 %v951, %v1579
  %v1581 = vmul.f32 %v1569, 3.8918573e-05
  %v1582 = vadd.f32 %v1581, 0.001143296
  %v1583 = vmul.f32 %v1569, %v1582
  %v1584 = vadd.f32 %v1583, 0.014752088
  %v1585 = vmul.f32 %v1569, %v1584
  %v1586 = vadd.f32 %v1585, 0.112945676
  %v1587 = vmul.f32 %v1569, %v1586
  %v1588 = vadd.f32 %v1587, 0.4994258
  %v1589 = vmul.f32 %v1569, %v1588
  %v1590 = vadd.f32 %v1589, 1.0
  %v1591 = vrcp.pop %v1590
  %v1592 = vmul.f32 %v1590, %v1591
  %v1593 = vsub.f32 1.0, %v1592
  %v1594 = vmul.f32 %v1591, %v1593
  %v1595 = vadd.f32 %v1591, %v1594
  %vm1596 = vweird.f32 %v1590
  %vm1597 = vweird.f32 %v1591
  %vm1598 = vmor %vm1596, %vm1597
  %v1599 = vsel %vm1598, %v1591, %v1595
  %v1600 = vand.u32 2147483647, %v1590
  %vm1601 = vcmp.eq.f32.partialorder %v1600, 8.507059e+37
  %v1602 = vand.u32 %v1590, 2147483648
  %v1603 = vor.u32 1.1754944e-38, %v1602
  %v1604 = vsel %vm1601, %v1603, %v1599
  %v1605 = vmul.f32 %v1580, %v1604
  %v1606 = vmin.f32 %v1605, 1.0
  %v1607 = vmax.f32 %v1606, -1.0
  %v1608 = vmul.f32 %v952, %v952
  %v1609 = vmin.f32 16.0, %v1608
  %v1610 = vmul.f32 %v1609, 2.1237322e-06
  %v1611 = vadd.f32 %v1610, 0.00028619796
  %v1612 = vmul.f32 %v1609, %v1611
  %v1613 = vadd.f32 %v1612, 0.0036580483
  %v1614 = vmul.f32 %v1609, %v1613
  %v1615 = vadd.f32 %v1614, 0.05243302
  %v1616 = vmul.f32 %v1609, %v1615
  %v1617 = vadd.f32 %v1616, 0.18741608
  %v1618 = vmul.f32 %v1609, %v1617
  %v1619 = vadd.f32 %v1618, 1.1283791
  %v1620 = vmul.f32 %v952, %v1619
  %v1621 = vmul.f32 %v1609, 3.8918573e-05
  %v1622 = vadd.f32 %v1621, 0.001143296
  %v1623 = vmul.f32 %v1609, %v1622
  %v1624 = vadd.f32 %v1623, 0.014752088
  %v1625 = vmul.f32 %v1609, %v1624
  %v1626 = vadd.f32 %v1625, 0.112945676
  %v1627 = vmul.f32 %v1609, %v1626
  %v1628 = vadd.f32 %v1627, 0.4994258
  %v1629 = vmul.f32 %v1609, %v1628
  %v1630 = vadd.f32 %v1629, 1.0
  %v1631 = vrcp.pop %v1630
  %v1632 = vmul.f32 %v1630, %v1631
  %v1633 = vsub.f32 1.0, %v1632
  %v1634 = vmul.f32 %v1631, %v1633
  %v1635 = vadd.f32 %v1631, %v1634
  %vm1636 = vweird.f32 %v1630
  %vm1637 = vweird.f32 %v1631
  %vm1638 = vmor %vm1636, %vm1637
  %v1639 = vsel %vm1638, %v1631, %v1635
  %v1640 = vand.u32 2147483647, %v1630
  %vm1641 = vcmp.eq.f32.partialorder %v1640, 8.507059e+37
  %v1642 = vand.u32 %v1630, 2147483648
  %v1643 = vor.u32 1.1754944e-38, %v1642
  %v1644 = vsel %vm1641, %v1643, %v1639
  %v1645 = vmul.f32 %v1620, %v1644
  %v1646 = vmin.f32 %v1645, 1.0
  %v1647 = vmax.f32 %v1646, -1.0
  %v1648 = vmul.f32 %v953, %v953
  %v1649 = vmin.f32 16.0, %v1648
  %v1650 = vmul.f32 %v1649, 2.1237322e-06
  %v1651 = vadd.f32 %v1650, 0.00028619796
  %v1652 = vmul.f32 %v1649, %v1651
  %v1653 = vadd.f32 %v1652, 0.0036580483
  %v1654 = vmul.f32 %v1649, %v1653
  %v1655 = vadd.f32 %v1654, 0.05243302
  %v1656 = vmul.f32 %v1649, %v1655
  %v1657 = vadd.f32 %v1656, 0.18741608
  %v1658 = vmul.f32 %v1649, %v1657
  %v1659 = vadd.f32 %v1658, 1.1283791
  %v1660 = vmul.f32 %v953, %v1659
  %v1661 = vmul.f32 %v1649, 3.8918573e-05
  %v1662 = vadd.f32 %v1661, 0.001143296
  %v1663 = vmul.f32 %v1649, %v1662
  %v1664 = vadd.f32 %v1663, 0.014752088
  %v1665 = vmul.f32 %v1649, %v1664
  %v1666 = vadd.f32 %v1665, 0.112945676
  %v1667 = vmul.f32 %v1649, %v1666
  %v1668 = vadd.f32 %v1667, 0.4994258
  %v1669 = vmul.f32 %v1649, %v1668
  %v1670 = vadd.f32 %v1669, 1.0
  %v1671 = vrcp.pop %v1670
  %v1672 = vmul.f32 %v1670, %v1671
  %v1673 = vsub.f32 1.0, %v1672
  %v1674 = vmul.f32 %v1671, %v1673
  %v1675 = vadd.f32 %v1671, %v1674
  %vm1676 = vweird.f32 %v1670
  %vm1677 = vweird.f32 %v1671
  %vm1678 = vmor %vm1676, %vm1677
  %v1679 = vsel %vm1678, %v1671, %v1675
  %v1680 = vand.u32 2147483647, %v1670
  %vm1681 = vcmp.eq.f32.partialorder %v1680, 8.507059e+37
  %v1682 = vand.u32 %v1670, 2147483648
  %v1683 = vor.u32 1.1754944e-38, %v1682
  %v1684 = vsel %vm1681, %v1683, %v1679
  %v1685 = vmul.f32 %v1660, %v1684
  %v1686 = vmin.f32 %v1685, 1.0
  %v1687 = vmax.f32 %v1686, -1.0
  %v1688 = vmul.f32 %v954, %v954
  %v1689 = vmin.f32 16.0, %v1688
  %v1690 = vmul.f32 %v1689, 2.1237322e-06
  %v1691 = vadd.f32 %v1690, 0.00028619796
  %v1692 = vmul.f32 %v1689, %v1691
  %v1693 = vadd.f32 %v1692, 0.0036580483
  %v1694 = vmul.f32 %v1689, %v1693
  %v1695 = vadd.f32 %v1694, 0.05243302
  %v1696 = vmul.f32 %v1689, %v1695
  %v1697 = vadd.f32 %v1696, 0.18741608
  %v1698 = vmul.f32 %v1689, %v1697
  %v1699 = vadd.f32 %v1698, 1.1283791
  %v1700 = vmul.f32 %v954, %v1699
  %v1701 = vmul.f32 %v1689, 3.8918573e-05
  %v1702 = vadd.f32 %v1701, 0.001143296
  %v1703 = vmul.f32 %v1689, %v1702
  %v1704 = vadd.f32 %v1703, 0.014752088
  %v1705 = vmul.f32 %v1689, %v1704
  %v1706 = vadd.f32 %v1705, 0.112945676
  %v1707 = vmul.f32 %v1689, %v1706
  %v1708 = vadd.f32 %v1707, 0.4994258
  %v1709 = vmul.f32 %v1689, %v1708
  %v1710 = vadd.f32 %v1709, 1.0
  %v1711 = vrcp.pop %v1710
  %v1712 = vmul.f32 %v1710, %v1711
  %v1713 = vsub.f32 1.0, %v1712
  %v1714 = vmul.f32 %v1711, %v1713
  %v1715 = vadd.f32 %v1711, %v1714
  %vm1716 = vweird.f32 %v1710
  %vm1717 = vweird.f32 %v1711
  %vm1718 = vmor %vm1716, %vm1717
  %v1719 = vsel %vm1718, %v1711, %v1715
  %v1720 = vand.u32 2147483647, %v1710
  %vm1721 = vcmp.eq.f32.partialorder %v1720, 8.507059e+37
  %v1722 = vand.u32 %v1710, 2147483648
  %v1723 = vor.u32 1.1754944e-38, %v1722
  %v1724 = vsel %vm1721, %v1723, %v1719
  %v1725 = vmul.f32 %v1700, %v1724
  %v1726 = vmin.f32 %v1725, 1.0
  %v1727 = vmax.f32 %v1726, -1.0
  %v1728 = vmul.f32 %v955, %v955
  %v1729 = vmin.f32 16.0, %v1728
  %v1730 = vmul.f32 %v1729, 2.1237322e-06
  %v1731 = vadd.f32 %v1730, 0.00028619796
  %v1732 = vmul.f32 %v1729, %v1731
  %v1733 = vadd.f32 %v1732, 0.0036580483
  %v1734 = vmul.f32 %v1729, %v1733
  %v1735 = vadd.f32 %v1734, 0.05243302
  %v1736 = vmul.f32 %v1729, %v1735
  %v1737 = vadd.f32 %v1736, 0.18741608
  %v1738 = vmul.f32 %v1729, %v1737
  %v1739 = vadd.f32 %v1738, 1.1283791
  %v1740 = vmul.f32 %v955, %v1739
  %v1741 = vmul.f32 %v1729, 3.8918573e-05
  %v1742 = vadd.f32 %v1741, 0.001143296
  %v1743 = vmul.f32 %v1729, %v1742
  %v1744 = vadd.f32 %v1743, 0.014752088
  %v1745 = vmul.f32 %v1729, %v1744
  %v1746 = vadd.f32 %v1745, 0.112945676
  %v1747 = vmul.f32 %v1729, %v1746
  %v1748 = vadd.f32 %v1747, 0.4994258
  %v1749 = vmul.f32 %v1729, %v1748
  %v1750 = vadd.f32 %v1749, 1.0
  %v1751 = vrcp.pop %v1750
  %v1752 = vmul.f32 %v1750, %v1751
  %v1753 = vsub.f32 1.0, %v1752
  %v1754 = vmul.f32 %v1751, %v1753
  %v1755 = vadd.f32 %v1751, %v1754
  %vm1756 = vweird.f32 %v1750
  %vm1757 = vweird.f32 %v1751
  %vm1758 = vmor %vm1756, %vm1757
  %v1759 = vsel %vm1758, %v1751, %v1755
  %v1760 = vand.u32 2147483647, %v1750
  %vm1761 = vcmp.eq.f32.partialorder %v1760, 8.507059e+37
  %v1762 = vand.u32 %v1750, 2147483648
  %v1763 = vor.u32 1.1754944e-38, %v1762
  %v1764 = vsel %vm1761, %v1763, %v1759
  %v1765 = vmul.f32 %v1740, %v1764
  %v1766 = vmin.f32 %v1765, 1.0
  %v1767 = vmax.f32 %v1766, -1.0
  %v1768 = vmul.f32 %v956, %v956
  %v1769 = vmin.f32 16.0, %v1768
  %v1770 = vmul.f32 %v1769, 2.1237322e-06
  %v1771 = vadd.f32 %v1770, 0.00028619796
  %v1772 = vmul.f32 %v1769, %v1771
  %v1773 = vadd.f32 %v1772, 0.0036580483
  %v1774 = vmul.f32 %v1769, %v1773
  %v1775 = vadd.f32 %v1774, 0.05243302
  %v1776 = vmul.f32 %v1769, %v1775
  %v1777 = vadd.f32 %v1776, 0.18741608
  %v1778 = vmul.f32 %v1769, %v1777
  %v1779 = vadd.f32 %v1778, 1.1283791
  %v1780 = vmul.f32 %v956, %v1779
  %v1781 = vmul.f32 %v1769, 3.8918573e-05
  %v1782 = vadd.f32 %v1781, 0.001143296
  %v1783 = vmul.f32 %v1769, %v1782
  %v1784 = vadd.f32 %v1783, 0.014752088
  %v1785 = vmul.f32 %v1769, %v1784
  %v1786 = vadd.f32 %v1785, 0.112945676
  %v1787 = vmul.f32 %v1769, %v1786
  %v1788 = vadd.f32 %v1787, 0.4994258
  %v1789 = vmul.f32 %v1769, %v1788
  %v1790 = vadd.f32 %v1789, 1.0
  %v1791 = vrcp.pop %v1790
  %v1792 = vmul.f32 %v1790, %v1791
  %v1793 = vsub.f32 1.0, %v1792
  %v1794 = vmul.f32 %v1791, %v1793
  %v1795 = vadd.f32 %v1791, %v1794
  %vm1796 = vweird.f32 %v1790
  %vm1797 = vweird.f32 %v1791
  %vm1798 = vmor %vm1796, %vm1797
  %v1799 = vsel %vm1798, %v1791, %v1795
  %v1800 = vand.u32 2147483647, %v1790
  %vm1801 = vcmp.eq.f32.partialorder %v1800, 8.507059e+37
  %v1802 = vand.u32 %v1790, 2147483648
  %v1803 = vor.u32 1.1754944e-38, %v1802
  %v1804 = vsel %vm1801, %v1803, %v1799
  %v1805 = vmul.f32 %v1780, %v1804
  %v1806 = vmin.f32 %v1805, 1.0
  %v1807 = vmax.f32 %v1806, -1.0
  %v1808 = vmul.f32 %v957, %v957
  %v1809 = vmin.f32 16.0, %v1808
  %v1810 = vmul.f32 %v1809, 2.1237322e-06
  %v1811 = vadd.f32 %v1810, 0.00028619796
  %v1812 = vmul.f32 %v1809, %v1811
  %v1813 = vadd.f32 %v1812, 0.0036580483
  %v1814 = vmul.f32 %v1809, %v1813
  %v1815 = vadd.f32 %v1814, 0.05243302
  %v1816 = vmul.f32 %v1809, %v1815
  %v1817 = vadd.f32 %v1816, 0.18741608
  %v1818 = vmul.f32 %v1809, %v1817
  %v1819 = vadd.f32 %v1818, 1.1283791
  %v1820 = vmul.f32 %v957, %v1819
  %v1821 = vmul.f32 %v1809, 3.8918573e-05
  %v1822 = vadd.f32 %v1821, 0.001143296
  %v1823 = vmul.f32 %v1809, %v1822
  %v1824 = vadd.f32 %v1823, 0.014752088
  %v1825 = vmul.f32 %v1809, %v1824
  %v1826 = vadd.f32 %v1825, 0.112945676
  %v1827 = vmul.f32 %v1809, %v1826
  %v1828 = vadd.f32 %v1827, 0.4994258
  %v1829 = vmul.f32 %v1809, %v1828
  %v1830 = vadd.f32 %v1829, 1.0
  %v1831 = vrcp.pop %v1830
  %v1832 = vmul.f32 %v1830, %v1831
  %v1833 = vsub.f32 1.0, %v1832
  %v1834 = vmul.f32 %v1831, %v1833
  %v1835 = vadd.f32 %v1831, %v1834
  %vm1836 = vweird.f32 %v1830
  %vm1837 = vweird.f32 %v1831
  %vm1838 = vmor %vm1836, %vm1837
  %v1839 = vsel %vm1838, %v1831, %v1835
  %v1840 = vand.u32 2147483647, %v1830
  %vm1841 = vcmp.eq.f32.partialorder %v1840, 8.507059e+37
  %v1842 = vand.u32 %v1830, 2147483648
  %v1843 = vor.u32 1.1754944e-38, %v1842
  %v1844 = vsel %vm1841, %v1843, %v1839
  %v1845 = vmul.f32 %v1820, %v1844
  %v1846 = vmin.f32 %v1845, 1.0
  %v1847 = vmax.f32 %v1846, -1.0
  %v1848 = vmul.f32 %v958, %v958
  %v1849 = vmin.f32 16.0, %v1848
  %v1850 = vmul.f32 %v1849, 2.1237322e-06
  %v1851 = vadd.f32 %v1850, 0.00028619796
  %v1852 = vmul.f32 %v1849, %v1851
  %v1853 = vadd.f32 %v1852, 0.0036580483
  %v1854 = vmul.f32 %v1849, %v1853
  %v1855 = vadd.f32 %v1854, 0.05243302
  %v1856 = vmul.f32 %v1849, %v1855
  %v1857 = vadd.f32 %v1856, 0.18741608
  %v1858 = vmul.f32 %v1849, %v1857
  %v1859 = vadd.f32 %v1858, 1.1283791
  %v1860 = vmul.f32 %v958, %v1859
  %v1861 = vmul.f32 %v1849, 3.8918573e-05
  %v1862 = vadd.f32 %v1861, 0.001143296
  %v1863 = vmul.f32 %v1849, %v1862
  %v1864 = vadd.f32 %v1863, 0.014752088
  %v1865 = vmul.f32 %v1849, %v1864
  %v1866 = vadd.f32 %v1865, 0.112945676
  %v1867 = vmul.f32 %v1849, %v1866
  %v1868 = vadd.f32 %v1867, 0.4994258
  %v1869 = vmul.f32 %v1849, %v1868
  %v1870 = vadd.f32 %v1869, 1.0
  %v1871 = vrcp.pop %v1870
  %v1872 = vmul.f32 %v1870, %v1871
  %v1873 = vsub.f32 1.0, %v1872
  %v1874 = vmul.f32 %v1871, %v1873
  %v1875 = vadd.f32 %v1871, %v1874
  %vm1876 = vweird.f32 %v1870
  %vm1877 = vweird.f32 %v1871
  %vm1878 = vmor %vm1876, %vm1877
  %v1879 = vsel %vm1878, %v1871, %v1875
  %v1880 = vand.u32 2147483647, %v1870
  %vm1881 = vcmp.eq.f32.partialorder %v1880, 8.507059e+37
  %v1882 = vand.u32 %v1870, 2147483648
  %v1883 = vor.u32 1.1754944e-38, %v1882
  %v1884 = vsel %vm1881, %v1883, %v1879
  %v1885 = vmul.f32 %v1860, %v1884
  %v1886 = vmin.f32 %v1885, 1.0
  %v1887 = vmax.f32 %v1886, -1.0
  %v1888 = vmul.f32 %v959, %v959
  %v1889 = vmin.f32 16.0, %v1888
  %v1890 = vmul.f32 %v1889, 2.1237322e-06
  %v1891 = vadd.f32 %v1890, 0.00028619796
  %v1892 = vmul.f32 %v1889, %v1891
  %v1893 = vadd.f32 %v1892, 0.0036580483
  %v1894 = vmul.f32 %v1889, %v1893
  %v1895 = vadd.f32 %v1894, 0.05243302
  %v1896 = vmul.f32 %v1889, %v1895
  %v1897 = vadd.f32 %v1896, 0.18741608
  %v1898 = vmul.f32 %v1889, %v1897
  %v1899 = vadd.f32 %v1898, 1.1283791
  %v1900 = vmul.f32 %v959, %v1899
  %v1901 = vmul.f32 %v1889, 3.8918573e-05
  %v1902 = vadd.f32 %v1901, 0.001143296
  %v1903 = vmul.f32 %v1889, %v1902
  %v1904 = vadd.f32 %v1903, 0.014752088
  %v1905 = vmul.f32 %v1889, %v1904
  %v1906 = vadd.f32 %v1905, 0.112945676
  %v1907 = vmul.f32 %v1889, %v1906
  %v1908 = vadd.f32 %v1907, 0.4994258
  %v1909 = vmul.f32 %v1889, %v1908
  %v1910 = vadd.f32 %v1909, 1.0
  %v1911 = vrcp.pop %v1910
  %v1912 = vmul.f32 %v1910, %v1911
  %v1913 = vsub.f32 1.0, %v1912
  %v1914 = vmul.f32 %v1911, %v1913
  %v1915 = vadd.f32 %v1911, %v1914
  %vm1916 = vweird.f32 %v1910
  %vm1917 = vweird.f32 %v1911
  %vm1918 = vmor %vm1916, %vm1917
  %v1919 = vsel %vm1918, %v1911, %v1915
  %v1920 = vand.u32 2147483647, %v1910
  %vm1921 = vcmp.eq.f32.partialorder %v1920, 8.507059e+37
  %v1922 = vand.u32 %v1910, 2147483648
  %v1923 = vor.u32 1.1754944e-38, %v1922
  %v1924 = vsel %vm1921, %v1923, %v1919
  %v1925 = vmul.f32 %v1900, %v1924
  %v1926 = vmin.f32 %v1925, 1.0
  %v1927 = vmax.f32 %v1926, -1.0
  %v1928 = vmul.f32 %v960, %v960
  %v1929 = vmin.f32 16.0, %v1928
  %v1930 = vmul.f32 %v1929, 2.1237322e-06
  %v1931 = vadd.f32 %v1930, 0.00028619796
  %v1932 = vmul.f32 %v1929, %v1931
  %v1933 = vadd.f32 %v1932, 0.0036580483
  %v1934 = vmul.f32 %v1929, %v1933
  %v1935 = vadd.f32 %v1934, 0.05243302
  %v1936 = vmul.f32 %v1929, %v1935
  %v1937 = vadd.f32 %v1936, 0.18741608
  %v1938 = vmul.f32 %v1929, %v1937
  %v1939 = vadd.f32 %v1938, 1.1283791
  %v1940 = vmul.f32 %v960, %v1939
  %v1941 = vmul.f32 %v1929, 3.8918573e-05
  %v1942 = vadd.f32 %v1941, 0.001143296
  %v1943 = vmul.f32 %v1929, %v1942
  %v1944 = vadd.f32 %v1943, 0.014752088
  %v1945 = vmul.f32 %v1929, %v1944
  %v1946 = vadd.f32 %v1945, 0.112945676
  %v1947 = vmul.f32 %v1929, %v1946
  %v1948 = vadd.f32 %v1947, 0.4994258
  %v1949 = vmul.f32 %v1929, %v1948
  %v1950 = vadd.f32 %v1949, 1.0
  %v1951 = vrcp.pop %v1950
  %v1952 = vmul.f32 %v1950, %v1951
  %v1953 = vsub.f32 1.0, %v1952
  %v1954 = vmul.f32 %v1951, %v1953
  %v1955 = vadd.f32 %v1951, %v1954
  %vm1956 = vweird.f32 %v1950
  %vm1957 = vweird.f32 %v1951
  %vm1958 = vmor %vm1956, %vm1957
  %v1959 = vsel %vm1958, %v1951, %v1955
  %v1960 = vand.u32 2147483647, %v1950
  %vm1961 = vcmp.eq.f32.partialorder %v1960, 8.507059e+37
  %v1962 = vand.u32 %v1950, 2147483648
  %v1963 = vor.u32 1.1754944e-38, %v1962
  %v1964 = vsel %vm1961, %v1963, %v1959
  %v1965 = vmul.f32 %v1940, %v1964
  %v1966 = vmin.f32 %v1965, 1.0
  %v1967 = vmax.f32 %v1966, -1.0
  %v1968 = vmul.f32 %v961, %v961
  %v1969 = vmin.f32 16.0, %v1968
  %v1970 = vmul.f32 %v1969, 2.1237322e-06
  %v1971 = vadd.f32 %v1970, 0.00028619796
  %v1972 = vmul.f32 %v1969, %v1971
  %v1973 = vadd.f32 %v1972, 0.0036580483
  %v1974 = vmul.f32 %v1969, %v1973
  %v1975 = vadd.f32 %v1974, 0.05243302
  %v1976 = vmul.f32 %v1969, %v1975
  %v1977 = vadd.f32 %v1976, 0.18741608
  %v1978 = vmul.f32 %v1969, %v1977
  %v1979 = vadd.f32 %v1978, 1.1283791
  %v1980 = vmul.f32 %v961, %v1979
  %v1981 = vmul.f32 %v1969, 3.8918573e-05
  %v1982 = vadd.f32 %v1981, 0.001143296
  %v1983 = vmul.f32 %v1969, %v1982
  %v1984 = vadd.f32 %v1983, 0.014752088
  %v1985 = vmul.f32 %v1969, %v1984
  %v1986 = vadd.f32 %v1985, 0.112945676
  %v1987 = vmul.f32 %v1969, %v1986
  %v1988 = vadd.f32 %v1987, 0.4994258
  %v1989 = vmul.f32 %v1969, %v1988
  %v1990 = vadd.f32 %v1989, 1.0
  %v1991 = vrcp.pop %v1990
  %v1992 = vmul.f32 %v1990, %v1991
  %v1993 = vsub.f32 1.0, %v1992
  %v1994 = vmul.f32 %v1991, %v1993
  %v1995 = vadd.f32 %v1991, %v1994
  %vm1996 = vweird.f32 %v1990
  %vm1997 = vweird.f32 %v1991
  %vm1998 = vmor %vm1996, %vm1997
  %v1999 = vsel %vm1998, %v1991, %v1995
  %v2000 = vand.u32 2147483647, %v1990
  %vm2001 = vcmp.eq.f32.partialorder %v2000, 8.507059e+37
  %v2002 = vand.u32 %v1990, 2147483648
  %v2003 = vor.u32 1.1754944e-38, %v2002
  %v2004 = vsel %vm2001, %v2003, %v1999
  %v2005 = vmul.f32 %v1980, %v2004
  %v2006 = vmin.f32 %v2005, 1.0
  %v2007 = vmax.f32 %v2006, -1.0
  %v2008 = vmul.f32 %v962, %v962
  %v2009 = vmin.f32 16.0, %v2008
  %v2010 = vmul.f32 %v2009, 2.1237322e-06
  %v2011 = vadd.f32 %v2010, 0.00028619796
  %v2012 = vmul.f32 %v2009, %v2011
  %v2013 = vadd.f32 %v2012, 0.0036580483
  %v2014 = vmul.f32 %v2009, %v2013
  %v2015 = vadd.f32 %v2014, 0.05243302
  %v2016 = vmul.f32 %v2009, %v2015
  %v2017 = vadd.f32 %v2016, 0.18741608
  %v2018 = vmul.f32 %v2009, %v2017
  %v2019 = vadd.f32 %v2018, 1.1283791
  %v2020 = vmul.f32 %v962, %v2019
  %v2021 = vmul.f32 %v2009, 3.8918573e-05
  %v2022 = vadd.f32 %v2021, 0.001143296
  %v2023 = vmul.f32 %v2009, %v2022
  %v2024 = vadd.f32 %v2023, 0.014752088
  %v2025 = vmul.f32 %v2009, %v2024
  %v2026 = vadd.f32 %v2025, 0.112945676
  %v2027 = vmul.f32 %v2009, %v2026
  %v2028 = vadd.f32 %v2027, 0.4994258
  %v2029 = vmul.f32 %v2009, %v2028
  %v2030 = vadd.f32 %v2029, 1.0
  %v2031 = vrcp.pop %v2030
  %v2032 = vmul.f32 %v2030, %v2031
  %v2033 = vsub.f32 1.0, %v2032
  %v2034 = vmul.f32 %v2031, %v2033
  %v2035 = vadd.f32 %v2031, %v2034
  %vm2036 = vweird.f32 %v2030
  %vm2037 = vweird.f32 %v2031
  %vm2038 = vmor %vm2036, %vm2037
  %v2039 = vsel %vm2038, %v2031, %v2035
  %v2040 = vand.u32 2147483647, %v2030
  %vm2041 = vcmp.eq.f32.partialorder %v2040, 8.507059e+37
  %v2042 = vand.u32 %v2030, 2147483648
  %v2043 = vor.u32 1.1754944e-38, %v2042
  %v2044 = vsel %vm2041, %v2043, %v2039
  %v2045 = vmul.f32 %v2020, %v2044
  %v2046 = vmin.f32 %v2045, 1.0
  %v2047 = vmax.f32 %v2046, -1.0
  %v2048 = vmul.f32 %v963, %v963
  %v2049 = vmin.f32 16.0, %v2048
  %v2050 = vmul.f32 %v2049, 2.1237322e-06
  %v2051 = vadd.f32 %v2050, 0.00028619796
  %v2052 = vmul.f32 %v2049, %v2051
  %v2053 = vadd.f32 %v2052, 0.0036580483
  %v2054 = vmul.f32 %v2049, %v2053
  %v2055 = vadd.f32 %v2054, 0.05243302
  %v2056 = vmul.f32 %v2049, %v2055
  %v2057 = vadd.f32 %v2056, 0.18741608
  %v2058 = vmul.f32 %v2049, %v2057
  %v2059 = vadd.f32 %v2058, 1.1283791
  %v2060 = vmul.f32 %v963, %v2059
  %v2061 = vmul.f32 %v2049, 3.8918573e-05
  %v2062 = vadd.f32 %v2061, 0.001143296
  %v2063 = vmul.f32 %v2049, %v2062
  %v2064 = vadd.f32 %v2063, 0.014752088
  %v2065 = vmul.f32 %v2049, %v2064
  %v2066 = vadd.f32 %v2065, 0.112945676
  %v2067 = vmul.f32 %v2049, %v2066
  %v2068 = vadd.f32 %v2067, 0.4994258
  %v2069 = vmul.f32 %v2049, %v2068
  %v2070 = vadd.f32 %v2069, 1.0
  %v2071 = vrcp.pop %v2070
  %v2072 = vmul.f32 %v2070, %v2071
  %v2073 = vsub.f32 1.0, %v2072
  %v2074 = vmul.f32 %v2071, %v2073
  %v2075 = vadd.f32 %v2071, %v2074
  %vm2076 = vweird.f32 %v2070
  %vm2077 = vweird.f32 %v2071
  %vm2078 = vmor %vm2076, %vm2077
  %v2079 = vsel %vm2078, %v2071, %v2075
  %v2080 = vand.u32 2147483647, %v2070
  %vm2081 = vcmp.eq.f32.partialorder %v2080, 8.507059e+37
  %v2082 = vand.u32 %v2070, 2147483648
  %v2083 = vor.u32 1.1754944e-38, %v2082
  %v2084 = vsel %vm2081, %v2083, %v2079
  %v2085 = vmul.f32 %v2060, %v2084
  %v2086 = vmin.f32 %v2085, 1.0
  %v2087 = vmax.f32 %v2086, -1.0
  %v2088 = vmul.f32 %v964, %v964
  %v2089 = vmin.f32 16.0, %v2088
  %v2090 = vmul.f32 %v2089, 2.1237322e-06
  %v2091 = vadd.f32 %v2090, 0.00028619796
  %v2092 = vmul.f32 %v2089, %v2091
  %v2093 = vadd.f32 %v2092, 0.0036580483
  %v2094 = vmul.f32 %v2089, %v2093
  %v2095 = vadd.f32 %v2094, 0.05243302
  %v2096 = vmul.f32 %v2089, %v2095
  %v2097 = vadd.f32 %v2096, 0.18741608
  %v2098 = vmul.f32 %v2089, %v2097
  %v2099 = vadd.f32 %v2098, 1.1283791
  %v2100 = vmul.f32 %v964, %v2099
  %v2101 = vmul.f32 %v2089, 3.8918573e-05
  %v2102 = vadd.f32 %v2101, 0.001143296
  %v2103 = vmul.f32 %v2089, %v2102
  %v2104 = vadd.f32 %v2103, 0.014752088
  %v2105 = vmul.f32 %v2089, %v2104
  %v2106 = vadd.f32 %v2105, 0.112945676
  %v2107 = vmul.f32 %v2089, %v2106
  %v2108 = vadd.f32 %v2107, 0.4994258
  %v2109 = vmul.f32 %v2089, %v2108
  %v2110 = vadd.f32 %v2109, 1.0
  %v2111 = vrcp.pop %v2110
  %v2112 = vmul.f32 %v2110, %v2111
  %v2113 = vsub.f32 1.0, %v2112
  %v2114 = vmul.f32 %v2111, %v2113
  %v2115 = vadd.f32 %v2111, %v2114
  %vm2116 = vweird.f32 %v2110
  %vm2117 = vweird.f32 %v2111
  %vm2118 = vmor %vm2116, %vm2117
  %v2119 = vsel %vm2118, %v2111, %v2115
  %v2120 = vand.u32 2147483647, %v2110
  %vm2121 = vcmp.eq.f32.partialorder %v2120, 8.507059e+37
  %v2122 = vand.u32 %v2110, 2147483648
  %v2123 = vor.u32 1.1754944e-38, %v2122
  %v2124 = vsel %vm2121, %v2123, %v2119
  %v2125 = vmul.f32 %v2100, %v2124
  %v2126 = vmin.f32 %v2125, 1.0
  %v2127 = vmax.f32 %v2126, -1.0
  %v2128 = vmul.f32 %v965, %v965
  %v2129 = vmin.f32 16.0, %v2128
  %v2130 = vmul.f32 %v2129, 2.1237322e-06
  %v2131 = vadd.f32 %v2130, 0.00028619796
  %v2132 = vmul.f32 %v2129, %v2131
  %v2133 = vadd.f32 %v2132, 0.0036580483
  %v2134 = vmul.f32 %v2129, %v2133
  %v2135 = vadd.f32 %v2134, 0.05243302
  %v2136 = vmul.f32 %v2129, %v2135
  %v2137 = vadd.f32 %v2136, 0.18741608
  %v2138 = vmul.f32 %v2129, %v2137
  %v2139 = vadd.f32 %v2138, 1.1283791
  %v2140 = vmul.f32 %v965, %v2139
  %v2141 = vmul.f32 %v2129, 3.8918573e-05
  %v2142 = vadd.f32 %v2141, 0.001143296
  %v2143 = vmul.f32 %v2129, %v2142
  %v2144 = vadd.f32 %v2143, 0.014752088
  %v2145 = vmul.f32 %v2129, %v2144
  %v2146 = vadd.f32 %v2145, 0.112945676
  %v2147 = vmul.f32 %v2129, %v2146
  %v2148 = vadd.f32 %v2147, 0.4994258
  %v2149 = vmul.f32 %v2129, %v2148
  %v2150 = vadd.f32 %v2149, 1.0
  %v2151 = vrcp.pop %v2150
  %v2152 = vmul.f32 %v2150, %v2151
  %v2153 = vsub.f32 1.0, %v2152
  %v2154 = vmul.f32 %v2151, %v2153
  %v2155 = vadd.f32 %v2151, %v2154
  %vm2156 = vweird.f32 %v2150
  %vm2157 = vweird.f32 %v2151
  %vm2158 = vmor %vm2156, %vm2157
  %v2159 = vsel %vm2158, %v2151, %v2155
  %v2160 = vand.u32 2147483647, %v2150
  %vm2161 = vcmp.eq.f32.partialorder %v2160, 8.507059e+37
  %v2162 = vand.u32 %v2150, 2147483648
  %v2163 = vor.u32 1.1754944e-38, %v2162
  %v2164 = vsel %vm2161, %v2163, %v2159
  %v2165 = vmul.f32 %v2140, %v2164
  %v2166 = vmin.f32 %v2165, 1.0
  %v2167 = vmax.f32 %v2166, -1.0
  %v2168 = vmul.f32 %v966, %v966
  %v2169 = vmin.f32 16.0, %v2168
  %v2170 = vmul.f32 %v2169, 2.1237322e-06
  %v2171 = vadd.f32 %v2170, 0.00028619796
  %v2172 = vmul.f32 %v2169, %v2171
  %v2173 = vadd.f32 %v2172, 0.0036580483
  %v2174 = vmul.f32 %v2169, %v2173
  %v2175 = vadd.f32 %v2174, 0.05243302
  %v2176 = vmul.f32 %v2169, %v2175
  %v2177 = vadd.f32 %v2176, 0.18741608
  %v2178 = vmul.f32 %v2169, %v2177
  %v2179 = vadd.f32 %v2178, 1.1283791
  %v2180 = vmul.f32 %v966, %v2179
  %v2181 = vmul.f32 %v2169, 3.8918573e-05
  %v2182 = vadd.f32 %v2181, 0.001143296
  %v2183 = vmul.f32 %v2169, %v2182
  %v2184 = vadd.f32 %v2183, 0.014752088
  %v2185 = vmul.f32 %v2169, %v2184
  %v2186 = vadd.f32 %v2185, 0.112945676
  %v2187 = vmul.f32 %v2169, %v2186
  %v2188 = vadd.f32 %v2187, 0.4994258
  %v2189 = vmul.f32 %v2169, %v2188
  %v2190 = vadd.f32 %v2189, 1.0
  %v2191 = vrcp.pop %v2190
  %v2192 = vmul.f32 %v2190, %v2191
  %v2193 = vsub.f32 1.0, %v2192
  %v2194 = vmul.f32 %v2191, %v2193
  %v2195 = vadd.f32 %v2191, %v2194
  %vm2196 = vweird.f32 %v2190
  %vm2197 = vweird.f32 %v2191
  %vm2198 = vmor %vm2196, %vm2197
  %v2199 = vsel %vm2198, %v2191, %v2195
  %v2200 = vand.u32 2147483647, %v2190
  %vm2201 = vcmp.eq.f32.partialorder %v2200, 8.507059e+37
  %v2202 = vand.u32 %v2190, 2147483648
  %v2203 = vor.u32 1.1754944e-38, %v2202
  %v2204 = vsel %vm2201, %v2203, %v2199
  %v2205 = vmul.f32 %v2180, %v2204
  %v2206 = vmin.f32 %v2205, 1.0
  %v2207 = vmax.f32 %v2206, -1.0
  %v2208 = vmul.f32 %v967, %v967
  %v2209 = vmin.f32 16.0, %v2208
  %v2210 = vmul.f32 %v2209, 2.1237322e-06
  %v2211 = vadd.f32 %v2210, 0.00028619796
  %v2212 = vmul.f32 %v2209, %v2211
  %v2213 = vadd.f32 %v2212, 0.0036580483
  %v2214 = vmul.f32 %v2209, %v2213
  %v2215 = vadd.f32 %v2214, 0.05243302
  %v2216 = vmul.f32 %v2209, %v2215
  %v2217 = vadd.f32 %v2216, 0.18741608
  %v2218 = vmul.f32 %v2209, %v2217
  %v2219 = vadd.f32 %v2218, 1.1283791
  %v2220 = vmul.f32 %v967, %v2219
  %v2221 = vmul.f32 %v2209, 3.8918573e-05
  %v2222 = vadd.f32 %v2221, 0.001143296
  %v2223 = vmul.f32 %v2209, %v2222
  %v2224 = vadd.f32 %v2223, 0.014752088
  %v2225 = vmul.f32 %v2209, %v2224
  %v2226 = vadd.f32 %v2225, 0.112945676
  %v2227 = vmul.f32 %v2209, %v2226
  %v2228 = vadd.f32 %v2227, 0.4994258
  %v2229 = vmul.f32 %v2209, %v2228
  %v2230 = vadd.f32 %v2229, 1.0
  %v2231 = vrcp.pop %v2230
  %v2232 = vmul.f32 %v2230, %v2231
  %v2233 = vsub.f32 1.0, %v2232
  %v2234 = vmul.f32 %v2231, %v2233
  %v2235 = vadd.f32 %v2231, %v2234
  %vm2236 = vweird.f32 %v2230
  %vm2237 = vweird.f32 %v2231
  %vm2238 = vmor %vm2236, %vm2237
  %v2239 = vsel %vm2238, %v2231, %v2235
  %v2240 = vand.u32 2147483647, %v2230
  %vm2241 = vcmp.eq.f32.partialorder %v2240, 8.507059e+37
  %v2242 = vand.u32 %v2230, 2147483648
  %v2243 = vor.u32 1.1754944e-38, %v2242
  %v2244 = vsel %vm2241, %v2243, %v2239
  %v2245 = vmul.f32 %v2220, %v2244
  %v2246 = vmin.f32 %v2245, 1.0
  %v2247 = vmax.f32 %v2246, -1.0
  %v2248 = vadd.f32 %v1007, 1.0
  %v2249 = vadd.f32 %v1047, 1.0
  %v2250 = vadd.f32 %v1087, 1.0
  %v2251 = vadd.f32 %v1127, 1.0
  %v2252 = vadd.f32 %v1167, 1.0
  %v2253 = vadd.f32 %v1207, 1.0
  %v2254 = vadd.f32 %v1247, 1.0
  %v2255 = vadd.f32 %v1287, 1.0
  %v2256 = vadd.f32 %v1327, 1.0
  %v2257 = vadd.f32 %v1367, 1.0
  %v2258 = vadd.f32 %v1407, 1.0
  %v2259 = vadd.f32 %v1447, 1.0
  %v2260 = vadd.f32 %v1487, 1.0
  %v2261 = vadd.f32 %v1527, 1.0
  %v2262 = vadd.f32 %v1567, 1.0
  %v2263 = vadd.f32 %v1607, 1.0
  %v2264 = vadd.f32 %v1647, 1.0
  %v2265 = vadd.f32 %v1687, 1.0
  %v2266 = vadd.f32 %v1727, 1.0
  %v2267 = vadd.f32 %v1767, 1.0
  %v2268 = vadd.f32 %v1807, 1.0
  %v2269 = vadd.f32 %v1847, 1.0
  %v2270 = vadd.f32 %v1887, 1.0
  %v2271 = vadd.f32 %v1927, 1.0
  %v2272 = vadd.f32 %v1967, 1.0
  %v2273 = vadd.f32 %v2007, 1.0
  %v2274 = vadd.f32 %v2047, 1.0
  %v2275 = vadd.f32 %v2087, 1.0
  %v2276 = vadd.f32 %v2127, 1.0
  %v2277 = vadd.f32 %v2167, 1.0
  %v2278 = vadd.f32 %v2207, 1.0
  %v2279 = vadd.f32 %v2247, 1.0
  %v2280 = vmul.f32 %v904, %v2248
  %v2281 = vmul.f32 %v905, %v2249
  %v2282 = vmul.f32 %v906, %v2250
  %v2283 = vmul.f32 %v907, %v2251
  %v2284 = vmul.f32 %v908, %v2252
  %v2285 = vmul.f32 %v909, %v2253
  %v2286 = vmul.f32 %v910, %v2254
  %v2287 = vmul.f32 %v911, %v2255
  %v2288 = vmul.f32 %v912, %v2256
  %v2289 = vmul.f32 %v913, %v2257
  %v2290 = vmul.f32 %v914, %v2258
  %v2291 = vmul.f32 %v915, %v2259
  %v2292 = vmul.f32 %v916, %v2260
  %v2293 = vmul.f32 %v917, %v2261
  %v2294 = vmul.f32 %v918, %v2262
  %v2295 = vmul.f32 %v919, %v2263
  %v2296 = vmul.f32 %v920, %v2264
  %v2297 = vmul.f32 %v921, %v2265
  %v2298 = vmul.f32 %v922, %v2266
  %v2299 = vmul.f32 %v923, %v2267
  %v2300 = vmul.f32 %v924, %v2268
  %v2301 = vmul.f32 %v925, %v2269
  %v2302 = vmul.f32 %v926, %v2270
  %v2303 = vmul.f32 %v927, %v2271
  %v2304 = vmul.f32 %v928, %v2272
  %v2305 = vmul.f32 %v929, %v2273
  %v2306 = vmul.f32 %v930, %v2274
  %v2307 = vmul.f32 %v931, %v2275
  %v2308 = vmul.f32 %v932, %v2276
  %v2309 = vmul.f32 %v933, %v2277
  %v2310 = vmul.f32 %v934, %v2278
  %v2311 = vmul.f32 %v935, %v2279
  %v2312 = vld [vmem:[%s7] sm:$0xff]
  %v2313 = vld [vmem:[%s7 + $0x8] sm:$0xff]
  %v2314 = vld [vmem:[%s8] sm:$0xff]
  %v2315 = vld [vmem:[%s8 + $0x8] sm:$0xff]
  %2317 = vset.pattern.permute.xlu0 0
  %2318 = vperm.xlu0 %2317, %v2314
  %v2319 = vpop.permute.xlu0 %2318
  %2322 = vset.pattern.permute.xlu0 0
  %2323 = vperm.xlu0 %2322, %v2315
  %v2324 = vpop.permute.xlu0 %2323
  %vm2326 = vcmask 261120
  %v2328 = vsel %vm2326, %v2312, 0
  %v2331 = vsel %vm2326, %v2313, 0
  %2333 = vmatpush.msra.mxu0 0.0
  %2334 = vmatpush.msra.mxu0 0.0
  %2335 = vmatpush.msra.mxu0 0.0
  %2336 = vmatpush.msra.mxu0 0.0
  %2337 = vmatpush.msra.mxu0 0.0
  %2338 = vmatpush.msra.mxu0 0.0
  %2339 = vmatpush.msra.mxu0 0.0
  %2340 = vmatpush.msra.mxu0 0.0
  %2341 = vmatpush.msra.mxu0 0.0
  %2342 = vmatpush.msra.mxu0 0.0
  %2343 = vmatpush.msra.mxu0 0.0
  %2344 = vmatpush.msra.mxu0 0.0
  %2345 = vmatpush.msra.mxu0 %v2283
  %2346 = vmatpush.msra.mxu0 %v2282
  %2347 = vmatpush.msra.mxu0 %v2281
  %2348 = vmatpush.msra.mxu0 %v2280
  %2349 = vmatmul.f32.gmra.mxu0 %v2328
  %v2350 = vpop.f32.mrf.mxu0
  %v2351 = vadd.f32 %v2319, %v2350
  %2352 = vmatmul.f32.gmra.mxu0 %v2331
  %v2353 = vpop.f32.mrf.mxu0
  %v2354 = vadd.f32 %v2324, %v2353
  %2355 = vdwg.mxu0
  %2356 = vmatpush.msra.mxu0 0.0
  %2357 = vmatpush.msra.mxu0 0.0
  %2358 = vmatpush.msra.mxu0 0.0
  %2359 = vmatpush.msra.mxu0 0.0
  %2360 = vmatpush.msra.mxu0 0.0
  %2361 = vmatpush.msra.mxu0 0.0
  %2362 = vmatpush.msra.mxu0 0.0
  %2363 = vmatpush.msra.mxu0 0.0
  %2364 = vmatpush.msra.mxu0 0.0
  %2365 = vmatpush.msra.mxu0 0.0
  %2366 = vmatpush.msra.mxu0 0.0
  %2367 = vmatpush.msra.mxu0 0.0
  %2368 = vmatpush.msra.mxu0 %v2287
  %2369 = vmatpush.msra.mxu0 %v2286
  %2370 = vmatpush.msra.mxu0 %v2285
  %2371 = vmatpush.msra.mxu0 %v2284
  %2372 = vmatmul.f32.gmra.mxu0 %v2328
  %v2373 = vpop.f32.mrf.mxu0
  %v2374 = vadd.f32 %v2319, %v2373
  %2375 = vmatmul.f32.gmra.mxu0 %v2331
  %v2376 = vpop.f32.mrf.mxu0
  %v2377 = vadd.f32 %v2324, %v2376
  %2378 = vdwg.mxu0
  %2379 = vmatpush.msra.mxu0 0.0
  %2380 = vmatpush.msra.mxu0 0.0
  %2381 = vmatpush.msra.mxu0 0.0
  %2382 = vmatpush.msra.mxu0 0.0
  %2383 = vmatpush.msra.mxu0 0.0
  %2384 = vmatpush.msra.mxu0 0.0
  %2385 = vmatpush.msra.mxu0 0.0
  %2386 = vmatpush.msra.mxu0 0.0
  %2387 = vmatpush.msra.mxu0 0.0
  %2388 = vmatpush.msra.mxu0 0.0
  %2389 = vmatpush.msra.mxu0 0.0
  %2390 = vmatpush.msra.mxu0 0.0
  %2391 = vmatpush.msra.mxu0 %v2291
  %2392 = vmatpush.msra.mxu0 %v2290
  %2393 = vmatpush.msra.mxu0 %v2289
  %2394 = vmatpush.msra.mxu0 %v2288
  %2395 = vmatmul.f32.gmra.mxu0 %v2328
  %v2396 = vpop.f32.mrf.mxu0
  %v2397 = vadd.f32 %v2319, %v2396
  %2398 = vmatmul.f32.gmra.mxu0 %v2331
  %v2399 = vpop.f32.mrf.mxu0
  %v2400 = vadd.f32 %v2324, %v2399
  %2401 = vdwg.mxu0
  %2402 = vmatpush.msra.mxu0 0.0
  %2403 = vmatpush.msra.mxu0 0.0
  %2404 = vmatpush.msra.mxu0 0.0
  %2405 = vmatpush.msra.mxu0 0.0
  %2406 = vmatpush.msra.mxu0 0.0
  %2407 = vmatpush.msra.mxu0 0.0
  %2408 = vmatpush.msra.mxu0 0.0
  %2409 = vmatpush.msra.mxu0 0.0
  %2410 = vmatpush.msra.mxu0 0.0
  %2411 = vmatpush.msra.mxu0 0.0
  %2412 = vmatpush.msra.mxu0 0.0
  %2413 = vmatpush.msra.mxu0 0.0
  %2414 = vmatpush.msra.mxu0 %v2295
  %2415 = vmatpush.msra.mxu0 %v2294
  %2416 = vmatpush.msra.mxu0 %v2293
  %2417 = vmatpush.msra.mxu0 %v2292
  %2418 = vmatmul.f32.gmra.mxu0 %v2328
  %v2419 = vpop.f32.mrf.mxu0
  %v2420 = vadd.f32 %v2319, %v2419
  %2421 = vmatmul.f32.gmra.mxu0 %v2331
  %v2422 = vpop.f32.mrf.mxu0
  %v2423 = vadd.f32 %v2324, %v2422
  %2424 = vdwg.mxu0
  %2425 = vmatpush.msra.mxu0 0.0
  %2426 = vmatpush.msra.mxu0 0.0
  %2427 = vmatpush.msra.mxu0 0.0
  %2428 = vmatpush.msra.mxu0 0.0
  %2429 = vmatpush.msra.mxu0 0.0
  %2430 = vmatpush.msra.mxu0 0.0
  %2431 = vmatpush.msra.mxu0 0.0
  %2432 = vmatpush.msra.mxu0 0.0
  %2433 = vmatpush.msra.mxu0 0.0
  %2434 = vmatpush.msra.mxu0 0.0
  %2435 = vmatpush.msra.mxu0 0.0
  %2436 = vmatpush.msra.mxu0 0.0
  %2437 = vmatpush.msra.mxu0 %v2299
  %2438 = vmatpush.msra.mxu0 %v2298
  %2439 = vmatpush.msra.mxu0 %v2297
  %2440 = vmatpush.msra.mxu0 %v2296
  %2441 = vmatmul.f32.gmra.mxu0 %v2328
  %v2442 = vpop.f32.mrf.mxu0
  %v2443 = vadd.f32 %v2319, %v2442
  %2444 = vmatmul.f32.gmra.mxu0 %v2331
  %v2445 = vpop.f32.mrf.mxu0
  %v2446 = vadd.f32 %v2324, %v2445
  %2447 = vdwg.mxu0
  %2448 = vmatpush.msra.mxu0 0.0
  %2449 = vmatpush.msra.mxu0 0.0
  %2450 = vmatpush.msra.mxu0 0.0
  %2451 = vmatpush.msra.mxu0 0.0
  %2452 = vmatpush.msra.mxu0 0.0
  %2453 = vmatpush.msra.mxu0 0.0
  %2454 = vmatpush.msra.mxu0 0.0
  %2455 = vmatpush.msra.mxu0 0.0
  %2456 = vmatpush.msra.mxu0 0.0
  %2457 = vmatpush.msra.mxu0 0.0
  %2458 = vmatpush.msra.mxu0 0.0
  %2459 = vmatpush.msra.mxu0 0.0
  %2460 = vmatpush.msra.mxu0 %v2303
  %2461 = vmatpush.msra.mxu0 %v2302
  %2462 = vmatpush.msra.mxu0 %v2301
  %2463 = vmatpush.msra.mxu0 %v2300
  %2464 = vmatmul.f32.gmra.mxu0 %v2328
  %v2465 = vpop.f32.mrf.mxu0
  %v2466 = vadd.f32 %v2319, %v2465
  %2467 = vmatmul.f32.gmra.mxu0 %v2331
  %v2468 = vpop.f32.mrf.mxu0
  %v2469 = vadd.f32 %v2324, %v2468
  %2470 = vdwg.mxu0
  %2471 = vmatpush.msra.mxu0 0.0
  %2472 = vmatpush.msra.mxu0 0.0
  %2473 = vmatpush.msra.mxu0 0.0
  %2474 = vmatpush.msra.mxu0 0.0
  %2475 = vmatpush.msra.mxu0 0.0
  %2476 = vmatpush.msra.mxu0 0.0
  %2477 = vmatpush.msra.mxu0 0.0
  %2478 = vmatpush.msra.mxu0 0.0
  %2479 = vmatpush.msra.mxu0 0.0
  %2480 = vmatpush.msra.mxu0 0.0
  %2481 = vmatpush.msra.mxu0 0.0
  %2482 = vmatpush.msra.mxu0 0.0
  %2483 = vmatpush.msra.mxu0 %v2307
  %2484 = vmatpush.msra.mxu0 %v2306
  %2485 = vmatpush.msra.mxu0 %v2305
  %2486 = vmatpush.msra.mxu0 %v2304
  %2487 = vmatmul.f32.gmra.mxu0 %v2328
  %v2488 = vpop.f32.mrf.mxu0
  %v2489 = vadd.f32 %v2319, %v2488
  %2490 = vmatmul.f32.gmra.mxu0 %v2331
  %v2491 = vpop.f32.mrf.mxu0
  %v2492 = vadd.f32 %v2324, %v2491
  %2493 = vdwg.mxu0
  %2494 = vmatpush.msra.mxu0 0.0
  %2495 = vmatpush.msra.mxu0 0.0
  %2496 = vmatpush.msra.mxu0 0.0
  %2497 = vmatpush.msra.mxu0 0.0
  %2498 = vmatpush.msra.mxu0 0.0
  %2499 = vmatpush.msra.mxu0 0.0
  %2500 = vmatpush.msra.mxu0 0.0
  %2501 = vmatpush.msra.mxu0 0.0
  %2502 = vmatpush.msra.mxu0 0.0
  %2503 = vmatpush.msra.mxu0 0.0
  %2504 = vmatpush.msra.mxu0 0.0
  %2505 = vmatpush.msra.mxu0 0.0
  %2506 = vmatpush.msra.mxu0 %v2311
  %2507 = vmatpush.msra.mxu0 %v2310
  %2508 = vmatpush.msra.mxu0 %v2309
  %2509 = vmatpush.msra.mxu0 %v2308
  %2510 = vmatmul.f32.gmra.mxu0 %v2328
  %v2511 = vpop.f32.mrf.mxu0
  %v2512 = vadd.f32 %v2319, %v2511
  %2513 = vmatmul.f32.gmra.mxu0 %v2331
  %v2514 = vpop.f32.mrf.mxu0
  %v2515 = vadd.f32 %v2324, %v2514
  %2516 = vdwg.mxu0
  %v2517 = vadd.f32 %v615, %v2351
  %v2518 = vadd.f32 %v616, %v2354
  %v2519 = vadd.f32 %v617, %v2374
  %v2520 = vadd.f32 %v618, %v2377
  %v2521 = vadd.f32 %v619, %v2397
  %v2522 = vadd.f32 %v620, %v2400
  %v2523 = vadd.f32 %v621, %v2420
  %v2524 = vadd.f32 %v622, %v2423
  %v2525 = vadd.f32 %v623, %v2443
  %v2526 = vadd.f32 %v624, %v2446
  %v2527 = vadd.f32 %v625, %v2466
  %v2528 = vadd.f32 %v626, %v2469
  %v2529 = vadd.f32 %v627, %v2489
  %v2530 = vadd.f32 %v628, %v2492
  %v2531 = vadd.f32 %v629, %v2512
  %v2532 = vadd.f32 %v630, %v2515
  %v2533 = vsel %vm233, %v2517, 0.0
  %2534 = vadd.xlane.f32.xlu0 %v2533
  %v2535 = vpop.xlane.xlu0 %2534
  %v2536 = vsel %vm233, %v2518, 0.0
  %2537 = vadd.xlane.f32.xlu0 %v2536
  %v2538 = vpop.xlane.xlu0 %2537
  %v2539 = vsel %vm233, %v2519, 0.0
  %2540 = vadd.xlane.f32.xlu0 %v2539
  %v2541 = vpop.xlane.xlu0 %2540
  %v2542 = vsel %vm233, %v2520, 0.0
  %2543 = vadd.xlane.f32.xlu0 %v2542
  %v2544 = vpop.xlane.xlu0 %2543
  %v2545 = vsel %vm233, %v2521, 0.0
  %2546 = vadd.xlane.f32.xlu0 %v2545
  %v2547 = vpop.xlane.xlu0 %2546
  %v2548 = vsel %vm233, %v2522, 0.0
  %2549 = vadd.xlane.f32.xlu0 %v2548
  %v2550 = vpop.xlane.xlu0 %2549
  %v2551 = vsel %vm233, %v2523, 0.0
  %2552 = vadd.xlane.f32.xlu0 %v2551
  %v2553 = vpop.xlane.xlu0 %2552
  %v2554 = vsel %vm233, %v2524, 0.0
  %2555 = vadd.xlane.f32.xlu0 %v2554
  %v2556 = vpop.xlane.xlu0 %2555
  %v2557 = vsel %vm233, %v2525, 0.0
  %2558 = vadd.xlane.f32.xlu0 %v2557
  %v2559 = vpop.xlane.xlu0 %2558
  %v2560 = vsel %vm233, %v2526, 0.0
  %2561 = vadd.xlane.f32.xlu0 %v2560
  %v2562 = vpop.xlane.xlu0 %2561
  %v2563 = vsel %vm233, %v2527, 0.0
  %2564 = vadd.xlane.f32.xlu0 %v2563
  %v2565 = vpop.xlane.xlu0 %2564
  %v2566 = vsel %vm233, %v2528, 0.0
  %2567 = vadd.xlane.f32.xlu0 %v2566
  %v2568 = vpop.xlane.xlu0 %2567
  %v2569 = vsel %vm233, %v2529, 0.0
  %2570 = vadd.xlane.f32.xlu0 %v2569
  %v2571 = vpop.xlane.xlu0 %2570
  %v2572 = vsel %vm233, %v2530, 0.0
  %2573 = vadd.xlane.f32.xlu0 %v2572
  %v2574 = vpop.xlane.xlu0 %2573
  %v2575 = vsel %vm233, %v2531, 0.0
  %2576 = vadd.xlane.f32.xlu0 %v2575
  %v2577 = vpop.xlane.xlu0 %2576
  %v2578 = vsel %vm233, %v2532, 0.0
  %2579 = vadd.xlane.f32.xlu0 %v2578
  %v2580 = vpop.xlane.xlu0 %2579
  %v2581 = vmul.f32 %v2535, %v288
  %v2582 = vmul.f32 %v2538, %v288
  %v2583 = vmul.f32 %v2541, %v288
  %v2584 = vmul.f32 %v2544, %v288
  %v2585 = vmul.f32 %v2547, %v288
  %v2586 = vmul.f32 %v2550, %v288
  %v2587 = vmul.f32 %v2553, %v288
  %v2588 = vmul.f32 %v2556, %v288
  %v2589 = vmul.f32 %v2559, %v288
  %v2590 = vmul.f32 %v2562, %v288
  %v2591 = vmul.f32 %v2565, %v288
  %v2592 = vmul.f32 %v2568, %v288
  %v2593 = vmul.f32 %v2571, %v288
  %v2594 = vmul.f32 %v2574, %v288
  %v2595 = vmul.f32 %v2577, %v288
  %v2596 = vmul.f32 %v2580, %v288
  %v2597 = vsub.f32 %v2517, %v2581
  %v2598 = vsub.f32 %v2518, %v2582
  %v2599 = vsub.f32 %v2519, %v2583
  %v2600 = vsub.f32 %v2520, %v2584
  %v2601 = vsub.f32 %v2521, %v2585
  %v2602 = vsub.f32 %v2522, %v2586
  %v2603 = vsub.f32 %v2523, %v2587
  %v2604 = vsub.f32 %v2524, %v2588
  %v2605 = vsub.f32 %v2525, %v2589
  %v2606 = vsub.f32 %v2526, %v2590
  %v2607 = vsub.f32 %v2527, %v2591
  %v2608 = vsub.f32 %v2528, %v2592
  %v2609 = vsub.f32 %v2529, %v2593
  %v2610 = vsub.f32 %v2530, %v2594
  %v2611 = vsub.f32 %v2531, %v2595
  %v2612 = vsub.f32 %v2532, %v2596
  %v2613 = vmul.f32 %v2597, %v2597
  %v2614 = vmul.f32 %v2598, %v2598
  %v2615 = vmul.f32 %v2599, %v2599
  %v2616 = vmul.f32 %v2600, %v2600
  %v2617 = vmul.f32 %v2601, %v2601
  %v2618 = vmul.f32 %v2602, %v2602
  %v2619 = vmul.f32 %v2603, %v2603
  %v2620 = vmul.f32 %v2604, %v2604
  %v2621 = vmul.f32 %v2605, %v2605
  %v2622 = vmul.f32 %v2606, %v2606
  %v2623 = vmul.f32 %v2607, %v2607
  %v2624 = vmul.f32 %v2608, %v2608
  %v2625 = vmul.f32 %v2609, %v2609
  %v2626 = vmul.f32 %v2610, %v2610
  %v2627 = vmul.f32 %v2611, %v2611
  %v2628 = vmul.f32 %v2612, %v2612
  %v2629 = vsel %vm233, %v2613, 0.0
  %2630 = vadd.xlane.f32.xlu0 %v2629
  %v2631 = vpop.xlane.xlu0 %2630
  %v2632 = vsel %vm233, %v2614, 0.0
  %2633 = vadd.xlane.f32.xlu0 %v2632
  %v2634 = vpop.xlane.xlu0 %2633
  %v2635 = vsel %vm233, %v2615, 0.0
  %2636 = vadd.xlane.f32.xlu0 %v2635
  %v2637 = vpop.xlane.xlu0 %2636
  %v2638 = vsel %vm233, %v2616, 0.0
  %2639 = vadd.xlane.f32.xlu0 %v2638
  %v2640 = vpop.xlane.xlu0 %2639
  %v2641 = vsel %vm233, %v2617, 0.0
  %2642 = vadd.xlane.f32.xlu0 %v2641
  %v2643 = vpop.xlane.xlu0 %2642
  %v2644 = vsel %vm233, %v2618, 0.0
  %2645 = vadd.xlane.f32.xlu0 %v2644
  %v2646 = vpop.xlane.xlu0 %2645
  %v2647 = vsel %vm233, %v2619, 0.0
  %2648 = vadd.xlane.f32.xlu0 %v2647
  %v2649 = vpop.xlane.xlu0 %2648
  %v2650 = vsel %vm233, %v2620, 0.0
  %2651 = vadd.xlane.f32.xlu0 %v2650
  %v2652 = vpop.xlane.xlu0 %2651
  %v2653 = vsel %vm233, %v2621, 0.0
  %2654 = vadd.xlane.f32.xlu0 %v2653
  %v2655 = vpop.xlane.xlu0 %2654
  %v2656 = vsel %vm233, %v2622, 0.0
  %2657 = vadd.xlane.f32.xlu0 %v2656
  %v2658 = vpop.xlane.xlu0 %2657
  %v2659 = vsel %vm233, %v2623, 0.0
  %2660 = vadd.xlane.f32.xlu0 %v2659
  %v2661 = vpop.xlane.xlu0 %2660
  %v2662 = vsel %vm233, %v2624, 0.0
  %2663 = vadd.xlane.f32.xlu0 %v2662
  %v2664 = vpop.xlane.xlu0 %2663
  %v2665 = vsel %vm233, %v2625, 0.0
  %2666 = vadd.xlane.f32.xlu0 %v2665
  %v2667 = vpop.xlane.xlu0 %2666
  %v2668 = vsel %vm233, %v2626, 0.0
  %2669 = vadd.xlane.f32.xlu0 %v2668
  %v2670 = vpop.xlane.xlu0 %2669
  %v2671 = vsel %vm233, %v2627, 0.0
  %2672 = vadd.xlane.f32.xlu0 %v2671
  %v2673 = vpop.xlane.xlu0 %2672
  %v2674 = vsel %vm233, %v2628, 0.0
  %2675 = vadd.xlane.f32.xlu0 %v2674
  %v2676 = vpop.xlane.xlu0 %2675
  %v2677 = vmul.f32 %v2631, %v288
  %v2678 = vmul.f32 %v2634, %v288
  %v2679 = vmul.f32 %v2637, %v288
  %v2680 = vmul.f32 %v2640, %v288
  %v2681 = vmul.f32 %v2643, %v288
  %v2682 = vmul.f32 %v2646, %v288
  %v2683 = vmul.f32 %v2649, %v288
  %v2684 = vmul.f32 %v2652, %v288
  %v2685 = vmul.f32 %v2655, %v288
  %v2686 = vmul.f32 %v2658, %v288
  %v2687 = vmul.f32 %v2661, %v288
  %v2688 = vmul.f32 %v2664, %v288
  %v2689 = vmul.f32 %v2667, %v288
  %v2690 = vmul.f32 %v2670, %v288
  %v2691 = vmul.f32 %v2673, %v288
  %v2692 = vmul.f32 %v2676, %v288
  %v2693 = vadd.f32 %v2677, 1e-05
  %v2694 = vadd.f32 %v2678, 1e-05
  %v2695 = vadd.f32 %v2679, 1e-05
  %v2696 = vadd.f32 %v2680, 1e-05
  %v2697 = vadd.f32 %v2681, 1e-05
  %v2698 = vadd.f32 %v2682, 1e-05
  %v2699 = vadd.f32 %v2683, 1e-05
  %v2700 = vadd.f32 %v2684, 1e-05
  %v2701 = vadd.f32 %v2685, 1e-05
  %v2702 = vadd.f32 %v2686, 1e-05
  %v2703 = vadd.f32 %v2687, 1e-05
  %v2704 = vadd.f32 %v2688, 1e-05
  %v2705 = vadd.f32 %v2689, 1e-05
  %v2706 = vadd.f32 %v2690, 1e-05
  %v2707 = vadd.f32 %v2691, 1e-05
  %v2708 = vadd.f32 %v2692, 1e-05
  %v2709 = vrsqrt.pop %v2693
  %v2710 = vmul.f32 %v2709, %v2693
  %v2711 = vmul.f32 %v2710, %v2709
  %v2712 = vmul.f32 0.5, %v2711
  %v2713 = vsub.f32 1.5, %v2712
  %v2714 = vmul.f32 %v2709, %v2713
  %vm2715 = vweird.f32 %v2693
  %vm2716 = vweird.f32 %v2709
  %vm2717 = vmor %vm2715, %vm2716
  %v2718 = vsel %vm2717, %v2709, %v2714
  %v2719 = vrsqrt.pop %v2694
  %v2720 = vmul.f32 %v2719, %v2694
  %v2721 = vmul.f32 %v2720, %v2719
  %v2722 = vmul.f32 0.5, %v2721
  %v2723 = vsub.f32 1.5, %v2722
  %v2724 = vmul.f32 %v2719, %v2723
  %vm2725 = vweird.f32 %v2694
  %vm2726 = vweird.f32 %v2719
  %vm2727 = vmor %vm2725, %vm2726
  %v2728 = vsel %vm2727, %v2719, %v2724
  %v2729 = vrsqrt.pop %v2695
  %v2730 = vmul.f32 %v2729, %v2695
  %v2731 = vmul.f32 %v2730, %v2729
  %v2732 = vmul.f32 0.5, %v2731
  %v2733 = vsub.f32 1.5, %v2732
  %v2734 = vmul.f32 %v2729, %v2733
  %vm2735 = vweird.f32 %v2695
  %vm2736 = vweird.f32 %v2729
  %vm2737 = vmor %vm2735, %vm2736
  %v2738 = vsel %vm2737, %v2729, %v2734
  %v2739 = vrsqrt.pop %v2696
  %v2740 = vmul.f32 %v2739, %v2696
  %v2741 = vmul.f32 %v2740, %v2739
  %v2742 = vmul.f32 0.5, %v2741
  %v2743 = vsub.f32 1.5, %v2742
  %v2744 = vmul.f32 %v2739, %v2743
  %vm2745 = vweird.f32 %v2696
  %vm2746 = vweird.f32 %v2739
  %vm2747 = vmor %vm2745, %vm2746
  %v2748 = vsel %vm2747, %v2739, %v2744
  %v2749 = vrsqrt.pop %v2697
  %v2750 = vmul.f32 %v2749, %v2697
  %v2751 = vmul.f32 %v2750, %v2749
  %v2752 = vmul.f32 0.5, %v2751
  %v2753 = vsub.f32 1.5, %v2752
  %v2754 = vmul.f32 %v2749, %v2753
  %vm2755 = vweird.f32 %v2697
  %vm2756 = vweird.f32 %v2749
  %vm2757 = vmor %vm2755, %vm2756
  %v2758 = vsel %vm2757, %v2749, %v2754
  %v2759 = vrsqrt.pop %v2698
  %v2760 = vmul.f32 %v2759, %v2698
  %v2761 = vmul.f32 %v2760, %v2759
  %v2762 = vmul.f32 0.5, %v2761
  %v2763 = vsub.f32 1.5, %v2762
  %v2764 = vmul.f32 %v2759, %v2763
  %vm2765 = vweird.f32 %v2698
  %vm2766 = vweird.f32 %v2759
  %vm2767 = vmor %vm2765, %vm2766
  %v2768 = vsel %vm2767, %v2759, %v2764
  %v2769 = vrsqrt.pop %v2699
  %v2770 = vmul.f32 %v2769, %v2699
  %v2771 = vmul.f32 %v2770, %v2769
  %v2772 = vmul.f32 0.5, %v2771
  %v2773 = vsub.f32 1.5, %v2772
  %v2774 = vmul.f32 %v2769, %v2773
  %vm2775 = vweird.f32 %v2699
  %vm2776 = vweird.f32 %v2769
  %vm2777 = vmor %vm2775, %vm2776
  %v2778 = vsel %vm2777, %v2769, %v2774
  %v2779 = vrsqrt.pop %v2700
  %v2780 = vmul.f32 %v2779, %v2700
  %v2781 = vmul.f32 %v2780, %v2779
  %v2782 = vmul.f32 0.5, %v2781
  %v2783 = vsub.f32 1.5, %v2782
  %v2784 = vmul.f32 %v2779, %v2783
  %vm2785 = vweird.f32 %v2700
  %vm2786 = vweird.f32 %v2779
  %vm2787 = vmor %vm2785, %vm2786
  %v2788 = vsel %vm2787, %v2779, %v2784
  %v2789 = vrsqrt.pop %v2701
  %v2790 = vmul.f32 %v2789, %v2701
  %v2791 = vmul.f32 %v2790, %v2789
  %v2792 = vmul.f32 0.5, %v2791
  %v2793 = vsub.f32 1.5, %v2792
  %v2794 = vmul.f32 %v2789, %v2793
  %vm2795 = vweird.f32 %v2701
  %vm2796 = vweird.f32 %v2789
  %vm2797 = vmor %vm2795, %vm2796
  %v2798 = vsel %vm2797, %v2789, %v2794
  %v2799 = vrsqrt.pop %v2702
  %v2800 = vmul.f32 %v2799, %v2702
  %v2801 = vmul.f32 %v2800, %v2799
  %v2802 = vmul.f32 0.5, %v2801
  %v2803 = vsub.f32 1.5, %v2802
  %v2804 = vmul.f32 %v2799, %v2803
  %vm2805 = vweird.f32 %v2702
  %vm2806 = vweird.f32 %v2799
  %vm2807 = vmor %vm2805, %vm2806
  %v2808 = vsel %vm2807, %v2799, %v2804
  %v2809 = vrsqrt.pop %v2703
  %v2810 = vmul.f32 %v2809, %v2703
  %v2811 = vmul.f32 %v2810, %v2809
  %v2812 = vmul.f32 0.5, %v2811
  %v2813 = vsub.f32 1.5, %v2812
  %v2814 = vmul.f32 %v2809, %v2813
  %vm2815 = vweird.f32 %v2703
  %vm2816 = vweird.f32 %v2809
  %vm2817 = vmor %vm2815, %vm2816
  %v2818 = vsel %vm2817, %v2809, %v2814
  %v2819 = vrsqrt.pop %v2704
  %v2820 = vmul.f32 %v2819, %v2704
  %v2821 = vmul.f32 %v2820, %v2819
  %v2822 = vmul.f32 0.5, %v2821
  %v2823 = vsub.f32 1.5, %v2822
  %v2824 = vmul.f32 %v2819, %v2823
  %vm2825 = vweird.f32 %v2704
  %vm2826 = vweird.f32 %v2819
  %vm2827 = vmor %vm2825, %vm2826
  %v2828 = vsel %vm2827, %v2819, %v2824
  %v2829 = vrsqrt.pop %v2705
  %v2830 = vmul.f32 %v2829, %v2705
  %v2831 = vmul.f32 %v2830, %v2829
  %v2832 = vmul.f32 0.5, %v2831
  %v2833 = vsub.f32 1.5, %v2832
  %v2834 = vmul.f32 %v2829, %v2833
  %vm2835 = vweird.f32 %v2705
  %vm2836 = vweird.f32 %v2829
  %vm2837 = vmor %vm2835, %vm2836
  %v2838 = vsel %vm2837, %v2829, %v2834
  %v2839 = vrsqrt.pop %v2706
  %v2840 = vmul.f32 %v2839, %v2706
  %v2841 = vmul.f32 %v2840, %v2839
  %v2842 = vmul.f32 0.5, %v2841
  %v2843 = vsub.f32 1.5, %v2842
  %v2844 = vmul.f32 %v2839, %v2843
  %vm2845 = vweird.f32 %v2706
  %vm2846 = vweird.f32 %v2839
  %vm2847 = vmor %vm2845, %vm2846
  %v2848 = vsel %vm2847, %v2839, %v2844
  %v2849 = vrsqrt.pop %v2707
  %v2850 = vmul.f32 %v2849, %v2707
  %v2851 = vmul.f32 %v2850, %v2849
  %v2852 = vmul.f32 0.5, %v2851
  %v2853 = vsub.f32 1.5, %v2852
  %v2854 = vmul.f32 %v2849, %v2853
  %vm2855 = vweird.f32 %v2707
  %vm2856 = vweird.f32 %v2849
  %vm2857 = vmor %vm2855, %vm2856
  %v2858 = vsel %vm2857, %v2849, %v2854
  %v2859 = vrsqrt.pop %v2708
  %v2860 = vmul.f32 %v2859, %v2708
  %v2861 = vmul.f32 %v2860, %v2859
  %v2862 = vmul.f32 0.5, %v2861
  %v2863 = vsub.f32 1.5, %v2862
  %v2864 = vmul.f32 %v2859, %v2863
  %vm2865 = vweird.f32 %v2708
  %vm2866 = vweird.f32 %v2859
  %vm2867 = vmor %vm2865, %vm2866
  %v2868 = vsel %vm2867, %v2859, %v2864
  %v2869 = vmul.f32 %v2597, %v2718
  %v2870 = vmul.f32 %v2598, %v2728
  %v2871 = vmul.f32 %v2599, %v2738
  %v2872 = vmul.f32 %v2600, %v2748
  %v2873 = vmul.f32 %v2601, %v2758
  %v2874 = vmul.f32 %v2602, %v2768
  %v2875 = vmul.f32 %v2603, %v2778
  %v2876 = vmul.f32 %v2604, %v2788
  %v2877 = vmul.f32 %v2605, %v2798
  %v2878 = vmul.f32 %v2606, %v2808
  %v2879 = vmul.f32 %v2607, %v2818
  %v2880 = vmul.f32 %v2608, %v2828
  %v2881 = vmul.f32 %v2609, %v2838
  %v2882 = vmul.f32 %v2610, %v2848
  %v2883 = vmul.f32 %v2611, %v2858
  %v2884 = vmul.f32 %v2612, %v2868
  %v2885 = vmul.f32 %v2869, %v594
  %v2886 = vmul.f32 %v2870, %v594
  %v2887 = vmul.f32 %v2871, %v594
  %v2888 = vmul.f32 %v2872, %v594
  %v2889 = vmul.f32 %v2873, %v594
  %v2890 = vmul.f32 %v2874, %v594
  %v2891 = vmul.f32 %v2875, %v594
  %v2892 = vmul.f32 %v2876, %v594
  %v2893 = vmul.f32 %v2877, %v594
  %v2894 = vmul.f32 %v2878, %v594
  %v2895 = vmul.f32 %v2879, %v594
  %v2896 = vmul.f32 %v2880, %v594
  %v2897 = vmul.f32 %v2881, %v594
  %v2898 = vmul.f32 %v2882, %v594
  %v2899 = vmul.f32 %v2883, %v594
  %v2900 = vmul.f32 %v2884, %v594
  %v2901 = vadd.f32 %v2885, %v613
  %v2902 = vadd.f32 %v2886, %v613
  %v2903 = vadd.f32 %v2887, %v613
  %v2904 = vadd.f32 %v2888, %v613
  %v2905 = vadd.f32 %v2889, %v613
  %v2906 = vadd.f32 %v2890, %v613
  %v2907 = vadd.f32 %v2891, %v613
  %v2908 = vadd.f32 %v2892, %v613
  %v2909 = vadd.f32 %v2893, %v613
  %v2910 = vadd.f32 %v2894, %v613
  %v2911 = vadd.f32 %v2895, %v613
  %v2912 = vadd.f32 %v2896, %v613
  %v2913 = vadd.f32 %v2897, %v613
  %v2914 = vadd.f32 %v2898, %v613
  %v2915 = vadd.f32 %v2899, %v613
  %v2916 = vadd.f32 %v2900, %v613
  %v2917 = vld [vmem:[%s9] sm:$0xff]
  %v2918 = vld [vmem:[%s9 + $0x8] sm:$0x3f]
  %v2919 = vld [vmem:[%s10] sm:$0x1]
  %v2921 = vperm.slane %v2919, 0
  %v2924 = vsel %vm233, %v2901, 0
  %v2927 = vsel %vm233, %v2902, 0
  %v2930 = vsel %vm233, %v2903, 0
  %v2933 = vsel %vm233, %v2904, 0
  %v2936 = vsel %vm233, %v2905, 0
  %v2939 = vsel %vm233, %v2906, 0
  %v2942 = vsel %vm233, %v2907, 0
  %v2945 = vsel %vm233, %v2908, 0
  %v2948 = vsel %vm233, %v2909, 0
  %v2951 = vsel %vm233, %v2910, 0
  %v2954 = vsel %vm233, %v2911, 0
  %v2957 = vsel %vm233, %v2912, 0
  %v2960 = vsel %vm233, %v2913, 0
  %v2963 = vsel %vm233, %v2914, 0
  %v2966 = vsel %vm233, %v2915, 0
  %v2969 = vsel %vm233, %v2916, 0
  %vm2971 = vcmask 1045504
  %v2973 = vsel %vm2971, %v2918, 0
  %2975 = vmatpush.msra.mxu0 0.0
  %2976 = vmatpush.msra.mxu0 0.0
  %2977 = vmatpush.msra.mxu0 0.0
  %2978 = vmatpush.msra.mxu0 0.0
  %2979 = vmatpush.msra.mxu0 0.0
  %2980 = vmatpush.msra.mxu0 0.0
  %2981 = vmatpush.msra.mxu0 0.0
  %2982 = vmatpush.msra.mxu0 0.0
  %2983 = vmatpush.msra.mxu0 0.0
  %2984 = vmatpush.msra.mxu0 0.0
  %2985 = vmatpush.msra.mxu0 0.0
  %2986 = vmatpush.msra.mxu0 0.0
  %2987 = vmatpush.msra.mxu0 0.0
  %2988 = vmatpush.msra.mxu0 0.0
  %2989 = vmatpush.msra.mxu0 %v2973
  %2990 = vmatpush.msra.mxu0 %v2917
  %2991 = vmatmul.f32.gmra.mxu0 %v2924
  %v2992 = vpop.f32.mrf.mxu0
  %v2993 = vadd.f32 %v2921, %v2992
  %2994 = vmatmul.f32.gmra.mxu0 %v2927
  %v2995 = vpop.f32.mrf.mxu0
  %v2996 = vadd.f32 %v2921, %v2995
  %2997 = vmatmul.f32.gmra.mxu0 %v2930
  %v2998 = vpop.f32.mrf.mxu0
  %v2999 = vadd.f32 %v2921, %v2998
  %3000 = vmatmul.f32.gmra.mxu0 %v2933
  %v3001 = vpop.f32.mrf.mxu0
  %v3002 = vadd.f32 %v2921, %v3001
  %3003 = vmatmul.f32.gmra.mxu0 %v2936
  %v3004 = vpop.f32.mrf.mxu0
  %v3005 = vadd.f32 %v2921, %v3004
  %3006 = vmatmul.f32.gmra.mxu0 %v2939
  %v3007 = vpop.f32.mrf.mxu0
  %v3008 = vadd.f32 %v2921, %v3007
  %3009 = vmatmul.f32.gmra.mxu0 %v2942
  %v3010 = vpop.f32.mrf.mxu0
  %v3011 = vadd.f32 %v2921, %v3010
  %3012 = vmatmul.f32.gmra.mxu0 %v2945
  %v3013 = vpop.f32.mrf.mxu0
  %v3014 = vadd.f32 %v2921, %v3013
  %3015 = vmatmul.f32.gmra.mxu0 %v2948
  %v3016 = vpop.f32.mrf.mxu0
  %v3017 = vadd.f32 %v2921, %v3016
  %3018 = vmatmul.f32.gmra.mxu0 %v2951
  %v3019 = vpop.f32.mrf.mxu0
  %v3020 = vadd.f32 %v2921, %v3019
  %3021 = vmatmul.f32.gmra.mxu0 %v2954
  %v3022 = vpop.f32.mrf.mxu0
  %v3023 = vadd.f32 %v2921, %v3022
  %3024 = vmatmul.f32.gmra.mxu0 %v2957
  %v3025 = vpop.f32.mrf.mxu0
  %v3026 = vadd.f32 %v2921, %v3025
  %3027 = vmatmul.f32.gmra.mxu0 %v2960
  %v3028 = vpop.f32.mrf.mxu0
  %v3029 = vadd.f32 %v2921, %v3028
  %3030 = vmatmul.f32.gmra.mxu0 %v2963
  %v3031 = vpop.f32.mrf.mxu0
  %v3032 = vadd.f32 %v2921, %v3031
  %3033 = vmatmul.f32.gmra.mxu0 %v2966
  %v3034 = vpop.f32.mrf.mxu0
  %v3035 = vadd.f32 %v2921, %v3034
  %3036 = vmatmul.f32.gmra.mxu0 %v2969
  %v3037 = vpop.f32.mrf.mxu0
  %v3038 = vadd.f32 %v2921, %v3037
  %3039 = vdwg.mxu0
  %v3040 = vmul.f32 %v2993, 0.5
  %v3041 = vmul.f32 %v2996, 0.5
  %v3042 = vmul.f32 %v2999, 0.5
  %v3043 = vmul.f32 %v3002, 0.5
  %v3044 = vmul.f32 %v3005, 0.5
  %v3045 = vmul.f32 %v3008, 0.5
  %v3046 = vmul.f32 %v3011, 0.5
  %v3047 = vmul.f32 %v3014, 0.5
  %v3048 = vmul.f32 %v3017, 0.5
  %v3049 = vmul.f32 %v3020, 0.5
  %v3050 = vmul.f32 %v3023, 0.5
  %v3051 = vmul.f32 %v3026, 0.5
  %v3052 = vmul.f32 %v3029, 0.5
  %v3053 = vmul.f32 %v3032, 0.5
  %v3054 = vmul.f32 %v3035, 0.5
  %v3055 = vmul.f32 %v3038, 0.5
  %v3056 = vmul.f32 %v2993, 0.70710677
  %v3057 = vmul.f32 %v2996, 0.70710677
  %v3058 = vmul.f32 %v2999, 0.70710677
  %v3059 = vmul.f32 %v3002, 0.70710677
  %v3060 = vmul.f32 %v3005, 0.70710677
  %v3061 = vmul.f32 %v3008, 0.70710677
  %v3062 = vmul.f32 %v3011, 0.70710677
  %v3063 = vmul.f32 %v3014, 0.70710677
  %v3064 = vmul.f32 %v3017, 0.70710677
  %v3065 = vmul.f32 %v3020, 0.70710677
  %v3066 = vmul.f32 %v3023, 0.70710677
  %v3067 = vmul.f32 %v3026, 0.70710677
  %v3068 = vmul.f32 %v3029, 0.70710677
  %v3069 = vmul.f32 %v3032, 0.70710677
  %v3070 = vmul.f32 %v3035, 0.70710677
  %v3071 = vmul.f32 %v3038, 0.70710677
  %v3072 = vmul.f32 %v3056, %v3056
  %v3073 = vmin.f32 16.0, %v3072
  %v3074 = vmul.f32 %v3073, 2.1237322e-06
  %v3075 = vadd.f32 %v3074, 0.00028619796
  %v3076 = vmul.f32 %v3073, %v3075
  %v3077 = vadd.f32 %v3076, 0.0036580483
  %v3078 = vmul.f32 %v3073, %v3077
  %v3079 = vadd.f32 %v3078, 0.05243302
  %v3080 = vmul.f32 %v3073, %v3079
  %v3081 = vadd.f32 %v3080, 0.18741608
  %v3082 = vmul.f32 %v3073, %v3081
  %v3083 = vadd.f32 %v3082, 1.1283791
  %v3084 = vmul.f32 %v3056, %v3083
  %v3085 = vmul.f32 %v3073, 3.8918573e-05
  %v3086 = vadd.f32 %v3085, 0.001143296
  %v3087 = vmul.f32 %v3073, %v3086
  %v3088 = vadd.f32 %v3087, 0.014752088
  %v3089 = vmul.f32 %v3073, %v3088
  %v3090 = vadd.f32 %v3089, 0.112945676
  %v3091 = vmul.f32 %v3073, %v3090
  %v3092 = vadd.f32 %v3091, 0.4994258
  %v3093 = vmul.f32 %v3073, %v3092
  %v3094 = vadd.f32 %v3093, 1.0
  %v3095 = vrcp.pop %v3094
  %v3096 = vmul.f32 %v3094, %v3095
  %v3097 = vsub.f32 1.0, %v3096
  %v3098 = vmul.f32 %v3095, %v3097
  %v3099 = vadd.f32 %v3095, %v3098
  %vm3100 = vweird.f32 %v3094
  %vm3101 = vweird.f32 %v3095
  %vm3102 = vmor %vm3100, %vm3101
  %v3103 = vsel %vm3102, %v3095, %v3099
  %v3104 = vand.u32 2147483647, %v3094
  %vm3105 = vcmp.eq.f32.partialorder %v3104, 8.507059e+37
  %v3106 = vand.u32 %v3094, 2147483648
  %v3107 = vor.u32 1.1754944e-38, %v3106
  %v3108 = vsel %vm3105, %v3107, %v3103
  %v3109 = vmul.f32 %v3084, %v3108
  %v3110 = vmin.f32 %v3109, 1.0
  %v3111 = vmax.f32 %v3110, -1.0
  %v3112 = vmul.f32 %v3057, %v3057
  %v3113 = vmin.f32 16.0, %v3112
  %v3114 = vmul.f32 %v3113, 2.1237322e-06
  %v3115 = vadd.f32 %v3114, 0.00028619796
  %v3116 = vmul.f32 %v3113, %v3115
  %v3117 = vadd.f32 %v3116, 0.0036580483
  %v3118 = vmul.f32 %v3113, %v3117
  %v3119 = vadd.f32 %v3118, 0.05243302
  %v3120 = vmul.f32 %v3113, %v3119
  %v3121 = vadd.f32 %v3120, 0.18741608
  %v3122 = vmul.f32 %v3113, %v3121
  %v3123 = vadd.f32 %v3122, 1.1283791
  %v3124 = vmul.f32 %v3057, %v3123
  %v3125 = vmul.f32 %v3113, 3.8918573e-05
  %v3126 = vadd.f32 %v3125, 0.001143296
  %v3127 = vmul.f32 %v3113, %v3126
  %v3128 = vadd.f32 %v3127, 0.014752088
  %v3129 = vmul.f32 %v3113, %v3128
  %v3130 = vadd.f32 %v3129, 0.112945676
  %v3131 = vmul.f32 %v3113, %v3130
  %v3132 = vadd.f32 %v3131, 0.4994258
  %v3133 = vmul.f32 %v3113, %v3132
  %v3134 = vadd.f32 %v3133, 1.0
  %v3135 = vrcp.pop %v3134
  %v3136 = vmul.f32 %v3134, %v3135
  %v3137 = vsub.f32 1.0, %v3136
  %v3138 = vmul.f32 %v3135, %v3137
  %v3139 = vadd.f32 %v3135, %v3138
  %vm3140 = vweird.f32 %v3134
  %vm3141 = vweird.f32 %v3135
  %vm3142 = vmor %vm3140, %vm3141
  %v3143 = vsel %vm3142, %v3135, %v3139
  %v3144 = vand.u32 2147483647, %v3134
  %vm3145 = vcmp.eq.f32.partialorder %v3144, 8.507059e+37
  %v3146 = vand.u32 %v3134, 2147483648
  %v3147 = vor.u32 1.1754944e-38, %v3146
  %v3148 = vsel %vm3145, %v3147, %v3143
  %v3149 = vmul.f32 %v3124, %v3148
  %v3150 = vmin.f32 %v3149, 1.0
  %v3151 = vmax.f32 %v3150, -1.0
  %v3152 = vmul.f32 %v3058, %v3058
  %v3153 = vmin.f32 16.0, %v3152
  %v3154 = vmul.f32 %v3153, 2.1237322e-06
  %v3155 = vadd.f32 %v3154, 0.00028619796
  %v3156 = vmul.f32 %v3153, %v3155
  %v3157 = vadd.f32 %v3156, 0.0036580483
  %v3158 = vmul.f32 %v3153, %v3157
  %v3159 = vadd.f32 %v3158, 0.05243302
  %v3160 = vmul.f32 %v3153, %v3159
  %v3161 = vadd.f32 %v3160, 0.18741608
  %v3162 = vmul.f32 %v3153, %v3161
  %v3163 = vadd.f32 %v3162, 1.1283791
  %v3164 = vmul.f32 %v3058, %v3163
  %v3165 = vmul.f32 %v3153, 3.8918573e-05
  %v3166 = vadd.f32 %v3165, 0.001143296
  %v3167 = vmul.f32 %v3153, %v3166
  %v3168 = vadd.f32 %v3167, 0.014752088
  %v3169 = vmul.f32 %v3153, %v3168
  %v3170 = vadd.f32 %v3169, 0.112945676
  %v3171 = vmul.f32 %v3153, %v3170
  %v3172 = vadd.f32 %v3171, 0.4994258
  %v3173 = vmul.f32 %v3153, %v3172
  %v3174 = vadd.f32 %v3173, 1.0
  %v3175 = vrcp.pop %v3174
  %v3176 = vmul.f32 %v3174, %v3175
  %v3177 = vsub.f32 1.0, %v3176
  %v3178 = vmul.f32 %v3175, %v3177
  %v3179 = vadd.f32 %v3175, %v3178
  %vm3180 = vweird.f32 %v3174
  %vm3181 = vweird.f32 %v3175
  %vm3182 = vmor %vm3180, %vm3181
  %v3183 = vsel %vm3182, %v3175, %v3179
  %v3184 = vand.u32 2147483647, %v3174
  %vm3185 = vcmp.eq.f32.partialorder %v3184, 8.507059e+37
  %v3186 = vand.u32 %v3174, 2147483648
  %v3187 = vor.u32 1.1754944e-38, %v3186
  %v3188 = vsel %vm3185, %v3187, %v3183
  %v3189 = vmul.f32 %v3164, %v3188
  %v3190 = vmin.f32 %v3189, 1.0
  %v3191 = vmax.f32 %v3190, -1.0
  %v3192 = vmul.f32 %v3059, %v3059
  %v3193 = vmin.f32 16.0, %v3192
  %v3194 = vmul.f32 %v3193, 2.1237322e-06
  %v3195 = vadd.f32 %v3194, 0.00028619796
  %v3196 = vmul.f32 %v3193, %v3195
  %v3197 = vadd.f32 %v3196, 0.0036580483
  %v3198 = vmul.f32 %v3193, %v3197
  %v3199 = vadd.f32 %v3198, 0.05243302
  %v3200 = vmul.f32 %v3193, %v3199
  %v3201 = vadd.f32 %v3200, 0.18741608
  %v3202 = vmul.f32 %v3193, %v3201
  %v3203 = vadd.f32 %v3202, 1.1283791
  %v3204 = vmul.f32 %v3059, %v3203
  %v3205 = vmul.f32 %v3193, 3.8918573e-05
  %v3206 = vadd.f32 %v3205, 0.001143296
  %v3207 = vmul.f32 %v3193, %v3206
  %v3208 = vadd.f32 %v3207, 0.014752088
  %v3209 = vmul.f32 %v3193, %v3208
  %v3210 = vadd.f32 %v3209, 0.112945676
  %v3211 = vmul.f32 %v3193, %v3210
  %v3212 = vadd.f32 %v3211, 0.4994258
  %v3213 = vmul.f32 %v3193, %v3212
  %v3214 = vadd.f32 %v3213, 1.0
  %v3215 = vrcp.pop %v3214
  %v3216 = vmul.f32 %v3214, %v3215
  %v3217 = vsub.f32 1.0, %v3216
  %v3218 = vmul.f32 %v3215, %v3217
  %v3219 = vadd.f32 %v3215, %v3218
  %vm3220 = vweird.f32 %v3214
  %vm3221 = vweird.f32 %v3215
  %vm3222 = vmor %vm3220, %vm3221
  %v3223 = vsel %vm3222, %v3215, %v3219
  %v3224 = vand.u32 2147483647, %v3214
  %vm3225 = vcmp.eq.f32.partialorder %v3224, 8.507059e+37
  %v3226 = vand.u32 %v3214, 2147483648
  %v3227 = vor.u32 1.1754944e-38, %v3226
  %v3228 = vsel %vm3225, %v3227, %v3223
  %v3229 = vmul.f32 %v3204, %v3228
  %v3230 = vmin.f32 %v3229, 1.0
  %v3231 = vmax.f32 %v3230, -1.0
  %v3232 = vmul.f32 %v3060, %v3060
  %v3233 = vmin.f32 16.0, %v3232
  %v3234 = vmul.f32 %v3233, 2.1237322e-06
  %v3235 = vadd.f32 %v3234, 0.00028619796
  %v3236 = vmul.f32 %v3233, %v3235
  %v3237 = vadd.f32 %v3236, 0.0036580483
  %v3238 = vmul.f32 %v3233, %v3237
  %v3239 = vadd.f32 %v3238, 0.05243302
  %v3240 = vmul.f32 %v3233, %v3239
  %v3241 = vadd.f32 %v3240, 0.18741608
  %v3242 = vmul.f32 %v3233, %v3241
  %v3243 = vadd.f32 %v3242, 1.1283791
  %v3244 = vmul.f32 %v3060, %v3243
  %v3245 = vmul.f32 %v3233, 3.8918573e-05
  %v3246 = vadd.f32 %v3245, 0.001143296
  %v3247 = vmul.f32 %v3233, %v3246
  %v3248 = vadd.f32 %v3247, 0.014752088
  %v3249 = vmul.f32 %v3233, %v3248
  %v3250 = vadd.f32 %v3249, 0.112945676
  %v3251 = vmul.f32 %v3233, %v3250
  %v3252 = vadd.f32 %v3251, 0.4994258
  %v3253 = vmul.f32 %v3233, %v3252
  %v3254 = vadd.f32 %v3253, 1.0
  %v3255 = vrcp.pop %v3254
  %v3256 = vmul.f32 %v3254, %v3255
  %v3257 = vsub.f32 1.0, %v3256
  %v3258 = vmul.f32 %v3255, %v3257
  %v3259 = vadd.f32 %v3255, %v3258
  %vm3260 = vweird.f32 %v3254
  %vm3261 = vweird.f32 %v3255
  %vm3262 = vmor %vm3260, %vm3261
  %v3263 = vsel %vm3262, %v3255, %v3259
  %v3264 = vand.u32 2147483647, %v3254
  %vm3265 = vcmp.eq.f32.partialorder %v3264, 8.507059e+37
  %v3266 = vand.u32 %v3254, 2147483648
  %v3267 = vor.u32 1.1754944e-38, %v3266
  %v3268 = vsel %vm3265, %v3267, %v3263
  %v3269 = vmul.f32 %v3244, %v3268
  %v3270 = vmin.f32 %v3269, 1.0
  %v3271 = vmax.f32 %v3270, -1.0
  %v3272 = vmul.f32 %v3061, %v3061
  %v3273 = vmin.f32 16.0, %v3272
  %v3274 = vmul.f32 %v3273, 2.1237322e-06
  %v3275 = vadd.f32 %v3274, 0.00028619796
  %v3276 = vmul.f32 %v3273, %v3275
  %v3277 = vadd.f32 %v3276, 0.0036580483
  %v3278 = vmul.f32 %v3273, %v3277
  %v3279 = vadd.f32 %v3278, 0.05243302
  %v3280 = vmul.f32 %v3273, %v3279
  %v3281 = vadd.f32 %v3280, 0.18741608
  %v3282 = vmul.f32 %v3273, %v3281
  %v3283 = vadd.f32 %v3282, 1.1283791
  %v3284 = vmul.f32 %v3061, %v3283
  %v3285 = vmul.f32 %v3273, 3.8918573e-05
  %v3286 = vadd.f32 %v3285, 0.001143296
  %v3287 = vmul.f32 %v3273, %v3286
  %v3288 = vadd.f32 %v3287, 0.014752088
  %v3289 = vmul.f32 %v3273, %v3288
  %v3290 = vadd.f32 %v3289, 0.112945676
  %v3291 = vmul.f32 %v3273, %v3290
  %v3292 = vadd.f32 %v3291, 0.4994258
  %v3293 = vmul.f32 %v3273, %v3292
  %v3294 = vadd.f32 %v3293, 1.0
  %v3295 = vrcp.pop %v3294
  %v3296 = vmul.f32 %v3294, %v3295
  %v3297 = vsub.f32 1.0, %v3296
  %v3298 = vmul.f32 %v3295, %v3297
  %v3299 = vadd.f32 %v3295, %v3298
  %vm3300 = vweird.f32 %v3294
  %vm3301 = vweird.f32 %v3295
  %vm3302 = vmor %vm3300, %vm3301
  %v3303 = vsel %vm3302, %v3295, %v3299
  %v3304 = vand.u32 2147483647, %v3294
  %vm3305 = vcmp.eq.f32.partialorder %v3304, 8.507059e+37
  %v3306 = vand.u32 %v3294, 2147483648
  %v3307 = vor.u32 1.1754944e-38, %v3306
  %v3308 = vsel %vm3305, %v3307, %v3303
  %v3309 = vmul.f32 %v3284, %v3308
  %v3310 = vmin.f32 %v3309, 1.0
  %v3311 = vmax.f32 %v3310, -1.0
  %v3312 = vmul.f32 %v3062, %v3062
  %v3313 = vmin.f32 16.0, %v3312
  %v3314 = vmul.f32 %v3313, 2.1237322e-06
  %v3315 = vadd.f32 %v3314, 0.00028619796
  %v3316 = vmul.f32 %v3313, %v3315
  %v3317 = vadd.f32 %v3316, 0.0036580483
  %v3318 = vmul.f32 %v3313, %v3317
  %v3319 = vadd.f32 %v3318, 0.05243302
  %v3320 = vmul.f32 %v3313, %v3319
  %v3321 = vadd.f32 %v3320, 0.18741608
  %v3322 = vmul.f32 %v3313, %v3321
  %v3323 = vadd.f32 %v3322, 1.1283791
  %v3324 = vmul.f32 %v3062, %v3323
  %v3325 = vmul.f32 %v3313, 3.8918573e-05
  %v3326 = vadd.f32 %v3325, 0.001143296
  %v3327 = vmul.f32 %v3313, %v3326
  %v3328 = vadd.f32 %v3327, 0.014752088
  %v3329 = vmul.f32 %v3313, %v3328
  %v3330 = vadd.f32 %v3329, 0.112945676
  %v3331 = vmul.f32 %v3313, %v3330
  %v3332 = vadd.f32 %v3331, 0.4994258
  %v3333 = vmul.f32 %v3313, %v3332
  %v3334 = vadd.f32 %v3333, 1.0
  %v3335 = vrcp.pop %v3334
  %v3336 = vmul.f32 %v3334, %v3335
  %v3337 = vsub.f32 1.0, %v3336
  %v3338 = vmul.f32 %v3335, %v3337
  %v3339 = vadd.f32 %v3335, %v3338
  %vm3340 = vweird.f32 %v3334
  %vm3341 = vweird.f32 %v3335
  %vm3342 = vmor %vm3340, %vm3341
  %v3343 = vsel %vm3342, %v3335, %v3339
  %v3344 = vand.u32 2147483647, %v3334
  %vm3345 = vcmp.eq.f32.partialorder %v3344, 8.507059e+37
  %v3346 = vand.u32 %v3334, 2147483648
  %v3347 = vor.u32 1.1754944e-38, %v3346
  %v3348 = vsel %vm3345, %v3347, %v3343
  %v3349 = vmul.f32 %v3324, %v3348
  %v3350 = vmin.f32 %v3349, 1.0
  %v3351 = vmax.f32 %v3350, -1.0
  %v3352 = vmul.f32 %v3063, %v3063
  %v3353 = vmin.f32 16.0, %v3352
  %v3354 = vmul.f32 %v3353, 2.1237322e-06
  %v3355 = vadd.f32 %v3354, 0.00028619796
  %v3356 = vmul.f32 %v3353, %v3355
  %v3357 = vadd.f32 %v3356, 0.0036580483
  %v3358 = vmul.f32 %v3353, %v3357
  %v3359 = vadd.f32 %v3358, 0.05243302
  %v3360 = vmul.f32 %v3353, %v3359
  %v3361 = vadd.f32 %v3360, 0.18741608
  %v3362 = vmul.f32 %v3353, %v3361
  %v3363 = vadd.f32 %v3362, 1.1283791
  %v3364 = vmul.f32 %v3063, %v3363
  %v3365 = vmul.f32 %v3353, 3.8918573e-05
  %v3366 = vadd.f32 %v3365, 0.001143296
  %v3367 = vmul.f32 %v3353, %v3366
  %v3368 = vadd.f32 %v3367, 0.014752088
  %v3369 = vmul.f32 %v3353, %v3368
  %v3370 = vadd.f32 %v3369, 0.112945676
  %v3371 = vmul.f32 %v3353, %v3370
  %v3372 = vadd.f32 %v3371, 0.4994258
  %v3373 = vmul.f32 %v3353, %v3372
  %v3374 = vadd.f32 %v3373, 1.0
  %v3375 = vrcp.pop %v3374
  %v3376 = vmul.f32 %v3374, %v3375
  %v3377 = vsub.f32 1.0, %v3376
  %v3378 = vmul.f32 %v3375, %v3377
  %v3379 = vadd.f32 %v3375, %v3378
  %vm3380 = vweird.f32 %v3374
  %vm3381 = vweird.f32 %v3375
  %vm3382 = vmor %vm3380, %vm3381
  %v3383 = vsel %vm3382, %v3375, %v3379
  %v3384 = vand.u32 2147483647, %v3374
  %vm3385 = vcmp.eq.f32.partialorder %v3384, 8.507059e+37
  %v3386 = vand.u32 %v3374, 2147483648
  %v3387 = vor.u32 1.1754944e-38, %v3386
  %v3388 = vsel %vm3385, %v3387, %v3383
  %v3389 = vmul.f32 %v3364, %v3388
  %v3390 = vmin.f32 %v3389, 1.0
  %v3391 = vmax.f32 %v3390, -1.0
  %v3392 = vmul.f32 %v3064, %v3064
  %v3393 = vmin.f32 16.0, %v3392
  %v3394 = vmul.f32 %v3393, 2.1237322e-06
  %v3395 = vadd.f32 %v3394, 0.00028619796
  %v3396 = vmul.f32 %v3393, %v3395
  %v3397 = vadd.f32 %v3396, 0.0036580483
  %v3398 = vmul.f32 %v3393, %v3397
  %v3399 = vadd.f32 %v3398, 0.05243302
  %v3400 = vmul.f32 %v3393, %v3399
  %v3401 = vadd.f32 %v3400, 0.18741608
  %v3402 = vmul.f32 %v3393, %v3401
  %v3403 = vadd.f32 %v3402, 1.1283791
  %v3404 = vmul.f32 %v3064, %v3403
  %v3405 = vmul.f32 %v3393, 3.8918573e-05
  %v3406 = vadd.f32 %v3405, 0.001143296
  %v3407 = vmul.f32 %v3393, %v3406
  %v3408 = vadd.f32 %v3407, 0.014752088
  %v3409 = vmul.f32 %v3393, %v3408
  %v3410 = vadd.f32 %v3409, 0.112945676
  %v3411 = vmul.f32 %v3393, %v3410
  %v3412 = vadd.f32 %v3411, 0.4994258
  %v3413 = vmul.f32 %v3393, %v3412
  %v3414 = vadd.f32 %v3413, 1.0
  %v3415 = vrcp.pop %v3414
  %v3416 = vmul.f32 %v3414, %v3415
  %v3417 = vsub.f32 1.0, %v3416
  %v3418 = vmul.f32 %v3415, %v3417
  %v3419 = vadd.f32 %v3415, %v3418
  %vm3420 = vweird.f32 %v3414
  %vm3421 = vweird.f32 %v3415
  %vm3422 = vmor %vm3420, %vm3421
  %v3423 = vsel %vm3422, %v3415, %v3419
  %v3424 = vand.u32 2147483647, %v3414
  %vm3425 = vcmp.eq.f32.partialorder %v3424, 8.507059e+37
  %v3426 = vand.u32 %v3414, 2147483648
  %v3427 = vor.u32 1.1754944e-38, %v3426
  %v3428 = vsel %vm3425, %v3427, %v3423
  %v3429 = vmul.f32 %v3404, %v3428
  %v3430 = vmin.f32 %v3429, 1.0
  %v3431 = vmax.f32 %v3430, -1.0
  %v3432 = vmul.f32 %v3065, %v3065
  %v3433 = vmin.f32 16.0, %v3432
  %v3434 = vmul.f32 %v3433, 2.1237322e-06
  %v3435 = vadd.f32 %v3434, 0.00028619796
  %v3436 = vmul.f32 %v3433, %v3435
  %v3437 = vadd.f32 %v3436, 0.0036580483
  %v3438 = vmul.f32 %v3433, %v3437
  %v3439 = vadd.f32 %v3438, 0.05243302
  %v3440 = vmul.f32 %v3433, %v3439
  %v3441 = vadd.f32 %v3440, 0.18741608
  %v3442 = vmul.f32 %v3433, %v3441
  %v3443 = vadd.f32 %v3442, 1.1283791
  %v3444 = vmul.f32 %v3065, %v3443
  %v3445 = vmul.f32 %v3433, 3.8918573e-05
  %v3446 = vadd.f32 %v3445, 0.001143296
  %v3447 = vmul.f32 %v3433, %v3446
  %v3448 = vadd.f32 %v3447, 0.014752088
  %v3449 = vmul.f32 %v3433, %v3448
  %v3450 = vadd.f32 %v3449, 0.112945676
  %v3451 = vmul.f32 %v3433, %v3450
  %v3452 = vadd.f32 %v3451, 0.4994258
  %v3453 = vmul.f32 %v3433, %v3452
  %v3454 = vadd.f32 %v3453, 1.0
  %v3455 = vrcp.pop %v3454
  %v3456 = vmul.f32 %v3454, %v3455
  %v3457 = vsub.f32 1.0, %v3456
  %v3458 = vmul.f32 %v3455, %v3457
  %v3459 = vadd.f32 %v3455, %v3458
  %vm3460 = vweird.f32 %v3454
  %vm3461 = vweird.f32 %v3455
  %vm3462 = vmor %vm3460, %vm3461
  %v3463 = vsel %vm3462, %v3455, %v3459
  %v3464 = vand.u32 2147483647, %v3454
  %vm3465 = vcmp.eq.f32.partialorder %v3464, 8.507059e+37
  %v3466 = vand.u32 %v3454, 2147483648
  %v3467 = vor.u32 1.1754944e-38, %v3466
  %v3468 = vsel %vm3465, %v3467, %v3463
  %v3469 = vmul.f32 %v3444, %v3468
  %v3470 = vmin.f32 %v3469, 1.0
  %v3471 = vmax.f32 %v3470, -1.0
  %v3472 = vmul.f32 %v3066, %v3066
  %v3473 = vmin.f32 16.0, %v3472
  %v3474 = vmul.f32 %v3473, 2.1237322e-06
  %v3475 = vadd.f32 %v3474, 0.00028619796
  %v3476 = vmul.f32 %v3473, %v3475
  %v3477 = vadd.f32 %v3476, 0.0036580483
  %v3478 = vmul.f32 %v3473, %v3477
  %v3479 = vadd.f32 %v3478, 0.05243302
  %v3480 = vmul.f32 %v3473, %v3479
  %v3481 = vadd.f32 %v3480, 0.18741608
  %v3482 = vmul.f32 %v3473, %v3481
  %v3483 = vadd.f32 %v3482, 1.1283791
  %v3484 = vmul.f32 %v3066, %v3483
  %v3485 = vmul.f32 %v3473, 3.8918573e-05
  %v3486 = vadd.f32 %v3485, 0.001143296
  %v3487 = vmul.f32 %v3473, %v3486
  %v3488 = vadd.f32 %v3487, 0.014752088
  %v3489 = vmul.f32 %v3473, %v3488
  %v3490 = vadd.f32 %v3489, 0.112945676
  %v3491 = vmul.f32 %v3473, %v3490
  %v3492 = vadd.f32 %v3491, 0.4994258
  %v3493 = vmul.f32 %v3473, %v3492
  %v3494 = vadd.f32 %v3493, 1.0
  %v3495 = vrcp.pop %v3494
  %v3496 = vmul.f32 %v3494, %v3495
  %v3497 = vsub.f32 1.0, %v3496
  %v3498 = vmul.f32 %v3495, %v3497
  %v3499 = vadd.f32 %v3495, %v3498
  %vm3500 = vweird.f32 %v3494
  %vm3501 = vweird.f32 %v3495
  %vm3502 = vmor %vm3500, %vm3501
  %v3503 = vsel %vm3502, %v3495, %v3499
  %v3504 = vand.u32 2147483647, %v3494
  %vm3505 = vcmp.eq.f32.partialorder %v3504, 8.507059e+37
  %v3506 = vand.u32 %v3494, 2147483648
  %v3507 = vor.u32 1.1754944e-38, %v3506
  %v3508 = vsel %vm3505, %v3507, %v3503
  %v3509 = vmul.f32 %v3484, %v3508
  %v3510 = vmin.f32 %v3509, 1.0
  %v3511 = vmax.f32 %v3510, -1.0
  %v3512 = vmul.f32 %v3067, %v3067
  %v3513 = vmin.f32 16.0, %v3512
  %v3514 = vmul.f32 %v3513, 2.1237322e-06
  %v3515 = vadd.f32 %v3514, 0.00028619796
  %v3516 = vmul.f32 %v3513, %v3515
  %v3517 = vadd.f32 %v3516, 0.0036580483
  %v3518 = vmul.f32 %v3513, %v3517
  %v3519 = vadd.f32 %v3518, 0.05243302
  %v3520 = vmul.f32 %v3513, %v3519
  %v3521 = vadd.f32 %v3520, 0.18741608
  %v3522 = vmul.f32 %v3513, %v3521
  %v3523 = vadd.f32 %v3522, 1.1283791
  %v3524 = vmul.f32 %v3067, %v3523
  %v3525 = vmul.f32 %v3513, 3.8918573e-05
  %v3526 = vadd.f32 %v3525, 0.001143296
  %v3527 = vmul.f32 %v3513, %v3526
  %v3528 = vadd.f32 %v3527, 0.014752088
  %v3529 = vmul.f32 %v3513, %v3528
  %v3530 = vadd.f32 %v3529, 0.112945676
  %v3531 = vmul.f32 %v3513, %v3530
  %v3532 = vadd.f32 %v3531, 0.4994258
  %v3533 = vmul.f32 %v3513, %v3532
  %v3534 = vadd.f32 %v3533, 1.0
  %v3535 = vrcp.pop %v3534
  %v3536 = vmul.f32 %v3534, %v3535
  %v3537 = vsub.f32 1.0, %v3536
  %v3538 = vmul.f32 %v3535, %v3537
  %v3539 = vadd.f32 %v3535, %v3538
  %vm3540 = vweird.f32 %v3534
  %vm3541 = vweird.f32 %v3535
  %vm3542 = vmor %vm3540, %vm3541
  %v3543 = vsel %vm3542, %v3535, %v3539
  %v3544 = vand.u32 2147483647, %v3534
  %vm3545 = vcmp.eq.f32.partialorder %v3544, 8.507059e+37
  %v3546 = vand.u32 %v3534, 2147483648
  %v3547 = vor.u32 1.1754944e-38, %v3546
  %v3548 = vsel %vm3545, %v3547, %v3543
  %v3549 = vmul.f32 %v3524, %v3548
  %v3550 = vmin.f32 %v3549, 1.0
  %v3551 = vmax.f32 %v3550, -1.0
  %v3552 = vmul.f32 %v3068, %v3068
  %v3553 = vmin.f32 16.0, %v3552
  %v3554 = vmul.f32 %v3553, 2.1237322e-06
  %v3555 = vadd.f32 %v3554, 0.00028619796
  %v3556 = vmul.f32 %v3553, %v3555
  %v3557 = vadd.f32 %v3556, 0.0036580483
  %v3558 = vmul.f32 %v3553, %v3557
  %v3559 = vadd.f32 %v3558, 0.05243302
  %v3560 = vmul.f32 %v3553, %v3559
  %v3561 = vadd.f32 %v3560, 0.18741608
  %v3562 = vmul.f32 %v3553, %v3561
  %v3563 = vadd.f32 %v3562, 1.1283791
  %v3564 = vmul.f32 %v3068, %v3563
  %v3565 = vmul.f32 %v3553, 3.8918573e-05
  %v3566 = vadd.f32 %v3565, 0.001143296
  %v3567 = vmul.f32 %v3553, %v3566
  %v3568 = vadd.f32 %v3567, 0.014752088
  %v3569 = vmul.f32 %v3553, %v3568
  %v3570 = vadd.f32 %v3569, 0.112945676
  %v3571 = vmul.f32 %v3553, %v3570
  %v3572 = vadd.f32 %v3571, 0.4994258
  %v3573 = vmul.f32 %v3553, %v3572
  %v3574 = vadd.f32 %v3573, 1.0
  %v3575 = vrcp.pop %v3574
  %v3576 = vmul.f32 %v3574, %v3575
  %v3577 = vsub.f32 1.0, %v3576
  %v3578 = vmul.f32 %v3575, %v3577
  %v3579 = vadd.f32 %v3575, %v3578
  %vm3580 = vweird.f32 %v3574
  %vm3581 = vweird.f32 %v3575
  %vm3582 = vmor %vm3580, %vm3581
  %v3583 = vsel %vm3582, %v3575, %v3579
  %v3584 = vand.u32 2147483647, %v3574
  %vm3585 = vcmp.eq.f32.partialorder %v3584, 8.507059e+37
  %v3586 = vand.u32 %v3574, 2147483648
  %v3587 = vor.u32 1.1754944e-38, %v3586
  %v3588 = vsel %vm3585, %v3587, %v3583
  %v3589 = vmul.f32 %v3564, %v3588
  %v3590 = vmin.f32 %v3589, 1.0
  %v3591 = vmax.f32 %v3590, -1.0
  %v3592 = vmul.f32 %v3069, %v3069
  %v3593 = vmin.f32 16.0, %v3592
  %v3594 = vmul.f32 %v3593, 2.1237322e-06
  %v3595 = vadd.f32 %v3594, 0.00028619796
  %v3596 = vmul.f32 %v3593, %v3595
  %v3597 = vadd.f32 %v3596, 0.0036580483
  %v3598 = vmul.f32 %v3593, %v3597
  %v3599 = vadd.f32 %v3598, 0.05243302
  %v3600 = vmul.f32 %v3593, %v3599
  %v3601 = vadd.f32 %v3600, 0.18741608
  %v3602 = vmul.f32 %v3593, %v3601
  %v3603 = vadd.f32 %v3602, 1.1283791
  %v3604 = vmul.f32 %v3069, %v3603
  %v3605 = vmul.f32 %v3593, 3.8918573e-05
  %v3606 = vadd.f32 %v3605, 0.001143296
  %v3607 = vmul.f32 %v3593, %v3606
  %v3608 = vadd.f32 %v3607, 0.014752088
  %v3609 = vmul.f32 %v3593, %v3608
  %v3610 = vadd.f32 %v3609, 0.112945676
  %v3611 = vmul.f32 %v3593, %v3610
  %v3612 = vadd.f32 %v3611, 0.4994258
  %v3613 = vmul.f32 %v3593, %v3612
  %v3614 = vadd.f32 %v3613, 1.0
  %v3615 = vrcp.pop %v3614
  %v3616 = vmul.f32 %v3614, %v3615
  %v3617 = vsub.f32 1.0, %v3616
  %v3618 = vmul.f32 %v3615, %v3617
  %v3619 = vadd.f32 %v3615, %v3618
  %vm3620 = vweird.f32 %v3614
  %vm3621 = vweird.f32 %v3615
  %vm3622 = vmor %vm3620, %vm3621
  %v3623 = vsel %vm3622, %v3615, %v3619
  %v3624 = vand.u32 2147483647, %v3614
  %vm3625 = vcmp.eq.f32.partialorder %v3624, 8.507059e+37
  %v3626 = vand.u32 %v3614, 2147483648
  %v3627 = vor.u32 1.1754944e-38, %v3626
  %v3628 = vsel %vm3625, %v3627, %v3623
  %v3629 = vmul.f32 %v3604, %v3628
  %v3630 = vmin.f32 %v3629, 1.0
  %v3631 = vmax.f32 %v3630, -1.0
  %v3632 = vmul.f32 %v3070, %v3070
  %v3633 = vmin.f32 16.0, %v3632
  %v3634 = vmul.f32 %v3633, 2.1237322e-06
  %v3635 = vadd.f32 %v3634, 0.00028619796
  %v3636 = vmul.f32 %v3633, %v3635
  %v3637 = vadd.f32 %v3636, 0.0036580483
  %v3638 = vmul.f32 %v3633, %v3637
  %v3639 = vadd.f32 %v3638, 0.05243302
  %v3640 = vmul.f32 %v3633, %v3639
  %v3641 = vadd.f32 %v3640, 0.18741608
  %v3642 = vmul.f32 %v3633, %v3641
  %v3643 = vadd.f32 %v3642, 1.1283791
  %v3644 = vmul.f32 %v3070, %v3643
  %v3645 = vmul.f32 %v3633, 3.8918573e-05
  %v3646 = vadd.f32 %v3645, 0.001143296
  %v3647 = vmul.f32 %v3633, %v3646
  %v3648 = vadd.f32 %v3647, 0.014752088
  %v3649 = vmul.f32 %v3633, %v3648
  %v3650 = vadd.f32 %v3649, 0.112945676
  %v3651 = vmul.f32 %v3633, %v3650
  %v3652 = vadd.f32 %v3651, 0.4994258
  %v3653 = vmul.f32 %v3633, %v3652
  %v3654 = vadd.f32 %v3653, 1.0
  %v3655 = vrcp.pop %v3654
  %v3656 = vmul.f32 %v3654, %v3655
  %v3657 = vsub.f32 1.0, %v3656
  %v3658 = vmul.f32 %v3655, %v3657
  %v3659 = vadd.f32 %v3655, %v3658
  %vm3660 = vweird.f32 %v3654
  %vm3661 = vweird.f32 %v3655
  %vm3662 = vmor %vm3660, %vm3661
  %v3663 = vsel %vm3662, %v3655, %v3659
  %v3664 = vand.u32 2147483647, %v3654
  %vm3665 = vcmp.eq.f32.partialorder %v3664, 8.507059e+37
  %v3666 = vand.u32 %v3654, 2147483648
  %v3667 = vor.u32 1.1754944e-38, %v3666
  %v3668 = vsel %vm3665, %v3667, %v3663
  %v3669 = vmul.f32 %v3644, %v3668
  %v3670 = vmin.f32 %v3669, 1.0
  %v3671 = vmax.f32 %v3670, -1.0
  %v3672 = vmul.f32 %v3071, %v3071
  %v3673 = vmin.f32 16.0, %v3672
  %v3674 = vmul.f32 %v3673, 2.1237322e-06
  %v3675 = vadd.f32 %v3674, 0.00028619796
  %v3676 = vmul.f32 %v3673, %v3675
  %v3677 = vadd.f32 %v3676, 0.0036580483
  %v3678 = vmul.f32 %v3673, %v3677
  %v3679 = vadd.f32 %v3678, 0.05243302
  %v3680 = vmul.f32 %v3673, %v3679
  %v3681 = vadd.f32 %v3680, 0.18741608
  %v3682 = vmul.f32 %v3673, %v3681
  %v3683 = vadd.f32 %v3682, 1.1283791
  %v3684 = vmul.f32 %v3071, %v3683
  %v3685 = vmul.f32 %v3673, 3.8918573e-05
  %v3686 = vadd.f32 %v3685, 0.001143296
  %v3687 = vmul.f32 %v3673, %v3686
  %v3688 = vadd.f32 %v3687, 0.014752088
  %v3689 = vmul.f32 %v3673, %v3688
  %v3690 = vadd.f32 %v3689, 0.112945676
  %v3691 = vmul.f32 %v3673, %v3690
  %v3692 = vadd.f32 %v3691, 0.4994258
  %v3693 = vmul.f32 %v3673, %v3692
  %v3694 = vadd.f32 %v3693, 1.0
  %v3695 = vrcp.pop %v3694
  %v3696 = vmul.f32 %v3694, %v3695
  %v3697 = vsub.f32 1.0, %v3696
  %v3698 = vmul.f32 %v3695, %v3697
  %v3699 = vadd.f32 %v3695, %v3698
  %vm3700 = vweird.f32 %v3694
  %vm3701 = vweird.f32 %v3695
  %vm3702 = vmor %vm3700, %vm3701
  %v3703 = vsel %vm3702, %v3695, %v3699
  %v3704 = vand.u32 2147483647, %v3694
  %vm3705 = vcmp.eq.f32.partialorder %v3704, 8.507059e+37
  %v3706 = vand.u32 %v3694, 2147483648
  %v3707 = vor.u32 1.1754944e-38, %v3706
  %v3708 = vsel %vm3705, %v3707, %v3703
  %v3709 = vmul.f32 %v3684, %v3708
  %v3710 = vmin.f32 %v3709, 1.0
  %v3711 = vmax.f32 %v3710, -1.0
  %v3712 = vadd.f32 %v3111, 1.0
  %v3713 = vadd.f32 %v3151, 1.0
  %v3714 = vadd.f32 %v3191, 1.0
  %v3715 = vadd.f32 %v3231, 1.0
  %v3716 = vadd.f32 %v3271, 1.0
  %v3717 = vadd.f32 %v3311, 1.0
  %v3718 = vadd.f32 %v3351, 1.0
  %v3719 = vadd.f32 %v3391, 1.0
  %v3720 = vadd.f32 %v3431, 1.0
  %v3721 = vadd.f32 %v3471, 1.0
  %v3722 = vadd.f32 %v3511, 1.0
  %v3723 = vadd.f32 %v3551, 1.0
  %v3724 = vadd.f32 %v3591, 1.0
  %v3725 = vadd.f32 %v3631, 1.0
  %v3726 = vadd.f32 %v3671, 1.0
  %v3727 = vadd.f32 %v3711, 1.0
  %v3728 = vmul.f32 %v3040, %v3712
  %v3729 = vmul.f32 %v3041, %v3713
  %v3730 = vmul.f32 %v3042, %v3714
  %v3731 = vmul.f32 %v3043, %v3715
  %v3732 = vmul.f32 %v3044, %v3716
  %v3733 = vmul.f32 %v3045, %v3717
  %v3734 = vmul.f32 %v3046, %v3718
  %v3735 = vmul.f32 %v3047, %v3719
  %v3736 = vmul.f32 %v3048, %v3720
  %v3737 = vmul.f32 %v3049, %v3721
  %v3738 = vmul.f32 %v3050, %v3722
  %v3739 = vmul.f32 %v3051, %v3723
  %v3740 = vmul.f32 %v3052, %v3724
  %v3741 = vmul.f32 %v3053, %v3725
  %v3742 = vmul.f32 %v3054, %v3726
  %v3743 = vmul.f32 %v3055, %v3727
  %v3744 = vld [vmem:[%s11] sm:$0xff]
  %v3745 = vld [vmem:[%s11 + $0x8] sm:$0xff]
  %v3746 = vld [vmem:[%s11 + $0x10] sm:$0xff]
  %v3747 = vld [vmem:[%s11 + $0x18] sm:$0xff]
  %v3748 = vld [vmem:[%s12] sm:$0x1]
  %v3750 = vperm.slane %v3748, 0
  %v3753 = vsel %vm2326, %v3728, 0
  %v3756 = vsel %vm2326, %v3729, 0
  %v3759 = vsel %vm2326, %v3730, 0
  %v3762 = vsel %vm2326, %v3731, 0
  %v3765 = vsel %vm2326, %v3732, 0
  %v3768 = vsel %vm2326, %v3733, 0
  %v3771 = vsel %vm2326, %v3734, 0
  %v3774 = vsel %vm2326, %v3735, 0
  %v3777 = vsel %vm2326, %v3736, 0
  %v3780 = vsel %vm2326, %v3737, 0
  %v3783 = vsel %vm2326, %v3738, 0
  %v3786 = vsel %vm2326, %v3739, 0
  %v3789 = vsel %vm2326, %v3740, 0
  %v3792 = vsel %vm2326, %v3741, 0
  %v3795 = vsel %vm2326, %v3742, 0
  %v3798 = vsel %vm2326, %v3743, 0
  %3800 = vmatpush.msra.mxu0 0.0
  %3801 = vmatpush.msra.mxu0 0.0
  %3802 = vmatpush.msra.mxu0 0.0
  %3803 = vmatpush.msra.mxu0 0.0
  %3804 = vmatpush.msra.mxu0 0.0
  %3805 = vmatpush.msra.mxu0 0.0
  %3806 = vmatpush.msra.mxu0 0.0
  %3807 = vmatpush.msra.mxu0 0.0
  %3808 = vmatpush.msra.mxu0 0.0
  %3809 = vmatpush.msra.mxu0 0.0
  %3810 = vmatpush.msra.mxu0 0.0
  %3811 = vmatpush.msra.mxu0 0.0
  %3812 = vmatpush.msra.mxu0 %v3747
  %3813 = vmatpush.msra.mxu0 %v3746
  %3814 = vmatpush.msra.mxu0 %v3745
  %3815 = vmatpush.msra.mxu0 %v3744
  %3816 = vmatmul.f32.gmra.mxu0 %v3753
  %v3817 = vpop.f32.mrf.mxu0
  %v3818 = vadd.f32 %v3750, %v3817
  %3819 = vmatmul.f32.gmra.mxu0 %v3756
  %v3820 = vpop.f32.mrf.mxu0
  %v3821 = vadd.f32 %v3750, %v3820
  %3822 = vmatmul.f32.gmra.mxu0 %v3759
  %v3823 = vpop.f32.mrf.mxu0
  %v3824 = vadd.f32 %v3750, %v3823
  %3825 = vmatmul.f32.gmra.mxu0 %v3762
  %v3826 = vpop.f32.mrf.mxu0
  %v3827 = vadd.f32 %v3750, %v3826
  %3828 = vmatmul.f32.gmra.mxu0 %v3765
  %v3829 = vpop.f32.mrf.mxu0
  %v3830 = vadd.f32 %v3750, %v3829
  %3831 = vmatmul.f32.gmra.mxu0 %v3768
  %v3832 = vpop.f32.mrf.mxu0
  %v3833 = vadd.f32 %v3750, %v3832
  %3834 = vmatmul.f32.gmra.mxu0 %v3771
  %v3835 = vpop.f32.mrf.mxu0
  %v3836 = vadd.f32 %v3750, %v3835
  %3837 = vmatmul.f32.gmra.mxu0 %v3774
  %v3838 = vpop.f32.mrf.mxu0
  %v3839 = vadd.f32 %v3750, %v3838
  %3840 = vmatmul.f32.gmra.mxu0 %v3777
  %v3841 = vpop.f32.mrf.mxu0
  %v3842 = vadd.f32 %v3750, %v3841
  %3843 = vmatmul.f32.gmra.mxu0 %v3780
  %v3844 = vpop.f32.mrf.mxu0
  %v3845 = vadd.f32 %v3750, %v3844
  %3846 = vmatmul.f32.gmra.mxu0 %v3783
  %v3847 = vpop.f32.mrf.mxu0
  %v3848 = vadd.f32 %v3750, %v3847
  %3849 = vmatmul.f32.gmra.mxu0 %v3786
  %v3850 = vpop.f32.mrf.mxu0
  %v3851 = vadd.f32 %v3750, %v3850
  %3852 = vmatmul.f32.gmra.mxu0 %v3789
  %v3853 = vpop.f32.mrf.mxu0
  %v3854 = vadd.f32 %v3750, %v3853
  %3855 = vmatmul.f32.gmra.mxu0 %v3792
  %v3856 = vpop.f32.mrf.mxu0
  %v3857 = vadd.f32 %v3750, %v3856
  %3858 = vmatmul.f32.gmra.mxu0 %v3795
  %v3859 = vpop.f32.mrf.mxu0
  %v3860 = vadd.f32 %v3750, %v3859
  %3861 = vmatmul.f32.gmra.mxu0 %v3798
  %v3862 = vpop.f32.mrf.mxu0
  %v3863 = vadd.f32 %v3750, %v3862
  %3864 = vdwg.mxu0
  %v3865 = vadd.f32 %v2901, %v3818
  %v3866 = vadd.f32 %v2902, %v3821
  %v3867 = vadd.f32 %v2903, %v3824
  %v3868 = vadd.f32 %v2904, %v3827
  %v3869 = vadd.f32 %v2905, %v3830
  %v3870 = vadd.f32 %v2906, %v3833
  %v3871 = vadd.f32 %v2907, %v3836
  %v3872 = vadd.f32 %v2908, %v3839
  %v3873 = vadd.f32 %v2909, %v3842
  %v3874 = vadd.f32 %v2910, %v3845
  %v3875 = vadd.f32 %v2911, %v3848
  %v3876 = vadd.f32 %v2912, %v3851
  %v3877 = vadd.f32 %v2913, %v3854
  %v3878 = vadd.f32 %v2914, %v3857
  %v3879 = vadd.f32 %v2915, %v3860
  %v3880 = vadd.f32 %v2916, %v3863
  %v3881 = vld [vmem:[%s13] sm:$0x1]
  %v3882 = vld [vmem:[%s14] sm:$0x1]
  %v3883 = vsel %vm233, %v3865, 0.0
  %3884 = vadd.xlane.f32.xlu0 %v3883
  %v3885 = vpop.xlane.xlu0 %3884
  %v3886 = vsel %vm233, %v3866, 0.0
  %3887 = vadd.xlane.f32.xlu0 %v3886
  %v3888 = vpop.xlane.xlu0 %3887
  %v3889 = vsel %vm233, %v3867, 0.0
  %3890 = vadd.xlane.f32.xlu0 %v3889
  %v3891 = vpop.xlane.xlu0 %3890
  %v3892 = vsel %vm233, %v3868, 0.0
  %3893 = vadd.xlane.f32.xlu0 %v3892
  %v3894 = vpop.xlane.xlu0 %3893
  %v3895 = vsel %vm233, %v3869, 0.0
  %3896 = vadd.xlane.f32.xlu0 %v3895
  %v3897 = vpop.xlane.xlu0 %3896
  %v3898 = vsel %vm233, %v3870, 0.0
  %3899 = vadd.xlane.f32.xlu0 %v3898
  %v3900 = vpop.xlane.xlu0 %3899
  %v3901 = vsel %vm233, %v3871, 0.0
  %3902 = vadd.xlane.f32.xlu0 %v3901
  %v3903 = vpop.xlane.xlu0 %3902
  %v3904 = vsel %vm233, %v3872, 0.0
  %3905 = vadd.xlane.f32.xlu0 %v3904
  %v3906 = vpop.xlane.xlu0 %3905
  %v3907 = vsel %vm233, %v3873, 0.0
  %3908 = vadd.xlane.f32.xlu0 %v3907
  %v3909 = vpop.xlane.xlu0 %3908
  %v3910 = vsel %vm233, %v3874, 0.0
  %3911 = vadd.xlane.f32.xlu0 %v3910
  %v3912 = vpop.xlane.xlu0 %3911
  %v3913 = vsel %vm233, %v3875, 0.0
  %3914 = vadd.xlane.f32.xlu0 %v3913
  %v3915 = vpop.xlane.xlu0 %3914
  %v3916 = vsel %vm233, %v3876, 0.0
  %3917 = vadd.xlane.f32.xlu0 %v3916
  %v3918 = vpop.xlane.xlu0 %3917
  %v3919 = vsel %vm233, %v3877, 0.0
  %3920 = vadd.xlane.f32.xlu0 %v3919
  %v3921 = vpop.xlane.xlu0 %3920
  %v3922 = vsel %vm233, %v3878, 0.0
  %3923 = vadd.xlane.f32.xlu0 %v3922
  %v3924 = vpop.xlane.xlu0 %3923
  %v3925 = vsel %vm233, %v3879, 0.0
  %3926 = vadd.xlane.f32.xlu0 %v3925
  %v3927 = vpop.xlane.xlu0 %3926
  %v3928 = vsel %vm233, %v3880, 0.0
  %3929 = vadd.xlane.f32.xlu0 %v3928
  %v3930 = vpop.xlane.xlu0 %3929
  %v3931 = vmul.f32 %v3885, %v288
  %v3932 = vmul.f32 %v3888, %v288
  %v3933 = vmul.f32 %v3891, %v288
  %v3934 = vmul.f32 %v3894, %v288
  %v3935 = vmul.f32 %v3897, %v288
  %v3936 = vmul.f32 %v3900, %v288
  %v3937 = vmul.f32 %v3903, %v288
  %v3938 = vmul.f32 %v3906, %v288
  %v3939 = vmul.f32 %v3909, %v288
  %v3940 = vmul.f32 %v3912, %v288
  %v3941 = vmul.f32 %v3915, %v288
  %v3942 = vmul.f32 %v3918, %v288
  %v3943 = vmul.f32 %v3921, %v288
  %v3944 = vmul.f32 %v3924, %v288
  %v3945 = vmul.f32 %v3927, %v288
  %v3946 = vmul.f32 %v3930, %v288
  %v3947 = vsub.f32 %v3865, %v3931
  %v3948 = vsub.f32 %v3866, %v3932
  %v3949 = vsub.f32 %v3867, %v3933
  %v3950 = vsub.f32 %v3868, %v3934
  %v3951 = vsub.f32 %v3869, %v3935
  %v3952 = vsub.f32 %v3870, %v3936
  %v3953 = vsub.f32 %v3871, %v3937
  %v3954 = vsub.f32 %v3872, %v3938
  %v3955 = vsub.f32 %v3873, %v3939
  %v3956 = vsub.f32 %v3874, %v3940
  %v3957 = vsub.f32 %v3875, %v3941
  %v3958 = vsub.f32 %v3876, %v3942
  %v3959 = vsub.f32 %v3877, %v3943
  %v3960 = vsub.f32 %v3878, %v3944
  %v3961 = vsub.f32 %v3879, %v3945
  %v3962 = vsub.f32 %v3880, %v3946
  %v3963 = vmul.f32 %v3947, %v3947
  %v3964 = vmul.f32 %v3948, %v3948
  %v3965 = vmul.f32 %v3949, %v3949
  %v3966 = vmul.f32 %v3950, %v3950
  %v3967 = vmul.f32 %v3951, %v3951
  %v3968 = vmul.f32 %v3952, %v3952
  %v3969 = vmul.f32 %v3953, %v3953
  %v3970 = vmul.f32 %v3954, %v3954
  %v3971 = vmul.f32 %v3955, %v3955
  %v3972 = vmul.f32 %v3956, %v3956
  %v3973 = vmul.f32 %v3957, %v3957
  %v3974 = vmul.f32 %v3958, %v3958
  %v3975 = vmul.f32 %v3959, %v3959
  %v3976 = vmul.f32 %v3960, %v3960
  %v3977 = vmul.f32 %v3961, %v3961
  %v3978 = vmul.f32 %v3962, %v3962
  %v3979 = vsel %vm233, %v3963, 0.0
  %3980 = vadd.xlane.f32.xlu0 %v3979
  %v3981 = vpop.xlane.xlu0 %3980
  %v3982 = vsel %vm233, %v3964, 0.0
  %3983 = vadd.xlane.f32.xlu0 %v3982
  %v3984 = vpop.xlane.xlu0 %3983
  %v3985 = vsel %vm233, %v3965, 0.0
  %3986 = vadd.xlane.f32.xlu0 %v3985
  %v3987 = vpop.xlane.xlu0 %3986
  %v3988 = vsel %vm233, %v3966, 0.0
  %3989 = vadd.xlane.f32.xlu0 %v3988
  %v3990 = vpop.xlane.xlu0 %3989
  %v3991 = vsel %vm233, %v3967, 0.0
  %3992 = vadd.xlane.f32.xlu0 %v3991
  %v3993 = vpop.xlane.xlu0 %3992
  %v3994 = vsel %vm233, %v3968, 0.0
  %3995 = vadd.xlane.f32.xlu0 %v3994
  %v3996 = vpop.xlane.xlu0 %3995
  %v3997 = vsel %vm233, %v3969, 0.0
  %3998 = vadd.xlane.f32.xlu0 %v3997
  %v3999 = vpop.xlane.xlu0 %3998
  %v4000 = vsel %vm233, %v3970, 0.0
  %4001 = vadd.xlane.f32.xlu0 %v4000
  %v4002 = vpop.xlane.xlu0 %4001
  %v4003 = vsel %vm233, %v3971, 0.0
  %4004 = vadd.xlane.f32.xlu0 %v4003
  %v4005 = vpop.xlane.xlu0 %4004
  %v4006 = vsel %vm233, %v3972, 0.0
  %4007 = vadd.xlane.f32.xlu0 %v4006
  %v4008 = vpop.xlane.xlu0 %4007
  %v4009 = vsel %vm233, %v3973, 0.0
  %4010 = vadd.xlane.f32.xlu0 %v4009
  %v4011 = vpop.xlane.xlu0 %4010
  %v4012 = vsel %vm233, %v3974, 0.0
  %4013 = vadd.xlane.f32.xlu0 %v4012
  %v4014 = vpop.xlane.xlu0 %4013
  %v4015 = vsel %vm233, %v3975, 0.0
  %4016 = vadd.xlane.f32.xlu0 %v4015
  %v4017 = vpop.xlane.xlu0 %4016
  %v4018 = vsel %vm233, %v3976, 0.0
  %4019 = vadd.xlane.f32.xlu0 %v4018
  %v4020 = vpop.xlane.xlu0 %4019
  %v4021 = vsel %vm233, %v3977, 0.0
  %4022 = vadd.xlane.f32.xlu0 %v4021
  %v4023 = vpop.xlane.xlu0 %4022
  %v4024 = vsel %vm233, %v3978, 0.0
  %4025 = vadd.xlane.f32.xlu0 %v4024
  %v4026 = vpop.xlane.xlu0 %4025
  %v4027 = vmul.f32 %v3981, %v288
  %v4028 = vmul.f32 %v3984, %v288
  %v4029 = vmul.f32 %v3987, %v288
  %v4030 = vmul.f32 %v3990, %v288
  %v4031 = vmul.f32 %v3993, %v288
  %v4032 = vmul.f32 %v3996, %v288
  %v4033 = vmul.f32 %v3999, %v288
  %v4034 = vmul.f32 %v4002, %v288
  %v4035 = vmul.f32 %v4005, %v288
  %v4036 = vmul.f32 %v4008, %v288
  %v4037 = vmul.f32 %v4011, %v288
  %v4038 = vmul.f32 %v4014, %v288
  %v4039 = vmul.f32 %v4017, %v288
  %v4040 = vmul.f32 %v4020, %v288
  %v4041 = vmul.f32 %v4023, %v288
  %v4042 = vmul.f32 %v4026, %v288
  %v4043 = vadd.f32 %v4027, 1e-05
  %v4044 = vadd.f32 %v4028, 1e-05
  %v4045 = vadd.f32 %v4029, 1e-05
  %v4046 = vadd.f32 %v4030, 1e-05
  %v4047 = vadd.f32 %v4031, 1e-05
  %v4048 = vadd.f32 %v4032, 1e-05
  %v4049 = vadd.f32 %v4033, 1e-05
  %v4050 = vadd.f32 %v4034, 1e-05
  %v4051 = vadd.f32 %v4035, 1e-05
  %v4052 = vadd.f32 %v4036, 1e-05
  %v4053 = vadd.f32 %v4037, 1e-05
  %v4054 = vadd.f32 %v4038, 1e-05
  %v4055 = vadd.f32 %v4039, 1e-05
  %v4056 = vadd.f32 %v4040, 1e-05
  %v4057 = vadd.f32 %v4041, 1e-05
  %v4058 = vadd.f32 %v4042, 1e-05
  %v4059 = vrsqrt.pop %v4043
  %v4060 = vmul.f32 %v4059, %v4043
  %v4061 = vmul.f32 %v4060, %v4059
  %v4062 = vmul.f32 0.5, %v4061
  %v4063 = vsub.f32 1.5, %v4062
  %v4064 = vmul.f32 %v4059, %v4063
  %vm4065 = vweird.f32 %v4043
  %vm4066 = vweird.f32 %v4059
  %vm4067 = vmor %vm4065, %vm4066
  %v4068 = vsel %vm4067, %v4059, %v4064
  %v4069 = vrsqrt.pop %v4044
  %v4070 = vmul.f32 %v4069, %v4044
  %v4071 = vmul.f32 %v4070, %v4069
  %v4072 = vmul.f32 0.5, %v4071
  %v4073 = vsub.f32 1.5, %v4072
  %v4074 = vmul.f32 %v4069, %v4073
  %vm4075 = vweird.f32 %v4044
  %vm4076 = vweird.f32 %v4069
  %vm4077 = vmor %vm4075, %vm4076
  %v4078 = vsel %vm4077, %v4069, %v4074
  %v4079 = vrsqrt.pop %v4045
  %v4080 = vmul.f32 %v4079, %v4045
  %v4081 = vmul.f32 %v4080, %v4079
  %v4082 = vmul.f32 0.5, %v4081
  %v4083 = vsub.f32 1.5, %v4082
  %v4084 = vmul.f32 %v4079, %v4083
  %vm4085 = vweird.f32 %v4045
  %vm4086 = vweird.f32 %v4079
  %vm4087 = vmor %vm4085, %vm4086
  %v4088 = vsel %vm4087, %v4079, %v4084
  %v4089 = vrsqrt.pop %v4046
  %v4090 = vmul.f32 %v4089, %v4046
  %v4091 = vmul.f32 %v4090, %v4089
  %v4092 = vmul.f32 0.5, %v4091
  %v4093 = vsub.f32 1.5, %v4092
  %v4094 = vmul.f32 %v4089, %v4093
  %vm4095 = vweird.f32 %v4046
  %vm4096 = vweird.f32 %v4089
  %vm4097 = vmor %vm4095, %vm4096
  %v4098 = vsel %vm4097, %v4089, %v4094
  %v4099 = vrsqrt.pop %v4047
  %v4100 = vmul.f32 %v4099, %v4047
  %v4101 = vmul.f32 %v4100, %v4099
  %v4102 = vmul.f32 0.5, %v4101
  %v4103 = vsub.f32 1.5, %v4102
  %v4104 = vmul.f32 %v4099, %v4103
  %vm4105 = vweird.f32 %v4047
  %vm4106 = vweird.f32 %v4099
  %vm4107 = vmor %vm4105, %vm4106
  %v4108 = vsel %vm4107, %v4099, %v4104
  %v4109 = vrsqrt.pop %v4048
  %v4110 = vmul.f32 %v4109, %v4048
  %v4111 = vmul.f32 %v4110, %v4109
  %v4112 = vmul.f32 0.5, %v4111
  %v4113 = vsub.f32 1.5, %v4112
  %v4114 = vmul.f32 %v4109, %v4113
  %vm4115 = vweird.f32 %v4048
  %vm4116 = vweird.f32 %v4109
  %vm4117 = vmor %vm4115, %vm4116
  %v4118 = vsel %vm4117, %v4109, %v4114
  %v4119 = vrsqrt.pop %v4049
  %v4120 = vmul.f32 %v4119, %v4049
  %v4121 = vmul.f32 %v4120, %v4119
  %v4122 = vmul.f32 0.5, %v4121
  %v4123 = vsub.f32 1.5, %v4122
  %v4124 = vmul.f32 %v4119, %v4123
  %vm4125 = vweird.f32 %v4049
  %vm4126 = vweird.f32 %v4119
  %vm4127 = vmor %vm4125, %vm4126
  %v4128 = vsel %vm4127, %v4119, %v4124
  %v4129 = vrsqrt.pop %v4050
  %v4130 = vmul.f32 %v4129, %v4050
  %v4131 = vmul.f32 %v4130, %v4129
  %v4132 = vmul.f32 0.5, %v4131
  %v4133 = vsub.f32 1.5, %v4132
  %v4134 = vmul.f32 %v4129, %v4133
  %vm4135 = vweird.f32 %v4050
  %vm4136 = vweird.f32 %v4129
  %vm4137 = vmor %vm4135, %vm4136
  %v4138 = vsel %vm4137, %v4129, %v4134
  %v4139 = vrsqrt.pop %v4051
  %v4140 = vmul.f32 %v4139, %v4051
  %v4141 = vmul.f32 %v4140, %v4139
  %v4142 = vmul.f32 0.5, %v4141
  %v4143 = vsub.f32 1.5, %v4142
  %v4144 = vmul.f32 %v4139, %v4143
  %vm4145 = vweird.f32 %v4051
  %vm4146 = vweird.f32 %v4139
  %vm4147 = vmor %vm4145, %vm4146
  %v4148 = vsel %vm4147, %v4139, %v4144
  %v4149 = vrsqrt.pop %v4052
  %v4150 = vmul.f32 %v4149, %v4052
  %v4151 = vmul.f32 %v4150, %v4149
  %v4152 = vmul.f32 0.5, %v4151
  %v4153 = vsub.f32 1.5, %v4152
  %v4154 = vmul.f32 %v4149, %v4153
  %vm4155 = vweird.f32 %v4052
  %vm4156 = vweird.f32 %v4149
  %vm4157 = vmor %vm4155, %vm4156
  %v4158 = vsel %vm4157, %v4149, %v4154
  %v4159 = vrsqrt.pop %v4053
  %v4160 = vmul.f32 %v4159, %v4053
  %v4161 = vmul.f32 %v4160, %v4159
  %v4162 = vmul.f32 0.5, %v4161
  %v4163 = vsub.f32 1.5, %v4162
  %v4164 = vmul.f32 %v4159, %v4163
  %vm4165 = vweird.f32 %v4053
  %vm4166 = vweird.f32 %v4159
  %vm4167 = vmor %vm4165, %vm4166
  %v4168 = vsel %vm4167, %v4159, %v4164
  %v4169 = vrsqrt.pop %v4054
  %v4170 = vmul.f32 %v4169, %v4054
  %v4171 = vmul.f32 %v4170, %v4169
  %v4172 = vmul.f32 0.5, %v4171
  %v4173 = vsub.f32 1.5, %v4172
  %v4174 = vmul.f32 %v4169, %v4173
  %vm4175 = vweird.f32 %v4054
  %vm4176 = vweird.f32 %v4169
  %vm4177 = vmor %vm4175, %vm4176
  %v4178 = vsel %vm4177, %v4169, %v4174
  %v4179 = vrsqrt.pop %v4055
  %v4180 = vmul.f32 %v4179, %v4055
  %v4181 = vmul.f32 %v4180, %v4179
  %v4182 = vmul.f32 0.5, %v4181
  %v4183 = vsub.f32 1.5, %v4182
  %v4184 = vmul.f32 %v4179, %v4183
  %vm4185 = vweird.f32 %v4055
  %vm4186 = vweird.f32 %v4179
  %vm4187 = vmor %vm4185, %vm4186
  %v4188 = vsel %vm4187, %v4179, %v4184
  %v4189 = vrsqrt.pop %v4056
  %v4190 = vmul.f32 %v4189, %v4056
  %v4191 = vmul.f32 %v4190, %v4189
  %v4192 = vmul.f32 0.5, %v4191
  %v4193 = vsub.f32 1.5, %v4192
  %v4194 = vmul.f32 %v4189, %v4193
  %vm4195 = vweird.f32 %v4056
  %vm4196 = vweird.f32 %v4189
  %vm4197 = vmor %vm4195, %vm4196
  %v4198 = vsel %vm4197, %v4189, %v4194
  %v4199 = vrsqrt.pop %v4057
  %v4200 = vmul.f32 %v4199, %v4057
  %v4201 = vmul.f32 %v4200, %v4199
  %v4202 = vmul.f32 0.5, %v4201
  %v4203 = vsub.f32 1.5, %v4202
  %v4204 = vmul.f32 %v4199, %v4203
  %vm4205 = vweird.f32 %v4057
  %vm4206 = vweird.f32 %v4199
  %vm4207 = vmor %vm4205, %vm4206
  %v4208 = vsel %vm4207, %v4199, %v4204
  %v4209 = vrsqrt.pop %v4058
  %v4210 = vmul.f32 %v4209, %v4058
  %v4211 = vmul.f32 %v4210, %v4209
  %v4212 = vmul.f32 0.5, %v4211
  %v4213 = vsub.f32 1.5, %v4212
  %v4214 = vmul.f32 %v4209, %v4213
  %vm4215 = vweird.f32 %v4058
  %vm4216 = vweird.f32 %v4209
  %vm4217 = vmor %vm4215, %vm4216
  %v4218 = vsel %vm4217, %v4209, %v4214
  %v4219 = vmul.f32 %v3947, %v4068
  %v4220 = vmul.f32 %v3948, %v4078
  %v4221 = vmul.f32 %v3949, %v4088
  %v4222 = vmul.f32 %v3950, %v4098
  %v4223 = vmul.f32 %v3951, %v4108
  %v4224 = vmul.f32 %v3952, %v4118
  %v4225 = vmul.f32 %v3953, %v4128
  %v4226 = vmul.f32 %v3954, %v4138
  %v4227 = vmul.f32 %v3955, %v4148
  %v4228 = vmul.f32 %v3956, %v4158
  %v4229 = vmul.f32 %v3957, %v4168
  %v4230 = vmul.f32 %v3958, %v4178
  %v4231 = vmul.f32 %v3959, %v4188
  %v4232 = vmul.f32 %v3960, %v4198
  %v4233 = vmul.f32 %v3961, %v4208
  %v4234 = vmul.f32 %v3962, %v4218
  %v4236 = vperm.slane %v3881, 0
  %v4238 = vmul.f32 %v4219, %v4236
  %v4239 = vmul.f32 %v4220, %v4236
  %v4240 = vmul.f32 %v4221, %v4236
  %v4241 = vmul.f32 %v4222, %v4236
  %v4242 = vmul.f32 %v4223, %v4236
  %v4243 = vmul.f32 %v4224, %v4236
  %v4244 = vmul.f32 %v4225, %v4236
  %v4245 = vmul.f32 %v4226, %v4236
  %v4246 = vmul.f32 %v4227, %v4236
  %v4247 = vmul.f32 %v4228, %v4236
  %v4248 = vmul.f32 %v4229, %v4236
  %v4249 = vmul.f32 %v4230, %v4236
  %v4250 = vmul.f32 %v4231, %v4236
  %v4251 = vmul.f32 %v4232, %v4236
  %v4252 = vmul.f32 %v4233, %v4236
  %v4253 = vmul.f32 %v4234, %v4236
  %v4255 = vperm.slane %v3882, 0
  %v4257 = vadd.f32 %v4238, %v4255
  %v4258 = vadd.f32 %v4239, %v4255
  %v4259 = vadd.f32 %v4240, %v4255
  %v4260 = vadd.f32 %v4241, %v4255
  %v4261 = vadd.f32 %v4242, %v4255
  %v4262 = vadd.f32 %v4243, %v4255
  %v4263 = vadd.f32 %v4244, %v4255
  %v4264 = vadd.f32 %v4245, %v4255
  %v4265 = vadd.f32 %v4246, %v4255
  %v4266 = vadd.f32 %v4247, %v4255
  %v4267 = vadd.f32 %v4248, %v4255
  %v4268 = vadd.f32 %v4249, %v4255
  %v4269 = vadd.f32 %v4250, %v4255
  %v4270 = vadd.f32 %v4251, %v4255
  %v4271 = vadd.f32 %v4252, %v4255
  %v4272 = vadd.f32 %v4253, %v4255
  %v4273 = vld [vmem:[%s15] sm:$0xff]
  %v4274 = vld [vmem:[%s15 + $0x8] sm:$0xff]
  %v4275 = vld [vmem:[%s15 + $0x10] sm:$0xff]
  %v4276 = vld [vmem:[%s15 + $0x18] sm:$0xff]
  %v4277 = vld [vmem:[%s16] sm:$0xff]
  %v4278 = vld [vmem:[%s16 + $0x8] sm:$0xff]
  %v4279 = vld [vmem:[%s16 + $0x10] sm:$0xff]
  %v4280 = vld [vmem:[%s16 + $0x18] sm:$0xff]
  %4282 = vset.pattern.permute.xlu0 0
  %4283 = vperm.xlu0 %4282, %v4277
  %v4284 = vpop.permute.xlu0 %4283
  %4287 = vset.pattern.permute.xlu0 0
  %4288 = vperm.xlu0 %4287, %v4278
  %v4289 = vpop.permute.xlu0 %4288
  %4292 = vset.pattern.permute.xlu0 0
  %4293 = vperm.xlu0 %4292, %v4279
  %v4294 = vpop.permute.xlu0 %4293
  %4297 = vset.pattern.permute.xlu0 0
  %4298 = vperm.xlu0 %4297, %v4280
  %v4299 = vpop.permute.xlu0 %4298
  %v4302 = vsel %vm659, %v4273, 0
  %v4305 = vsel %vm659, %v4274, 0
  %v4308 = vsel %vm659, %v4275, 0
  %v4311 = vsel %vm659, %v4276, 0
  %4313 = vmatpush.msra.mxu0 0.0
  %4314 = vmatpush.msra.mxu0 0.0
  %4315 = vmatpush.msra.mxu0 0.0
  %4316 = vmatpush.msra.mxu0 0.0
  %4317 = vmatpush.msra.mxu0 0.0
  %4318 = vmatpush.msra.mxu0 0.0
  %4319 = vmatpush.msra.mxu0 0.0
  %4320 = vmatpush.msra.mxu0 0.0
  %4321 = vmatpush.msra.mxu0 0.0
  %4322 = vmatpush.msra.mxu0 0.0
  %4323 = vmatpush.msra.mxu0 0.0
  %4324 = vmatpush.msra.mxu0 0.0
  %4325 = vmatpush.msra.mxu0 0.0
  %4326 = vmatpush.msra.mxu0 0.0
  %4327 = vmatpush.msra.mxu0 %v4258
  %4328 = vmatpush.msra.mxu0 %v4257
  %4329 = vmatmul.f32.gmra.mxu0 %v4302
  %v4330 = vpop.f32.mrf.mxu0
  %v4331 = vadd.f32 %v4284, %v4330
  %4332 = vmatmul.f32.gmra.mxu0 %v4305
  %v4333 = vpop.f32.mrf.mxu0
  %v4334 = vadd.f32 %v4289, %v4333
  %4335 = vmatmul.f32.gmra.mxu0 %v4308
  %v4336 = vpop.f32.mrf.mxu0
  %v4337 = vadd.f32 %v4294, %v4336
  %4338 = vmatmul.f32.gmra.mxu0 %v4311
  %v4339 = vpop.f32.mrf.mxu0
  %v4340 = vadd.f32 %v4299, %v4339
  %4341 = vdwg.mxu0
  %4342 = vmatpush.msra.mxu0 0.0
  %4343 = vmatpush.msra.mxu0 0.0
  %4344 = vmatpush.msra.mxu0 0.0
  %4345 = vmatpush.msra.mxu0 0.0
  %4346 = vmatpush.msra.mxu0 0.0
  %4347 = vmatpush.msra.mxu0 0.0
  %4348 = vmatpush.msra.mxu0 0.0
  %4349 = vmatpush.msra.mxu0 0.0
  %4350 = vmatpush.msra.mxu0 0.0
  %4351 = vmatpush.msra.mxu0 0.0
  %4352 = vmatpush.msra.mxu0 0.0
  %4353 = vmatpush.msra.mxu0 0.0
  %4354 = vmatpush.msra.mxu0 0.0
  %4355 = vmatpush.msra.mxu0 0.0
  %4356 = vmatpush.msra.mxu0 %v4260
  %4357 = vmatpush.msra.mxu0 %v4259
  %4358 = vmatmul.f32.gmra.mxu0 %v4302
  %v4359 = vpop.f32.mrf.mxu0
  %v4360 = vadd.f32 %v4284, %v4359
  %4361 = vmatmul.f32.gmra.mxu0 %v4305
  %v4362 = vpop.f32.mrf.mxu0
  %v4363 = vadd.f32 %v4289, %v4362
  %4364 = vmatmul.f32.gmra.mxu0 %v4308
  %v4365 = vpop.f32.mrf.mxu0
  %v4366 = vadd.f32 %v4294, %v4365
  %4367 = vmatmul.f32.gmra.mxu0 %v4311
  %v4368 = vpop.f32.mrf.mxu0
  %v4369 = vadd.f32 %v4299, %v4368
  %4370 = vdwg.mxu0
  %4371 = vmatpush.msra.mxu0 0.0
  %4372 = vmatpush.msra.mxu0 0.0
  %4373 = vmatpush.msra.mxu0 0.0
  %4374 = vmatpush.msra.mxu0 0.0
  %4375 = vmatpush.msra.mxu0 0.0
  %4376 = vmatpush.msra.mxu0 0.0
  %4377 = vmatpush.msra.mxu0 0.0
  %4378 = vmatpush.msra.mxu0 0.0
  %4379 = vmatpush.msra.mxu0 0.0
  %4380 = vmatpush.msra.mxu0 0.0
  %4381 = vmatpush.msra.mxu0 0.0
  %4382 = vmatpush.msra.mxu0 0.0
  %4383 = vmatpush.msra.mxu0 0.0
  %4384 = vmatpush.msra.mxu0 0.0
  %4385 = vmatpush.msra.mxu0 %v4262
  %4386 = vmatpush.msra.mxu0 %v4261
  %4387 = vmatmul.f32.gmra.mxu0 %v4302
  %v4388 = vpop.f32.mrf.mxu0
  %v4389 = vadd.f32 %v4284, %v4388
  %4390 = vmatmul.f32.gmra.mxu0 %v4305
  %v4391 = vpop.f32.mrf.mxu0
  %v4392 = vadd.f32 %v4289, %v4391
  %4393 = vmatmul.f32.gmra.mxu0 %v4308
  %v4394 = vpop.f32.mrf.mxu0
  %v4395 = vadd.f32 %v4294, %v4394
  %4396 = vmatmul.f32.gmra.mxu0 %v4311
  %v4397 = vpop.f32.mrf.mxu0
  %v4398 = vadd.f32 %v4299, %v4397
  %4399 = vdwg.mxu0
  %4400 = vmatpush.msra.mxu0 0.0
  %4401 = vmatpush.msra.mxu0 0.0
  %4402 = vmatpush.msra.mxu0 0.0
  %4403 = vmatpush.msra.mxu0 0.0
  %4404 = vmatpush.msra.mxu0 0.0
  %4405 = vmatpush.msra.mxu0 0.0
  %4406 = vmatpush.msra.mxu0 0.0
  %4407 = vmatpush.msra.mxu0 0.0
  %4408 = vmatpush.msra.mxu0 0.0
  %4409 = vmatpush.msra.mxu0 0.0
  %4410 = vmatpush.msra.mxu0 0.0
  %4411 = vmatpush.msra.mxu0 0.0
  %4412 = vmatpush.msra.mxu0 0.0
  %4413 = vmatpush.msra.mxu0 0.0
  %4414 = vmatpush.msra.mxu0 %v4264
  %4415 = vmatpush.msra.mxu0 %v4263
  %4416 = vmatmul.f32.gmra.mxu0 %v4302
  %v4417 = vpop.f32.mrf.mxu0
  %v4418 = vadd.f32 %v4284, %v4417
  %4419 = vmatmul.f32.gmra.mxu0 %v4305
  %v4420 = vpop.f32.mrf.mxu0
  %v4421 = vadd.f32 %v4289, %v4420
  %4422 = vmatmul.f32.gmra.mxu0 %v4308
  %v4423 = vpop.f32.mrf.mxu0
  %v4424 = vadd.f32 %v4294, %v4423
  %4425 = vmatmul.f32.gmra.mxu0 %v4311
  %v4426 = vpop.f32.mrf.mxu0
  %v4427 = vadd.f32 %v4299, %v4426
  %4428 = vdwg.mxu0
  %4429 = vmatpush.msra.mxu0 0.0
  %4430 = vmatpush.msra.mxu0 0.0
  %4431 = vmatpush.msra.mxu0 0.0
  %4432 = vmatpush.msra.mxu0 0.0
  %4433 = vmatpush.msra.mxu0 0.0
  %4434 = vmatpush.msra.mxu0 0.0
  %4435 = vmatpush.msra.mxu0 0.0
  %4436 = vmatpush.msra.mxu0 0.0
  %4437 = vmatpush.msra.mxu0 0.0
  %4438 = vmatpush.msra.mxu0 0.0
  %4439 = vmatpush.msra.mxu0 0.0
  %4440 = vmatpush.msra.mxu0 0.0
  %4441 = vmatpush.msra.mxu0 0.0
  %4442 = vmatpush.msra.mxu0 0.0
  %4443 = vmatpush.msra.mxu0 %v4266
  %4444 = vmatpush.msra.mxu0 %v4265
  %4445 = vmatmul.f32.gmra.mxu0 %v4302
  %v4446 = vpop.f32.mrf.mxu0
  %v4447 = vadd.f32 %v4284, %v4446
  %4448 = vmatmul.f32.gmra.mxu0 %v4305
  %v4449 = vpop.f32.mrf.mxu0
  %v4450 = vadd.f32 %v4289, %v4449
  %4451 = vmatmul.f32.gmra.mxu0 %v4308
  %v4452 = vpop.f32.mrf.mxu0
  %v4453 = vadd.f32 %v4294, %v4452
  %4454 = vmatmul.f32.gmra.mxu0 %v4311
  %v4455 = vpop.f32.mrf.mxu0
  %v4456 = vadd.f32 %v4299, %v4455
  %4457 = vdwg.mxu0
  %4458 = vmatpush.msra.mxu0 0.0
  %4459 = vmatpush.msra.mxu0 0.0
  %4460 = vmatpush.msra.mxu0 0.0
  %4461 = vmatpush.msra.mxu0 0.0
  %4462 = vmatpush.msra.mxu0 0.0
  %4463 = vmatpush.msra.mxu0 0.0
  %4464 = vmatpush.msra.mxu0 0.0
  %4465 = vmatpush.msra.mxu0 0.0
  %4466 = vmatpush.msra.mxu0 0.0
  %4467 = vmatpush.msra.mxu0 0.0
  %4468 = vmatpush.msra.mxu0 0.0
  %4469 = vmatpush.msra.mxu0 0.0
  %4470 = vmatpush.msra.mxu0 0.0
  %4471 = vmatpush.msra.mxu0 0.0
  %4472 = vmatpush.msra.mxu0 %v4268
  %4473 = vmatpush.msra.mxu0 %v4267
  %4474 = vmatmul.f32.gmra.mxu0 %v4302
  %v4475 = vpop.f32.mrf.mxu0
  %v4476 = vadd.f32 %v4284, %v4475
  %4477 = vmatmul.f32.gmra.mxu0 %v4305
  %v4478 = vpop.f32.mrf.mxu0
  %v4479 = vadd.f32 %v4289, %v4478
  %4480 = vmatmul.f32.gmra.mxu0 %v4308
  %v4481 = vpop.f32.mrf.mxu0
  %v4482 = vadd.f32 %v4294, %v4481
  %4483 = vmatmul.f32.gmra.mxu0 %v4311
  %v4484 = vpop.f32.mrf.mxu0
  %v4485 = vadd.f32 %v4299, %v4484
  %4486 = vdwg.mxu0
  %4487 = vmatpush.msra.mxu0 0.0
  %4488 = vmatpush.msra.mxu0 0.0
  %4489 = vmatpush.msra.mxu0 0.0
  %4490 = vmatpush.msra.mxu0 0.0
  %4491 = vmatpush.msra.mxu0 0.0
  %4492 = vmatpush.msra.mxu0 0.0
  %4493 = vmatpush.msra.mxu0 0.0
  %4494 = vmatpush.msra.mxu0 0.0
  %4495 = vmatpush.msra.mxu0 0.0
  %4496 = vmatpush.msra.mxu0 0.0
  %4497 = vmatpush.msra.mxu0 0.0
  %4498 = vmatpush.msra.mxu0 0.0
  %4499 = vmatpush.msra.mxu0 0.0
  %4500 = vmatpush.msra.mxu0 0.0
  %4501 = vmatpush.msra.mxu0 %v4270
  %4502 = vmatpush.msra.mxu0 %v4269
  %4503 = vmatmul.f32.gmra.mxu0 %v4302
  %v4504 = vpop.f32.mrf.mxu0
  %v4505 = vadd.f32 %v4284, %v4504
  %4506 = vmatmul.f32.gmra.mxu0 %v4305
  %v4507 = vpop.f32.mrf.mxu0
  %v4508 = vadd.f32 %v4289, %v4507
  %4509 = vmatmul.f32.gmra.mxu0 %v4308
  %v4510 = vpop.f32.mrf.mxu0
  %v4511 = vadd.f32 %v4294, %v4510
  %4512 = vmatmul.f32.gmra.mxu0 %v4311
  %v4513 = vpop.f32.mrf.mxu0
  %v4514 = vadd.f32 %v4299, %v4513
  %4515 = vdwg.mxu0
  %4516 = vmatpush.msra.mxu0 0.0
  %4517 = vmatpush.msra.mxu0 0.0
  %4518 = vmatpush.msra.mxu0 0.0
  %4519 = vmatpush.msra.mxu0 0.0
  %4520 = vmatpush.msra.mxu0 0.0
  %4521 = vmatpush.msra.mxu0 0.0
  %4522 = vmatpush.msra.mxu0 0.0
  %4523 = vmatpush.msra.mxu0 0.0
  %4524 = vmatpush.msra.mxu0 0.0
  %4525 = vmatpush.msra.mxu0 0.0
  %4526 = vmatpush.msra.mxu0 0.0
  %4527 = vmatpush.msra.mxu0 0.0
  %4528 = vmatpush.msra.mxu0 0.0
  %4529 = vmatpush.msra.mxu0 0.0
  %4530 = vmatpush.msra.mxu0 %v4272
  %4531 = vmatpush.msra.mxu0 %v4271
  %4532 = vmatmul.f32.gmra.mxu0 %v4302
  %v4533 = vpop.f32.mrf.mxu0
  %v4534 = vadd.f32 %v4284, %v4533
  %4535 = vmatmul.f32.gmra.mxu0 %v4305
  %v4536 = vpop.f32.mrf.mxu0
  %v4537 = vadd.f32 %v4289, %v4536
  %4538 = vmatmul.f32.gmra.mxu0 %v4308
  %v4539 = vpop.f32.mrf.mxu0
  %v4540 = vadd.f32 %v4294, %v4539
  %4541 = vmatmul.f32.gmra.mxu0 %v4311
  %v4542 = vpop.f32.mrf.mxu0
  %v4543 = vadd.f32 %v4299, %v4542
  %4544 = vdwg.mxu0
  %v4545 = vmul.f32 %v4331, 0.5
  %v4546 = vmul.f32 %v4334, 0.5
  %v4547 = vmul.f32 %v4337, 0.5
  %v4548 = vmul.f32 %v4340, 0.5
  %v4549 = vmul.f32 %v4360, 0.5
  %v4550 = vmul.f32 %v4363, 0.5
  %v4551 = vmul.f32 %v4366, 0.5
  %v4552 = vmul.f32 %v4369, 0.5
  %v4553 = vmul.f32 %v4389, 0.5
  %v4554 = vmul.f32 %v4392, 0.5
  %v4555 = vmul.f32 %v4395, 0.5
  %v4556 = vmul.f32 %v4398, 0.5
  %v4557 = vmul.f32 %v4418, 0.5
  %v4558 = vmul.f32 %v4421, 0.5
  %v4559 = vmul.f32 %v4424, 0.5
  %v4560 = vmul.f32 %v4427, 0.5
  %v4561 = vmul.f32 %v4447, 0.5
  %v4562 = vmul.f32 %v4450, 0.5
  %v4563 = vmul.f32 %v4453, 0.5
  %v4564 = vmul.f32 %v4456, 0.5
  %v4565 = vmul.f32 %v4476, 0.5
  %v4566 = vmul.f32 %v4479, 0.5
  %v4567 = vmul.f32 %v4482, 0.5
  %v4568 = vmul.f32 %v4485, 0.5
  %v4569 = vmul.f32 %v4505, 0.5
  %v4570 = vmul.f32 %v4508, 0.5
  %v4571 = vmul.f32 %v4511, 0.5
  %v4572 = vmul.f32 %v4514, 0.5
  %v4573 = vmul.f32 %v4534, 0.5
  %v4574 = vmul.f32 %v4537, 0.5
  %v4575 = vmul.f32 %v4540, 0.5
  %v4576 = vmul.f32 %v4543, 0.5
  %v4577 = vmul.f32 %v4331, 0.70710677
  %v4578 = vmul.f32 %v4334, 0.70710677
  %v4579 = vmul.f32 %v4337, 0.70710677
  %v4580 = vmul.f32 %v4340, 0.70710677
  %v4581 = vmul.f32 %v4360, 0.70710677
  %v4582 = vmul.f32 %v4363, 0.70710677
  %v4583 = vmul.f32 %v4366, 0.70710677
  %v4584 = vmul.f32 %v4369, 0.70710677
  %v4585 = vmul.f32 %v4389, 0.70710677
  %v4586 = vmul.f32 %v4392, 0.70710677
  %v4587 = vmul.f32 %v4395, 0.70710677
  %v4588 = vmul.f32 %v4398, 0.70710677
  %v4589 = vmul.f32 %v4418, 0.70710677
  %v4590 = vmul.f32 %v4421, 0.70710677
  %v4591 = vmul.f32 %v4424, 0.70710677
  %v4592 = vmul.f32 %v4427, 0.70710677
  %v4593 = vmul.f32 %v4447, 0.70710677
  %v4594 = vmul.f32 %v4450, 0.70710677
  %v4595 = vmul.f32 %v4453, 0.70710677
  %v4596 = vmul.f32 %v4456, 0.70710677
  %v4597 = vmul.f32 %v4476, 0.70710677
  %v4598 = vmul.f32 %v4479, 0.70710677
  %v4599 = vmul.f32 %v4482, 0.70710677
  %v4600 = vmul.f32 %v4485, 0.70710677
  %v4601 = vmul.f32 %v4505, 0.70710677
  %v4602 = vmul.f32 %v4508, 0.70710677
  %v4603 = vmul.f32 %v4511, 0.70710677
  %v4604 = vmul.f32 %v4514, 0.70710677
  %v4605 = vmul.f32 %v4534, 0.70710677
  %v4606 = vmul.f32 %v4537, 0.70710677
  %v4607 = vmul.f32 %v4540, 0.70710677
  %v4608 = vmul.f32 %v4543, 0.70710677
  %v4609 = vmul.f32 %v4577, %v4577
  %v4610 = vmin.f32 16.0, %v4609
  %v4611 = vmul.f32 %v4610, 2.1237322e-06
  %v4612 = vadd.f32 %v4611, 0.00028619796
  %v4613 = vmul.f32 %v4610, %v4612
  %v4614 = vadd.f32 %v4613, 0.0036580483
  %v4615 = vmul.f32 %v4610, %v4614
  %v4616 = vadd.f32 %v4615, 0.05243302
  %v4617 = vmul.f32 %v4610, %v4616
  %v4618 = vadd.f32 %v4617, 0.18741608
  %v4619 = vmul.f32 %v4610, %v4618
  %v4620 = vadd.f32 %v4619, 1.1283791
  %v4621 = vmul.f32 %v4577, %v4620
  %v4622 = vmul.f32 %v4610, 3.8918573e-05
  %v4623 = vadd.f32 %v4622, 0.001143296
  %v4624 = vmul.f32 %v4610, %v4623
  %v4625 = vadd.f32 %v4624, 0.014752088
  %v4626 = vmul.f32 %v4610, %v4625
  %v4627 = vadd.f32 %v4626, 0.112945676
  %v4628 = vmul.f32 %v4610, %v4627
  %v4629 = vadd.f32 %v4628, 0.4994258
  %v4630 = vmul.f32 %v4610, %v4629
  %v4631 = vadd.f32 %v4630, 1.0
  %v4632 = vrcp.pop %v4631
  %v4633 = vmul.f32 %v4631, %v4632
  %v4634 = vsub.f32 1.0, %v4633
  %v4635 = vmul.f32 %v4632, %v4634
  %v4636 = vadd.f32 %v4632, %v4635
  %vm4637 = vweird.f32 %v4631
  %vm4638 = vweird.f32 %v4632
  %vm4639 = vmor %vm4637, %vm4638
  %v4640 = vsel %vm4639, %v4632, %v4636
  %v4641 = vand.u32 2147483647, %v4631
  %vm4642 = vcmp.eq.f32.partialorder %v4641, 8.507059e+37
  %v4643 = vand.u32 %v4631, 2147483648
  %v4644 = vor.u32 1.1754944e-38, %v4643
  %v4645 = vsel %vm4642, %v4644, %v4640
  %v4646 = vmul.f32 %v4621, %v4645
  %v4647 = vmin.f32 %v4646, 1.0
  %v4648 = vmax.f32 %v4647, -1.0
  %v4649 = vmul.f32 %v4578, %v4578
  %v4650 = vmin.f32 16.0, %v4649
  %v4651 = vmul.f32 %v4650, 2.1237322e-06
  %v4652 = vadd.f32 %v4651, 0.00028619796
  %v4653 = vmul.f32 %v4650, %v4652
  %v4654 = vadd.f32 %v4653, 0.0036580483
  %v4655 = vmul.f32 %v4650, %v4654
  %v4656 = vadd.f32 %v4655, 0.05243302
  %v4657 = vmul.f32 %v4650, %v4656
  %v4658 = vadd.f32 %v4657, 0.18741608
  %v4659 = vmul.f32 %v4650, %v4658
  %v4660 = vadd.f32 %v4659, 1.1283791
  %v4661 = vmul.f32 %v4578, %v4660
  %v4662 = vmul.f32 %v4650, 3.8918573e-05
  %v4663 = vadd.f32 %v4662, 0.001143296
  %v4664 = vmul.f32 %v4650, %v4663
  %v4665 = vadd.f32 %v4664, 0.014752088
  %v4666 = vmul.f32 %v4650, %v4665
  %v4667 = vadd.f32 %v4666, 0.112945676
  %v4668 = vmul.f32 %v4650, %v4667
  %v4669 = vadd.f32 %v4668, 0.4994258
  %v4670 = vmul.f32 %v4650, %v4669
  %v4671 = vadd.f32 %v4670, 1.0
  %v4672 = vrcp.pop %v4671
  %v4673 = vmul.f32 %v4671, %v4672
  %v4674 = vsub.f32 1.0, %v4673
  %v4675 = vmul.f32 %v4672, %v4674
  %v4676 = vadd.f32 %v4672, %v4675
  %vm4677 = vweird.f32 %v4671
  %vm4678 = vweird.f32 %v4672
  %vm4679 = vmor %vm4677, %vm4678
  %v4680 = vsel %vm4679, %v4672, %v4676
  %v4681 = vand.u32 2147483647, %v4671
  %vm4682 = vcmp.eq.f32.partialorder %v4681, 8.507059e+37
  %v4683 = vand.u32 %v4671, 2147483648
  %v4684 = vor.u32 1.1754944e-38, %v4683
  %v4685 = vsel %vm4682, %v4684, %v4680
  %v4686 = vmul.f32 %v4661, %v4685
  %v4687 = vmin.f32 %v4686, 1.0
  %v4688 = vmax.f32 %v4687, -1.0
  %v4689 = vmul.f32 %v4579, %v4579
  %v4690 = vmin.f32 16.0, %v4689
  %v4691 = vmul.f32 %v4690, 2.1237322e-06
  %v4692 = vadd.f32 %v4691, 0.00028619796
  %v4693 = vmul.f32 %v4690, %v4692
  %v4694 = vadd.f32 %v4693, 0.0036580483
  %v4695 = vmul.f32 %v4690, %v4694
  %v4696 = vadd.f32 %v4695, 0.05243302
  %v4697 = vmul.f32 %v4690, %v4696
  %v4698 = vadd.f32 %v4697, 0.18741608
  %v4699 = vmul.f32 %v4690, %v4698
  %v4700 = vadd.f32 %v4699, 1.1283791
  %v4701 = vmul.f32 %v4579, %v4700
  %v4702 = vmul.f32 %v4690, 3.8918573e-05
  %v4703 = vadd.f32 %v4702, 0.001143296
  %v4704 = vmul.f32 %v4690, %v4703
  %v4705 = vadd.f32 %v4704, 0.014752088
  %v4706 = vmul.f32 %v4690, %v4705
  %v4707 = vadd.f32 %v4706, 0.112945676
  %v4708 = vmul.f32 %v4690, %v4707
  %v4709 = vadd.f32 %v4708, 0.4994258
  %v4710 = vmul.f32 %v4690, %v4709
  %v4711 = vadd.f32 %v4710, 1.0
  %v4712 = vrcp.pop %v4711
  %v4713 = vmul.f32 %v4711, %v4712
  %v4714 = vsub.f32 1.0, %v4713
  %v4715 = vmul.f32 %v4712, %v4714
  %v4716 = vadd.f32 %v4712, %v4715
  %vm4717 = vweird.f32 %v4711
  %vm4718 = vweird.f32 %v4712
  %vm4719 = vmor %vm4717, %vm4718
  %v4720 = vsel %vm4719, %v4712, %v4716
  %v4721 = vand.u32 2147483647, %v4711
  %vm4722 = vcmp.eq.f32.partialorder %v4721, 8.507059e+37
  %v4723 = vand.u32 %v4711, 2147483648
  %v4724 = vor.u32 1.1754944e-38, %v4723
  %v4725 = vsel %vm4722, %v4724, %v4720
  %v4726 = vmul.f32 %v4701, %v4725
  %v4727 = vmin.f32 %v4726, 1.0
  %v4728 = vmax.f32 %v4727, -1.0
  %v4729 = vmul.f32 %v4580, %v4580
  %v4730 = vmin.f32 16.0, %v4729
  %v4731 = vmul.f32 %v4730, 2.1237322e-06
  %v4732 = vadd.f32 %v4731, 0.00028619796
  %v4733 = vmul.f32 %v4730, %v4732
  %v4734 = vadd.f32 %v4733, 0.0036580483
  %v4735 = vmul.f32 %v4730, %v4734
  %v4736 = vadd.f32 %v4735, 0.05243302
  %v4737 = vmul.f32 %v4730, %v4736
  %v4738 = vadd.f32 %v4737, 0.18741608
  %v4739 = vmul.f32 %v4730, %v4738
  %v4740 = vadd.f32 %v4739, 1.1283791
  %v4741 = vmul.f32 %v4580, %v4740
  %v4742 = vmul.f32 %v4730, 3.8918573e-05
  %v4743 = vadd.f32 %v4742, 0.001143296
  %v4744 = vmul.f32 %v4730, %v4743
  %v4745 = vadd.f32 %v4744, 0.014752088
  %v4746 = vmul.f32 %v4730, %v4745
  %v4747 = vadd.f32 %v4746, 0.112945676
  %v4748 = vmul.f32 %v4730, %v4747
  %v4749 = vadd.f32 %v4748, 0.4994258
  %v4750 = vmul.f32 %v4730, %v4749
  %v4751 = vadd.f32 %v4750, 1.0
  %v4752 = vrcp.pop %v4751
  %v4753 = vmul.f32 %v4751, %v4752
  %v4754 = vsub.f32 1.0, %v4753
  %v4755 = vmul.f32 %v4752, %v4754
  %v4756 = vadd.f32 %v4752, %v4755
  %vm4757 = vweird.f32 %v4751
  %vm4758 = vweird.f32 %v4752
  %vm4759 = vmor %vm4757, %vm4758
  %v4760 = vsel %vm4759, %v4752, %v4756
  %v4761 = vand.u32 2147483647, %v4751
  %vm4762 = vcmp.eq.f32.partialorder %v4761, 8.507059e+37
  %v4763 = vand.u32 %v4751, 2147483648
  %v4764 = vor.u32 1.1754944e-38, %v4763
  %v4765 = vsel %vm4762, %v4764, %v4760
  %v4766 = vmul.f32 %v4741, %v4765
  %v4767 = vmin.f32 %v4766, 1.0
  %v4768 = vmax.f32 %v4767, -1.0
  %v4769 = vmul.f32 %v4581, %v4581
  %v4770 = vmin.f32 16.0, %v4769
  %v4771 = vmul.f32 %v4770, 2.1237322e-06
  %v4772 = vadd.f32 %v4771, 0.00028619796
  %v4773 = vmul.f32 %v4770, %v4772
  %v4774 = vadd.f32 %v4773, 0.0036580483
  %v4775 = vmul.f32 %v4770, %v4774
  %v4776 = vadd.f32 %v4775, 0.05243302
  %v4777 = vmul.f32 %v4770, %v4776
  %v4778 = vadd.f32 %v4777, 0.18741608
  %v4779 = vmul.f32 %v4770, %v4778
  %v4780 = vadd.f32 %v4779, 1.1283791
  %v4781 = vmul.f32 %v4581, %v4780
  %v4782 = vmul.f32 %v4770, 3.8918573e-05
  %v4783 = vadd.f32 %v4782, 0.001143296
  %v4784 = vmul.f32 %v4770, %v4783
  %v4785 = vadd.f32 %v4784, 0.014752088
  %v4786 = vmul.f32 %v4770, %v4785
  %v4787 = vadd.f32 %v4786, 0.112945676
  %v4788 = vmul.f32 %v4770, %v4787
  %v4789 = vadd.f32 %v4788, 0.4994258
  %v4790 = vmul.f32 %v4770, %v4789
  %v4791 = vadd.f32 %v4790, 1.0
  %v4792 = vrcp.pop %v4791
  %v4793 = vmul.f32 %v4791, %v4792
  %v4794 = vsub.f32 1.0, %v4793
  %v4795 = vmul.f32 %v4792, %v4794
  %v4796 = vadd.f32 %v4792, %v4795
  %vm4797 = vweird.f32 %v4791
  %vm4798 = vweird.f32 %v4792
  %vm4799 = vmor %vm4797, %vm4798
  %v4800 = vsel %vm4799, %v4792, %v4796
  %v4801 = vand.u32 2147483647, %v4791
  %vm4802 = vcmp.eq.f32.partialorder %v4801, 8.507059e+37
  %v4803 = vand.u32 %v4791, 2147483648
  %v4804 = vor.u32 1.1754944e-38, %v4803
  %v4805 = vsel %vm4802, %v4804, %v4800
  %v4806 = vmul.f32 %v4781, %v4805
  %v4807 = vmin.f32 %v4806, 1.0
  %v4808 = vmax.f32 %v4807, -1.0
  %v4809 = vmul.f32 %v4582, %v4582
  %v4810 = vmin.f32 16.0, %v4809
  %v4811 = vmul.f32 %v4810, 2.1237322e-06
  %v4812 = vadd.f32 %v4811, 0.00028619796
  %v4813 = vmul.f32 %v4810, %v4812
  %v4814 = vadd.f32 %v4813, 0.0036580483
  %v4815 = vmul.f32 %v4810, %v4814
  %v4816 = vadd.f32 %v4815, 0.05243302
  %v4817 = vmul.f32 %v4810, %v4816
  %v4818 = vadd.f32 %v4817, 0.18741608
  %v4819 = vmul.f32 %v4810, %v4818
  %v4820 = vadd.f32 %v4819, 1.1283791
  %v4821 = vmul.f32 %v4582, %v4820
  %v4822 = vmul.f32 %v4810, 3.8918573e-05
  %v4823 = vadd.f32 %v4822, 0.001143296
  %v4824 = vmul.f32 %v4810, %v4823
  %v4825 = vadd.f32 %v4824, 0.014752088
  %v4826 = vmul.f32 %v4810, %v4825
  %v4827 = vadd.f32 %v4826, 0.112945676
  %v4828 = vmul.f32 %v4810, %v4827
  %v4829 = vadd.f32 %v4828, 0.4994258
  %v4830 = vmul.f32 %v4810, %v4829
  %v4831 = vadd.f32 %v4830, 1.0
  %v4832 = vrcp.pop %v4831
  %v4833 = vmul.f32 %v4831, %v4832
  %v4834 = vsub.f32 1.0, %v4833
  %v4835 = vmul.f32 %v4832, %v4834
  %v4836 = vadd.f32 %v4832, %v4835
  %vm4837 = vweird.f32 %v4831
  %vm4838 = vweird.f32 %v4832
  %vm4839 = vmor %vm4837, %vm4838
  %v4840 = vsel %vm4839, %v4832, %v4836
  %v4841 = vand.u32 2147483647, %v4831
  %vm4842 = vcmp.eq.f32.partialorder %v4841, 8.507059e+37
  %v4843 = vand.u32 %v4831, 2147483648
  %v4844 = vor.u32 1.1754944e-38, %v4843
  %v4845 = vsel %vm4842, %v4844, %v4840
  %v4846 = vmul.f32 %v4821, %v4845
  %v4847 = vmin.f32 %v4846, 1.0
  %v4848 = vmax.f32 %v4847, -1.0
  %v4849 = vmul.f32 %v4583, %v4583
  %v4850 = vmin.f32 16.0, %v4849
  %v4851 = vmul.f32 %v4850, 2.1237322e-06
  %v4852 = vadd.f32 %v4851, 0.00028619796
  %v4853 = vmul.f32 %v4850, %v4852
  %v4854 = vadd.f32 %v4853, 0.0036580483
  %v4855 = vmul.f32 %v4850, %v4854
  %v4856 = vadd.f32 %v4855, 0.05243302
  %v4857 = vmul.f32 %v4850, %v4856
  %v4858 = vadd.f32 %v4857, 0.18741608
  %v4859 = vmul.f32 %v4850, %v4858
  %v4860 = vadd.f32 %v4859, 1.1283791
  %v4861 = vmul.f32 %v4583, %v4860
  %v4862 = vmul.f32 %v4850, 3.8918573e-05
  %v4863 = vadd.f32 %v4862, 0.001143296
  %v4864 = vmul.f32 %v4850, %v4863
  %v4865 = vadd.f32 %v4864, 0.014752088
  %v4866 = vmul.f32 %v4850, %v4865
  %v4867 = vadd.f32 %v4866, 0.112945676
  %v4868 = vmul.f32 %v4850, %v4867
  %v4869 = vadd.f32 %v4868, 0.4994258
  %v4870 = vmul.f32 %v4850, %v4869
  %v4871 = vadd.f32 %v4870, 1.0
  %v4872 = vrcp.pop %v4871
  %v4873 = vmul.f32 %v4871, %v4872
  %v4874 = vsub.f32 1.0, %v4873
  %v4875 = vmul.f32 %v4872, %v4874
  %v4876 = vadd.f32 %v4872, %v4875
  %vm4877 = vweird.f32 %v4871
  %vm4878 = vweird.f32 %v4872
  %vm4879 = vmor %vm4877, %vm4878
  %v4880 = vsel %vm4879, %v4872, %v4876
  %v4881 = vand.u32 2147483647, %v4871
  %vm4882 = vcmp.eq.f32.partialorder %v4881, 8.507059e+37
  %v4883 = vand.u32 %v4871, 2147483648
  %v4884 = vor.u32 1.1754944e-38, %v4883
  %v4885 = vsel %vm4882, %v4884, %v4880
  %v4886 = vmul.f32 %v4861, %v4885
  %v4887 = vmin.f32 %v4886, 1.0
  %v4888 = vmax.f32 %v4887, -1.0
  %v4889 = vmul.f32 %v4584, %v4584
  %v4890 = vmin.f32 16.0, %v4889
  %v4891 = vmul.f32 %v4890, 2.1237322e-06
  %v4892 = vadd.f32 %v4891, 0.00028619796
  %v4893 = vmul.f32 %v4890, %v4892
  %v4894 = vadd.f32 %v4893, 0.0036580483
  %v4895 = vmul.f32 %v4890, %v4894
  %v4896 = vadd.f32 %v4895, 0.05243302
  %v4897 = vmul.f32 %v4890, %v4896
  %v4898 = vadd.f32 %v4897, 0.18741608
  %v4899 = vmul.f32 %v4890, %v4898
  %v4900 = vadd.f32 %v4899, 1.1283791
  %v4901 = vmul.f32 %v4584, %v4900
  %v4902 = vmul.f32 %v4890, 3.8918573e-05
  %v4903 = vadd.f32 %v4902, 0.001143296
  %v4904 = vmul.f32 %v4890, %v4903
  %v4905 = vadd.f32 %v4904, 0.014752088
  %v4906 = vmul.f32 %v4890, %v4905
  %v4907 = vadd.f32 %v4906, 0.112945676
  %v4908 = vmul.f32 %v4890, %v4907
  %v4909 = vadd.f32 %v4908, 0.4994258
  %v4910 = vmul.f32 %v4890, %v4909
  %v4911 = vadd.f32 %v4910, 1.0
  %v4912 = vrcp.pop %v4911
  %v4913 = vmul.f32 %v4911, %v4912
  %v4914 = vsub.f32 1.0, %v4913
  %v4915 = vmul.f32 %v4912, %v4914
  %v4916 = vadd.f32 %v4912, %v4915
  %vm4917 = vweird.f32 %v4911
  %vm4918 = vweird.f32 %v4912
  %vm4919 = vmor %vm4917, %vm4918
  %v4920 = vsel %vm4919, %v4912, %v4916
  %v4921 = vand.u32 2147483647, %v4911
  %vm4922 = vcmp.eq.f32.partialorder %v4921, 8.507059e+37
  %v4923 = vand.u32 %v4911, 2147483648
  %v4924 = vor.u32 1.1754944e-38, %v4923
  %v4925 = vsel %vm4922, %v4924, %v4920
  %v4926 = vmul.f32 %v4901, %v4925
  %v4927 = vmin.f32 %v4926, 1.0
  %v4928 = vmax.f32 %v4927, -1.0
  %v4929 = vmul.f32 %v4585, %v4585
  %v4930 = vmin.f32 16.0, %v4929
  %v4931 = vmul.f32 %v4930, 2.1237322e-06
  %v4932 = vadd.f32 %v4931, 0.00028619796
  %v4933 = vmul.f32 %v4930, %v4932
  %v4934 = vadd.f32 %v4933, 0.0036580483
  %v4935 = vmul.f32 %v4930, %v4934
  %v4936 = vadd.f32 %v4935, 0.05243302
  %v4937 = vmul.f32 %v4930, %v4936
  %v4938 = vadd.f32 %v4937, 0.18741608
  %v4939 = vmul.f32 %v4930, %v4938
  %v4940 = vadd.f32 %v4939, 1.1283791
  %v4941 = vmul.f32 %v4585, %v4940
  %v4942 = vmul.f32 %v4930, 3.8918573e-05
  %v4943 = vadd.f32 %v4942, 0.001143296
  %v4944 = vmul.f32 %v4930, %v4943
  %v4945 = vadd.f32 %v4944, 0.014752088
  %v4946 = vmul.f32 %v4930, %v4945
  %v4947 = vadd.f32 %v4946, 0.112945676
  %v4948 = vmul.f32 %v4930, %v4947
  %v4949 = vadd.f32 %v4948, 0.4994258
  %v4950 = vmul.f32 %v4930, %v4949
  %v4951 = vadd.f32 %v4950, 1.0
  %v4952 = vrcp.pop %v4951
  %v4953 = vmul.f32 %v4951, %v4952
  %v4954 = vsub.f32 1.0, %v4953
  %v4955 = vmul.f32 %v4952, %v4954
  %v4956 = vadd.f32 %v4952, %v4955
  %vm4957 = vweird.f32 %v4951
  %vm4958 = vweird.f32 %v4952
  %vm4959 = vmor %vm4957, %vm4958
  %v4960 = vsel %vm4959, %v4952, %v4956
  %v4961 = vand.u32 2147483647, %v4951
  %vm4962 = vcmp.eq.f32.partialorder %v4961, 8.507059e+37
  %v4963 = vand.u32 %v4951, 2147483648
  %v4964 = vor.u32 1.1754944e-38, %v4963
  %v4965 = vsel %vm4962, %v4964, %v4960
  %v4966 = vmul.f32 %v4941, %v4965
  %v4967 = vmin.f32 %v4966, 1.0
  %v4968 = vmax.f32 %v4967, -1.0
  %v4969 = vmul.f32 %v4586, %v4586
  %v4970 = vmin.f32 16.0, %v4969
  %v4971 = vmul.f32 %v4970, 2.1237322e-06
  %v4972 = vadd.f32 %v4971, 0.00028619796
  %v4973 = vmul.f32 %v4970, %v4972
  %v4974 = vadd.f32 %v4973, 0.0036580483
  %v4975 = vmul.f32 %v4970, %v4974
  %v4976 = vadd.f32 %v4975, 0.05243302
  %v4977 = vmul.f32 %v4970, %v4976
  %v4978 = vadd.f32 %v4977, 0.18741608
  %v4979 = vmul.f32 %v4970, %v4978
  %v4980 = vadd.f32 %v4979, 1.1283791
  %v4981 = vmul.f32 %v4586, %v4980
  %v4982 = vmul.f32 %v4970, 3.8918573e-05
  %v4983 = vadd.f32 %v4982, 0.001143296
  %v4984 = vmul.f32 %v4970, %v4983
  %v4985 = vadd.f32 %v4984, 0.014752088
  %v4986 = vmul.f32 %v4970, %v4985
  %v4987 = vadd.f32 %v4986, 0.112945676
  %v4988 = vmul.f32 %v4970, %v4987
  %v4989 = vadd.f32 %v4988, 0.4994258
  %v4990 = vmul.f32 %v4970, %v4989
  %v4991 = vadd.f32 %v4990, 1.0
  %v4992 = vrcp.pop %v4991
  %v4993 = vmul.f32 %v4991, %v4992
  %v4994 = vsub.f32 1.0, %v4993
  %v4995 = vmul.f32 %v4992, %v4994
  %v4996 = vadd.f32 %v4992, %v4995
  %vm4997 = vweird.f32 %v4991
  %vm4998 = vweird.f32 %v4992
  %vm4999 = vmor %vm4997, %vm4998
  %v5000 = vsel %vm4999, %v4992, %v4996
  %v5001 = vand.u32 2147483647, %v4991
  %vm5002 = vcmp.eq.f32.partialorder %v5001, 8.507059e+37
  %v5003 = vand.u32 %v4991, 2147483648
  %v5004 = vor.u32 1.1754944e-38, %v5003
  %v5005 = vsel %vm5002, %v5004, %v5000
  %v5006 = vmul.f32 %v4981, %v5005
  %v5007 = vmin.f32 %v5006, 1.0
  %v5008 = vmax.f32 %v5007, -1.0
  %v5009 = vmul.f32 %v4587, %v4587
  %v5010 = vmin.f32 16.0, %v5009
  %v5011 = vmul.f32 %v5010, 2.1237322e-06
  %v5012 = vadd.f32 %v5011, 0.00028619796
  %v5013 = vmul.f32 %v5010, %v5012
  %v5014 = vadd.f32 %v5013, 0.0036580483
  %v5015 = vmul.f32 %v5010, %v5014
  %v5016 = vadd.f32 %v5015, 0.05243302
  %v5017 = vmul.f32 %v5010, %v5016
  %v5018 = vadd.f32 %v5017, 0.18741608
  %v5019 = vmul.f32 %v5010, %v5018
  %v5020 = vadd.f32 %v5019, 1.1283791
  %v5021 = vmul.f32 %v4587, %v5020
  %v5022 = vmul.f32 %v5010, 3.8918573e-05
  %v5023 = vadd.f32 %v5022, 0.001143296
  %v5024 = vmul.f32 %v5010, %v5023
  %v5025 = vadd.f32 %v5024, 0.014752088
  %v5026 = vmul.f32 %v5010, %v5025
  %v5027 = vadd.f32 %v5026, 0.112945676
  %v5028 = vmul.f32 %v5010, %v5027
  %v5029 = vadd.f32 %v5028, 0.4994258
  %v5030 = vmul.f32 %v5010, %v5029
  %v5031 = vadd.f32 %v5030, 1.0
  %v5032 = vrcp.pop %v5031
  %v5033 = vmul.f32 %v5031, %v5032
  %v5034 = vsub.f32 1.0, %v5033
  %v5035 = vmul.f32 %v5032, %v5034
  %v5036 = vadd.f32 %v5032, %v5035
  %vm5037 = vweird.f32 %v5031
  %vm5038 = vweird.f32 %v5032
  %vm5039 = vmor %vm5037, %vm5038
  %v5040 = vsel %vm5039, %v5032, %v5036
  %v5041 = vand.u32 2147483647, %v5031
  %vm5042 = vcmp.eq.f32.partialorder %v5041, 8.507059e+37
  %v5043 = vand.u32 %v5031, 2147483648
  %v5044 = vor.u32 1.1754944e-38, %v5043
  %v5045 = vsel %vm5042, %v5044, %v5040
  %v5046 = vmul.f32 %v5021, %v5045
  %v5047 = vmin.f32 %v5046, 1.0
  %v5048 = vmax.f32 %v5047, -1.0
  %v5049 = vmul.f32 %v4588, %v4588
  %v5050 = vmin.f32 16.0, %v5049
  %v5051 = vmul.f32 %v5050, 2.1237322e-06
  %v5052 = vadd.f32 %v5051, 0.00028619796
  %v5053 = vmul.f32 %v5050, %v5052
  %v5054 = vadd.f32 %v5053, 0.0036580483
  %v5055 = vmul.f32 %v5050, %v5054
  %v5056 = vadd.f32 %v5055, 0.05243302
  %v5057 = vmul.f32 %v5050, %v5056
  %v5058 = vadd.f32 %v5057, 0.18741608
  %v5059 = vmul.f32 %v5050, %v5058
  %v5060 = vadd.f32 %v5059, 1.1283791
  %v5061 = vmul.f32 %v4588, %v5060
  %v5062 = vmul.f32 %v5050, 3.8918573e-05
  %v5063 = vadd.f32 %v5062, 0.001143296
  %v5064 = vmul.f32 %v5050, %v5063
  %v5065 = vadd.f32 %v5064, 0.014752088
  %v5066 = vmul.f32 %v5050, %v5065
  %v5067 = vadd.f32 %v5066, 0.112945676
  %v5068 = vmul.f32 %v5050, %v5067
  %v5069 = vadd.f32 %v5068, 0.4994258
  %v5070 = vmul.f32 %v5050, %v5069
  %v5071 = vadd.f32 %v5070, 1.0
  %v5072 = vrcp.pop %v5071
  %v5073 = vmul.f32 %v5071, %v5072
  %v5074 = vsub.f32 1.0, %v5073
  %v5075 = vmul.f32 %v5072, %v5074
  %v5076 = vadd.f32 %v5072, %v5075
  %vm5077 = vweird.f32 %v5071
  %vm5078 = vweird.f32 %v5072
  %vm5079 = vmor %vm5077, %vm5078
  %v5080 = vsel %vm5079, %v5072, %v5076
  %v5081 = vand.u32 2147483647, %v5071
  %vm5082 = vcmp.eq.f32.partialorder %v5081, 8.507059e+37
  %v5083 = vand.u32 %v5071, 2147483648
  %v5084 = vor.u32 1.1754944e-38, %v5083
  %v5085 = vsel %vm5082, %v5084, %v5080
  %v5086 = vmul.f32 %v5061, %v5085
  %v5087 = vmin.f32 %v5086, 1.0
  %v5088 = vmax.f32 %v5087, -1.0
  %v5089 = vmul.f32 %v4589, %v4589
  %v5090 = vmin.f32 16.0, %v5089
  %v5091 = vmul.f32 %v5090, 2.1237322e-06
  %v5092 = vadd.f32 %v5091, 0.00028619796
  %v5093 = vmul.f32 %v5090, %v5092
  %v5094 = vadd.f32 %v5093, 0.0036580483
  %v5095 = vmul.f32 %v5090, %v5094
  %v5096 = vadd.f32 %v5095, 0.05243302
  %v5097 = vmul.f32 %v5090, %v5096
  %v5098 = vadd.f32 %v5097, 0.18741608
  %v5099 = vmul.f32 %v5090, %v5098
  %v5100 = vadd.f32 %v5099, 1.1283791
  %v5101 = vmul.f32 %v4589, %v5100
  %v5102 = vmul.f32 %v5090, 3.8918573e-05
  %v5103 = vadd.f32 %v5102, 0.001143296
  %v5104 = vmul.f32 %v5090, %v5103
  %v5105 = vadd.f32 %v5104, 0.014752088
  %v5106 = vmul.f32 %v5090, %v5105
  %v5107 = vadd.f32 %v5106, 0.112945676
  %v5108 = vmul.f32 %v5090, %v5107
  %v5109 = vadd.f32 %v5108, 0.4994258
  %v5110 = vmul.f32 %v5090, %v5109
  %v5111 = vadd.f32 %v5110, 1.0
  %v5112 = vrcp.pop %v5111
  %v5113 = vmul.f32 %v5111, %v5112
  %v5114 = vsub.f32 1.0, %v5113
  %v5115 = vmul.f32 %v5112, %v5114
  %v5116 = vadd.f32 %v5112, %v5115
  %vm5117 = vweird.f32 %v5111
  %vm5118 = vweird.f32 %v5112
  %vm5119 = vmor %vm5117, %vm5118
  %v5120 = vsel %vm5119, %v5112, %v5116
  %v5121 = vand.u32 2147483647, %v5111
  %vm5122 = vcmp.eq.f32.partialorder %v5121, 8.507059e+37
  %v5123 = vand.u32 %v5111, 2147483648
  %v5124 = vor.u32 1.1754944e-38, %v5123
  %v5125 = vsel %vm5122, %v5124, %v5120
  %v5126 = vmul.f32 %v5101, %v5125
  %v5127 = vmin.f32 %v5126, 1.0
  %v5128 = vmax.f32 %v5127, -1.0
  %v5129 = vmul.f32 %v4590, %v4590
  %v5130 = vmin.f32 16.0, %v5129
  %v5131 = vmul.f32 %v5130, 2.1237322e-06
  %v5132 = vadd.f32 %v5131, 0.00028619796
  %v5133 = vmul.f32 %v5130, %v5132
  %v5134 = vadd.f32 %v5133, 0.0036580483
  %v5135 = vmul.f32 %v5130, %v5134
  %v5136 = vadd.f32 %v5135, 0.05243302
  %v5137 = vmul.f32 %v5130, %v5136
  %v5138 = vadd.f32 %v5137, 0.18741608
  %v5139 = vmul.f32 %v5130, %v5138
  %v5140 = vadd.f32 %v5139, 1.1283791
  %v5141 = vmul.f32 %v4590, %v5140
  %v5142 = vmul.f32 %v5130, 3.8918573e-05
  %v5143 = vadd.f32 %v5142, 0.001143296
  %v5144 = vmul.f32 %v5130, %v5143
  %v5145 = vadd.f32 %v5144, 0.014752088
  %v5146 = vmul.f32 %v5130, %v5145
  %v5147 = vadd.f32 %v5146, 0.112945676
  %v5148 = vmul.f32 %v5130, %v5147
  %v5149 = vadd.f32 %v5148, 0.4994258
  %v5150 = vmul.f32 %v5130, %v5149
  %v5151 = vadd.f32 %v5150, 1.0
  %v5152 = vrcp.pop %v5151
  %v5153 = vmul.f32 %v5151, %v5152
  %v5154 = vsub.f32 1.0, %v5153
  %v5155 = vmul.f32 %v5152, %v5154
  %v5156 = vadd.f32 %v5152, %v5155
  %vm5157 = vweird.f32 %v5151
  %vm5158 = vweird.f32 %v5152
  %vm5159 = vmor %vm5157, %vm5158
  %v5160 = vsel %vm5159, %v5152, %v5156
  %v5161 = vand.u32 2147483647, %v5151
  %vm5162 = vcmp.eq.f32.partialorder %v5161, 8.507059e+37
  %v5163 = vand.u32 %v5151, 2147483648
  %v5164 = vor.u32 1.1754944e-38, %v5163
  %v5165 = vsel %vm5162, %v5164, %v5160
  %v5166 = vmul.f32 %v5141, %v5165
  %v5167 = vmin.f32 %v5166, 1.0
  %v5168 = vmax.f32 %v5167, -1.0
  %v5169 = vmul.f32 %v4591, %v4591
  %v5170 = vmin.f32 16.0, %v5169
  %v5171 = vmul.f32 %v5170, 2.1237322e-06
  %v5172 = vadd.f32 %v5171, 0.00028619796
  %v5173 = vmul.f32 %v5170, %v5172
  %v5174 = vadd.f32 %v5173, 0.0036580483
  %v5175 = vmul.f32 %v5170, %v5174
  %v5176 = vadd.f32 %v5175, 0.05243302
  %v5177 = vmul.f32 %v5170, %v5176
  %v5178 = vadd.f32 %v5177, 0.18741608
  %v5179 = vmul.f32 %v5170, %v5178
  %v5180 = vadd.f32 %v5179, 1.1283791
  %v5181 = vmul.f32 %v4591, %v5180
  %v5182 = vmul.f32 %v5170, 3.8918573e-05
  %v5183 = vadd.f32 %v5182, 0.001143296
  %v5184 = vmul.f32 %v5170, %v5183
  %v5185 = vadd.f32 %v5184, 0.014752088
  %v5186 = vmul.f32 %v5170, %v5185
  %v5187 = vadd.f32 %v5186, 0.112945676
  %v5188 = vmul.f32 %v5170, %v5187
  %v5189 = vadd.f32 %v5188, 0.4994258
  %v5190 = vmul.f32 %v5170, %v5189
  %v5191 = vadd.f32 %v5190, 1.0
  %v5192 = vrcp.pop %v5191
  %v5193 = vmul.f32 %v5191, %v5192
  %v5194 = vsub.f32 1.0, %v5193
  %v5195 = vmul.f32 %v5192, %v5194
  %v5196 = vadd.f32 %v5192, %v5195
  %vm5197 = vweird.f32 %v5191
  %vm5198 = vweird.f32 %v5192
  %vm5199 = vmor %vm5197, %vm5198
  %v5200 = vsel %vm5199, %v5192, %v5196
  %v5201 = vand.u32 2147483647, %v5191
  %vm5202 = vcmp.eq.f32.partialorder %v5201, 8.507059e+37
  %v5203 = vand.u32 %v5191, 2147483648
  %v5204 = vor.u32 1.1754944e-38, %v5203
  %v5205 = vsel %vm5202, %v5204, %v5200
  %v5206 = vmul.f32 %v5181, %v5205
  %v5207 = vmin.f32 %v5206, 1.0
  %v5208 = vmax.f32 %v5207, -1.0
  %v5209 = vmul.f32 %v4592, %v4592
  %v5210 = vmin.f32 16.0, %v5209
  %v5211 = vmul.f32 %v5210, 2.1237322e-06
  %v5212 = vadd.f32 %v5211, 0.00028619796
  %v5213 = vmul.f32 %v5210, %v5212
  %v5214 = vadd.f32 %v5213, 0.0036580483
  %v5215 = vmul.f32 %v5210, %v5214
  %v5216 = vadd.f32 %v5215, 0.05243302
  %v5217 = vmul.f32 %v5210, %v5216
  %v5218 = vadd.f32 %v5217, 0.18741608
  %v5219 = vmul.f32 %v5210, %v5218
  %v5220 = vadd.f32 %v5219, 1.1283791
  %v5221 = vmul.f32 %v4592, %v5220
  %v5222 = vmul.f32 %v5210, 3.8918573e-05
  %v5223 = vadd.f32 %v5222, 0.001143296
  %v5224 = vmul.f32 %v5210, %v5223
  %v5225 = vadd.f32 %v5224, 0.014752088
  %v5226 = vmul.f32 %v5210, %v5225
  %v5227 = vadd.f32 %v5226, 0.112945676
  %v5228 = vmul.f32 %v5210, %v5227
  %v5229 = vadd.f32 %v5228, 0.4994258
  %v5230 = vmul.f32 %v5210, %v5229
  %v5231 = vadd.f32 %v5230, 1.0
  %v5232 = vrcp.pop %v5231
  %v5233 = vmul.f32 %v5231, %v5232
  %v5234 = vsub.f32 1.0, %v5233
  %v5235 = vmul.f32 %v5232, %v5234
  %v5236 = vadd.f32 %v5232, %v5235
  %vm5237 = vweird.f32 %v5231
  %vm5238 = vweird.f32 %v5232
  %vm5239 = vmor %vm5237, %vm5238
  %v5240 = vsel %vm5239, %v5232, %v5236
  %v5241 = vand.u32 2147483647, %v5231
  %vm5242 = vcmp.eq.f32.partialorder %v5241, 8.507059e+37
  %v5243 = vand.u32 %v5231, 2147483648
  %v5244 = vor.u32 1.1754944e-38, %v5243
  %v5245 = vsel %vm5242, %v5244, %v5240
  %v5246 = vmul.f32 %v5221, %v5245
  %v5247 = vmin.f32 %v5246, 1.0
  %v5248 = vmax.f32 %v5247, -1.0
  %v5249 = vmul.f32 %v4593, %v4593
  %v5250 = vmin.f32 16.0, %v5249
  %v5251 = vmul.f32 %v5250, 2.1237322e-06
  %v5252 = vadd.f32 %v5251, 0.00028619796
  %v5253 = vmul.f32 %v5250, %v5252
  %v5254 = vadd.f32 %v5253, 0.0036580483
  %v5255 = vmul.f32 %v5250, %v5254
  %v5256 = vadd.f32 %v5255, 0.05243302
  %v5257 = vmul.f32 %v5250, %v5256
  %v5258 = vadd.f32 %v5257, 0.18741608
  %v5259 = vmul.f32 %v5250, %v5258
  %v5260 = vadd.f32 %v5259, 1.1283791
  %v5261 = vmul.f32 %v4593, %v5260
  %v5262 = vmul.f32 %v5250, 3.8918573e-05
  %v5263 = vadd.f32 %v5262, 0.001143296
  %v5264 = vmul.f32 %v5250, %v5263
  %v5265 = vadd.f32 %v5264, 0.014752088
  %v5266 = vmul.f32 %v5250, %v5265
  %v5267 = vadd.f32 %v5266, 0.112945676
  %v5268 = vmul.f32 %v5250, %v5267
  %v5269 = vadd.f32 %v5268, 0.4994258
  %v5270 = vmul.f32 %v5250, %v5269
  %v5271 = vadd.f32 %v5270, 1.0
  %v5272 = vrcp.pop %v5271
  %v5273 = vmul.f32 %v5271, %v5272
  %v5274 = vsub.f32 1.0, %v5273
  %v5275 = vmul.f32 %v5272, %v5274
  %v5276 = vadd.f32 %v5272, %v5275
  %vm5277 = vweird.f32 %v5271
  %vm5278 = vweird.f32 %v5272
  %vm5279 = vmor %vm5277, %vm5278
  %v5280 = vsel %vm5279, %v5272, %v5276
  %v5281 = vand.u32 2147483647, %v5271
  %vm5282 = vcmp.eq.f32.partialorder %v5281, 8.507059e+37
  %v5283 = vand.u32 %v5271, 2147483648
  %v5284 = vor.u32 1.1754944e-38, %v5283
  %v5285 = vsel %vm5282, %v5284, %v5280
  %v5286 = vmul.f32 %v5261, %v5285
  %v5287 = vmin.f32 %v5286, 1.0
  %v5288 = vmax.f32 %v5287, -1.0
  %v5289 = vmul.f32 %v4594, %v4594
  %v5290 = vmin.f32 16.0, %v5289
  %v5291 = vmul.f32 %v5290, 2.1237322e-06
  %v5292 = vadd.f32 %v5291, 0.00028619796
  %v5293 = vmul.f32 %v5290, %v5292
  %v5294 = vadd.f32 %v5293, 0.0036580483
  %v5295 = vmul.f32 %v5290, %v5294
  %v5296 = vadd.f32 %v5295, 0.05243302
  %v5297 = vmul.f32 %v5290, %v5296
  %v5298 = vadd.f32 %v5297, 0.18741608
  %v5299 = vmul.f32 %v5290, %v5298
  %v5300 = vadd.f32 %v5299, 1.1283791
  %v5301 = vmul.f32 %v4594, %v5300
  %v5302 = vmul.f32 %v5290, 3.8918573e-05
  %v5303 = vadd.f32 %v5302, 0.001143296
  %v5304 = vmul.f32 %v5290, %v5303
  %v5305 = vadd.f32 %v5304, 0.014752088
  %v5306 = vmul.f32 %v5290, %v5305
  %v5307 = vadd.f32 %v5306, 0.112945676
  %v5308 = vmul.f32 %v5290, %v5307
  %v5309 = vadd.f32 %v5308, 0.4994258
  %v5310 = vmul.f32 %v5290, %v5309
  %v5311 = vadd.f32 %v5310, 1.0
  %v5312 = vrcp.pop %v5311
  %v5313 = vmul.f32 %v5311, %v5312
  %v5314 = vsub.f32 1.0, %v5313
  %v5315 = vmul.f32 %v5312, %v5314
  %v5316 = vadd.f32 %v5312, %v5315
  %vm5317 = vweird.f32 %v5311
  %vm5318 = vweird.f32 %v5312
  %vm5319 = vmor %vm5317, %vm5318
  %v5320 = vsel %vm5319, %v5312, %v5316
  %v5321 = vand.u32 2147483647, %v5311
  %vm5322 = vcmp.eq.f32.partialorder %v5321, 8.507059e+37
  %v5323 = vand.u32 %v5311, 2147483648
  %v5324 = vor.u32 1.1754944e-38, %v5323
  %v5325 = vsel %vm5322, %v5324, %v5320
  %v5326 = vmul.f32 %v5301, %v5325
  %v5327 = vmin.f32 %v5326, 1.0
  %v5328 = vmax.f32 %v5327, -1.0
  %v5329 = vmul.f32 %v4595, %v4595
  %v5330 = vmin.f32 16.0, %v5329
  %v5331 = vmul.f32 %v5330, 2.1237322e-06
  %v5332 = vadd.f32 %v5331, 0.00028619796
  %v5333 = vmul.f32 %v5330, %v5332
  %v5334 = vadd.f32 %v5333, 0.0036580483
  %v5335 = vmul.f32 %v5330, %v5334
  %v5336 = vadd.f32 %v5335, 0.05243302
  %v5337 = vmul.f32 %v5330, %v5336
  %v5338 = vadd.f32 %v5337, 0.18741608
  %v5339 = vmul.f32 %v5330, %v5338
  %v5340 = vadd.f32 %v5339, 1.1283791
  %v5341 = vmul.f32 %v4595, %v5340
  %v5342 = vmul.f32 %v5330, 3.8918573e-05
  %v5343 = vadd.f32 %v5342, 0.001143296
  %v5344 = vmul.f32 %v5330, %v5343
  %v5345 = vadd.f32 %v5344, 0.014752088
  %v5346 = vmul.f32 %v5330, %v5345
  %v5347 = vadd.f32 %v5346, 0.112945676
  %v5348 = vmul.f32 %v5330, %v5347
  %v5349 = vadd.f32 %v5348, 0.4994258
  %v5350 = vmul.f32 %v5330, %v5349
  %v5351 = vadd.f32 %v5350, 1.0
  %v5352 = vrcp.pop %v5351
  %v5353 = vmul.f32 %v5351, %v5352
  %v5354 = vsub.f32 1.0, %v5353
  %v5355 = vmul.f32 %v5352, %v5354
  %v5356 = vadd.f32 %v5352, %v5355
  %vm5357 = vweird.f32 %v5351
  %vm5358 = vweird.f32 %v5352
  %vm5359 = vmor %vm5357, %vm5358
  %v5360 = vsel %vm5359, %v5352, %v5356
  %v5361 = vand.u32 2147483647, %v5351
  %vm5362 = vcmp.eq.f32.partialorder %v5361, 8.507059e+37
  %v5363 = vand.u32 %v5351, 2147483648
  %v5364 = vor.u32 1.1754944e-38, %v5363
  %v5365 = vsel %vm5362, %v5364, %v5360
  %v5366 = vmul.f32 %v5341, %v5365
  %v5367 = vmin.f32 %v5366, 1.0
  %v5368 = vmax.f32 %v5367, -1.0
  %v5369 = vmul.f32 %v4596, %v4596
  %v5370 = vmin.f32 16.0, %v5369
  %v5371 = vmul.f32 %v5370, 2.1237322e-06
  %v5372 = vadd.f32 %v5371, 0.00028619796
  %v5373 = vmul.f32 %v5370, %v5372
  %v5374 = vadd.f32 %v5373, 0.0036580483
  %v5375 = vmul.f32 %v5370, %v5374
  %v5376 = vadd.f32 %v5375, 0.05243302
  %v5377 = vmul.f32 %v5370, %v5376
  %v5378 = vadd.f32 %v5377, 0.18741608
  %v5379 = vmul.f32 %v5370, %v5378
  %v5380 = vadd.f32 %v5379, 1.1283791
  %v5381 = vmul.f32 %v4596, %v5380
  %v5382 = vmul.f32 %v5370, 3.8918573e-05
  %v5383 = vadd.f32 %v5382, 0.001143296
  %v5384 = vmul.f32 %v5370, %v5383
  %v5385 = vadd.f32 %v5384, 0.014752088
  %v5386 = vmul.f32 %v5370, %v5385
  %v5387 = vadd.f32 %v5386, 0.112945676
  %v5388 = vmul.f32 %v5370, %v5387
  %v5389 = vadd.f32 %v5388, 0.4994258
  %v5390 = vmul.f32 %v5370, %v5389
  %v5391 = vadd.f32 %v5390, 1.0
  %v5392 = vrcp.pop %v5391
  %v5393 = vmul.f32 %v5391, %v5392
  %v5394 = vsub.f32 1.0, %v5393
  %v5395 = vmul.f32 %v5392, %v5394
  %v5396 = vadd.f32 %v5392, %v5395
  %vm5397 = vweird.f32 %v5391
  %vm5398 = vweird.f32 %v5392
  %vm5399 = vmor %vm5397, %vm5398
  %v5400 = vsel %vm5399, %v5392, %v5396
  %v5401 = vand.u32 2147483647, %v5391
  %vm5402 = vcmp.eq.f32.partialorder %v5401, 8.507059e+37
  %v5403 = vand.u32 %v5391, 2147483648
  %v5404 = vor.u32 1.1754944e-38, %v5403
  %v5405 = vsel %vm5402, %v5404, %v5400
  %v5406 = vmul.f32 %v5381, %v5405
  %v5407 = vmin.f32 %v5406, 1.0
  %v5408 = vmax.f32 %v5407, -1.0
  %v5409 = vmul.f32 %v4597, %v4597
  %v5410 = vmin.f32 16.0, %v5409
  %v5411 = vmul.f32 %v5410, 2.1237322e-06
  %v5412 = vadd.f32 %v5411, 0.00028619796
  %v5413 = vmul.f32 %v5410, %v5412
  %v5414 = vadd.f32 %v5413, 0.0036580483
  %v5415 = vmul.f32 %v5410, %v5414
  %v5416 = vadd.f32 %v5415, 0.05243302
  %v5417 = vmul.f32 %v5410, %v5416
  %v5418 = vadd.f32 %v5417, 0.18741608
  %v5419 = vmul.f32 %v5410, %v5418
  %v5420 = vadd.f32 %v5419, 1.1283791
  %v5421 = vmul.f32 %v4597, %v5420
  %v5422 = vmul.f32 %v5410, 3.8918573e-05
  %v5423 = vadd.f32 %v5422, 0.001143296
  %v5424 = vmul.f32 %v5410, %v5423
  %v5425 = vadd.f32 %v5424, 0.014752088
  %v5426 = vmul.f32 %v5410, %v5425
  %v5427 = vadd.f32 %v5426, 0.112945676
  %v5428 = vmul.f32 %v5410, %v5427
  %v5429 = vadd.f32 %v5428, 0.4994258
  %v5430 = vmul.f32 %v5410, %v5429
  %v5431 = vadd.f32 %v5430, 1.0
  %v5432 = vrcp.pop %v5431
  %v5433 = vmul.f32 %v5431, %v5432
  %v5434 = vsub.f32 1.0, %v5433
  %v5435 = vmul.f32 %v5432, %v5434
  %v5436 = vadd.f32 %v5432, %v5435
  %vm5437 = vweird.f32 %v5431
  %vm5438 = vweird.f32 %v5432
  %vm5439 = vmor %vm5437, %vm5438
  %v5440 = vsel %vm5439, %v5432, %v5436
  %v5441 = vand.u32 2147483647, %v5431
  %vm5442 = vcmp.eq.f32.partialorder %v5441, 8.507059e+37
  %v5443 = vand.u32 %v5431, 2147483648
  %v5444 = vor.u32 1.1754944e-38, %v5443
  %v5445 = vsel %vm5442, %v5444, %v5440
  %v5446 = vmul.f32 %v5421, %v5445
  %v5447 = vmin.f32 %v5446, 1.0
  %v5448 = vmax.f32 %v5447, -1.0
  %v5449 = vmul.f32 %v4598, %v4598
  %v5450 = vmin.f32 16.0, %v5449
  %v5451 = vmul.f32 %v5450, 2.1237322e-06
  %v5452 = vadd.f32 %v5451, 0.00028619796
  %v5453 = vmul.f32 %v5450, %v5452
  %v5454 = vadd.f32 %v5453, 0.0036580483
  %v5455 = vmul.f32 %v5450, %v5454
  %v5456 = vadd.f32 %v5455, 0.05243302
  %v5457 = vmul.f32 %v5450, %v5456
  %v5458 = vadd.f32 %v5457, 0.18741608
  %v5459 = vmul.f32 %v5450, %v5458
  %v5460 = vadd.f32 %v5459, 1.1283791
  %v5461 = vmul.f32 %v4598, %v5460
  %v5462 = vmul.f32 %v5450, 3.8918573e-05
  %v5463 = vadd.f32 %v5462, 0.001143296
  %v5464 = vmul.f32 %v5450, %v5463
  %v5465 = vadd.f32 %v5464, 0.014752088
  %v5466 = vmul.f32 %v5450, %v5465
  %v5467 = vadd.f32 %v5466, 0.112945676
  %v5468 = vmul.f32 %v5450, %v5467
  %v5469 = vadd.f32 %v5468, 0.4994258
  %v5470 = vmul.f32 %v5450, %v5469
  %v5471 = vadd.f32 %v5470, 1.0
  %v5472 = vrcp.pop %v5471
  %v5473 = vmul.f32 %v5471, %v5472
  %v5474 = vsub.f32 1.0, %v5473
  %v5475 = vmul.f32 %v5472, %v5474
  %v5476 = vadd.f32 %v5472, %v5475
  %vm5477 = vweird.f32 %v5471
  %vm5478 = vweird.f32 %v5472
  %vm5479 = vmor %vm5477, %vm5478
  %v5480 = vsel %vm5479, %v5472, %v5476
  %v5481 = vand.u32 2147483647, %v5471
  %vm5482 = vcmp.eq.f32.partialorder %v5481, 8.507059e+37
  %v5483 = vand.u32 %v5471, 2147483648
  %v5484 = vor.u32 1.1754944e-38, %v5483
  %v5485 = vsel %vm5482, %v5484, %v5480
  %v5486 = vmul.f32 %v5461, %v5485
  %v5487 = vmin.f32 %v5486, 1.0
  %v5488 = vmax.f32 %v5487, -1.0
  %v5489 = vmul.f32 %v4599, %v4599
  %v5490 = vmin.f32 16.0, %v5489
  %v5491 = vmul.f32 %v5490, 2.1237322e-06
  %v5492 = vadd.f32 %v5491, 0.00028619796
  %v5493 = vmul.f32 %v5490, %v5492
  %v5494 = vadd.f32 %v5493, 0.0036580483
  %v5495 = vmul.f32 %v5490, %v5494
  %v5496 = vadd.f32 %v5495, 0.05243302
  %v5497 = vmul.f32 %v5490, %v5496
  %v5498 = vadd.f32 %v5497, 0.18741608
  %v5499 = vmul.f32 %v5490, %v5498
  %v5500 = vadd.f32 %v5499, 1.1283791
  %v5501 = vmul.f32 %v4599, %v5500
  %v5502 = vmul.f32 %v5490, 3.8918573e-05
  %v5503 = vadd.f32 %v5502, 0.001143296
  %v5504 = vmul.f32 %v5490, %v5503
  %v5505 = vadd.f32 %v5504, 0.014752088
  %v5506 = vmul.f32 %v5490, %v5505
  %v5507 = vadd.f32 %v5506, 0.112945676
  %v5508 = vmul.f32 %v5490, %v5507
  %v5509 = vadd.f32 %v5508, 0.4994258
  %v5510 = vmul.f32 %v5490, %v5509
  %v5511 = vadd.f32 %v5510, 1.0
  %v5512 = vrcp.pop %v5511
  %v5513 = vmul.f32 %v5511, %v5512
  %v5514 = vsub.f32 1.0, %v5513
  %v5515 = vmul.f32 %v5512, %v5514
  %v5516 = vadd.f32 %v5512, %v5515
  %vm5517 = vweird.f32 %v5511
  %vm5518 = vweird.f32 %v5512
  %vm5519 = vmor %vm5517, %vm5518
  %v5520 = vsel %vm5519, %v5512, %v5516
  %v5521 = vand.u32 2147483647, %v5511
  %vm5522 = vcmp.eq.f32.partialorder %v5521, 8.507059e+37
  %v5523 = vand.u32 %v5511, 2147483648
  %v5524 = vor.u32 1.1754944e-38, %v5523
  %v5525 = vsel %vm5522, %v5524, %v5520
  %v5526 = vmul.f32 %v5501, %v5525
  %v5527 = vmin.f32 %v5526, 1.0
  %v5528 = vmax.f32 %v5527, -1.0
  %v5529 = vmul.f32 %v4600, %v4600
  %v5530 = vmin.f32 16.0, %v5529
  %v5531 = vmul.f32 %v5530, 2.1237322e-06
  %v5532 = vadd.f32 %v5531, 0.00028619796
  %v5533 = vmul.f32 %v5530, %v5532
  %v5534 = vadd.f32 %v5533, 0.0036580483
  %v5535 = vmul.f32 %v5530, %v5534
  %v5536 = vadd.f32 %v5535, 0.05243302
  %v5537 = vmul.f32 %v5530, %v5536
  %v5538 = vadd.f32 %v5537, 0.18741608
  %v5539 = vmul.f32 %v5530, %v5538
  %v5540 = vadd.f32 %v5539, 1.1283791
  %v5541 = vmul.f32 %v4600, %v5540
  %v5542 = vmul.f32 %v5530, 3.8918573e-05
  %v5543 = vadd.f32 %v5542, 0.001143296
  %v5544 = vmul.f32 %v5530, %v5543
  %v5545 = vadd.f32 %v5544, 0.014752088
  %v5546 = vmul.f32 %v5530, %v5545
  %v5547 = vadd.f32 %v5546, 0.112945676
  %v5548 = vmul.f32 %v5530, %v5547
  %v5549 = vadd.f32 %v5548, 0.4994258
  %v5550 = vmul.f32 %v5530, %v5549
  %v5551 = vadd.f32 %v5550, 1.0
  %v5552 = vrcp.pop %v5551
  %v5553 = vmul.f32 %v5551, %v5552
  %v5554 = vsub.f32 1.0, %v5553
  %v5555 = vmul.f32 %v5552, %v5554
  %v5556 = vadd.f32 %v5552, %v5555
  %vm5557 = vweird.f32 %v5551
  %vm5558 = vweird.f32 %v5552
  %vm5559 = vmor %vm5557, %vm5558
  %v5560 = vsel %vm5559, %v5552, %v5556
  %v5561 = vand.u32 2147483647, %v5551
  %vm5562 = vcmp.eq.f32.partialorder %v5561, 8.507059e+37
  %v5563 = vand.u32 %v5551, 2147483648
  %v5564 = vor.u32 1.1754944e-38, %v5563
  %v5565 = vsel %vm5562, %v5564, %v5560
  %v5566 = vmul.f32 %v5541, %v5565
  %v5567 = vmin.f32 %v5566, 1.0
  %v5568 = vmax.f32 %v5567, -1.0
  %v5569 = vmul.f32 %v4601, %v4601
  %v5570 = vmin.f32 16.0, %v5569
  %v5571 = vmul.f32 %v5570, 2.1237322e-06
  %v5572 = vadd.f32 %v5571, 0.00028619796
  %v5573 = vmul.f32 %v5570, %v5572
  %v5574 = vadd.f32 %v5573, 0.0036580483
  %v5575 = vmul.f32 %v5570, %v5574
  %v5576 = vadd.f32 %v5575, 0.05243302
  %v5577 = vmul.f32 %v5570, %v5576
  %v5578 = vadd.f32 %v5577, 0.18741608
  %v5579 = vmul.f32 %v5570, %v5578
  %v5580 = vadd.f32 %v5579, 1.1283791
  %v5581 = vmul.f32 %v4601, %v5580
  %v5582 = vmul.f32 %v5570, 3.8918573e-05
  %v5583 = vadd.f32 %v5582, 0.001143296
  %v5584 = vmul.f32 %v5570, %v5583
  %v5585 = vadd.f32 %v5584, 0.014752088
  %v5586 = vmul.f32 %v5570, %v5585
  %v5587 = vadd.f32 %v5586, 0.112945676
  %v5588 = vmul.f32 %v5570, %v5587
  %v5589 = vadd.f32 %v5588, 0.4994258
  %v5590 = vmul.f32 %v5570, %v5589
  %v5591 = vadd.f32 %v5590, 1.0
  %v5592 = vrcp.pop %v5591
  %v5593 = vmul.f32 %v5591, %v5592
  %v5594 = vsub.f32 1.0, %v5593
  %v5595 = vmul.f32 %v5592, %v5594
  %v5596 = vadd.f32 %v5592, %v5595
  %vm5597 = vweird.f32 %v5591
  %vm5598 = vweird.f32 %v5592
  %vm5599 = vmor %vm5597, %vm5598
  %v5600 = vsel %vm5599, %v5592, %v5596
  %v5601 = vand.u32 2147483647, %v5591
  %vm5602 = vcmp.eq.f32.partialorder %v5601, 8.507059e+37
  %v5603 = vand.u32 %v5591, 2147483648
  %v5604 = vor.u32 1.1754944e-38, %v5603
  %v5605 = vsel %vm5602, %v5604, %v5600
  %v5606 = vmul.f32 %v5581, %v5605
  %v5607 = vmin.f32 %v5606, 1.0
  %v5608 = vmax.f32 %v5607, -1.0
  %v5609 = vmul.f32 %v4602, %v4602
  %v5610 = vmin.f32 16.0, %v5609
  %v5611 = vmul.f32 %v5610, 2.1237322e-06
  %v5612 = vadd.f32 %v5611, 0.00028619796
  %v5613 = vmul.f32 %v5610, %v5612
  %v5614 = vadd.f32 %v5613, 0.0036580483
  %v5615 = vmul.f32 %v5610, %v5614
  %v5616 = vadd.f32 %v5615, 0.05243302
  %v5617 = vmul.f32 %v5610, %v5616
  %v5618 = vadd.f32 %v5617, 0.18741608
  %v5619 = vmul.f32 %v5610, %v5618
  %v5620 = vadd.f32 %v5619, 1.1283791
  %v5621 = vmul.f32 %v4602, %v5620
  %v5622 = vmul.f32 %v5610, 3.8918573e-05
  %v5623 = vadd.f32 %v5622, 0.001143296
  %v5624 = vmul.f32 %v5610, %v5623
  %v5625 = vadd.f32 %v5624, 0.014752088
  %v5626 = vmul.f32 %v5610, %v5625
  %v5627 = vadd.f32 %v5626, 0.112945676
  %v5628 = vmul.f32 %v5610, %v5627
  %v5629 = vadd.f32 %v5628, 0.4994258
  %v5630 = vmul.f32 %v5610, %v5629
  %v5631 = vadd.f32 %v5630, 1.0
  %v5632 = vrcp.pop %v5631
  %v5633 = vmul.f32 %v5631, %v5632
  %v5634 = vsub.f32 1.0, %v5633
  %v5635 = vmul.f32 %v5632, %v5634
  %v5636 = vadd.f32 %v5632, %v5635
  %vm5637 = vweird.f32 %v5631
  %vm5638 = vweird.f32 %v5632
  %vm5639 = vmor %vm5637, %vm5638
  %v5640 = vsel %vm5639, %v5632, %v5636
  %v5641 = vand.u32 2147483647, %v5631
  %vm5642 = vcmp.eq.f32.partialorder %v5641, 8.507059e+37
  %v5643 = vand.u32 %v5631, 2147483648
  %v5644 = vor.u32 1.1754944e-38, %v5643
  %v5645 = vsel %vm5642, %v5644, %v5640
  %v5646 = vmul.f32 %v5621, %v5645
  %v5647 = vmin.f32 %v5646, 1.0
  %v5648 = vmax.f32 %v5647, -1.0
  %v5649 = vmul.f32 %v4603, %v4603
  %v5650 = vmin.f32 16.0, %v5649
  %v5651 = vmul.f32 %v5650, 2.1237322e-06
  %v5652 = vadd.f32 %v5651, 0.00028619796
  %v5653 = vmul.f32 %v5650, %v5652
  %v5654 = vadd.f32 %v5653, 0.0036580483
  %v5655 = vmul.f32 %v5650, %v5654
  %v5656 = vadd.f32 %v5655, 0.05243302
  %v5657 = vmul.f32 %v5650, %v5656
  %v5658 = vadd.f32 %v5657, 0.18741608
  %v5659 = vmul.f32 %v5650, %v5658
  %v5660 = vadd.f32 %v5659, 1.1283791
  %v5661 = vmul.f32 %v4603, %v5660
  %v5662 = vmul.f32 %v5650, 3.8918573e-05
  %v5663 = vadd.f32 %v5662, 0.001143296
  %v5664 = vmul.f32 %v5650, %v5663
  %v5665 = vadd.f32 %v5664, 0.014752088
  %v5666 = vmul.f32 %v5650, %v5665
  %v5667 = vadd.f32 %v5666, 0.112945676
  %v5668 = vmul.f32 %v5650, %v5667
  %v5669 = vadd.f32 %v5668, 0.4994258
  %v5670 = vmul.f32 %v5650, %v5669
  %v5671 = vadd.f32 %v5670, 1.0
  %v5672 = vrcp.pop %v5671
  %v5673 = vmul.f32 %v5671, %v5672
  %v5674 = vsub.f32 1.0, %v5673
  %v5675 = vmul.f32 %v5672, %v5674
  %v5676 = vadd.f32 %v5672, %v5675
  %vm5677 = vweird.f32 %v5671
  %vm5678 = vweird.f32 %v5672
  %vm5679 = vmor %vm5677, %vm5678
  %v5680 = vsel %vm5679, %v5672, %v5676
  %v5681 = vand.u32 2147483647, %v5671
  %vm5682 = vcmp.eq.f32.partialorder %v5681, 8.507059e+37
  %v5683 = vand.u32 %v5671, 2147483648
  %v5684 = vor.u32 1.1754944e-38, %v5683
  %v5685 = vsel %vm5682, %v5684, %v5680
  %v5686 = vmul.f32 %v5661, %v5685
  %v5687 = vmin.f32 %v5686, 1.0
  %v5688 = vmax.f32 %v5687, -1.0
  %v5689 = vmul.f32 %v4604, %v4604
  %v5690 = vmin.f32 16.0, %v5689
  %v5691 = vmul.f32 %v5690, 2.1237322e-06
  %v5692 = vadd.f32 %v5691, 0.00028619796
  %v5693 = vmul.f32 %v5690, %v5692
  %v5694 = vadd.f32 %v5693, 0.0036580483
  %v5695 = vmul.f32 %v5690, %v5694
  %v5696 = vadd.f32 %v5695, 0.05243302
  %v5697 = vmul.f32 %v5690, %v5696
  %v5698 = vadd.f32 %v5697, 0.18741608
  %v5699 = vmul.f32 %v5690, %v5698
  %v5700 = vadd.f32 %v5699, 1.1283791
  %v5701 = vmul.f32 %v4604, %v5700
  %v5702 = vmul.f32 %v5690, 3.8918573e-05
  %v5703 = vadd.f32 %v5702, 0.001143296
  %v5704 = vmul.f32 %v5690, %v5703
  %v5705 = vadd.f32 %v5704, 0.014752088
  %v5706 = vmul.f32 %v5690, %v5705
  %v5707 = vadd.f32 %v5706, 0.112945676
  %v5708 = vmul.f32 %v5690, %v5707
  %v5709 = vadd.f32 %v5708, 0.4994258
  %v5710 = vmul.f32 %v5690, %v5709
  %v5711 = vadd.f32 %v5710, 1.0
  %v5712 = vrcp.pop %v5711
  %v5713 = vmul.f32 %v5711, %v5712
  %v5714 = vsub.f32 1.0, %v5713
  %v5715 = vmul.f32 %v5712, %v5714
  %v5716 = vadd.f32 %v5712, %v5715
  %vm5717 = vweird.f32 %v5711
  %vm5718 = vweird.f32 %v5712
  %vm5719 = vmor %vm5717, %vm5718
  %v5720 = vsel %vm5719, %v5712, %v5716
  %v5721 = vand.u32 2147483647, %v5711
  %vm5722 = vcmp.eq.f32.partialorder %v5721, 8.507059e+37
  %v5723 = vand.u32 %v5711, 2147483648
  %v5724 = vor.u32 1.1754944e-38, %v5723
  %v5725 = vsel %vm5722, %v5724, %v5720
  %v5726 = vmul.f32 %v5701, %v5725
  %v5727 = vmin.f32 %v5726, 1.0
  %v5728 = vmax.f32 %v5727, -1.0
  %v5729 = vmul.f32 %v4605, %v4605
  %v5730 = vmin.f32 16.0, %v5729
  %v5731 = vmul.f32 %v5730, 2.1237322e-06
  %v5732 = vadd.f32 %v5731, 0.00028619796
  %v5733 = vmul.f32 %v5730, %v5732
  %v5734 = vadd.f32 %v5733, 0.0036580483
  %v5735 = vmul.f32 %v5730, %v5734
  %v5736 = vadd.f32 %v5735, 0.05243302
  %v5737 = vmul.f32 %v5730, %v5736
  %v5738 = vadd.f32 %v5737, 0.18741608
  %v5739 = vmul.f32 %v5730, %v5738
  %v5740 = vadd.f32 %v5739, 1.1283791
  %v5741 = vmul.f32 %v4605, %v5740
  %v5742 = vmul.f32 %v5730, 3.8918573e-05
  %v5743 = vadd.f32 %v5742, 0.001143296
  %v5744 = vmul.f32 %v5730, %v5743
  %v5745 = vadd.f32 %v5744, 0.014752088
  %v5746 = vmul.f32 %v5730, %v5745
  %v5747 = vadd.f32 %v5746, 0.112945676
  %v5748 = vmul.f32 %v5730, %v5747
  %v5749 = vadd.f32 %v5748, 0.4994258
  %v5750 = vmul.f32 %v5730, %v5749
  %v5751 = vadd.f32 %v5750, 1.0
  %v5752 = vrcp.pop %v5751
  %v5753 = vmul.f32 %v5751, %v5752
  %v5754 = vsub.f32 1.0, %v5753
  %v5755 = vmul.f32 %v5752, %v5754
  %v5756 = vadd.f32 %v5752, %v5755
  %vm5757 = vweird.f32 %v5751
  %vm5758 = vweird.f32 %v5752
  %vm5759 = vmor %vm5757, %vm5758
  %v5760 = vsel %vm5759, %v5752, %v5756
  %v5761 = vand.u32 2147483647, %v5751
  %vm5762 = vcmp.eq.f32.partialorder %v5761, 8.507059e+37
  %v5763 = vand.u32 %v5751, 2147483648
  %v5764 = vor.u32 1.1754944e-38, %v5763
  %v5765 = vsel %vm5762, %v5764, %v5760
  %v5766 = vmul.f32 %v5741, %v5765
  %v5767 = vmin.f32 %v5766, 1.0
  %v5768 = vmax.f32 %v5767, -1.0
  %v5769 = vmul.f32 %v4606, %v4606
  %v5770 = vmin.f32 16.0, %v5769
  %v5771 = vmul.f32 %v5770, 2.1237322e-06
  %v5772 = vadd.f32 %v5771, 0.00028619796
  %v5773 = vmul.f32 %v5770, %v5772
  %v5774 = vadd.f32 %v5773, 0.0036580483
  %v5775 = vmul.f32 %v5770, %v5774
  %v5776 = vadd.f32 %v5775, 0.05243302
  %v5777 = vmul.f32 %v5770, %v5776
  %v5778 = vadd.f32 %v5777, 0.18741608
  %v5779 = vmul.f32 %v5770, %v5778
  %v5780 = vadd.f32 %v5779, 1.1283791
  %v5781 = vmul.f32 %v4606, %v5780
  %v5782 = vmul.f32 %v5770, 3.8918573e-05
  %v5783 = vadd.f32 %v5782, 0.001143296
  %v5784 = vmul.f32 %v5770, %v5783
  %v5785 = vadd.f32 %v5784, 0.014752088
  %v5786 = vmul.f32 %v5770, %v5785
  %v5787 = vadd.f32 %v5786, 0.112945676
  %v5788 = vmul.f32 %v5770, %v5787
  %v5789 = vadd.f32 %v5788, 0.4994258
  %v5790 = vmul.f32 %v5770, %v5789
  %v5791 = vadd.f32 %v5790, 1.0
  %v5792 = vrcp.pop %v5791
  %v5793 = vmul.f32 %v5791, %v5792
  %v5794 = vsub.f32 1.0, %v5793
  %v5795 = vmul.f32 %v5792, %v5794
  %v5796 = vadd.f32 %v5792, %v5795
  %vm5797 = vweird.f32 %v5791
  %vm5798 = vweird.f32 %v5792
  %vm5799 = vmor %vm5797, %vm5798
  %v5800 = vsel %vm5799, %v5792, %v5796
  %v5801 = vand.u32 2147483647, %v5791
  %vm5802 = vcmp.eq.f32.partialorder %v5801, 8.507059e+37
  %v5803 = vand.u32 %v5791, 2147483648
  %v5804 = vor.u32 1.1754944e-38, %v5803
  %v5805 = vsel %vm5802, %v5804, %v5800
  %v5806 = vmul.f32 %v5781, %v5805
  %v5807 = vmin.f32 %v5806, 1.0
  %v5808 = vmax.f32 %v5807, -1.0
  %v5809 = vmul.f32 %v4607, %v4607
  %v5810 = vmin.f32 16.0, %v5809
  %v5811 = vmul.f32 %v5810, 2.1237322e-06
  %v5812 = vadd.f32 %v5811, 0.00028619796
  %v5813 = vmul.f32 %v5810, %v5812
  %v5814 = vadd.f32 %v5813, 0.0036580483
  %v5815 = vmul.f32 %v5810, %v5814
  %v5816 = vadd.f32 %v5815, 0.05243302
  %v5817 = vmul.f32 %v5810, %v5816
  %v5818 = vadd.f32 %v5817, 0.18741608
  %v5819 = vmul.f32 %v5810, %v5818
  %v5820 = vadd.f32 %v5819, 1.1283791
  %v5821 = vmul.f32 %v4607, %v5820
  %v5822 = vmul.f32 %v5810, 3.8918573e-05
  %v5823 = vadd.f32 %v5822, 0.001143296
  %v5824 = vmul.f32 %v5810, %v5823
  %v5825 = vadd.f32 %v5824, 0.014752088
  %v5826 = vmul.f32 %v5810, %v5825
  %v5827 = vadd.f32 %v5826, 0.112945676
  %v5828 = vmul.f32 %v5810, %v5827
  %v5829 = vadd.f32 %v5828, 0.4994258
  %v5830 = vmul.f32 %v5810, %v5829
  %v5831 = vadd.f32 %v5830, 1.0
  %v5832 = vrcp.pop %v5831
  %v5833 = vmul.f32 %v5831, %v5832
  %v5834 = vsub.f32 1.0, %v5833
  %v5835 = vmul.f32 %v5832, %v5834
  %v5836 = vadd.f32 %v5832, %v5835
  %vm5837 = vweird.f32 %v5831
  %vm5838 = vweird.f32 %v5832
  %vm5839 = vmor %vm5837, %vm5838
  %v5840 = vsel %vm5839, %v5832, %v5836
  %v5841 = vand.u32 2147483647, %v5831
  %vm5842 = vcmp.eq.f32.partialorder %v5841, 8.507059e+37
  %v5843 = vand.u32 %v5831, 2147483648
  %v5844 = vor.u32 1.1754944e-38, %v5843
  %v5845 = vsel %vm5842, %v5844, %v5840
  %v5846 = vmul.f32 %v5821, %v5845
  %v5847 = vmin.f32 %v5846, 1.0
  %v5848 = vmax.f32 %v5847, -1.0
  %v5849 = vmul.f32 %v4608, %v4608
  %v5850 = vmin.f32 16.0, %v5849
  %v5851 = vmul.f32 %v5850, 2.1237322e-06
  %v5852 = vadd.f32 %v5851, 0.00028619796
  %v5853 = vmul.f32 %v5850, %v5852
  %v5854 = vadd.f32 %v5853, 0.0036580483
  %v5855 = vmul.f32 %v5850, %v5854
  %v5856 = vadd.f32 %v5855, 0.05243302
  %v5857 = vmul.f32 %v5850, %v5856
  %v5858 = vadd.f32 %v5857, 0.18741608
  %v5859 = vmul.f32 %v5850, %v5858
  %v5860 = vadd.f32 %v5859, 1.1283791
  %v5861 = vmul.f32 %v4608, %v5860
  %v5862 = vmul.f32 %v5850, 3.8918573e-05
  %v5863 = vadd.f32 %v5862, 0.001143296
  %v5864 = vmul.f32 %v5850, %v5863
  %v5865 = vadd.f32 %v5864, 0.014752088
  %v5866 = vmul.f32 %v5850, %v5865
  %v5867 = vadd.f32 %v5866, 0.112945676
  %v5868 = vmul.f32 %v5850, %v5867
  %v5869 = vadd.f32 %v5868, 0.4994258
  %v5870 = vmul.f32 %v5850, %v5869
  %v5871 = vadd.f32 %v5870, 1.0
  %v5872 = vrcp.pop %v5871
  %v5873 = vmul.f32 %v5871, %v5872
  %v5874 = vsub.f32 1.0, %v5873
  %v5875 = vmul.f32 %v5872, %v5874
  %v5876 = vadd.f32 %v5872, %v5875
  %vm5877 = vweird.f32 %v5871
  %vm5878 = vweird.f32 %v5872
  %vm5879 = vmor %vm5877, %vm5878
  %v5880 = vsel %vm5879, %v5872, %v5876
  %v5881 = vand.u32 2147483647, %v5871
  %vm5882 = vcmp.eq.f32.partialorder %v5881, 8.507059e+37
  %v5883 = vand.u32 %v5871, 2147483648
  %v5884 = vor.u32 1.1754944e-38, %v5883
  %v5885 = vsel %vm5882, %v5884, %v5880
  %v5886 = vmul.f32 %v5861, %v5885
  %v5887 = vmin.f32 %v5886, 1.0
  %v5888 = vmax.f32 %v5887, -1.0
  %v5889 = vadd.f32 %v4648, 1.0
  %v5890 = vadd.f32 %v4688, 1.0
  %v5891 = vadd.f32 %v4728, 1.0
  %v5892 = vadd.f32 %v4768, 1.0
  %v5893 = vadd.f32 %v4808, 1.0
  %v5894 = vadd.f32 %v4848, 1.0
  %v5895 = vadd.f32 %v4888, 1.0
  %v5896 = vadd.f32 %v4928, 1.0
  %v5897 = vadd.f32 %v4968, 1.0
  %v5898 = vadd.f32 %v5008, 1.0
  %v5899 = vadd.f32 %v5048, 1.0
  %v5900 = vadd.f32 %v5088, 1.0
  %v5901 = vadd.f32 %v5128, 1.0
  %v5902 = vadd.f32 %v5168, 1.0
  %v5903 = vadd.f32 %v5208, 1.0
  %v5904 = vadd.f32 %v5248, 1.0
  %v5905 = vadd.f32 %v5288, 1.0
  %v5906 = vadd.f32 %v5328, 1.0
  %v5907 = vadd.f32 %v5368, 1.0
  %v5908 = vadd.f32 %v5408, 1.0
  %v5909 = vadd.f32 %v5448, 1.0
  %v5910 = vadd.f32 %v5488, 1.0
  %v5911 = vadd.f32 %v5528, 1.0
  %v5912 = vadd.f32 %v5568, 1.0
  %v5913 = vadd.f32 %v5608, 1.0
  %v5914 = vadd.f32 %v5648, 1.0
  %v5915 = vadd.f32 %v5688, 1.0
  %v5916 = vadd.f32 %v5728, 1.0
  %v5917 = vadd.f32 %v5768, 1.0
  %v5918 = vadd.f32 %v5808, 1.0
  %v5919 = vadd.f32 %v5848, 1.0
  %v5920 = vadd.f32 %v5888, 1.0
  %v5921 = vmul.f32 %v4545, %v5889
  %v5922 = vmul.f32 %v4546, %v5890
  %v5923 = vmul.f32 %v4547, %v5891
  %v5924 = vmul.f32 %v4548, %v5892
  %v5925 = vmul.f32 %v4549, %v5893
  %v5926 = vmul.f32 %v4550, %v5894
  %v5927 = vmul.f32 %v4551, %v5895
  %v5928 = vmul.f32 %v4552, %v5896
  %v5929 = vmul.f32 %v4553, %v5897
  %v5930 = vmul.f32 %v4554, %v5898
  %v5931 = vmul.f32 %v4555, %v5899
  %v5932 = vmul.f32 %v4556, %v5900
  %v5933 = vmul.f32 %v4557, %v5901
  %v5934 = vmul.f32 %v4558, %v5902
  %v5935 = vmul.f32 %v4559, %v5903
  %v5936 = vmul.f32 %v4560, %v5904
  %v5937 = vmul.f32 %v4561, %v5905
  %v5938 = vmul.f32 %v4562, %v5906
  %v5939 = vmul.f32 %v4563, %v5907
  %v5940 = vmul.f32 %v4564, %v5908
  %v5941 = vmul.f32 %v4565, %v5909
  %v5942 = vmul.f32 %v4566, %v5910
  %v5943 = vmul.f32 %v4567, %v5911
  %v5944 = vmul.f32 %v4568, %v5912
  %v5945 = vmul.f32 %v4569, %v5913
  %v5946 = vmul.f32 %v4570, %v5914
  %v5947 = vmul.f32 %v4571, %v5915
  %v5948 = vmul.f32 %v4572, %v5916
  %v5949 = vmul.f32 %v4573, %v5917
  %v5950 = vmul.f32 %v4574, %v5918
  %v5951 = vmul.f32 %v4575, %v5919
  %v5952 = vmul.f32 %v4576, %v5920
  %v5953 = vld [vmem:[%s17] sm:$0xff]
  %v5954 = vld [vmem:[%s17 + $0x8] sm:$0xff]
  %v5955 = vld [vmem:[%s18] sm:$0xff]
  %v5956 = vld [vmem:[%s18 + $0x8] sm:$0xff]
  %5958 = vset.pattern.permute.xlu0 0
  %5959 = vperm.xlu0 %5958, %v5955
  %v5960 = vpop.permute.xlu0 %5959
  %5963 = vset.pattern.permute.xlu0 0
  %5964 = vperm.xlu0 %5963, %v5956
  %v5965 = vpop.permute.xlu0 %5964
  %v5968 = vsel %vm2326, %v5953, 0
  %v5971 = vsel %vm2326, %v5954, 0
  %5973 = vmatpush.msra.mxu0 0.0
  %5974 = vmatpush.msra.mxu0 0.0
  %5975 = vmatpush.msra.mxu0 0.0
  %5976 = vmatpush.msra.mxu0 0.0
  %5977 = vmatpush.msra.mxu0 0.0
  %5978 = vmatpush.msra.mxu0 0.0
  %5979 = vmatpush.msra.mxu0 0.0
  %5980 = vmatpush.msra.mxu0 0.0
  %5981 = vmatpush.msra.mxu0 0.0
  %5982 = vmatpush.msra.mxu0 0.0
  %5983 = vmatpush.msra.mxu0 0.0
  %5984 = vmatpush.msra.mxu0 0.0
  %5985 = vmatpush.msra.mxu0 %v5924
  %5986 = vmatpush.msra.mxu0 %v5923
  %5987 = vmatpush.msra.mxu0 %v5922
  %5988 = vmatpush.msra.mxu0 %v5921
  %5989 = vmatmul.f32.gmra.mxu0 %v5968
  %v5990 = vpop.f32.mrf.mxu0
  %v5991 = vadd.f32 %v5960, %v5990
  %5992 = vmatmul.f32.gmra.mxu0 %v5971
  %v5993 = vpop.f32.mrf.mxu0
  %v5994 = vadd.f32 %v5965, %v5993
  %5995 = vdwg.mxu0
  %5996 = vmatpush.msra.mxu0 0.0
  %5997 = vmatpush.msra.mxu0 0.0
  %5998 = vmatpush.msra.mxu0 0.0
  %5999 = vmatpush.msra.mxu0 0.0
  %6000 = vmatpush.msra.mxu0 0.0
  %6001 = vmatpush.msra.mxu0 0.0
  %6002 = vmatpush.msra.mxu0 0.0
  %6003 = vmatpush.msra.mxu0 0.0
  %6004 = vmatpush.msra.mxu0 0.0
  %6005 = vmatpush.msra.mxu0 0.0
  %6006 = vmatpush.msra.mxu0 0.0
  %6007 = vmatpush.msra.mxu0 0.0
  %6008 = vmatpush.msra.mxu0 %v5928
  %6009 = vmatpush.msra.mxu0 %v5927
  %6010 = vmatpush.msra.mxu0 %v5926
  %6011 = vmatpush.msra.mxu0 %v5925
  %6012 = vmatmul.f32.gmra.mxu0 %v5968
  %v6013 = vpop.f32.mrf.mxu0
  %v6014 = vadd.f32 %v5960, %v6013
  %6015 = vmatmul.f32.gmra.mxu0 %v5971
  %v6016 = vpop.f32.mrf.mxu0
  %v6017 = vadd.f32 %v5965, %v6016
  %6018 = vdwg.mxu0
  %6019 = vmatpush.msra.mxu0 0.0
  %6020 = vmatpush.msra.mxu0 0.0
  %6021 = vmatpush.msra.mxu0 0.0
  %6022 = vmatpush.msra.mxu0 0.0
  %6023 = vmatpush.msra.mxu0 0.0
  %6024 = vmatpush.msra.mxu0 0.0
  %6025 = vmatpush.msra.mxu0 0.0
  %6026 = vmatpush.msra.mxu0 0.0
  %6027 = vmatpush.msra.mxu0 0.0
  %6028 = vmatpush.msra.mxu0 0.0
  %6029 = vmatpush.msra.mxu0 0.0
  %6030 = vmatpush.msra.mxu0 0.0
  %6031 = vmatpush.msra.mxu0 %v5932
  %6032 = vmatpush.msra.mxu0 %v5931
  %6033 = vmatpush.msra.mxu0 %v5930
  %6034 = vmatpush.msra.mxu0 %v5929
  %6035 = vmatmul.f32.gmra.mxu0 %v5968
  %v6036 = vpop.f32.mrf.mxu0
  %v6037 = vadd.f32 %v5960, %v6036
  %6038 = vmatmul.f32.gmra.mxu0 %v5971
  %v6039 = vpop.f32.mrf.mxu0
  %v6040 = vadd.f32 %v5965, %v6039
  %6041 = vdwg.mxu0
  %6042 = vmatpush.msra.mxu0 0.0
  %6043 = vmatpush.msra.mxu0 0.0
  %6044 = vmatpush.msra.mxu0 0.0
  %6045 = vmatpush.msra.mxu0 0.0
  %6046 = vmatpush.msra.mxu0 0.0
  %6047 = vmatpush.msra.mxu0 0.0
  %6048 = vmatpush.msra.mxu0 0.0
  %6049 = vmatpush.msra.mxu0 0.0
  %6050 = vmatpush.msra.mxu0 0.0
  %6051 = vmatpush.msra.mxu0 0.0
  %6052 = vmatpush.msra.mxu0 0.0
  %6053 = vmatpush.msra.mxu0 0.0
  %6054 = vmatpush.msra.mxu0 %v5936
  %6055 = vmatpush.msra.mxu0 %v5935
  %6056 = vmatpush.msra.mxu0 %v5934
  %6057 = vmatpush.msra.mxu0 %v5933
  %6058 = vmatmul.f32.gmra.mxu0 %v5968
  %v6059 = vpop.f32.mrf.mxu0
  %v6060 = vadd.f32 %v5960, %v6059
  %6061 = vmatmul.f32.gmra.mxu0 %v5971
  %v6062 = vpop.f32.mrf.mxu0
  %v6063 = vadd.f32 %v5965, %v6062
  %6064 = vdwg.mxu0
  %6065 = vmatpush.msra.mxu0 0.0
  %6066 = vmatpush.msra.mxu0 0.0
  %6067 = vmatpush.msra.mxu0 0.0
  %6068 = vmatpush.msra.mxu0 0.0
  %6069 = vmatpush.msra.mxu0 0.0
  %6070 = vmatpush.msra.mxu0 0.0
  %6071 = vmatpush.msra.mxu0 0.0
  %6072 = vmatpush.msra.mxu0 0.0
  %6073 = vmatpush.msra.mxu0 0.0
  %6074 = vmatpush.msra.mxu0 0.0
  %6075 = vmatpush.msra.mxu0 0.0
  %6076 = vmatpush.msra.mxu0 0.0
  %6077 = vmatpush.msra.mxu0 %v5940
  %6078 = vmatpush.msra.mxu0 %v5939
  %6079 = vmatpush.msra.mxu0 %v5938
  %6080 = vmatpush.msra.mxu0 %v5937
  %6081 = vmatmul.f32.gmra.mxu0 %v5968
  %v6082 = vpop.f32.mrf.mxu0
  %v6083 = vadd.f32 %v5960, %v6082
  %6084 = vmatmul.f32.gmra.mxu0 %v5971
  %v6085 = vpop.f32.mrf.mxu0
  %v6086 = vadd.f32 %v5965, %v6085
  %6087 = vdwg.mxu0
  %6088 = vmatpush.msra.mxu0 0.0
  %6089 = vmatpush.msra.mxu0 0.0
  %6090 = vmatpush.msra.mxu0 0.0
  %6091 = vmatpush.msra.mxu0 0.0
  %6092 = vmatpush.msra.mxu0 0.0
  %6093 = vmatpush.msra.mxu0 0.0
  %6094 = vmatpush.msra.mxu0 0.0
  %6095 = vmatpush.msra.mxu0 0.0
  %6096 = vmatpush.msra.mxu0 0.0
  %6097 = vmatpush.msra.mxu0 0.0
  %6098 = vmatpush.msra.mxu0 0.0
  %6099 = vmatpush.msra.mxu0 0.0
  %6100 = vmatpush.msra.mxu0 %v5944
  %6101 = vmatpush.msra.mxu0 %v5943
  %6102 = vmatpush.msra.mxu0 %v5942
  %6103 = vmatpush.msra.mxu0 %v5941
  %6104 = vmatmul.f32.gmra.mxu0 %v5968
  %v6105 = vpop.f32.mrf.mxu0
  %v6106 = vadd.f32 %v5960, %v6105
  %6107 = vmatmul.f32.gmra.mxu0 %v5971
  %v6108 = vpop.f32.mrf.mxu0
  %v6109 = vadd.f32 %v5965, %v6108
  %6110 = vdwg.mxu0
  %6111 = vmatpush.msra.mxu0 0.0
  %6112 = vmatpush.msra.mxu0 0.0
  %6113 = vmatpush.msra.mxu0 0.0
  %6114 = vmatpush.msra.mxu0 0.0
  %6115 = vmatpush.msra.mxu0 0.0
  %6116 = vmatpush.msra.mxu0 0.0
  %6117 = vmatpush.msra.mxu0 0.0
  %6118 = vmatpush.msra.mxu0 0.0
  %6119 = vmatpush.msra.mxu0 0.0
  %6120 = vmatpush.msra.mxu0 0.0
  %6121 = vmatpush.msra.mxu0 0.0
  %6122 = vmatpush.msra.mxu0 0.0
  %6123 = vmatpush.msra.mxu0 %v5948
  %6124 = vmatpush.msra.mxu0 %v5947
  %6125 = vmatpush.msra.mxu0 %v5946
  %6126 = vmatpush.msra.mxu0 %v5945
  %6127 = vmatmul.f32.gmra.mxu0 %v5968
  %v6128 = vpop.f32.mrf.mxu0
  %v6129 = vadd.f32 %v5960, %v6128
  %6130 = vmatmul.f32.gmra.mxu0 %v5971
  %v6131 = vpop.f32.mrf.mxu0
  %v6132 = vadd.f32 %v5965, %v6131
  %6133 = vdwg.mxu0
  %6134 = vmatpush.msra.mxu0 0.0
  %6135 = vmatpush.msra.mxu0 0.0
  %6136 = vmatpush.msra.mxu0 0.0
  %6137 = vmatpush.msra.mxu0 0.0
  %6138 = vmatpush.msra.mxu0 0.0
  %6139 = vmatpush.msra.mxu0 0.0
  %6140 = vmatpush.msra.mxu0 0.0
  %6141 = vmatpush.msra.mxu0 0.0
  %6142 = vmatpush.msra.mxu0 0.0
  %6143 = vmatpush.msra.mxu0 0.0
  %6144 = vmatpush.msra.mxu0 0.0
  %6145 = vmatpush.msra.mxu0 0.0
  %6146 = vmatpush.msra.mxu0 %v5952
  %6147 = vmatpush.msra.mxu0 %v5951
  %6148 = vmatpush.msra.mxu0 %v5950
  %6149 = vmatpush.msra.mxu0 %v5949
  %6150 = vmatmul.f32.gmra.mxu0 %v5968
  %v6151 = vpop.f32.mrf.mxu0
  %v6152 = vadd.f32 %v5960, %v6151
  %6153 = vmatmul.f32.gmra.mxu0 %v5971
  %v6154 = vpop.f32.mrf.mxu0
  %v6155 = vadd.f32 %v5965, %v6154
  %6156 = vdwg.mxu0
  %v6157 = vadd.f32 %v4257, %v5991
  %v6158 = vadd.f32 %v4258, %v5994
  %v6159 = vadd.f32 %v4259, %v6014
  %v6160 = vadd.f32 %v4260, %v6017
  %v6161 = vadd.f32 %v4261, %v6037
  %v6162 = vadd.f32 %v4262, %v6040
  %v6163 = vadd.f32 %v4263, %v6060
  %v6164 = vadd.f32 %v4264, %v6063
  %v6165 = vadd.f32 %v4265, %v6083
  %v6166 = vadd.f32 %v4266, %v6086
  %v6167 = vadd.f32 %v4267, %v6106
  %v6168 = vadd.f32 %v4268, %v6109
  %v6169 = vadd.f32 %v4269, %v6129
  %v6170 = vadd.f32 %v4270, %v6132
  %v6171 = vadd.f32 %v4271, %v6152
  %v6172 = vadd.f32 %v4272, %v6155
  %v6173 = vsel %vm233, %v6157, 0.0
  %6174 = vadd.xlane.f32.xlu0 %v6173
  %v6175 = vpop.xlane.xlu0 %6174
  %v6176 = vsel %vm233, %v6158, 0.0
  %6177 = vadd.xlane.f32.xlu0 %v6176
  %v6178 = vpop.xlane.xlu0 %6177
  %v6179 = vsel %vm233, %v6159, 0.0
  %6180 = vadd.xlane.f32.xlu0 %v6179
  %v6181 = vpop.xlane.xlu0 %6180
  %v6182 = vsel %vm233, %v6160, 0.0
  %6183 = vadd.xlane.f32.xlu0 %v6182
  %v6184 = vpop.xlane.xlu0 %6183
  %v6185 = vsel %vm233, %v6161, 0.0
  %6186 = vadd.xlane.f32.xlu0 %v6185
  %v6187 = vpop.xlane.xlu0 %6186
  %v6188 = vsel %vm233, %v6162, 0.0
  %6189 = vadd.xlane.f32.xlu0 %v6188
  %v6190 = vpop.xlane.xlu0 %6189
  %v6191 = vsel %vm233, %v6163, 0.0
  %6192 = vadd.xlane.f32.xlu0 %v6191
  %v6193 = vpop.xlane.xlu0 %6192
  %v6194 = vsel %vm233, %v6164, 0.0
  %6195 = vadd.xlane.f32.xlu0 %v6194
  %v6196 = vpop.xlane.xlu0 %6195
  %v6197 = vsel %vm233, %v6165, 0.0
  %6198 = vadd.xlane.f32.xlu0 %v6197
  %v6199 = vpop.xlane.xlu0 %6198
  %v6200 = vsel %vm233, %v6166, 0.0
  %6201 = vadd.xlane.f32.xlu0 %v6200
  %v6202 = vpop.xlane.xlu0 %6201
  %v6203 = vsel %vm233, %v6167, 0.0
  %6204 = vadd.xlane.f32.xlu0 %v6203
  %v6205 = vpop.xlane.xlu0 %6204
  %v6206 = vsel %vm233, %v6168, 0.0
  %6207 = vadd.xlane.f32.xlu0 %v6206
  %v6208 = vpop.xlane.xlu0 %6207
  %v6209 = vsel %vm233, %v6169, 0.0
  %6210 = vadd.xlane.f32.xlu0 %v6209
  %v6211 = vpop.xlane.xlu0 %6210
  %v6212 = vsel %vm233, %v6170, 0.0
  %6213 = vadd.xlane.f32.xlu0 %v6212
  %v6214 = vpop.xlane.xlu0 %6213
  %v6215 = vsel %vm233, %v6171, 0.0
  %6216 = vadd.xlane.f32.xlu0 %v6215
  %v6217 = vpop.xlane.xlu0 %6216
  %v6218 = vsel %vm233, %v6172, 0.0
  %6219 = vadd.xlane.f32.xlu0 %v6218
  %v6220 = vpop.xlane.xlu0 %6219
  %v6221 = vmul.f32 %v6175, %v288
  %v6222 = vmul.f32 %v6178, %v288
  %v6223 = vmul.f32 %v6181, %v288
  %v6224 = vmul.f32 %v6184, %v288
  %v6225 = vmul.f32 %v6187, %v288
  %v6226 = vmul.f32 %v6190, %v288
  %v6227 = vmul.f32 %v6193, %v288
  %v6228 = vmul.f32 %v6196, %v288
  %v6229 = vmul.f32 %v6199, %v288
  %v6230 = vmul.f32 %v6202, %v288
  %v6231 = vmul.f32 %v6205, %v288
  %v6232 = vmul.f32 %v6208, %v288
  %v6233 = vmul.f32 %v6211, %v288
  %v6234 = vmul.f32 %v6214, %v288
  %v6235 = vmul.f32 %v6217, %v288
  %v6236 = vmul.f32 %v6220, %v288
  %v6237 = vsub.f32 %v6157, %v6221
  %v6238 = vsub.f32 %v6158, %v6222
  %v6239 = vsub.f32 %v6159, %v6223
  %v6240 = vsub.f32 %v6160, %v6224
  %v6241 = vsub.f32 %v6161, %v6225
  %v6242 = vsub.f32 %v6162, %v6226
  %v6243 = vsub.f32 %v6163, %v6227
  %v6244 = vsub.f32 %v6164, %v6228
  %v6245 = vsub.f32 %v6165, %v6229
  %v6246 = vsub.f32 %v6166, %v6230
  %v6247 = vsub.f32 %v6167, %v6231
  %v6248 = vsub.f32 %v6168, %v6232
  %v6249 = vsub.f32 %v6169, %v6233
  %v6250 = vsub.f32 %v6170, %v6234
  %v6251 = vsub.f32 %v6171, %v6235
  %v6252 = vsub.f32 %v6172, %v6236
  %v6253 = vmul.f32 %v6237, %v6237
  %v6254 = vmul.f32 %v6238, %v6238
  %v6255 = vmul.f32 %v6239, %v6239
  %v6256 = vmul.f32 %v6240, %v6240
  %v6257 = vmul.f32 %v6241, %v6241
  %v6258 = vmul.f32 %v6242, %v6242
  %v6259 = vmul.f32 %v6243, %v6243
  %v6260 = vmul.f32 %v6244, %v6244
  %v6261 = vmul.f32 %v6245, %v6245
  %v6262 = vmul.f32 %v6246, %v6246
  %v6263 = vmul.f32 %v6247, %v6247
  %v6264 = vmul.f32 %v6248, %v6248
  %v6265 = vmul.f32 %v6249, %v6249
  %v6266 = vmul.f32 %v6250, %v6250
  %v6267 = vmul.f32 %v6251, %v6251
  %v6268 = vmul.f32 %v6252, %v6252
  %v6269 = vsel %vm233, %v6253, 0.0
  %6270 = vadd.xlane.f32.xlu0 %v6269
  %v6271 = vpop.xlane.xlu0 %6270
  %v6272 = vsel %vm233, %v6254, 0.0
  %6273 = vadd.xlane.f32.xlu0 %v6272
  %v6274 = vpop.xlane.xlu0 %6273
  %v6275 = vsel %vm233, %v6255, 0.0
  %6276 = vadd.xlane.f32.xlu0 %v6275
  %v6277 = vpop.xlane.xlu0 %6276
  %v6278 = vsel %vm233, %v6256, 0.0
  %6279 = vadd.xlane.f32.xlu0 %v6278
  %v6280 = vpop.xlane.xlu0 %6279
  %v6281 = vsel %vm233, %v6257, 0.0
  %6282 = vadd.xlane.f32.xlu0 %v6281
  %v6283 = vpop.xlane.xlu0 %6282
  %v6284 = vsel %vm233, %v6258, 0.0
  %6285 = vadd.xlane.f32.xlu0 %v6284
  %v6286 = vpop.xlane.xlu0 %6285
  %v6287 = vsel %vm233, %v6259, 0.0
  %6288 = vadd.xlane.f32.xlu0 %v6287
  %v6289 = vpop.xlane.xlu0 %6288
  %v6290 = vsel %vm233, %v6260, 0.0
  %6291 = vadd.xlane.f32.xlu0 %v6290
  %v6292 = vpop.xlane.xlu0 %6291
  %v6293 = vsel %vm233, %v6261, 0.0
  %6294 = vadd.xlane.f32.xlu0 %v6293
  %v6295 = vpop.xlane.xlu0 %6294
  %v6296 = vsel %vm233, %v6262, 0.0
  %6297 = vadd.xlane.f32.xlu0 %v6296
  %v6298 = vpop.xlane.xlu0 %6297
  %v6299 = vsel %vm233, %v6263, 0.0
  %6300 = vadd.xlane.f32.xlu0 %v6299
  %v6301 = vpop.xlane.xlu0 %6300
  %v6302 = vsel %vm233, %v6264, 0.0
  %6303 = vadd.xlane.f32.xlu0 %v6302
  %v6304 = vpop.xlane.xlu0 %6303
  %v6305 = vsel %vm233, %v6265, 0.0
  %6306 = vadd.xlane.f32.xlu0 %v6305
  %v6307 = vpop.xlane.xlu0 %6306
  %v6308 = vsel %vm233, %v6266, 0.0
  %6309 = vadd.xlane.f32.xlu0 %v6308
  %v6310 = vpop.xlane.xlu0 %6309
  %v6311 = vsel %vm233, %v6267, 0.0
  %6312 = vadd.xlane.f32.xlu0 %v6311
  %v6313 = vpop.xlane.xlu0 %6312
  %v6314 = vsel %vm233, %v6268, 0.0
  %6315 = vadd.xlane.f32.xlu0 %v6314
  %v6316 = vpop.xlane.xlu0 %6315
  %v6317 = vmul.f32 %v6271, %v288
  %v6318 = vmul.f32 %v6274, %v288
  %v6319 = vmul.f32 %v6277, %v288
  %v6320 = vmul.f32 %v6280, %v288
  %v6321 = vmul.f32 %v6283, %v288
  %v6322 = vmul.f32 %v6286, %v288
  %v6323 = vmul.f32 %v6289, %v288
  %v6324 = vmul.f32 %v6292, %v288
  %v6325 = vmul.f32 %v6295, %v288
  %v6326 = vmul.f32 %v6298, %v288
  %v6327 = vmul.f32 %v6301, %v288
  %v6328 = vmul.f32 %v6304, %v288
  %v6329 = vmul.f32 %v6307, %v288
  %v6330 = vmul.f32 %v6310, %v288
  %v6331 = vmul.f32 %v6313, %v288
  %v6332 = vmul.f32 %v6316, %v288
  %v6333 = vadd.f32 %v6317, 1e-05
  %v6334 = vadd.f32 %v6318, 1e-05
  %v6335 = vadd.f32 %v6319, 1e-05
  %v6336 = vadd.f32 %v6320, 1e-05
  %v6337 = vadd.f32 %v6321, 1e-05
  %v6338 = vadd.f32 %v6322, 1e-05
  %v6339 = vadd.f32 %v6323, 1e-05
  %v6340 = vadd.f32 %v6324, 1e-05
  %v6341 = vadd.f32 %v6325, 1e-05
  %v6342 = vadd.f32 %v6326, 1e-05
  %v6343 = vadd.f32 %v6327, 1e-05
  %v6344 = vadd.f32 %v6328, 1e-05
  %v6345 = vadd.f32 %v6329, 1e-05
  %v6346 = vadd.f32 %v6330, 1e-05
  %v6347 = vadd.f32 %v6331, 1e-05
  %v6348 = vadd.f32 %v6332, 1e-05
  %v6349 = vrsqrt.pop %v6333
  %v6350 = vmul.f32 %v6349, %v6333
  %v6351 = vmul.f32 %v6350, %v6349
  %v6352 = vmul.f32 0.5, %v6351
  %v6353 = vsub.f32 1.5, %v6352
  %v6354 = vmul.f32 %v6349, %v6353
  %vm6355 = vweird.f32 %v6333
  %vm6356 = vweird.f32 %v6349
  %vm6357 = vmor %vm6355, %vm6356
  %v6358 = vsel %vm6357, %v6349, %v6354
  %v6359 = vrsqrt.pop %v6334
  %v6360 = vmul.f32 %v6359, %v6334
  %v6361 = vmul.f32 %v6360, %v6359
  %v6362 = vmul.f32 0.5, %v6361
  %v6363 = vsub.f32 1.5, %v6362
  %v6364 = vmul.f32 %v6359, %v6363
  %vm6365 = vweird.f32 %v6334
  %vm6366 = vweird.f32 %v6359
  %vm6367 = vmor %vm6365, %vm6366
  %v6368 = vsel %vm6367, %v6359, %v6364
  %v6369 = vrsqrt.pop %v6335
  %v6370 = vmul.f32 %v6369, %v6335
  %v6371 = vmul.f32 %v6370, %v6369
  %v6372 = vmul.f32 0.5, %v6371
  %v6373 = vsub.f32 1.5, %v6372
  %v6374 = vmul.f32 %v6369, %v6373
  %vm6375 = vweird.f32 %v6335
  %vm6376 = vweird.f32 %v6369
  %vm6377 = vmor %vm6375, %vm6376
  %v6378 = vsel %vm6377, %v6369, %v6374
  %v6379 = vrsqrt.pop %v6336
  %v6380 = vmul.f32 %v6379, %v6336
  %v6381 = vmul.f32 %v6380, %v6379
  %v6382 = vmul.f32 0.5, %v6381
  %v6383 = vsub.f32 1.5, %v6382
  %v6384 = vmul.f32 %v6379, %v6383
  %vm6385 = vweird.f32 %v6336
  %vm6386 = vweird.f32 %v6379
  %vm6387 = vmor %vm6385, %vm6386
  %v6388 = vsel %vm6387, %v6379, %v6384
  %v6389 = vrsqrt.pop %v6337
  %v6390 = vmul.f32 %v6389, %v6337
  %v6391 = vmul.f32 %v6390, %v6389
  %v6392 = vmul.f32 0.5, %v6391
  %v6393 = vsub.f32 1.5, %v6392
  %v6394 = vmul.f32 %v6389, %v6393
  %vm6395 = vweird.f32 %v6337
  %vm6396 = vweird.f32 %v6389
  %vm6397 = vmor %vm6395, %vm6396
  %v6398 = vsel %vm6397, %v6389, %v6394
  %v6399 = vrsqrt.pop %v6338
  %v6400 = vmul.f32 %v6399, %v6338
  %v6401 = vmul.f32 %v6400, %v6399
  %v6402 = vmul.f32 0.5, %v6401
  %v6403 = vsub.f32 1.5, %v6402
  %v6404 = vmul.f32 %v6399, %v6403
  %vm6405 = vweird.f32 %v6338
  %vm6406 = vweird.f32 %v6399
  %vm6407 = vmor %vm6405, %vm6406
  %v6408 = vsel %vm6407, %v6399, %v6404
  %v6409 = vrsqrt.pop %v6339
  %v6410 = vmul.f32 %v6409, %v6339
  %v6411 = vmul.f32 %v6410, %v6409
  %v6412 = vmul.f32 0.5, %v6411
  %v6413 = vsub.f32 1.5, %v6412
  %v6414 = vmul.f32 %v6409, %v6413
  %vm6415 = vweird.f32 %v6339
  %vm6416 = vweird.f32 %v6409
  %vm6417 = vmor %vm6415, %vm6416
  %v6418 = vsel %vm6417, %v6409, %v6414
  %v6419 = vrsqrt.pop %v6340
  %v6420 = vmul.f32 %v6419, %v6340
  %v6421 = vmul.f32 %v6420, %v6419
  %v6422 = vmul.f32 0.5, %v6421
  %v6423 = vsub.f32 1.5, %v6422
  %v6424 = vmul.f32 %v6419, %v6423
  %vm6425 = vweird.f32 %v6340
  %vm6426 = vweird.f32 %v6419
  %vm6427 = vmor %vm6425, %vm6426
  %v6428 = vsel %vm6427, %v6419, %v6424
  %v6429 = vrsqrt.pop %v6341
  %v6430 = vmul.f32 %v6429, %v6341
  %v6431 = vmul.f32 %v6430, %v6429
  %v6432 = vmul.f32 0.5, %v6431
  %v6433 = vsub.f32 1.5, %v6432
  %v6434 = vmul.f32 %v6429, %v6433
  %vm6435 = vweird.f32 %v6341
  %vm6436 = vweird.f32 %v6429
  %vm6437 = vmor %vm6435, %vm6436
  %v6438 = vsel %vm6437, %v6429, %v6434
  %v6439 = vrsqrt.pop %v6342
  %v6440 = vmul.f32 %v6439, %v6342
  %v6441 = vmul.f32 %v6440, %v6439
  %v6442 = vmul.f32 0.5, %v6441
  %v6443 = vsub.f32 1.5, %v6442
  %v6444 = vmul.f32 %v6439, %v6443
  %vm6445 = vweird.f32 %v6342
  %vm6446 = vweird.f32 %v6439
  %vm6447 = vmor %vm6445, %vm6446
  %v6448 = vsel %vm6447, %v6439, %v6444
  %v6449 = vrsqrt.pop %v6343
  %v6450 = vmul.f32 %v6449, %v6343
  %v6451 = vmul.f32 %v6450, %v6449
  %v6452 = vmul.f32 0.5, %v6451
  %v6453 = vsub.f32 1.5, %v6452
  %v6454 = vmul.f32 %v6449, %v6453
  %vm6455 = vweird.f32 %v6343
  %vm6456 = vweird.f32 %v6449
  %vm6457 = vmor %vm6455, %vm6456
  %v6458 = vsel %vm6457, %v6449, %v6454
  %v6459 = vrsqrt.pop %v6344
  %v6460 = vmul.f32 %v6459, %v6344
  %v6461 = vmul.f32 %v6460, %v6459
  %v6462 = vmul.f32 0.5, %v6461
  %v6463 = vsub.f32 1.5, %v6462
  %v6464 = vmul.f32 %v6459, %v6463
  %vm6465 = vweird.f32 %v6344
  %vm6466 = vweird.f32 %v6459
  %vm6467 = vmor %vm6465, %vm6466
  %v6468 = vsel %vm6467, %v6459, %v6464
  %v6469 = vrsqrt.pop %v6345
  %v6470 = vmul.f32 %v6469, %v6345
  %v6471 = vmul.f32 %v6470, %v6469
  %v6472 = vmul.f32 0.5, %v6471
  %v6473 = vsub.f32 1.5, %v6472
  %v6474 = vmul.f32 %v6469, %v6473
  %vm6475 = vweird.f32 %v6345
  %vm6476 = vweird.f32 %v6469
  %vm6477 = vmor %vm6475, %vm6476
  %v6478 = vsel %vm6477, %v6469, %v6474
  %v6479 = vrsqrt.pop %v6346
  %v6480 = vmul.f32 %v6479, %v6346
  %v6481 = vmul.f32 %v6480, %v6479
  %v6482 = vmul.f32 0.5, %v6481
  %v6483 = vsub.f32 1.5, %v6482
  %v6484 = vmul.f32 %v6479, %v6483
  %vm6485 = vweird.f32 %v6346
  %vm6486 = vweird.f32 %v6479
  %vm6487 = vmor %vm6485, %vm6486
  %v6488 = vsel %vm6487, %v6479, %v6484
  %v6489 = vrsqrt.pop %v6347
  %v6490 = vmul.f32 %v6489, %v6347
  %v6491 = vmul.f32 %v6490, %v6489
  %v6492 = vmul.f32 0.5, %v6491
  %v6493 = vsub.f32 1.5, %v6492
  %v6494 = vmul.f32 %v6489, %v6493
  %vm6495 = vweird.f32 %v6347
  %vm6496 = vweird.f32 %v6489
  %vm6497 = vmor %vm6495, %vm6496
  %v6498 = vsel %vm6497, %v6489, %v6494
  %v6499 = vrsqrt.pop %v6348
  %v6500 = vmul.f32 %v6499, %v6348
  %v6501 = vmul.f32 %v6500, %v6499
  %v6502 = vmul.f32 0.5, %v6501
  %v6503 = vsub.f32 1.5, %v6502
  %v6504 = vmul.f32 %v6499, %v6503
  %vm6505 = vweird.f32 %v6348
  %vm6506 = vweird.f32 %v6499
  %vm6507 = vmor %vm6505, %vm6506
  %v6508 = vsel %vm6507, %v6499, %v6504
  %v6509 = vmul.f32 %v6237, %v6358
  %v6510 = vmul.f32 %v6238, %v6368
  %v6511 = vmul.f32 %v6239, %v6378
  %v6512 = vmul.f32 %v6240, %v6388
  %v6513 = vmul.f32 %v6241, %v6398
  %v6514 = vmul.f32 %v6242, %v6408
  %v6515 = vmul.f32 %v6243, %v6418
  %v6516 = vmul.f32 %v6244, %v6428
  %v6517 = vmul.f32 %v6245, %v6438
  %v6518 = vmul.f32 %v6246, %v6448
  %v6519 = vmul.f32 %v6247, %v6458
  %v6520 = vmul.f32 %v6248, %v6468
  %v6521 = vmul.f32 %v6249, %v6478
  %v6522 = vmul.f32 %v6250, %v6488
  %v6523 = vmul.f32 %v6251, %v6498
  %v6524 = vmul.f32 %v6252, %v6508
  %v6525 = vmul.f32 %v6509, %v4236
  %v6526 = vmul.f32 %v6510, %v4236
  %v6527 = vmul.f32 %v6511, %v4236
  %v6528 = vmul.f32 %v6512, %v4236
  %v6529 = vmul.f32 %v6513, %v4236
  %v6530 = vmul.f32 %v6514, %v4236
  %v6531 = vmul.f32 %v6515, %v4236
  %v6532 = vmul.f32 %v6516, %v4236
  %v6533 = vmul.f32 %v6517, %v4236
  %v6534 = vmul.f32 %v6518, %v4236
  %v6535 = vmul.f32 %v6519, %v4236
  %v6536 = vmul.f32 %v6520, %v4236
  %v6537 = vmul.f32 %v6521, %v4236
  %v6538 = vmul.f32 %v6522, %v4236
  %v6539 = vmul.f32 %v6523, %v4236
  %v6540 = vmul.f32 %v6524, %v4236
  %v6541 = vadd.f32 %v6525, %v4255
  %v6542 = vadd.f32 %v6526, %v4255
  %v6543 = vadd.f32 %v6527, %v4255
  %v6544 = vadd.f32 %v6528, %v4255
  %v6545 = vadd.f32 %v6529, %v4255
  %v6546 = vadd.f32 %v6530, %v4255
  %v6547 = vadd.f32 %v6531, %v4255
  %v6548 = vadd.f32 %v6532, %v4255
  %v6549 = vadd.f32 %v6533, %v4255
  %v6550 = vadd.f32 %v6534, %v4255
  %v6551 = vadd.f32 %v6535, %v4255
  %v6552 = vadd.f32 %v6536, %v4255
  %v6553 = vadd.f32 %v6537, %v4255
  %v6554 = vadd.f32 %v6538, %v4255
  %v6555 = vadd.f32 %v6539, %v4255
  %v6556 = vadd.f32 %v6540, %v4255
  %v6557 = vld [vmem:[%s19] sm:$0xff]
  %v6558 = vld [vmem:[%s19 + $0x8] sm:$0x3f]
  %v6559 = vld [vmem:[%s20] sm:$0x1]
  %v6561 = vperm.slane %v6559, 0
  %v6564 = vsel %vm233, %v6541, 0
  %v6567 = vsel %vm233, %v6542, 0
  %v6570 = vsel %vm233, %v6543, 0
  %v6573 = vsel %vm233, %v6544, 0
  %v6576 = vsel %vm233, %v6545, 0
  %v6579 = vsel %vm233, %v6546, 0
  %v6582 = vsel %vm233, %v6547, 0
  %v6585 = vsel %vm233, %v6548, 0
  %v6588 = vsel %vm233, %v6549, 0
  %v6591 = vsel %vm233, %v6550, 0
  %v6594 = vsel %vm233, %v6551, 0
  %v6597 = vsel %vm233, %v6552, 0
  %v6600 = vsel %vm233, %v6553, 0
  %v6603 = vsel %vm233, %v6554, 0
  %v6606 = vsel %vm233, %v6555, 0
  %v6609 = vsel %vm233, %v6556, 0
  %v6612 = vsel %vm2971, %v6558, 0
  %6614 = vmatpush.msra.mxu0 0.0
  %6615 = vmatpush.msra.mxu0 0.0
  %6616 = vmatpush.msra.mxu0 0.0
  %6617 = vmatpush.msra.mxu0 0.0
  %6618 = vmatpush.msra.mxu0 0.0
  %6619 = vmatpush.msra.mxu0 0.0
  %6620 = vmatpush.msra.mxu0 0.0
  %6621 = vmatpush.msra.mxu0 0.0
  %6622 = vmatpush.msra.mxu0 0.0
  %6623 = vmatpush.msra.mxu0 0.0
  %6624 = vmatpush.msra.mxu0 0.0
  %6625 = vmatpush.msra.mxu0 0.0
  %6626 = vmatpush.msra.mxu0 0.0
  %6627 = vmatpush.msra.mxu0 0.0
  %6628 = vmatpush.msra.mxu0 %v6612
  %6629 = vmatpush.msra.mxu0 %v6557
  %6630 = vmatmul.f32.gmra.mxu0 %v6564
  %v6631 = vpop.f32.mrf.mxu0
  %v6632 = vadd.f32 %v6561, %v6631
  %6633 = vmatmul.f32.gmra.mxu0 %v6567
  %v6634 = vpop.f32.mrf.mxu0
  %v6635 = vadd.f32 %v6561, %v6634
  %6636 = vmatmul.f32.gmra.mxu0 %v6570
  %v6637 = vpop.f32.mrf.mxu0
  %v6638 = vadd.f32 %v6561, %v6637
  %6639 = vmatmul.f32.gmra.mxu0 %v6573
  %v6640 = vpop.f32.mrf.mxu0
  %v6641 = vadd.f32 %v6561, %v6640
  %6642 = vmatmul.f32.gmra.mxu0 %v6576
  %v6643 = vpop.f32.mrf.mxu0
  %v6644 = vadd.f32 %v6561, %v6643
  %6645 = vmatmul.f32.gmra.mxu0 %v6579
  %v6646 = vpop.f32.mrf.mxu0
  %v6647 = vadd.f32 %v6561, %v6646
  %6648 = vmatmul.f32.gmra.mxu0 %v6582
  %v6649 = vpop.f32.mrf.mxu0
  %v6650 = vadd.f32 %v6561, %v6649
  %6651 = vmatmul.f32.gmra.mxu0 %v6585
  %v6652 = vpop.f32.mrf.mxu0
  %v6653 = vadd.f32 %v6561, %v6652
  %6654 = vmatmul.f32.gmra.mxu0 %v6588
  %v6655 = vpop.f32.mrf.mxu0
  %v6656 = vadd.f32 %v6561, %v6655
  %6657 = vmatmul.f32.gmra.mxu0 %v6591
  %v6658 = vpop.f32.mrf.mxu0
  %v6659 = vadd.f32 %v6561, %v6658
  %6660 = vmatmul.f32.gmra.mxu0 %v6594
  %v6661 = vpop.f32.mrf.mxu0
  %v6662 = vadd.f32 %v6561, %v6661
  %6663 = vmatmul.f32.gmra.mxu0 %v6597
  %v6664 = vpop.f32.mrf.mxu0
  %v6665 = vadd.f32 %v6561, %v6664
  %6666 = vmatmul.f32.gmra.mxu0 %v6600
  %v6667 = vpop.f32.mrf.mxu0
  %v6668 = vadd.f32 %v6561, %v6667
  %6669 = vmatmul.f32.gmra.mxu0 %v6603
  %v6670 = vpop.f32.mrf.mxu0
  %v6671 = vadd.f32 %v6561, %v6670
  %6672 = vmatmul.f32.gmra.mxu0 %v6606
  %v6673 = vpop.f32.mrf.mxu0
  %v6674 = vadd.f32 %v6561, %v6673
  %6675 = vmatmul.f32.gmra.mxu0 %v6609
  %v6676 = vpop.f32.mrf.mxu0
  %v6677 = vadd.f32 %v6561, %v6676
  %6678 = vdwg.mxu0
  %v6679 = vmul.f32 %v6632, 0.5
  %v6680 = vmul.f32 %v6635, 0.5
  %v6681 = vmul.f32 %v6638, 0.5
  %v6682 = vmul.f32 %v6641, 0.5
  %v6683 = vmul.f32 %v6644, 0.5
  %v6684 = vmul.f32 %v6647, 0.5
  %v6685 = vmul.f32 %v6650, 0.5
  %v6686 = vmul.f32 %v6653, 0.5
  %v6687 = vmul.f32 %v6656, 0.5
  %v6688 = vmul.f32 %v6659, 0.5
  %v6689 = vmul.f32 %v6662, 0.5
  %v6690 = vmul.f32 %v6665, 0.5
  %v6691 = vmul.f32 %v6668, 0.5
  %v6692 = vmul.f32 %v6671, 0.5
  %v6693 = vmul.f32 %v6674, 0.5
  %v6694 = vmul.f32 %v6677, 0.5
  %v6695 = vmul.f32 %v6632, 0.70710677
  %v6696 = vmul.f32 %v6635, 0.70710677
  %v6697 = vmul.f32 %v6638, 0.70710677
  %v6698 = vmul.f32 %v6641, 0.70710677
  %v6699 = vmul.f32 %v6644, 0.70710677
  %v6700 = vmul.f32 %v6647, 0.70710677
  %v6701 = vmul.f32 %v6650, 0.70710677
  %v6702 = vmul.f32 %v6653, 0.70710677
  %v6703 = vmul.f32 %v6656, 0.70710677
  %v6704 = vmul.f32 %v6659, 0.70710677
  %v6705 = vmul.f32 %v6662, 0.70710677
  %v6706 = vmul.f32 %v6665, 0.70710677
  %v6707 = vmul.f32 %v6668, 0.70710677
  %v6708 = vmul.f32 %v6671, 0.70710677
  %v6709 = vmul.f32 %v6674, 0.70710677
  %v6710 = vmul.f32 %v6677, 0.70710677
  %v6711 = vmul.f32 %v6695, %v6695
  %v6712 = vmin.f32 16.0, %v6711
  %v6713 = vmul.f32 %v6712, 2.1237322e-06
  %v6714 = vadd.f32 %v6713, 0.00028619796
  %v6715 = vmul.f32 %v6712, %v6714
  %v6716 = vadd.f32 %v6715, 0.0036580483
  %v6717 = vmul.f32 %v6712, %v6716
  %v6718 = vadd.f32 %v6717, 0.05243302
  %v6719 = vmul.f32 %v6712, %v6718
  %v6720 = vadd.f32 %v6719, 0.18741608
  %v6721 = vmul.f32 %v6712, %v6720
  %v6722 = vadd.f32 %v6721, 1.1283791
  %v6723 = vmul.f32 %v6695, %v6722
  %v6724 = vmul.f32 %v6712, 3.8918573e-05
  %v6725 = vadd.f32 %v6724, 0.001143296
  %v6726 = vmul.f32 %v6712, %v6725
  %v6727 = vadd.f32 %v6726, 0.014752088
  %v6728 = vmul.f32 %v6712, %v6727
  %v6729 = vadd.f32 %v6728, 0.112945676
  %v6730 = vmul.f32 %v6712, %v6729
  %v6731 = vadd.f32 %v6730, 0.4994258
  %v6732 = vmul.f32 %v6712, %v6731
  %v6733 = vadd.f32 %v6732, 1.0
  %v6734 = vrcp.pop %v6733
  %v6735 = vmul.f32 %v6733, %v6734
  %v6736 = vsub.f32 1.0, %v6735
  %v6737 = vmul.f32 %v6734, %v6736
  %v6738 = vadd.f32 %v6734, %v6737
  %vm6739 = vweird.f32 %v6733
  %vm6740 = vweird.f32 %v6734
  %vm6741 = vmor %vm6739, %vm6740
  %v6742 = vsel %vm6741, %v6734, %v6738
  %v6743 = vand.u32 2147483647, %v6733
  %vm6744 = vcmp.eq.f32.partialorder %v6743, 8.507059e+37
  %v6745 = vand.u32 %v6733, 2147483648
  %v6746 = vor.u32 1.1754944e-38, %v6745
  %v6747 = vsel %vm6744, %v6746, %v6742
  %v6748 = vmul.f32 %v6723, %v6747
  %v6749 = vmin.f32 %v6748, 1.0
  %v6750 = vmax.f32 %v6749, -1.0
  %v6751 = vmul.f32 %v6696, %v6696
  %v6752 = vmin.f32 16.0, %v6751
  %v6753 = vmul.f32 %v6752, 2.1237322e-06
  %v6754 = vadd.f32 %v6753, 0.00028619796
  %v6755 = vmul.f32 %v6752, %v6754
  %v6756 = vadd.f32 %v6755, 0.0036580483
  %v6757 = vmul.f32 %v6752, %v6756
  %v6758 = vadd.f32 %v6757, 0.05243302
  %v6759 = vmul.f32 %v6752, %v6758
  %v6760 = vadd.f32 %v6759, 0.18741608
  %v6761 = vmul.f32 %v6752, %v6760
  %v6762 = vadd.f32 %v6761, 1.1283791
  %v6763 = vmul.f32 %v6696, %v6762
  %v6764 = vmul.f32 %v6752, 3.8918573e-05
  %v6765 = vadd.f32 %v6764, 0.001143296
  %v6766 = vmul.f32 %v6752, %v6765
  %v6767 = vadd.f32 %v6766, 0.014752088
  %v6768 = vmul.f32 %v6752, %v6767
  %v6769 = vadd.f32 %v6768, 0.112945676
  %v6770 = vmul.f32 %v6752, %v6769
  %v6771 = vadd.f32 %v6770, 0.4994258
  %v6772 = vmul.f32 %v6752, %v6771
  %v6773 = vadd.f32 %v6772, 1.0
  %v6774 = vrcp.pop %v6773
  %v6775 = vmul.f32 %v6773, %v6774
  %v6776 = vsub.f32 1.0, %v6775
  %v6777 = vmul.f32 %v6774, %v6776
  %v6778 = vadd.f32 %v6774, %v6777
  %vm6779 = vweird.f32 %v6773
  %vm6780 = vweird.f32 %v6774
  %vm6781 = vmor %vm6779, %vm6780
  %v6782 = vsel %vm6781, %v6774, %v6778
  %v6783 = vand.u32 2147483647, %v6773
  %vm6784 = vcmp.eq.f32.partialorder %v6783, 8.507059e+37
  %v6785 = vand.u32 %v6773, 2147483648
  %v6786 = vor.u32 1.1754944e-38, %v6785
  %v6787 = vsel %vm6784, %v6786, %v6782
  %v6788 = vmul.f32 %v6763, %v6787
  %v6789 = vmin.f32 %v6788, 1.0
  %v6790 = vmax.f32 %v6789, -1.0
  %v6791 = vmul.f32 %v6697, %v6697
  %v6792 = vmin.f32 16.0, %v6791
  %v6793 = vmul.f32 %v6792, 2.1237322e-06
  %v6794 = vadd.f32 %v6793, 0.00028619796
  %v6795 = vmul.f32 %v6792, %v6794
  %v6796 = vadd.f32 %v6795, 0.0036580483
  %v6797 = vmul.f32 %v6792, %v6796
  %v6798 = vadd.f32 %v6797, 0.05243302
  %v6799 = vmul.f32 %v6792, %v6798
  %v6800 = vadd.f32 %v6799, 0.18741608
  %v6801 = vmul.f32 %v6792, %v6800
  %v6802 = vadd.f32 %v6801, 1.1283791
  %v6803 = vmul.f32 %v6697, %v6802
  %v6804 = vmul.f32 %v6792, 3.8918573e-05
  %v6805 = vadd.f32 %v6804, 0.001143296
  %v6806 = vmul.f32 %v6792, %v6805
  %v6807 = vadd.f32 %v6806, 0.014752088
  %v6808 = vmul.f32 %v6792, %v6807
  %v6809 = vadd.f32 %v6808, 0.112945676
  %v6810 = vmul.f32 %v6792, %v6809
  %v6811 = vadd.f32 %v6810, 0.4994258
  %v6812 = vmul.f32 %v6792, %v6811
  %v6813 = vadd.f32 %v6812, 1.0
  %v6814 = vrcp.pop %v6813
  %v6815 = vmul.f32 %v6813, %v6814
  %v6816 = vsub.f32 1.0, %v6815
  %v6817 = vmul.f32 %v6814, %v6816
  %v6818 = vadd.f32 %v6814, %v6817
  %vm6819 = vweird.f32 %v6813
  %vm6820 = vweird.f32 %v6814
  %vm6821 = vmor %vm6819, %vm6820
  %v6822 = vsel %vm6821, %v6814, %v6818
  %v6823 = vand.u32 2147483647, %v6813
  %vm6824 = vcmp.eq.f32.partialorder %v6823, 8.507059e+37
  %v6825 = vand.u32 %v6813, 2147483648
  %v6826 = vor.u32 1.1754944e-38, %v6825
  %v6827 = vsel %vm6824, %v6826, %v6822
  %v6828 = vmul.f32 %v6803, %v6827
  %v6829 = vmin.f32 %v6828, 1.0
  %v6830 = vmax.f32 %v6829, -1.0
  %v6831 = vmul.f32 %v6698, %v6698
  %v6832 = vmin.f32 16.0, %v6831
  %v6833 = vmul.f32 %v6832, 2.1237322e-06
  %v6834 = vadd.f32 %v6833, 0.00028619796
  %v6835 = vmul.f32 %v6832, %v6834
  %v6836 = vadd.f32 %v6835, 0.0036580483
  %v6837 = vmul.f32 %v6832, %v6836
  %v6838 = vadd.f32 %v6837, 0.05243302
  %v6839 = vmul.f32 %v6832, %v6838
  %v6840 = vadd.f32 %v6839, 0.18741608
  %v6841 = vmul.f32 %v6832, %v6840
  %v6842 = vadd.f32 %v6841, 1.1283791
  %v6843 = vmul.f32 %v6698, %v6842
  %v6844 = vmul.f32 %v6832, 3.8918573e-05
  %v6845 = vadd.f32 %v6844, 0.001143296
  %v6846 = vmul.f32 %v6832, %v6845
  %v6847 = vadd.f32 %v6846, 0.014752088
  %v6848 = vmul.f32 %v6832, %v6847
  %v6849 = vadd.f32 %v6848, 0.112945676
  %v6850 = vmul.f32 %v6832, %v6849
  %v6851 = vadd.f32 %v6850, 0.4994258
  %v6852 = vmul.f32 %v6832, %v6851
  %v6853 = vadd.f32 %v6852, 1.0
  %v6854 = vrcp.pop %v6853
  %v6855 = vmul.f32 %v6853, %v6854
  %v6856 = vsub.f32 1.0, %v6855
  %v6857 = vmul.f32 %v6854, %v6856
  %v6858 = vadd.f32 %v6854, %v6857
  %vm6859 = vweird.f32 %v6853
  %vm6860 = vweird.f32 %v6854
  %vm6861 = vmor %vm6859, %vm6860
  %v6862 = vsel %vm6861, %v6854, %v6858
  %v6863 = vand.u32 2147483647, %v6853
  %vm6864 = vcmp.eq.f32.partialorder %v6863, 8.507059e+37
  %v6865 = vand.u32 %v6853, 2147483648
  %v6866 = vor.u32 1.1754944e-38, %v6865
  %v6867 = vsel %vm6864, %v6866, %v6862
  %v6868 = vmul.f32 %v6843, %v6867
  %v6869 = vmin.f32 %v6868, 1.0
  %v6870 = vmax.f32 %v6869, -1.0
  %v6871 = vmul.f32 %v6699, %v6699
  %v6872 = vmin.f32 16.0, %v6871
  %v6873 = vmul.f32 %v6872, 2.1237322e-06
  %v6874 = vadd.f32 %v6873, 0.00028619796
  %v6875 = vmul.f32 %v6872, %v6874
  %v6876 = vadd.f32 %v6875, 0.0036580483
  %v6877 = vmul.f32 %v6872, %v6876
  %v6878 = vadd.f32 %v6877, 0.05243302
  %v6879 = vmul.f32 %v6872, %v6878
  %v6880 = vadd.f32 %v6879, 0.18741608
  %v6881 = vmul.f32 %v6872, %v6880
  %v6882 = vadd.f32 %v6881, 1.1283791
  %v6883 = vmul.f32 %v6699, %v6882
  %v6884 = vmul.f32 %v6872, 3.8918573e-05
  %v6885 = vadd.f32 %v6884, 0.001143296
  %v6886 = vmul.f32 %v6872, %v6885
  %v6887 = vadd.f32 %v6886, 0.014752088
  %v6888 = vmul.f32 %v6872, %v6887
  %v6889 = vadd.f32 %v6888, 0.112945676
  %v6890 = vmul.f32 %v6872, %v6889
  %v6891 = vadd.f32 %v6890, 0.4994258
  %v6892 = vmul.f32 %v6872, %v6891
  %v6893 = vadd.f32 %v6892, 1.0
  %v6894 = vrcp.pop %v6893
  %v6895 = vmul.f32 %v6893, %v6894
  %v6896 = vsub.f32 1.0, %v6895
  %v6897 = vmul.f32 %v6894, %v6896
  %v6898 = vadd.f32 %v6894, %v6897
  %vm6899 = vweird.f32 %v6893
  %vm6900 = vweird.f32 %v6894
  %vm6901 = vmor %vm6899, %vm6900
  %v6902 = vsel %vm6901, %v6894, %v6898
  %v6903 = vand.u32 2147483647, %v6893
  %vm6904 = vcmp.eq.f32.partialorder %v6903, 8.507059e+37
  %v6905 = vand.u32 %v6893, 2147483648
  %v6906 = vor.u32 1.1754944e-38, %v6905
  %v6907 = vsel %vm6904, %v6906, %v6902
  %v6908 = vmul.f32 %v6883, %v6907
  %v6909 = vmin.f32 %v6908, 1.0
  %v6910 = vmax.f32 %v6909, -1.0
  %v6911 = vmul.f32 %v6700, %v6700
  %v6912 = vmin.f32 16.0, %v6911
  %v6913 = vmul.f32 %v6912, 2.1237322e-06
  %v6914 = vadd.f32 %v6913, 0.00028619796
  %v6915 = vmul.f32 %v6912, %v6914
  %v6916 = vadd.f32 %v6915, 0.0036580483
  %v6917 = vmul.f32 %v6912, %v6916
  %v6918 = vadd.f32 %v6917, 0.05243302
  %v6919 = vmul.f32 %v6912, %v6918
  %v6920 = vadd.f32 %v6919, 0.18741608
  %v6921 = vmul.f32 %v6912, %v6920
  %v6922 = vadd.f32 %v6921, 1.1283791
  %v6923 = vmul.f32 %v6700, %v6922
  %v6924 = vmul.f32 %v6912, 3.8918573e-05
  %v6925 = vadd.f32 %v6924, 0.001143296
  %v6926 = vmul.f32 %v6912, %v6925
  %v6927 = vadd.f32 %v6926, 0.014752088
  %v6928 = vmul.f32 %v6912, %v6927
  %v6929 = vadd.f32 %v6928, 0.112945676
  %v6930 = vmul.f32 %v6912, %v6929
  %v6931 = vadd.f32 %v6930, 0.4994258
  %v6932 = vmul.f32 %v6912, %v6931
  %v6933 = vadd.f32 %v6932, 1.0
  %v6934 = vrcp.pop %v6933
  %v6935 = vmul.f32 %v6933, %v6934
  %v6936 = vsub.f32 1.0, %v6935
  %v6937 = vmul.f32 %v6934, %v6936
  %v6938 = vadd.f32 %v6934, %v6937
  %vm6939 = vweird.f32 %v6933
  %vm6940 = vweird.f32 %v6934
  %vm6941 = vmor %vm6939, %vm6940
  %v6942 = vsel %vm6941, %v6934, %v6938
  %v6943 = vand.u32 2147483647, %v6933
  %vm6944 = vcmp.eq.f32.partialorder %v6943, 8.507059e+37
  %v6945 = vand.u32 %v6933, 2147483648
  %v6946 = vor.u32 1.1754944e-38, %v6945
  %v6947 = vsel %vm6944, %v6946, %v6942
  %v6948 = vmul.f32 %v6923, %v6947
  %v6949 = vmin.f32 %v6948, 1.0
  %v6950 = vmax.f32 %v6949, -1.0
  %v6951 = vmul.f32 %v6701, %v6701
  %v6952 = vmin.f32 16.0, %v6951
  %v6953 = vmul.f32 %v6952, 2.1237322e-06
  %v6954 = vadd.f32 %v6953, 0.00028619796
  %v6955 = vmul.f32 %v6952, %v6954
  %v6956 = vadd.f32 %v6955, 0.0036580483
  %v6957 = vmul.f32 %v6952, %v6956
  %v6958 = vadd.f32 %v6957, 0.05243302
  %v6959 = vmul.f32 %v6952, %v6958
  %v6960 = vadd.f32 %v6959, 0.18741608
  %v6961 = vmul.f32 %v6952, %v6960
  %v6962 = vadd.f32 %v6961, 1.1283791
  %v6963 = vmul.f32 %v6701, %v6962
  %v6964 = vmul.f32 %v6952, 3.8918573e-05
  %v6965 = vadd.f32 %v6964, 0.001143296
  %v6966 = vmul.f32 %v6952, %v6965
  %v6967 = vadd.f32 %v6966, 0.014752088
  %v6968 = vmul.f32 %v6952, %v6967
  %v6969 = vadd.f32 %v6968, 0.112945676
  %v6970 = vmul.f32 %v6952, %v6969
  %v6971 = vadd.f32 %v6970, 0.4994258
  %v6972 = vmul.f32 %v6952, %v6971
  %v6973 = vadd.f32 %v6972, 1.0
  %v6974 = vrcp.pop %v6973
  %v6975 = vmul.f32 %v6973, %v6974
  %v6976 = vsub.f32 1.0, %v6975
  %v6977 = vmul.f32 %v6974, %v6976
  %v6978 = vadd.f32 %v6974, %v6977
  %vm6979 = vweird.f32 %v6973
  %vm6980 = vweird.f32 %v6974
  %vm6981 = vmor %vm6979, %vm6980
  %v6982 = vsel %vm6981, %v6974, %v6978
  %v6983 = vand.u32 2147483647, %v6973
  %vm6984 = vcmp.eq.f32.partialorder %v6983, 8.507059e+37
  %v6985 = vand.u32 %v6973, 2147483648
  %v6986 = vor.u32 1.1754944e-38, %v6985
  %v6987 = vsel %vm6984, %v6986, %v6982
  %v6988 = vmul.f32 %v6963, %v6987
  %v6989 = vmin.f32 %v6988, 1.0
  %v6990 = vmax.f32 %v6989, -1.0
  %v6991 = vmul.f32 %v6702, %v6702
  %v6992 = vmin.f32 16.0, %v6991
  %v6993 = vmul.f32 %v6992, 2.1237322e-06
  %v6994 = vadd.f32 %v6993, 0.00028619796
  %v6995 = vmul.f32 %v6992, %v6994
  %v6996 = vadd.f32 %v6995, 0.0036580483
  %v6997 = vmul.f32 %v6992, %v6996
  %v6998 = vadd.f32 %v6997, 0.05243302
  %v6999 = vmul.f32 %v6992, %v6998
  %v7000 = vadd.f32 %v6999, 0.18741608
  %v7001 = vmul.f32 %v6992, %v7000
  %v7002 = vadd.f32 %v7001, 1.1283791
  %v7003 = vmul.f32 %v6702, %v7002
  %v7004 = vmul.f32 %v6992, 3.8918573e-05
  %v7005 = vadd.f32 %v7004, 0.001143296
  %v7006 = vmul.f32 %v6992, %v7005
  %v7007 = vadd.f32 %v7006, 0.014752088
  %v7008 = vmul.f32 %v6992, %v7007
  %v7009 = vadd.f32 %v7008, 0.112945676
  %v7010 = vmul.f32 %v6992, %v7009
  %v7011 = vadd.f32 %v7010, 0.4994258
  %v7012 = vmul.f32 %v6992, %v7011
  %v7013 = vadd.f32 %v7012, 1.0
  %v7014 = vrcp.pop %v7013
  %v7015 = vmul.f32 %v7013, %v7014
  %v7016 = vsub.f32 1.0, %v7015
  %v7017 = vmul.f32 %v7014, %v7016
  %v7018 = vadd.f32 %v7014, %v7017
  %vm7019 = vweird.f32 %v7013
  %vm7020 = vweird.f32 %v7014
  %vm7021 = vmor %vm7019, %vm7020
  %v7022 = vsel %vm7021, %v7014, %v7018
  %v7023 = vand.u32 2147483647, %v7013
  %vm7024 = vcmp.eq.f32.partialorder %v7023, 8.507059e+37
  %v7025 = vand.u32 %v7013, 2147483648
  %v7026 = vor.u32 1.1754944e-38, %v7025
  %v7027 = vsel %vm7024, %v7026, %v7022
  %v7028 = vmul.f32 %v7003, %v7027
  %v7029 = vmin.f32 %v7028, 1.0
  %v7030 = vmax.f32 %v7029, -1.0
  %v7031 = vmul.f32 %v6703, %v6703
  %v7032 = vmin.f32 16.0, %v7031
  %v7033 = vmul.f32 %v7032, 2.1237322e-06
  %v7034 = vadd.f32 %v7033, 0.00028619796
  %v7035 = vmul.f32 %v7032, %v7034
  %v7036 = vadd.f32 %v7035, 0.0036580483
  %v7037 = vmul.f32 %v7032, %v7036
  %v7038 = vadd.f32 %v7037, 0.05243302
  %v7039 = vmul.f32 %v7032, %v7038
  %v7040 = vadd.f32 %v7039, 0.18741608
  %v7041 = vmul.f32 %v7032, %v7040
  %v7042 = vadd.f32 %v7041, 1.1283791
  %v7043 = vmul.f32 %v6703, %v7042
  %v7044 = vmul.f32 %v7032, 3.8918573e-05
  %v7045 = vadd.f32 %v7044, 0.001143296
  %v7046 = vmul.f32 %v7032, %v7045
  %v7047 = vadd.f32 %v7046, 0.014752088
  %v7048 = vmul.f32 %v7032, %v7047
  %v7049 = vadd.f32 %v7048, 0.112945676
  %v7050 = vmul.f32 %v7032, %v7049
  %v7051 = vadd.f32 %v7050, 0.4994258
  %v7052 = vmul.f32 %v7032, %v7051
  %v7053 = vadd.f32 %v7052, 1.0
  %v7054 = vrcp.pop %v7053
  %v7055 = vmul.f32 %v7053, %v7054
  %v7056 = vsub.f32 1.0, %v7055
  %v7057 = vmul.f32 %v7054, %v7056
  %v7058 = vadd.f32 %v7054, %v7057
  %vm7059 = vweird.f32 %v7053
  %vm7060 = vweird.f32 %v7054
  %vm7061 = vmor %vm7059, %vm7060
  %v7062 = vsel %vm7061, %v7054, %v7058
  %v7063 = vand.u32 2147483647, %v7053
  %vm7064 = vcmp.eq.f32.partialorder %v7063, 8.507059e+37
  %v7065 = vand.u32 %v7053, 2147483648
  %v7066 = vor.u32 1.1754944e-38, %v7065
  %v7067 = vsel %vm7064, %v7066, %v7062
  %v7068 = vmul.f32 %v7043, %v7067
  %v7069 = vmin.f32 %v7068, 1.0
  %v7070 = vmax.f32 %v7069, -1.0
  %v7071 = vmul.f32 %v6704, %v6704
  %v7072 = vmin.f32 16.0, %v7071
  %v7073 = vmul.f32 %v7072, 2.1237322e-06
  %v7074 = vadd.f32 %v7073, 0.00028619796
  %v7075 = vmul.f32 %v7072, %v7074
  %v7076 = vadd.f32 %v7075, 0.0036580483
  %v7077 = vmul.f32 %v7072, %v7076
  %v7078 = vadd.f32 %v7077, 0.05243302
  %v7079 = vmul.f32 %v7072, %v7078
  %v7080 = vadd.f32 %v7079, 0.18741608
  %v7081 = vmul.f32 %v7072, %v7080
  %v7082 = vadd.f32 %v7081, 1.1283791
  %v7083 = vmul.f32 %v6704, %v7082
  %v7084 = vmul.f32 %v7072, 3.8918573e-05
  %v7085 = vadd.f32 %v7084, 0.001143296
  %v7086 = vmul.f32 %v7072, %v7085
  %v7087 = vadd.f32 %v7086, 0.014752088
  %v7088 = vmul.f32 %v7072, %v7087
  %v7089 = vadd.f32 %v7088, 0.112945676
  %v7090 = vmul.f32 %v7072, %v7089
  %v7091 = vadd.f32 %v7090, 0.4994258
  %v7092 = vmul.f32 %v7072, %v7091
  %v7093 = vadd.f32 %v7092, 1.0
  %v7094 = vrcp.pop %v7093
  %v7095 = vmul.f32 %v7093, %v7094
  %v7096 = vsub.f32 1.0, %v7095
  %v7097 = vmul.f32 %v7094, %v7096
  %v7098 = vadd.f32 %v7094, %v7097
  %vm7099 = vweird.f32 %v7093
  %vm7100 = vweird.f32 %v7094
  %vm7101 = vmor %vm7099, %vm7100
  %v7102 = vsel %vm7101, %v7094, %v7098
  %v7103 = vand.u32 2147483647, %v7093
  %vm7104 = vcmp.eq.f32.partialorder %v7103, 8.507059e+37
  %v7105 = vand.u32 %v7093, 2147483648
  %v7106 = vor.u32 1.1754944e-38, %v7105
  %v7107 = vsel %vm7104, %v7106, %v7102
  %v7108 = vmul.f32 %v7083, %v7107
  %v7109 = vmin.f32 %v7108, 1.0
  %v7110 = vmax.f32 %v7109, -1.0
  %v7111 = vmul.f32 %v6705, %v6705
  %v7112 = vmin.f32 16.0, %v7111
  %v7113 = vmul.f32 %v7112, 2.1237322e-06
  %v7114 = vadd.f32 %v7113, 0.00028619796
  %v7115 = vmul.f32 %v7112, %v7114
  %v7116 = vadd.f32 %v7115, 0.0036580483
  %v7117 = vmul.f32 %v7112, %v7116
  %v7118 = vadd.f32 %v7117, 0.05243302
  %v7119 = vmul.f32 %v7112, %v7118
  %v7120 = vadd.f32 %v7119, 0.18741608
  %v7121 = vmul.f32 %v7112, %v7120
  %v7122 = vadd.f32 %v7121, 1.1283791
  %v7123 = vmul.f32 %v6705, %v7122
  %v7124 = vmul.f32 %v7112, 3.8918573e-05
  %v7125 = vadd.f32 %v7124, 0.001143296
  %v7126 = vmul.f32 %v7112, %v7125
  %v7127 = vadd.f32 %v7126, 0.014752088
  %v7128 = vmul.f32 %v7112, %v7127
  %v7129 = vadd.f32 %v7128, 0.112945676
  %v7130 = vmul.f32 %v7112, %v7129
  %v7131 = vadd.f32 %v7130, 0.4994258
  %v7132 = vmul.f32 %v7112, %v7131
  %v7133 = vadd.f32 %v7132, 1.0
  %v7134 = vrcp.pop %v7133
  %v7135 = vmul.f32 %v7133, %v7134
  %v7136 = vsub.f32 1.0, %v7135
  %v7137 = vmul.f32 %v7134, %v7136
  %v7138 = vadd.f32 %v7134, %v7137
  %vm7139 = vweird.f32 %v7133
  %vm7140 = vweird.f32 %v7134
  %vm7141 = vmor %vm7139, %vm7140
  %v7142 = vsel %vm7141, %v7134, %v7138
  %v7143 = vand.u32 2147483647, %v7133
  %vm7144 = vcmp.eq.f32.partialorder %v7143, 8.507059e+37
  %v7145 = vand.u32 %v7133, 2147483648
  %v7146 = vor.u32 1.1754944e-38, %v7145
  %v7147 = vsel %vm7144, %v7146, %v7142
  %v7148 = vmul.f32 %v7123, %v7147
  %v7149 = vmin.f32 %v7148, 1.0
  %v7150 = vmax.f32 %v7149, -1.0
  %v7151 = vmul.f32 %v6706, %v6706
  %v7152 = vmin.f32 16.0, %v7151
  %v7153 = vmul.f32 %v7152, 2.1237322e-06
  %v7154 = vadd.f32 %v7153, 0.00028619796
  %v7155 = vmul.f32 %v7152, %v7154
  %v7156 = vadd.f32 %v7155, 0.0036580483
  %v7157 = vmul.f32 %v7152, %v7156
  %v7158 = vadd.f32 %v7157, 0.05243302
  %v7159 = vmul.f32 %v7152, %v7158
  %v7160 = vadd.f32 %v7159, 0.18741608
  %v7161 = vmul.f32 %v7152, %v7160
  %v7162 = vadd.f32 %v7161, 1.1283791
  %v7163 = vmul.f32 %v6706, %v7162
  %v7164 = vmul.f32 %v7152, 3.8918573e-05
  %v7165 = vadd.f32 %v7164, 0.001143296
  %v7166 = vmul.f32 %v7152, %v7165
  %v7167 = vadd.f32 %v7166, 0.014752088
  %v7168 = vmul.f32 %v7152, %v7167
  %v7169 = vadd.f32 %v7168, 0.112945676
  %v7170 = vmul.f32 %v7152, %v7169
  %v7171 = vadd.f32 %v7170, 0.4994258
  %v7172 = vmul.f32 %v7152, %v7171
  %v7173 = vadd.f32 %v7172, 1.0
  %v7174 = vrcp.pop %v7173
  %v7175 = vmul.f32 %v7173, %v7174
  %v7176 = vsub.f32 1.0, %v7175
  %v7177 = vmul.f32 %v7174, %v7176
  %v7178 = vadd.f32 %v7174, %v7177
  %vm7179 = vweird.f32 %v7173
  %vm7180 = vweird.f32 %v7174
  %vm7181 = vmor %vm7179, %vm7180
  %v7182 = vsel %vm7181, %v7174, %v7178
  %v7183 = vand.u32 2147483647, %v7173
  %vm7184 = vcmp.eq.f32.partialorder %v7183, 8.507059e+37
  %v7185 = vand.u32 %v7173, 2147483648
  %v7186 = vor.u32 1.1754944e-38, %v7185
  %v7187 = vsel %vm7184, %v7186, %v7182
  %v7188 = vmul.f32 %v7163, %v7187
  %v7189 = vmin.f32 %v7188, 1.0
  %v7190 = vmax.f32 %v7189, -1.0
  %v7191 = vmul.f32 %v6707, %v6707
  %v7192 = vmin.f32 16.0, %v7191
  %v7193 = vmul.f32 %v7192, 2.1237322e-06
  %v7194 = vadd.f32 %v7193, 0.00028619796
  %v7195 = vmul.f32 %v7192, %v7194
  %v7196 = vadd.f32 %v7195, 0.0036580483
  %v7197 = vmul.f32 %v7192, %v7196
  %v7198 = vadd.f32 %v7197, 0.05243302
  %v7199 = vmul.f32 %v7192, %v7198
  %v7200 = vadd.f32 %v7199, 0.18741608
  %v7201 = vmul.f32 %v7192, %v7200
  %v7202 = vadd.f32 %v7201, 1.1283791
  %v7203 = vmul.f32 %v6707, %v7202
  %v7204 = vmul.f32 %v7192, 3.8918573e-05
  %v7205 = vadd.f32 %v7204, 0.001143296
  %v7206 = vmul.f32 %v7192, %v7205
  %v7207 = vadd.f32 %v7206, 0.014752088
  %v7208 = vmul.f32 %v7192, %v7207
  %v7209 = vadd.f32 %v7208, 0.112945676
  %v7210 = vmul.f32 %v7192, %v7209
  %v7211 = vadd.f32 %v7210, 0.4994258
  %v7212 = vmul.f32 %v7192, %v7211
  %v7213 = vadd.f32 %v7212, 1.0
  %v7214 = vrcp.pop %v7213
  %v7215 = vmul.f32 %v7213, %v7214
  %v7216 = vsub.f32 1.0, %v7215
  %v7217 = vmul.f32 %v7214, %v7216
  %v7218 = vadd.f32 %v7214, %v7217
  %vm7219 = vweird.f32 %v7213
  %vm7220 = vweird.f32 %v7214
  %vm7221 = vmor %vm7219, %vm7220
  %v7222 = vsel %vm7221, %v7214, %v7218
  %v7223 = vand.u32 2147483647, %v7213
  %vm7224 = vcmp.eq.f32.partialorder %v7223, 8.507059e+37
  %v7225 = vand.u32 %v7213, 2147483648
  %v7226 = vor.u32 1.1754944e-38, %v7225
  %v7227 = vsel %vm7224, %v7226, %v7222
  %v7228 = vmul.f32 %v7203, %v7227
  %v7229 = vmin.f32 %v7228, 1.0
  %v7230 = vmax.f32 %v7229, -1.0
  %v7231 = vmul.f32 %v6708, %v6708
  %v7232 = vmin.f32 16.0, %v7231
  %v7233 = vmul.f32 %v7232, 2.1237322e-06
  %v7234 = vadd.f32 %v7233, 0.00028619796
  %v7235 = vmul.f32 %v7232, %v7234
  %v7236 = vadd.f32 %v7235, 0.0036580483
  %v7237 = vmul.f32 %v7232, %v7236
  %v7238 = vadd.f32 %v7237, 0.05243302
  %v7239 = vmul.f32 %v7232, %v7238
  %v7240 = vadd.f32 %v7239, 0.18741608
  %v7241 = vmul.f32 %v7232, %v7240
  %v7242 = vadd.f32 %v7241, 1.1283791
  %v7243 = vmul.f32 %v6708, %v7242
  %v7244 = vmul.f32 %v7232, 3.8918573e-05
  %v7245 = vadd.f32 %v7244, 0.001143296
  %v7246 = vmul.f32 %v7232, %v7245
  %v7247 = vadd.f32 %v7246, 0.014752088
  %v7248 = vmul.f32 %v7232, %v7247
  %v7249 = vadd.f32 %v7248, 0.112945676
  %v7250 = vmul.f32 %v7232, %v7249
  %v7251 = vadd.f32 %v7250, 0.4994258
  %v7252 = vmul.f32 %v7232, %v7251
  %v7253 = vadd.f32 %v7252, 1.0
  %v7254 = vrcp.pop %v7253
  %v7255 = vmul.f32 %v7253, %v7254
  %v7256 = vsub.f32 1.0, %v7255
  %v7257 = vmul.f32 %v7254, %v7256
  %v7258 = vadd.f32 %v7254, %v7257
  %vm7259 = vweird.f32 %v7253
  %vm7260 = vweird.f32 %v7254
  %vm7261 = vmor %vm7259, %vm7260
  %v7262 = vsel %vm7261, %v7254, %v7258
  %v7263 = vand.u32 2147483647, %v7253
  %vm7264 = vcmp.eq.f32.partialorder %v7263, 8.507059e+37
  %v7265 = vand.u32 %v7253, 2147483648
  %v7266 = vor.u32 1.1754944e-38, %v7265
  %v7267 = vsel %vm7264, %v7266, %v7262
  %v7268 = vmul.f32 %v7243, %v7267
  %v7269 = vmin.f32 %v7268, 1.0
  %v7270 = vmax.f32 %v7269, -1.0
  %v7271 = vmul.f32 %v6709, %v6709
  %v7272 = vmin.f32 16.0, %v7271
  %v7273 = vmul.f32 %v7272, 2.1237322e-06
  %v7274 = vadd.f32 %v7273, 0.00028619796
  %v7275 = vmul.f32 %v7272, %v7274
  %v7276 = vadd.f32 %v7275, 0.0036580483
  %v7277 = vmul.f32 %v7272, %v7276
  %v7278 = vadd.f32 %v7277, 0.05243302
  %v7279 = vmul.f32 %v7272, %v7278
  %v7280 = vadd.f32 %v7279, 0.18741608
  %v7281 = vmul.f32 %v7272, %v7280
  %v7282 = vadd.f32 %v7281, 1.1283791
  %v7283 = vmul.f32 %v6709, %v7282
  %v7284 = vmul.f32 %v7272, 3.8918573e-05
  %v7285 = vadd.f32 %v7284, 0.001143296
  %v7286 = vmul.f32 %v7272, %v7285
  %v7287 = vadd.f32 %v7286, 0.014752088
  %v7288 = vmul.f32 %v7272, %v7287
  %v7289 = vadd.f32 %v7288, 0.112945676
  %v7290 = vmul.f32 %v7272, %v7289
  %v7291 = vadd.f32 %v7290, 0.4994258
  %v7292 = vmul.f32 %v7272, %v7291
  %v7293 = vadd.f32 %v7292, 1.0
  %v7294 = vrcp.pop %v7293
  %v7295 = vmul.f32 %v7293, %v7294
  %v7296 = vsub.f32 1.0, %v7295
  %v7297 = vmul.f32 %v7294, %v7296
  %v7298 = vadd.f32 %v7294, %v7297
  %vm7299 = vweird.f32 %v7293
  %vm7300 = vweird.f32 %v7294
  %vm7301 = vmor %vm7299, %vm7300
  %v7302 = vsel %vm7301, %v7294, %v7298
  %v7303 = vand.u32 2147483647, %v7293
  %vm7304 = vcmp.eq.f32.partialorder %v7303, 8.507059e+37
  %v7305 = vand.u32 %v7293, 2147483648
  %v7306 = vor.u32 1.1754944e-38, %v7305
  %v7307 = vsel %vm7304, %v7306, %v7302
  %v7308 = vmul.f32 %v7283, %v7307
  %v7309 = vmin.f32 %v7308, 1.0
  %v7310 = vmax.f32 %v7309, -1.0
  %v7311 = vmul.f32 %v6710, %v6710
  %v7312 = vmin.f32 16.0, %v7311
  %v7313 = vmul.f32 %v7312, 2.1237322e-06
  %v7314 = vadd.f32 %v7313, 0.00028619796
  %v7315 = vmul.f32 %v7312, %v7314
  %v7316 = vadd.f32 %v7315, 0.0036580483
  %v7317 = vmul.f32 %v7312, %v7316
  %v7318 = vadd.f32 %v7317, 0.05243302
  %v7319 = vmul.f32 %v7312, %v7318
  %v7320 = vadd.f32 %v7319, 0.18741608
  %v7321 = vmul.f32 %v7312, %v7320
  %v7322 = vadd.f32 %v7321, 1.1283791
  %v7323 = vmul.f32 %v6710, %v7322
  %v7324 = vmul.f32 %v7312, 3.8918573e-05
  %v7325 = vadd.f32 %v7324, 0.001143296
  %v7326 = vmul.f32 %v7312, %v7325
  %v7327 = vadd.f32 %v7326, 0.014752088
  %v7328 = vmul.f32 %v7312, %v7327
  %v7329 = vadd.f32 %v7328, 0.112945676
  %v7330 = vmul.f32 %v7312, %v7329
  %v7331 = vadd.f32 %v7330, 0.4994258
  %v7332 = vmul.f32 %v7312, %v7331
  %v7333 = vadd.f32 %v7332, 1.0
  %v7334 = vrcp.pop %v7333
  %v7335 = vmul.f32 %v7333, %v7334
  %v7336 = vsub.f32 1.0, %v7335
  %v7337 = vmul.f32 %v7334, %v7336
  %v7338 = vadd.f32 %v7334, %v7337
  %vm7339 = vweird.f32 %v7333
  %vm7340 = vweird.f32 %v7334
  %vm7341 = vmor %vm7339, %vm7340
  %v7342 = vsel %vm7341, %v7334, %v7338
  %v7343 = vand.u32 2147483647, %v7333
  %vm7344 = vcmp.eq.f32.partialorder %v7343, 8.507059e+37
  %v7345 = vand.u32 %v7333, 2147483648
  %v7346 = vor.u32 1.1754944e-38, %v7345
  %v7347 = vsel %vm7344, %v7346, %v7342
  %v7348 = vmul.f32 %v7323, %v7347
  %v7349 = vmin.f32 %v7348, 1.0
  %v7350 = vmax.f32 %v7349, -1.0
  %v7351 = vadd.f32 %v6750, 1.0
  %v7352 = vadd.f32 %v6790, 1.0
  %v7353 = vadd.f32 %v6830, 1.0
  %v7354 = vadd.f32 %v6870, 1.0
  %v7355 = vadd.f32 %v6910, 1.0
  %v7356 = vadd.f32 %v6950, 1.0
  %v7357 = vadd.f32 %v6990, 1.0
  %v7358 = vadd.f32 %v7030, 1.0
  %v7359 = vadd.f32 %v7070, 1.0
  %v7360 = vadd.f32 %v7110, 1.0
  %v7361 = vadd.f32 %v7150, 1.0
  %v7362 = vadd.f32 %v7190, 1.0
  %v7363 = vadd.f32 %v7230, 1.0
  %v7364 = vadd.f32 %v7270, 1.0
  %v7365 = vadd.f32 %v7310, 1.0
  %v7366 = vadd.f32 %v7350, 1.0
  %v7367 = vmul.f32 %v6679, %v7351
  %v7368 = vmul.f32 %v6680, %v7352
  %v7369 = vmul.f32 %v6681, %v7353
  %v7370 = vmul.f32 %v6682, %v7354
  %v7371 = vmul.f32 %v6683, %v7355
  %v7372 = vmul.f32 %v6684, %v7356
  %v7373 = vmul.f32 %v6685, %v7357
  %v7374 = vmul.f32 %v6686, %v7358
  %v7375 = vmul.f32 %v6687, %v7359
  %v7376 = vmul.f32 %v6688, %v7360
  %v7377 = vmul.f32 %v6689, %v7361
  %v7378 = vmul.f32 %v6690, %v7362
  %v7379 = vmul.f32 %v6691, %v7363
  %v7380 = vmul.f32 %v6692, %v7364
  %v7381 = vmul.f32 %v6693, %v7365
  %v7382 = vmul.f32 %v6694, %v7366
  %v7383 = vld [vmem:[%s21] sm:$0xff]
  %v7384 = vld [vmem:[%s21 + $0x8] sm:$0xff]
  %v7385 = vld [vmem:[%s21 + $0x10] sm:$0xff]
  %v7386 = vld [vmem:[%s21 + $0x18] sm:$0xff]
  %v7387 = vld [vmem:[%s22] sm:$0x1]
  %v7389 = vperm.slane %v7387, 0
  %v7392 = vsel %vm2326, %v7367, 0
  %v7395 = vsel %vm2326, %v7368, 0
  %v7398 = vsel %vm2326, %v7369, 0
  %v7401 = vsel %vm2326, %v7370, 0
  %v7404 = vsel %vm2326, %v7371, 0
  %v7407 = vsel %vm2326, %v7372, 0
  %v7410 = vsel %vm2326, %v7373, 0
  %v7413 = vsel %vm2326, %v7374, 0
  %v7416 = vsel %vm2326, %v7375, 0
  %v7419 = vsel %vm2326, %v7376, 0
  %v7422 = vsel %vm2326, %v7377, 0
  %v7425 = vsel %vm2326, %v7378, 0
  %v7428 = vsel %vm2326, %v7379, 0
  %v7431 = vsel %vm2326, %v7380, 0
  %v7434 = vsel %vm2326, %v7381, 0
  %v7437 = vsel %vm2326, %v7382, 0
  %7439 = vmatpush.msra.mxu0 0.0
  %7440 = vmatpush.msra.mxu0 0.0
  %7441 = vmatpush.msra.mxu0 0.0
  %7442 = vmatpush.msra.mxu0 0.0
  %7443 = vmatpush.msra.mxu0 0.0
  %7444 = vmatpush.msra.mxu0 0.0
  %7445 = vmatpush.msra.mxu0 0.0
  %7446 = vmatpush.msra.mxu0 0.0
  %7447 = vmatpush.msra.mxu0 0.0
  %7448 = vmatpush.msra.mxu0 0.0
  %7449 = vmatpush.msra.mxu0 0.0
  %7450 = vmatpush.msra.mxu0 0.0
  %7451 = vmatpush.msra.mxu0 %v7386
  %7452 = vmatpush.msra.mxu0 %v7385
  %7453 = vmatpush.msra.mxu0 %v7384
  %7454 = vmatpush.msra.mxu0 %v7383
  %7455 = vmatmul.f32.gmra.mxu0 %v7392
  %v7456 = vpop.f32.mrf.mxu0
  %v7457 = vadd.f32 %v7389, %v7456
  %7458 = vmatmul.f32.gmra.mxu0 %v7395
  %v7459 = vpop.f32.mrf.mxu0
  %v7460 = vadd.f32 %v7389, %v7459
  %7461 = vmatmul.f32.gmra.mxu0 %v7398
  %v7462 = vpop.f32.mrf.mxu0
  %v7463 = vadd.f32 %v7389, %v7462
  %7464 = vmatmul.f32.gmra.mxu0 %v7401
  %v7465 = vpop.f32.mrf.mxu0
  %v7466 = vadd.f32 %v7389, %v7465
  %7467 = vmatmul.f32.gmra.mxu0 %v7404
  %v7468 = vpop.f32.mrf.mxu0
  %v7469 = vadd.f32 %v7389, %v7468
  %7470 = vmatmul.f32.gmra.mxu0 %v7407
  %v7471 = vpop.f32.mrf.mxu0
  %v7472 = vadd.f32 %v7389, %v7471
  %7473 = vmatmul.f32.gmra.mxu0 %v7410
  %v7474 = vpop.f32.mrf.mxu0
  %v7475 = vadd.f32 %v7389, %v7474
  %7476 = vmatmul.f32.gmra.mxu0 %v7413
  %v7477 = vpop.f32.mrf.mxu0
  %v7478 = vadd.f32 %v7389, %v7477
  %7479 = vmatmul.f32.gmra.mxu0 %v7416
  %v7480 = vpop.f32.mrf.mxu0
  %v7481 = vadd.f32 %v7389, %v7480
  %7482 = vmatmul.f32.gmra.mxu0 %v7419
  %v7483 = vpop.f32.mrf.mxu0
  %v7484 = vadd.f32 %v7389, %v7483
  %7485 = vmatmul.f32.gmra.mxu0 %v7422
  %v7486 = vpop.f32.mrf.mxu0
  %v7487 = vadd.f32 %v7389, %v7486
  %7488 = vmatmul.f32.gmra.mxu0 %v7425
  %v7489 = vpop.f32.mrf.mxu0
  %v7490 = vadd.f32 %v7389, %v7489
  %7491 = vmatmul.f32.gmra.mxu0 %v7428
  %v7492 = vpop.f32.mrf.mxu0
  %v7493 = vadd.f32 %v7389, %v7492
  %7494 = vmatmul.f32.gmra.mxu0 %v7431
  %v7495 = vpop.f32.mrf.mxu0
  %v7496 = vadd.f32 %v7389, %v7495
  %7497 = vmatmul.f32.gmra.mxu0 %v7434
  %v7498 = vpop.f32.mrf.mxu0
  %v7499 = vadd.f32 %v7389, %v7498
  %7500 = vmatmul.f32.gmra.mxu0 %v7437
  %v7501 = vpop.f32.mrf.mxu0
  %v7502 = vadd.f32 %v7389, %v7501
  %7503 = vdwg.mxu0
  %v7504 = vadd.f32 %v6541, %v7457
  %v7505 = vadd.f32 %v6542, %v7460
  %v7506 = vadd.f32 %v6543, %v7463
  %v7507 = vadd.f32 %v6544, %v7466
  %v7508 = vadd.f32 %v6545, %v7469
  %v7509 = vadd.f32 %v6546, %v7472
  %v7510 = vadd.f32 %v6547, %v7475
  %v7511 = vadd.f32 %v6548, %v7478
  %v7512 = vadd.f32 %v6549, %v7481
  %v7513 = vadd.f32 %v6550, %v7484
  %v7514 = vadd.f32 %v6551, %v7487
  %v7515 = vadd.f32 %v6552, %v7490
  %v7516 = vadd.f32 %v6553, %v7493
  %v7517 = vadd.f32 %v6554, %v7496
  %v7518 = vadd.f32 %v6555, %v7499
  %v7519 = vadd.f32 %v6556, %v7502
  %v7520 = vld [vmem:[%s23] sm:$0x1]
  %v7521 = vld [vmem:[%s24] sm:$0x1]
  %v7522 = vsel %vm233, %v7504, 0.0
  %7523 = vadd.xlane.f32.xlu0 %v7522
  %v7524 = vpop.xlane.xlu0 %7523
  %v7525 = vsel %vm233, %v7505, 0.0
  %7526 = vadd.xlane.f32.xlu0 %v7525
  %v7527 = vpop.xlane.xlu0 %7526
  %v7528 = vsel %vm233, %v7506, 0.0
  %7529 = vadd.xlane.f32.xlu0 %v7528
  %v7530 = vpop.xlane.xlu0 %7529
  %v7531 = vsel %vm233, %v7507, 0.0
  %7532 = vadd.xlane.f32.xlu0 %v7531
  %v7533 = vpop.xlane.xlu0 %7532
  %v7534 = vsel %vm233, %v7508, 0.0
  %7535 = vadd.xlane.f32.xlu0 %v7534
  %v7536 = vpop.xlane.xlu0 %7535
  %v7537 = vsel %vm233, %v7509, 0.0
  %7538 = vadd.xlane.f32.xlu0 %v7537
  %v7539 = vpop.xlane.xlu0 %7538
  %v7540 = vsel %vm233, %v7510, 0.0
  %7541 = vadd.xlane.f32.xlu0 %v7540
  %v7542 = vpop.xlane.xlu0 %7541
  %v7543 = vsel %vm233, %v7511, 0.0
  %7544 = vadd.xlane.f32.xlu0 %v7543
  %v7545 = vpop.xlane.xlu0 %7544
  %v7546 = vsel %vm233, %v7512, 0.0
  %7547 = vadd.xlane.f32.xlu0 %v7546
  %v7548 = vpop.xlane.xlu0 %7547
  %v7549 = vsel %vm233, %v7513, 0.0
  %7550 = vadd.xlane.f32.xlu0 %v7549
  %v7551 = vpop.xlane.xlu0 %7550
  %v7552 = vsel %vm233, %v7514, 0.0
  %7553 = vadd.xlane.f32.xlu0 %v7552
  %v7554 = vpop.xlane.xlu0 %7553
  %v7555 = vsel %vm233, %v7515, 0.0
  %7556 = vadd.xlane.f32.xlu0 %v7555
  %v7557 = vpop.xlane.xlu0 %7556
  %v7558 = vsel %vm233, %v7516, 0.0
  %7559 = vadd.xlane.f32.xlu0 %v7558
  %v7560 = vpop.xlane.xlu0 %7559
  %v7561 = vsel %vm233, %v7517, 0.0
  %7562 = vadd.xlane.f32.xlu0 %v7561
  %v7563 = vpop.xlane.xlu0 %7562
  %v7564 = vsel %vm233, %v7518, 0.0
  %7565 = vadd.xlane.f32.xlu0 %v7564
  %v7566 = vpop.xlane.xlu0 %7565
  %v7567 = vsel %vm233, %v7519, 0.0
  %7568 = vadd.xlane.f32.xlu0 %v7567
  %v7569 = vpop.xlane.xlu0 %7568
  %v7570 = vmul.f32 %v7524, %v288
  %v7571 = vmul.f32 %v7527, %v288
  %v7572 = vmul.f32 %v7530, %v288
  %v7573 = vmul.f32 %v7533, %v288
  %v7574 = vmul.f32 %v7536, %v288
  %v7575 = vmul.f32 %v7539, %v288
  %v7576 = vmul.f32 %v7542, %v288
  %v7577 = vmul.f32 %v7545, %v288
  %v7578 = vmul.f32 %v7548, %v288
  %v7579 = vmul.f32 %v7551, %v288
  %v7580 = vmul.f32 %v7554, %v288
  %v7581 = vmul.f32 %v7557, %v288
  %v7582 = vmul.f32 %v7560, %v288
  %v7583 = vmul.f32 %v7563, %v288
  %v7584 = vmul.f32 %v7566, %v288
  %v7585 = vmul.f32 %v7569, %v288
  %v7586 = vsub.f32 %v7504, %v7570
  %v7587 = vsub.f32 %v7505, %v7571
  %v7588 = vsub.f32 %v7506, %v7572
  %v7589 = vsub.f32 %v7507, %v7573
  %v7590 = vsub.f32 %v7508, %v7574
  %v7591 = vsub.f32 %v7509, %v7575
  %v7592 = vsub.f32 %v7510, %v7576
  %v7593 = vsub.f32 %v7511, %v7577
  %v7594 = vsub.f32 %v7512, %v7578
  %v7595 = vsub.f32 %v7513, %v7579
  %v7596 = vsub.f32 %v7514, %v7580
  %v7597 = vsub.f32 %v7515, %v7581
  %v7598 = vsub.f32 %v7516, %v7582
  %v7599 = vsub.f32 %v7517, %v7583
  %v7600 = vsub.f32 %v7518, %v7584
  %v7601 = vsub.f32 %v7519, %v7585
  %v7602 = vmul.f32 %v7586, %v7586
  %v7603 = vmul.f32 %v7587, %v7587
  %v7604 = vmul.f32 %v7588, %v7588
  %v7605 = vmul.f32 %v7589, %v7589
  %v7606 = vmul.f32 %v7590, %v7590
  %v7607 = vmul.f32 %v7591, %v7591
  %v7608 = vmul.f32 %v7592, %v7592
  %v7609 = vmul.f32 %v7593, %v7593
  %v7610 = vmul.f32 %v7594, %v7594
  %v7611 = vmul.f32 %v7595, %v7595
  %v7612 = vmul.f32 %v7596, %v7596
  %v7613 = vmul.f32 %v7597, %v7597
  %v7614 = vmul.f32 %v7598, %v7598
  %v7615 = vmul.f32 %v7599, %v7599
  %v7616 = vmul.f32 %v7600, %v7600
  %v7617 = vmul.f32 %v7601, %v7601
  %v7618 = vsel %vm233, %v7602, 0.0
  %7619 = vadd.xlane.f32.xlu0 %v7618
  %v7620 = vpop.xlane.xlu0 %7619
  %v7621 = vsel %vm233, %v7603, 0.0
  %7622 = vadd.xlane.f32.xlu0 %v7621
  %v7623 = vpop.xlane.xlu0 %7622
  %v7624 = vsel %vm233, %v7604, 0.0
  %7625 = vadd.xlane.f32.xlu0 %v7624
  %v7626 = vpop.xlane.xlu0 %7625
  %v7627 = vsel %vm233, %v7605, 0.0
  %7628 = vadd.xlane.f32.xlu0 %v7627
  %v7629 = vpop.xlane.xlu0 %7628
  %v7630 = vsel %vm233, %v7606, 0.0
  %7631 = vadd.xlane.f32.xlu0 %v7630
  %v7632 = vpop.xlane.xlu0 %7631
  %v7633 = vsel %vm233, %v7607, 0.0
  %7634 = vadd.xlane.f32.xlu0 %v7633
  %v7635 = vpop.xlane.xlu0 %7634
  %v7636 = vsel %vm233, %v7608, 0.0
  %7637 = vadd.xlane.f32.xlu0 %v7636
  %v7638 = vpop.xlane.xlu0 %7637
  %v7639 = vsel %vm233, %v7609, 0.0
  %7640 = vadd.xlane.f32.xlu0 %v7639
  %v7641 = vpop.xlane.xlu0 %7640
  %v7642 = vsel %vm233, %v7610, 0.0
  %7643 = vadd.xlane.f32.xlu0 %v7642
  %v7644 = vpop.xlane.xlu0 %7643
  %v7645 = vsel %vm233, %v7611, 0.0
  %7646 = vadd.xlane.f32.xlu0 %v7645
  %v7647 = vpop.xlane.xlu0 %7646
  %v7648 = vsel %vm233, %v7612, 0.0
  %7649 = vadd.xlane.f32.xlu0 %v7648
  %v7650 = vpop.xlane.xlu0 %7649
  %v7651 = vsel %vm233, %v7613, 0.0
  %7652 = vadd.xlane.f32.xlu0 %v7651
  %v7653 = vpop.xlane.xlu0 %7652
  %v7654 = vsel %vm233, %v7614, 0.0
  %7655 = vadd.xlane.f32.xlu0 %v7654
  %v7656 = vpop.xlane.xlu0 %7655
  %v7657 = vsel %vm233, %v7615, 0.0
  %7658 = vadd.xlane.f32.xlu0 %v7657
  %v7659 = vpop.xlane.xlu0 %7658
  %v7660 = vsel %vm233, %v7616, 0.0
  %7661 = vadd.xlane.f32.xlu0 %v7660
  %v7662 = vpop.xlane.xlu0 %7661
  %v7663 = vsel %vm233, %v7617, 0.0
  %7664 = vadd.xlane.f32.xlu0 %v7663
  %v7665 = vpop.xlane.xlu0 %7664
  %v7666 = vmul.f32 %v7620, %v288
  %v7667 = vmul.f32 %v7623, %v288
  %v7668 = vmul.f32 %v7626, %v288
  %v7669 = vmul.f32 %v7629, %v288
  %v7670 = vmul.f32 %v7632, %v288
  %v7671 = vmul.f32 %v7635, %v288
  %v7672 = vmul.f32 %v7638, %v288
  %v7673 = vmul.f32 %v7641, %v288
  %v7674 = vmul.f32 %v7644, %v288
  %v7675 = vmul.f32 %v7647, %v288
  %v7676 = vmul.f32 %v7650, %v288
  %v7677 = vmul.f32 %v7653, %v288
  %v7678 = vmul.f32 %v7656, %v288
  %v7679 = vmul.f32 %v7659, %v288
  %v7680 = vmul.f32 %v7662, %v288
  %v7681 = vmul.f32 %v7665, %v288
  %v7682 = vadd.f32 %v7666, 1e-05
  %v7683 = vadd.f32 %v7667, 1e-05
  %v7684 = vadd.f32 %v7668, 1e-05
  %v7685 = vadd.f32 %v7669, 1e-05
  %v7686 = vadd.f32 %v7670, 1e-05
  %v7687 = vadd.f32 %v7671, 1e-05
  %v7688 = vadd.f32 %v7672, 1e-05
  %v7689 = vadd.f32 %v7673, 1e-05
  %v7690 = vadd.f32 %v7674, 1e-05
  %v7691 = vadd.f32 %v7675, 1e-05
  %v7692 = vadd.f32 %v7676, 1e-05
  %v7693 = vadd.f32 %v7677, 1e-05
  %v7694 = vadd.f32 %v7678, 1e-05
  %v7695 = vadd.f32 %v7679, 1e-05
  %v7696 = vadd.f32 %v7680, 1e-05
  %v7697 = vadd.f32 %v7681, 1e-05
  %v7698 = vrsqrt.pop %v7682
  %v7699 = vmul.f32 %v7698, %v7682
  %v7700 = vmul.f32 %v7699, %v7698
  %v7701 = vmul.f32 0.5, %v7700
  %v7702 = vsub.f32 1.5, %v7701
  %v7703 = vmul.f32 %v7698, %v7702
  %vm7704 = vweird.f32 %v7682
  %vm7705 = vweird.f32 %v7698
  %vm7706 = vmor %vm7704, %vm7705
  %v7707 = vsel %vm7706, %v7698, %v7703
  %v7708 = vrsqrt.pop %v7683
  %v7709 = vmul.f32 %v7708, %v7683
  %v7710 = vmul.f32 %v7709, %v7708
  %v7711 = vmul.f32 0.5, %v7710
  %v7712 = vsub.f32 1.5, %v7711
  %v7713 = vmul.f32 %v7708, %v7712
  %vm7714 = vweird.f32 %v7683
  %vm7715 = vweird.f32 %v7708
  %vm7716 = vmor %vm7714, %vm7715
  %v7717 = vsel %vm7716, %v7708, %v7713
  %v7718 = vrsqrt.pop %v7684
  %v7719 = vmul.f32 %v7718, %v7684
  %v7720 = vmul.f32 %v7719, %v7718
  %v7721 = vmul.f32 0.5, %v7720
  %v7722 = vsub.f32 1.5, %v7721
  %v7723 = vmul.f32 %v7718, %v7722
  %vm7724 = vweird.f32 %v7684
  %vm7725 = vweird.f32 %v7718
  %vm7726 = vmor %vm7724, %vm7725
  %v7727 = vsel %vm7726, %v7718, %v7723
  %v7728 = vrsqrt.pop %v7685
  %v7729 = vmul.f32 %v7728, %v7685
  %v7730 = vmul.f32 %v7729, %v7728
  %v7731 = vmul.f32 0.5, %v7730
  %v7732 = vsub.f32 1.5, %v7731
  %v7733 = vmul.f32 %v7728, %v7732
  %vm7734 = vweird.f32 %v7685
  %vm7735 = vweird.f32 %v7728
  %vm7736 = vmor %vm7734, %vm7735
  %v7737 = vsel %vm7736, %v7728, %v7733
  %v7738 = vrsqrt.pop %v7686
  %v7739 = vmul.f32 %v7738, %v7686
  %v7740 = vmul.f32 %v7739, %v7738
  %v7741 = vmul.f32 0.5, %v7740
  %v7742 = vsub.f32 1.5, %v7741
  %v7743 = vmul.f32 %v7738, %v7742
  %vm7744 = vweird.f32 %v7686
  %vm7745 = vweird.f32 %v7738
  %vm7746 = vmor %vm7744, %vm7745
  %v7747 = vsel %vm7746, %v7738, %v7743
  %v7748 = vrsqrt.pop %v7687
  %v7749 = vmul.f32 %v7748, %v7687
  %v7750 = vmul.f32 %v7749, %v7748
  %v7751 = vmul.f32 0.5, %v7750
  %v7752 = vsub.f32 1.5, %v7751
  %v7753 = vmul.f32 %v7748, %v7752
  %vm7754 = vweird.f32 %v7687
  %vm7755 = vweird.f32 %v7748
  %vm7756 = vmor %vm7754, %vm7755
  %v7757 = vsel %vm7756, %v7748, %v7753
  %v7758 = vrsqrt.pop %v7688
  %v7759 = vmul.f32 %v7758, %v7688
  %v7760 = vmul.f32 %v7759, %v7758
  %v7761 = vmul.f32 0.5, %v7760
  %v7762 = vsub.f32 1.5, %v7761
  %v7763 = vmul.f32 %v7758, %v7762
  %vm7764 = vweird.f32 %v7688
  %vm7765 = vweird.f32 %v7758
  %vm7766 = vmor %vm7764, %vm7765
  %v7767 = vsel %vm7766, %v7758, %v7763
  %v7768 = vrsqrt.pop %v7689
  %v7769 = vmul.f32 %v7768, %v7689
  %v7770 = vmul.f32 %v7769, %v7768
  %v7771 = vmul.f32 0.5, %v7770
  %v7772 = vsub.f32 1.5, %v7771
  %v7773 = vmul.f32 %v7768, %v7772
  %vm7774 = vweird.f32 %v7689
  %vm7775 = vweird.f32 %v7768
  %vm7776 = vmor %vm7774, %vm7775
  %v7777 = vsel %vm7776, %v7768, %v7773
  %v7778 = vrsqrt.pop %v7690
  %v7779 = vmul.f32 %v7778, %v7690
  %v7780 = vmul.f32 %v7779, %v7778
  %v7781 = vmul.f32 0.5, %v7780
  %v7782 = vsub.f32 1.5, %v7781
  %v7783 = vmul.f32 %v7778, %v7782
  %vm7784 = vweird.f32 %v7690
  %vm7785 = vweird.f32 %v7778
  %vm7786 = vmor %vm7784, %vm7785
  %v7787 = vsel %vm7786, %v7778, %v7783
  %v7788 = vrsqrt.pop %v7691
  %v7789 = vmul.f32 %v7788, %v7691
  %v7790 = vmul.f32 %v7789, %v7788
  %v7791 = vmul.f32 0.5, %v7790
  %v7792 = vsub.f32 1.5, %v7791
  %v7793 = vmul.f32 %v7788, %v7792
  %vm7794 = vweird.f32 %v7691
  %vm7795 = vweird.f32 %v7788
  %vm7796 = vmor %vm7794, %vm7795
  %v7797 = vsel %vm7796, %v7788, %v7793
  %v7798 = vrsqrt.pop %v7692
  %v7799 = vmul.f32 %v7798, %v7692
  %v7800 = vmul.f32 %v7799, %v7798
  %v7801 = vmul.f32 0.5, %v7800
  %v7802 = vsub.f32 1.5, %v7801
  %v7803 = vmul.f32 %v7798, %v7802
  %vm7804 = vweird.f32 %v7692
  %vm7805 = vweird.f32 %v7798
  %vm7806 = vmor %vm7804, %vm7805
  %v7807 = vsel %vm7806, %v7798, %v7803
  %v7808 = vrsqrt.pop %v7693
  %v7809 = vmul.f32 %v7808, %v7693
  %v7810 = vmul.f32 %v7809, %v7808
  %v7811 = vmul.f32 0.5, %v7810
  %v7812 = vsub.f32 1.5, %v7811
  %v7813 = vmul.f32 %v7808, %v7812
  %vm7814 = vweird.f32 %v7693
  %vm7815 = vweird.f32 %v7808
  %vm7816 = vmor %vm7814, %vm7815
  %v7817 = vsel %vm7816, %v7808, %v7813
  %v7818 = vrsqrt.pop %v7694
  %v7819 = vmul.f32 %v7818, %v7694
  %v7820 = vmul.f32 %v7819, %v7818
  %v7821 = vmul.f32 0.5, %v7820
  %v7822 = vsub.f32 1.5, %v7821
  %v7823 = vmul.f32 %v7818, %v7822
  %vm7824 = vweird.f32 %v7694
  %vm7825 = vweird.f32 %v7818
  %vm7826 = vmor %vm7824, %vm7825
  %v7827 = vsel %vm7826, %v7818, %v7823
  %v7828 = vrsqrt.pop %v7695
  %v7829 = vmul.f32 %v7828, %v7695
  %v7830 = vmul.f32 %v7829, %v7828
  %v7831 = vmul.f32 0.5, %v7830
  %v7832 = vsub.f32 1.5, %v7831
  %v7833 = vmul.f32 %v7828, %v7832
  %vm7834 = vweird.f32 %v7695
  %vm7835 = vweird.f32 %v7828
  %vm7836 = vmor %vm7834, %vm7835
  %v7837 = vsel %vm7836, %v7828, %v7833
  %v7838 = vrsqrt.pop %v7696
  %v7839 = vmul.f32 %v7838, %v7696
  %v7840 = vmul.f32 %v7839, %v7838
  %v7841 = vmul.f32 0.5, %v7840
  %v7842 = vsub.f32 1.5, %v7841
  %v7843 = vmul.f32 %v7838, %v7842
  %vm7844 = vweird.f32 %v7696
  %vm7845 = vweird.f32 %v7838
  %vm7846 = vmor %vm7844, %vm7845
  %v7847 = vsel %vm7846, %v7838, %v7843
  %v7848 = vrsqrt.pop %v7697
  %v7849 = vmul.f32 %v7848, %v7697
  %v7850 = vmul.f32 %v7849, %v7848
  %v7851 = vmul.f32 0.5, %v7850
  %v7852 = vsub.f32 1.5, %v7851
  %v7853 = vmul.f32 %v7848, %v7852
  %vm7854 = vweird.f32 %v7697
  %vm7855 = vweird.f32 %v7848
  %vm7856 = vmor %vm7854, %vm7855
  %v7857 = vsel %vm7856, %v7848, %v7853
  %v7858 = vmul.f32 %v7586, %v7707
  %v7859 = vmul.f32 %v7587, %v7717
  %v7860 = vmul.f32 %v7588, %v7727
  %v7861 = vmul.f32 %v7589, %v7737
  %v7862 = vmul.f32 %v7590, %v7747
  %v7863 = vmul.f32 %v7591, %v7757
  %v7864 = vmul.f32 %v7592, %v7767
  %v7865 = vmul.f32 %v7593, %v7777
  %v7866 = vmul.f32 %v7594, %v7787
  %v7867 = vmul.f32 %v7595, %v7797
  %v7868 = vmul.f32 %v7596, %v7807
  %v7869 = vmul.f32 %v7597, %v7817
  %v7870 = vmul.f32 %v7598, %v7827
  %v7871 = vmul.f32 %v7599, %v7837
  %v7872 = vmul.f32 %v7600, %v7847
  %v7873 = vmul.f32 %v7601, %v7857
  %v7875 = vperm.slane %v7520, 0
  %v7877 = vmul.f32 %v7858, %v7875
  %v7878 = vmul.f32 %v7859, %v7875
  %v7879 = vmul.f32 %v7860, %v7875
  %v7880 = vmul.f32 %v7861, %v7875
  %v7881 = vmul.f32 %v7862, %v7875
  %v7882 = vmul.f32 %v7863, %v7875
  %v7883 = vmul.f32 %v7864, %v7875
  %v7884 = vmul.f32 %v7865, %v7875
  %v7885 = vmul.f32 %v7866, %v7875
  %v7886 = vmul.f32 %v7867, %v7875
  %v7887 = vmul.f32 %v7868, %v7875
  %v7888 = vmul.f32 %v7869, %v7875
  %v7889 = vmul.f32 %v7870, %v7875
  %v7890 = vmul.f32 %v7871, %v7875
  %v7891 = vmul.f32 %v7872, %v7875
  %v7892 = vmul.f32 %v7873, %v7875
  %v7894 = vperm.slane %v7521, 0
  %v7896 = vadd.f32 %v7877, %v7894
  %v7897 = vadd.f32 %v7878, %v7894
  %v7898 = vadd.f32 %v7879, %v7894
  %v7899 = vadd.f32 %v7880, %v7894
  %v7900 = vadd.f32 %v7881, %v7894
  %v7901 = vadd.f32 %v7882, %v7894
  %v7902 = vadd.f32 %v7883, %v7894
  %v7903 = vadd.f32 %v7884, %v7894
  %v7904 = vadd.f32 %v7885, %v7894
  %v7905 = vadd.f32 %v7886, %v7894
  %v7906 = vadd.f32 %v7887, %v7894
  %v7907 = vadd.f32 %v7888, %v7894
  %v7908 = vadd.f32 %v7889, %v7894
  %v7909 = vadd.f32 %v7890, %v7894
  %v7910 = vadd.f32 %v7891, %v7894
  %v7911 = vadd.f32 %v7892, %v7894
  %v7912 = vsel %vm233, %v7896, 0.0
  %v7913 = vsel %vm233, %v7897, 0.0
  %v7914 = vadd.f32 %v7912, %v7913
  %v7915 = vrot.slane %v7914, 4
  %v7916 = vadd.f32 %v7914, %v7915
  %v7917 = vrot.slane %v7916, 2
  %v7918 = vadd.f32 %v7916, %v7917
  %v7919 = vrot.slane %v7918, 1
  %v7920 = vadd.f32 %v7918, %v7919
  %v7921 = vsel %vm233, %v7898, 0.0
  %v7922 = vsel %vm233, %v7899, 0.0
  %v7923 = vadd.f32 %v7921, %v7922
  %v7924 = vrot.slane %v7923, 4
  %v7925 = vadd.f32 %v7923, %v7924
  %v7926 = vrot.slane %v7925, 2
  %v7927 = vadd.f32 %v7925, %v7926
  %v7928 = vrot.slane %v7927, 1
  %v7929 = vadd.f32 %v7927, %v7928
  %v7930 = vsel %vm233, %v7900, 0.0
  %v7931 = vsel %vm233, %v7901, 0.0
  %v7932 = vadd.f32 %v7930, %v7931
  %v7933 = vrot.slane %v7932, 4
  %v7934 = vadd.f32 %v7932, %v7933
  %v7935 = vrot.slane %v7934, 2
  %v7936 = vadd.f32 %v7934, %v7935
  %v7937 = vrot.slane %v7936, 1
  %v7938 = vadd.f32 %v7936, %v7937
  %v7939 = vsel %vm233, %v7902, 0.0
  %v7940 = vsel %vm233, %v7903, 0.0
  %v7941 = vadd.f32 %v7939, %v7940
  %v7942 = vrot.slane %v7941, 4
  %v7943 = vadd.f32 %v7941, %v7942
  %v7944 = vrot.slane %v7943, 2
  %v7945 = vadd.f32 %v7943, %v7944
  %v7946 = vrot.slane %v7945, 1
  %v7947 = vadd.f32 %v7945, %v7946
  %v7948 = vsel %vm233, %v7904, 0.0
  %v7949 = vsel %vm233, %v7905, 0.0
  %v7950 = vadd.f32 %v7948, %v7949
  %v7951 = vrot.slane %v7950, 4
  %v7952 = vadd.f32 %v7950, %v7951
  %v7953 = vrot.slane %v7952, 2
  %v7954 = vadd.f32 %v7952, %v7953
  %v7955 = vrot.slane %v7954, 1
  %v7956 = vadd.f32 %v7954, %v7955
  %v7957 = vsel %vm233, %v7906, 0.0
  %v7958 = vsel %vm233, %v7907, 0.0
  %v7959 = vadd.f32 %v7957, %v7958
  %v7960 = vrot.slane %v7959, 4
  %v7961 = vadd.f32 %v7959, %v7960
  %v7962 = vrot.slane %v7961, 2
  %v7963 = vadd.f32 %v7961, %v7962
  %v7964 = vrot.slane %v7963, 1
  %v7965 = vadd.f32 %v7963, %v7964
  %v7966 = vsel %vm233, %v7908, 0.0
  %v7967 = vsel %vm233, %v7909, 0.0
  %v7968 = vadd.f32 %v7966, %v7967
  %v7969 = vrot.slane %v7968, 4
  %v7970 = vadd.f32 %v7968, %v7969
  %v7971 = vrot.slane %v7970, 2
  %v7972 = vadd.f32 %v7970, %v7971
  %v7973 = vrot.slane %v7972, 1
  %v7974 = vadd.f32 %v7972, %v7973
  %v7975 = vsel %vm233, %v7910, 0.0
  %v7976 = vsel %vm233, %v7911, 0.0
  %v7977 = vadd.f32 %v7975, %v7976
  %v7978 = vrot.slane %v7977, 4
  %v7979 = vadd.f32 %v7977, %v7978
  %v7980 = vrot.slane %v7979, 2
  %v7981 = vadd.f32 %v7979, %v7980
  %v7982 = vrot.slane %v7981, 1
  %v7983 = vadd.f32 %v7981, %v7982
  %v7984 = vrcp.pop 16.0
  %v7985 = vmul.f32 16.0, %v7984
  %v7986 = vsub.f32 1.0, %v7985
  %v7987 = vmul.f32 %v7984, %v7986
  %v7988 = vadd.f32 %v7984, %v7987
  %vm7989 = vweird.f32 %v7984
  %v7990 = vsel %vm7989, %v7984, %v7988
  %v7991 = vmul.f32 %v7920, %v7990
  %v7992 = vmul.f32 %v7929, %v7990
  %v7993 = vmul.f32 %v7938, %v7990
  %v7994 = vmul.f32 %v7947, %v7990
  %v7995 = vmul.f32 %v7956, %v7990
  %v7996 = vmul.f32 %v7965, %v7990
  %v7997 = vmul.f32 %v7974, %v7990
  %v7998 = vmul.f32 %v7983, %v7990
  %v7999 = vld [vmem:[%s25] sm:$0xff]
  %v8000 = vld [vmem:[%s25 + $0x8] sm:$0x3f]
  %v8001 = vld [vmem:[%s26] sm:$0x1]
  %v8003 = vperm.slane %v8001, 0
  %vm8013 = vcmask 1041409
  %v8014 = vsel %vm8013, %v7992, %v7991
  %vm8015 = vcmask 1042434
  %v8016 = vsel %vm8015, %v7993, %v8014
  %vm8017 = vcmask 1043459
  %v8018 = vsel %vm8017, %v7994, %v8016
  %vm8019 = vcmask 1044484
  %v8020 = vsel %vm8019, %v7995, %v8018
  %vm8021 = vcmask 1045509
  %v8022 = vsel %vm8021, %v7996, %v8020
  %vm8023 = vcmask 1046534
  %v8024 = vsel %vm8023, %v7997, %v8022
  %vm8025 = vcmask 1047559
  %v8026 = vsel %vm8025, %v7998, %v8024
  %v8027 = vsel %vm233, %v8026, 0
  %v8030 = vsel %vm2971, %v8000, 0
  %8032 = vmatpush.msra.mxu0 0.0
  %8033 = vmatpush.msra.mxu0 0.0
  %8034 = vmatpush.msra.mxu0 0.0
  %8035 = vmatpush.msra.mxu0 0.0
  %8036 = vmatpush.msra.mxu0 0.0
  %8037 = vmatpush.msra.mxu0 0.0
  %8038 = vmatpush.msra.mxu0 0.0
  %8039 = vmatpush.msra.mxu0 0.0
  %8040 = vmatpush.msra.mxu0 0.0
  %8041 = vmatpush.msra.mxu0 0.0
  %8042 = vmatpush.msra.mxu0 0.0
  %8043 = vmatpush.msra.mxu0 0.0
  %8044 = vmatpush.msra.mxu0 0.0
  %8045 = vmatpush.msra.mxu0 0.0
  %8046 = vmatpush.msra.mxu0 %v8030
  %8047 = vmatpush.msra.mxu0 %v7999
  %8048 = vmatmul.f32.gmra.mxu0 %v8027
  %v8049 = vpop.f32.mrf.mxu0
  %v8050 = vadd.f32 %v8003, %v8049
  %8051 = vdwg.mxu0
  %8052 = vst [vmem:[%s27] sm:$0xff] %v8050
  // Predicated region
  $region110: #{_lambda_.1} parent=0 // pred_check
    _
  $region111: #{_lambda_.1} parent=0 // pred_check_branch
    %8054 = sbr.rel (0) target = $region113
  $region112: #{_lambda_.1} parent=0 // pred_region
    _
  $region113: #{_lambda_.1} parent=0 // pred_fallthru
    _
  // Predicated region
  $region114: #{_lambda_.1} parent=0 // pred_check
    _
  $region115: #{_lambda_.1} parent=0 // pred_check_branch
    %8056 = sbr.rel (0) target = $region117
  $region116: #{_lambda_.1} parent=0 // pred_region
    _
  $region117: #{_lambda_.1} parent=0 // pred_fallthru
    _

</llo_original>
